<compile_context>
chip_gen: v7x
topology: tpu7x:2x2x1
jax: 0.10.0
libtpu: 0.0.40
codegen_flags: <defaults>
</compile_context>

<pallas_src>
import functools

import jax
import jax.numpy as jnp
from jax.experimental import pallas as pl
from jax.experimental.pallas import tpu as pltpu


# ----------------------------------------------------------------------------
# Pallas kernels: fused matmul + bias + ReLU epilogue
# ----------------------------------------------------------------------------
def _mm_bias_relu_single_k(x_ref, w_ref, b_ref, o_ref, *, relu):
    # Whole reduction dim in one tile: accumulate on the MXU (f32), fuse the
    # bias + ReLU epilogue straight into the bf16 output store.
    y = jnp.dot(x_ref[...], w_ref[...], preferred_element_type=jnp.float32)
    y = y + b_ref[...]                      # BN scale already folded into w
    if relu:
        y = jnp.maximum(y, 0.0)
    o_ref[...] = y.astype(o_ref.dtype)


def _mm_bias_relu_multi_k(x_ref, w_ref, b_ref, o_ref, acc_ref, *, relu):
    k = pl.program_id(1)

    @pl.when(k == 0)
    def _():
        acc_ref[...] = jnp.zeros_like(acc_ref)

    acc_ref[...] += jnp.dot(x_ref[...], w_ref[...],
                            preferred_element_type=jnp.float32)

    @pl.when(k == pl.num_programs(1) - 1)
    def _():
        y = acc_ref[...] + b_ref[...]
        if relu:
            y = jnp.maximum(y, 0.0)
        o_ref[...] = y.astype(o_ref.dtype)


_VMEM_BUDGET = 40 * 1024 * 1024      # headroom under the 48 MiB scoped limit


def _pick_tk(K, cap=4608):
    """Largest K tile <= cap dividing K, lane-legal (multiple of 128 or full K)."""
    if K <= cap:
        return K
    for t in range(cap - (cap % 128), 0, -128):
        if K % t == 0:
            return t
    return K


def _pick_tm(M, tk, tn):
    """Largest M tile fitting the VMEM budget without excessive M padding."""
    for tm in (1024, 512, 256, 128):
        vmem = (2 * tm * tk * 2          # bf16 x tile, double-buffered
                + 2 * tk * tn * 2        # bf16 w tile, double-buffered
                + 2 * tm * tn * 2        # bf16 out tile, double-buffered
                + tm * tn * 4)           # f32 accumulator (multi-K path)
        if vmem <= _VMEM_BUDGET and (M >= tm or tm == 128):
            return tm
    return 128


def matmul_bias_act(x, w, bias, relu=True, out_dtype=jnp.bfloat16):
    """y = relu((x @ w) + bias); bf16 MXU inputs, f32 accumulation/epilogue."""
    M, K = x.shape
    K2, N = w.shape
    assert K == K2
    assert N % 128 == 0, "output channels must be lane-dense (multiple of 128)"

    tn = N                      # DPC: N == reduction_dim == 256 -> one lane-dense tile
    tk = _pick_tk(K)
    tm = _pick_tm(M, tk, tn)

    Mp = pl.cdiv(M, tm) * tm
    if Mp != M:
        x = jnp.pad(x, ((0, Mp - M), (0, 0)))
    x = x.astype(jnp.bfloat16)
    w = w.astype(jnp.bfloat16)
    bias = bias.astype(jnp.float32).reshape(1, N)

    n_k = K // tk
    compiler_params = pltpu.CompilerParams(
        dimension_semantics=(("parallel",) if n_k == 1
                             else ("parallel", "arbitrary")),
        vmem_limit_bytes=48 * 1024 * 1024,
    )

    if n_k == 1:
        # Fast path: whole reduction in one tile, no accumulator scratch.
        out = pl.pallas_call(
            functools.partial(_mm_bias_relu_single_k, relu=relu),
            out_shape=jax.ShapeDtypeStruct((Mp, N), out_dtype),
            grid_spec=pltpu.PrefetchScalarGridSpec(
                num_scalar_prefetch=0,
                grid=(Mp // tm,),
                in_specs=[
                    pl.BlockSpec((tm, tk), lambda i: (i, 0)),
                    # constant block index -> weights stay VMEM-resident
                    pl.BlockSpec((tk, tn), lambda i: (0, 0)),
                    pl.BlockSpec((1, tn), lambda i: (0, 0)),
                ],
                out_specs=pl.BlockSpec((tm, tn), lambda i: (i, 0)),
            ),
            compiler_params=compiler_params,
        )(x, w, bias)
    else:
        # Large-Cin path: K-tiled reduction with an f32 VMEM accumulator.
        out = pl.pallas_call(
            functools.partial(_mm_bias_relu_multi_k, relu=relu),
            out_shape=jax.ShapeDtypeStruct((Mp, N), out_dtype),
            grid_spec=pltpu.PrefetchScalarGridSpec(
                num_scalar_prefetch=0,
                grid=(Mp // tm, n_k),       # reduction (K) axis last, "arbitrary"
                in_specs=[
                    pl.BlockSpec((tm, tk), lambda i, k: (i, k)),
                    pl.BlockSpec((tk, tn), lambda i, k: (k, 0)),
                    pl.BlockSpec((1, tn), lambda i, k: (0, 0)),
                ],
                out_specs=pl.BlockSpec((tm, tn), lambda i, k: (i, 0)),
                scratch_shapes=[pltpu.VMEM((tm, tn), jnp.float32)],
            ),
            compiler_params=compiler_params,
        )(x, w, bias)

    return out[:M] if Mp != M else out


# ----------------------------------------------------------------------------
# dpc_conv: dilated 3x3 conv (no bias) + folded BN + ReLU  (NHWC)
# ----------------------------------------------------------------------------
def _im2col_3x3(x, rate):
    """x: [N,H,W,C], rate=(dh,dw), stride 1, padding==dilation -> same H,W.

    Returns patches [N,H,W, 9*C] with channel ordering (kh, kw, C)."""
    N, H, W, C = x.shape
    dh, dw = rate
    xp = jnp.pad(x, ((0, 0), (dh, dh), (dw, dw), (0, 0)))
    cols = []
    for i in range(3):
        for j in range(3):
            cols.append(xp[:, i * dh:i * dh + H, j * dw:j * dw + W, :])
    return jnp.concatenate(cols, axis=-1)


def dpc_conv_apply(x, p, rate):
    """x: NHWC (bf16) -> NHWC (bf16), one DPC branch."""
    N, H, W, C = x.shape
    patches = _im2col_3x3(x, rate).reshape(N * H * W, 9 * C)
    y = matmul_bias_act(patches, p["w"], p["b"], relu=True)
    return y.reshape(N, H, W, -1)


# ----------------------------------------------------------------------------
# Deterministic parameter construction (weights + inference-folded BN)
# ----------------------------------------------------------------------------
DPC_RATES = [(1, 6), (18, 15), (6, 21), (1, 1), (6, 3)]


class ParamGen:
    def __init__(self, key):
        self.key = key
        self.i = 0

    def _next(self):
        self.i += 1
        return jax.random.fold_in(self.key, self.i)

    def dpc_conv(self, cin, cout, eps=1e-5):
        std = (2.0 / (9 * cin)) ** 0.5
        w = std * jax.random.normal(self._next(), (3, 3, cin, cout), jnp.float32)
        gamma = 1.0 + 0.1 * jax.random.normal(self._next(), (cout,), jnp.float32)
        beta = 0.1 * jax.random.normal(self._next(), (cout,), jnp.float32)
        mean = 0.1 * jax.random.normal(self._next(), (cout,), jnp.float32)
        var = 1.0 + 0.1 * jnp.abs(jax.random.normal(self._next(), (cout,), jnp.float32))
        scale = gamma / jnp.sqrt(var + eps)           # f32 fold
        bias = beta - mean * scale                    # f32 bias kept in kernel
        w_fold = (w * scale).astype(jnp.bfloat16)     # fold BN scale into weights
        return {"w": w_fold.reshape(9 * cin, cout), "b": bias.reshape(1, cout)}


def make_dpc_params(key, in_dim, reduction_dim=256, output_stride=16,
                    separable=False):
    if separable:
        # TODO(synk): separable=True (grouped/depthwise 3x3) path not implemented.
        raise NotImplementedError("separable DPC branch not implemented")
    if output_stride == 8:
        rates = [(2 * r[0], 2 * r[1]) for r in DPC_RATES]
    elif output_stride == 16:
        rates = list(DPC_RATES)
    else:
        raise KeyError("[*] Output stride of {} not supported.".format(output_stride))
    pg = ParamGen(key)
    params = {
        "a": pg.dpc_conv(in_dim, reduction_dim),
        "b": pg.dpc_conv(reduction_dim, reduction_dim),
        "c": pg.dpc_conv(reduction_dim, reduction_dim),
        "d": pg.dpc_conv(reduction_dim, reduction_dim),
        "e": pg.dpc_conv(reduction_dim, reduction_dim),
    }
    return params, rates


# ----------------------------------------------------------------------------
# Forward pass (matches DPC.forward)
# ----------------------------------------------------------------------------
def dpc_forward(x_nchw, params, rates):
    # NCHW (PyTorch) -> NHWC (kernel layout), activations flow in bf16
    x = jnp.transpose(x_nchw, (0, 2, 3, 1)).astype(jnp.bfloat16)

    a = dpc_conv_apply(x, params["a"], rates[0])
    b = dpc_conv_apply(a, params["b"], rates[1])
    c = dpc_conv_apply(a, params["c"], rates[2])
    d = dpc_conv_apply(a, params["d"], rates[3])
    e = dpc_conv_apply(b, params["e"], rates[4])

    out = jnp.concatenate([a, b, c, d, e], axis=-1)
    # TODO(synk): train-mode nn.Dropout(p=0.1) not implemented (self.dropout
    # defaults to False and eval-mode dropout is the identity anyway).
    return jnp.transpose(out, (0, 3, 1, 2)).astype(jnp.float32)


# ----------------------------------------------------------------------------
if __name__ == "__main__":
    key = jax.random.PRNGKey(0)
    in_dim, reduction_dim = 64, 256
    params, rates = make_dpc_params(key, in_dim, reduction_dim, output_stride=16)

    # small NCHW input, consistent with the PyTorch conv layout
    x = jax.random.normal(jax.random.fold_in(key, 999),
                          (2, in_dim, 16, 16), jnp.float32)

    fwd = jax.jit(functools.partial(dpc_forward, rates=rates))
    out = fwd(x, params)
    jax.block_until_ready(out)

    assert out.shape == (2, 5 * reduction_dim, 16, 16), out.shape
    assert bool(jnp.all(jnp.isfinite(out)))
    print("KERNEL_OK")
</pallas_src>

<mosaic_0001>
module attributes {stable_mosaic.version = 11 : i64} {
  func.func @_mm_bias_relu_single_k(%arg0: i32, %arg1: memref<512x576xbf16, #tpu.memory_space<vmem>>, %arg2: memref<576x256xbf16, #tpu.memory_space<vmem>>, %arg3: memref<1x256xf32, #tpu.memory_space<vmem>>, %arg4: memref<512x256xbf16, #tpu.memory_space<vmem>>) attributes {dimension_semantics = [#tpu.dimension_semantics<parallel>], iteration_bounds = array<i64: 1>, scalar_prefetch = 0 : i64, scratch_operands = 0 : i64, tpu.core_type = #tpu.core_type<tc>, window_params = [{transform_indices = @transform_0, window_bounds = array<i64: 512, 576>}, {pipeline_mode = #tpu.pipeline_mode<synchronous>, transform_indices = @transform_1, window_bounds = array<i64: 576, 256>}, {pipeline_mode = #tpu.pipeline_mode<synchronous>, transform_indices = @transform_2, window_bounds = array<i64: 1, 256>}, {transform_indices = @transform_3, window_bounds = array<i64: 512, 256>}]} {
    %c0 = arith.constant 0 : index
    %c0_0 = arith.constant 0 : index
    %0 = vector.load %arg1[%c0, %c0_0] : memref<512x576xbf16, #tpu.memory_space<vmem>>, vector<512x576xbf16>
    %c0_1 = arith.constant 0 : index
    %c0_2 = arith.constant 0 : index
    %1 = vector.load %arg2[%c0_1, %c0_2] : memref<576x256xbf16, #tpu.memory_space<vmem>>, vector<576x256xbf16>
    %cst = arith.constant dense<0.000000e+00> : vector<512x256xf32>
    %2 = tpu.matmul %0, %1, %cst {dimension_numbers = #tpu.dot_dimension_numbers<[1], [0], [0], [1], [0, 0, 1, 1], [], []>} : vector<512x576xbf16>, vector<576x256xbf16>, vector<512x256xf32> -> vector<512x256xf32>
    %c0_3 = arith.constant 0 : index
    %c0_4 = arith.constant 0 : index
    %3 = vector.load %arg3[%c0_3, %c0_4] : memref<1x256xf32, #tpu.memory_space<vmem>>, vector<1x256xf32>
    %4 = vector.broadcast %3 : vector<1x256xf32> to vector<512x256xf32>
    %5 = arith.addf %2, %4 : vector<512x256xf32>
    %cst_5 = arith.constant 0.000000e+00 : f32
    %6 = vector.broadcast %cst_5 : f32 to vector<512x256xf32>
    %7 = arith.maximumf %5, %6 : vector<512x256xf32>
    %8 = arith.truncf %7 : vector<512x256xf32> to vector<512x256xbf16>
    %c0_6 = arith.constant 0 : index
    %c0_7 = arith.constant 0 : index
    %9 = vector.load %arg4[%c0_6, %c0_7] : memref<512x256xbf16, #tpu.memory_space<vmem>>, vector<512x256xbf16>
    tpu.vector_store %arg4[%c0_6, %c0_7], %8 {strides = array<i32>} : memref<512x256xbf16, #tpu.memory_space<vmem>>, vector<512x256xbf16>,
    return
  }
  func.func @transform_0(%arg0: i32) -> (i32, i32) {
    %c0_i32 = arith.constant 0 : i32
    %c0_i32_0 = arith.constant 0 : i32
    return %arg0, %c0_i32 : i32, i32
  }
  func.func @transform_1(%arg0: i32) -> (i32, i32) {
    %c0_i32 = arith.constant 0 : i32
    %c0_i32_0 = arith.constant 0 : i32
    %c0_i32_1 = arith.constant 0 : i32
    return %c0_i32, %c0_i32_0 : i32, i32
  }
  func.func @transform_2(%arg0: i32) -> (i32, i32) {
    %c0_i32 = arith.constant 0 : i32
    %c0_i32_0 = arith.constant 0 : i32
    %c0_i32_1 = arith.constant 0 : i32
    return %c0_i32, %c0_i32_0 : i32, i32
  }
  func.func @transform_3(%arg0: i32) -> (i32, i32) {
    %c0_i32 = arith.constant 0 : i32
    %c0_i32_0 = arith.constant 0 : i32
    return %arg0, %c0_i32 : i32, i32
  }
}

module attributes {stable_mosaic.version = 11 : i64} {
  func.func @_mm_bias_relu_single_k(%arg0: i32, %arg1: memref<512x2304xbf16, #tpu.memory_space<vmem>>, %arg2: memref<2304x256xbf16, #tpu.memory_space<vmem>>, %arg3: memref<1x256xf32, #tpu.memory_space<vmem>>, %arg4: memref<512x256xbf16, #tpu.memory_space<vmem>>) attributes {dimension_semantics = [#tpu.dimension_semantics<parallel>], iteration_bounds = array<i64: 1>, scalar_prefetch = 0 : i64, scratch_operands = 0 : i64, tpu.core_type = #tpu.core_type<tc>, window_params = [{transform_indices = @transform_0, window_bounds = array<i64: 512, 2304>}, {pipeline_mode = #tpu.pipeline_mode<synchronous>, transform_indices = @transform_1, window_bounds = array<i64: 2304, 256>}, {pipeline_mode = #tpu.pipeline_mode<synchronous>, transform_indices = @transform_2, window_bounds = array<i64: 1, 256>}, {transform_indices = @transform_3, window_bounds = array<i64: 512, 256>}]} {
    %c0 = arith.constant 0 : index
    %c0_0 = arith.constant 0 : index
    %0 = vector.load %arg1[%c0, %c0_0] : memref<512x2304xbf16, #tpu.memory_space<vmem>>, vector<512x2304xbf16>
    %c0_1 = arith.constant 0 : index
    %c0_2 = arith.constant 0 : index
    %1 = vector.load %arg2[%c0_1, %c0_2] : memref<2304x256xbf16, #tpu.memory_space<vmem>>, vector<2304x256xbf16>
    %cst = arith.constant dense<0.000000e+00> : vector<512x256xf32>
    %2 = tpu.matmul %0, %1, %cst {dimension_numbers = #tpu.dot_dimension_numbers<[1], [0], [0], [1], [0, 0, 1, 1], [], []>} : vector<512x2304xbf16>, vector<2304x256xbf16>, vector<512x256xf32> -> vector<512x256xf32>
    %c0_3 = arith.constant 0 : index
    %c0_4 = arith.constant 0 : index
    %3 = vector.load %arg3[%c0_3, %c0_4] : memref<1x256xf32, #tpu.memory_space<vmem>>, vector<1x256xf32>
    %4 = vector.broadcast %3 : vector<1x256xf32> to vector<512x256xf32>
    %5 = arith.addf %2, %4 : vector<512x256xf32>
    %cst_5 = arith.constant 0.000000e+00 : f32
    %6 = vector.broadcast %cst_5 : f32 to vector<512x256xf32>
    %7 = arith.maximumf %5, %6 : vector<512x256xf32>
    %8 = arith.truncf %7 : vector<512x256xf32> to vector<512x256xbf16>
    %c0_6 = arith.constant 0 : index
    %c0_7 = arith.constant 0 : index
    %9 = vector.load %arg4[%c0_6, %c0_7] : memref<512x256xbf16, #tpu.memory_space<vmem>>, vector<512x256xbf16>
    tpu.vector_store %arg4[%c0_6, %c0_7], %8 {strides = array<i32>} : memref<512x256xbf16, #tpu.memory_space<vmem>>, vector<512x256xbf16>,
    return
  }
  func.func @transform_0(%arg0: i32) -> (i32, i32) {
    %c0_i32 = arith.constant 0 : i32
    %c0_i32_0 = arith.constant 0 : i32
    return %arg0, %c0_i32 : i32, i32
  }
  func.func @transform_1(%arg0: i32) -> (i32, i32) {
    %c0_i32 = arith.constant 0 : i32
    %c0_i32_0 = arith.constant 0 : i32
    %c0_i32_1 = arith.constant 0 : i32
    return %c0_i32, %c0_i32_0 : i32, i32
  }
  func.func @transform_2(%arg0: i32) -> (i32, i32) {
    %c0_i32 = arith.constant 0 : i32
    %c0_i32_0 = arith.constant 0 : i32
    %c0_i32_1 = arith.constant 0 : i32
    return %c0_i32, %c0_i32_0 : i32, i32
  }
  func.func @transform_3(%arg0: i32) -> (i32, i32) {
    %c0_i32 = arith.constant 0 : i32
    %c0_i32_0 = arith.constant 0 : i32
    return %arg0, %c0_i32 : i32, i32
  }
}

</mosaic_0001>

<llo_original>
// kernel: dpc_forward.5
$region0: #{dpc_forward.5}
  #allocation0 [shape = 'u32[]', space=smem, size = 0x4, offset = 0x4, fixed_abs, tag = 'smem constant byte address 0x4 - core index']
  #allocation1 [shape = 'u32[144,128]{1,0:T(1,128)}', space=vmem, size = 0x12000, scoped, tag = 'internal scratch']
  %s0 = inlined_call_operand.vmem [shape: bf16[512,576], index: 0, kind: input, shape index: {}]
  %s1 = inlined_call_operand.vmem [shape: bf16[576,256], index: 1, kind: input, shape index: {}]
  %s2 = inlined_call_operand.vmem [shape: f32[1,256], index: 2, kind: input, shape index: {}]
  %s3 = inlined_call_operand.vmem [shape: bf16[512,256], index: 3, kind: output, shape index: {}]
  %s4 = sld [smem:[#allocation0]]
  $region22: #{dpc_forward.5} parent=0
    _
  %s6 = ssub.s32 1, %s4
  %s7 = scalar_select 0, %s6, %s4
  // Predicated region
  $region2: #{dpc_forward.5} parent=0 // pred_check
    _
  $region3: #{dpc_forward.5} parent=0 // pred_check_branch
    %9 = sbr.rel (0) target = $region5
  $region4: #{dpc_forward.5} parent=0 // pred_region
    _
  $region5: #{dpc_forward.5} parent=0 // pred_fallthru
    _
  // Predicated region
  $region6: #{dpc_forward.5} parent=0 // pred_check
    _
  $region7: #{dpc_forward.5} parent=0 // pred_check_branch
    %11 = sbr.rel (0) target = $region9
  $region8: #{dpc_forward.5} parent=0 // pred_region
    _
  $region9: #{dpc_forward.5} parent=0 // pred_fallthru
    _
  // Predicated region
  $region10: #{dpc_forward.5} parent=0 // pred_check
    _
  $region11: #{dpc_forward.5} parent=0 // pred_check_branch
    %13 = sbr.rel (0) target = $region13
  $region12: #{dpc_forward.5} parent=0 // pred_region
    _
  $region13: #{dpc_forward.5} parent=0 // pred_fallthru
    _
  %v15 = vld [vmem:[%s0] sm:$0xff]
  %v16 = vld [vmem:[%s0 + $0x8] sm:$0xff]
  %v17 = vld [vmem:[%s0 + $0x10] sm:$0xf]
  %v18 = vld [vmem:[%s0 + $0x14] sm:$0xff]
  %v19 = vld [vmem:[%s0 + $0x1c] sm:$0xff]
  %v20 = vld [vmem:[%s0 + $0x24] sm:$0xf]
  %v21 = vld [vmem:[%s0 + $0x28] sm:$0xff]
  %v22 = vld [vmem:[%s0 + $0x30] sm:$0xff]
  %v23 = vld [vmem:[%s0 + $0x38] sm:$0xf]
  %v24 = vld [vmem:[%s0 + $0x3c] sm:$0xff]
  %v25 = vld [vmem:[%s0 + $0x44] sm:$0xff]
  %v26 = vld [vmem:[%s0 + $0x4c] sm:$0xf]
  %v27 = vld [vmem:[%s0 + $0x50] sm:$0xff]
  %v28 = vld [vmem:[%s0 + $0x58] sm:$0xff]
  %v29 = vld [vmem:[%s0 + $0x60] sm:$0xf]
  %v30 = vld [vmem:[%s0 + $0x64] sm:$0xff]
  %v31 = vld [vmem:[%s0 + $0x6c] sm:$0xff]
  %v32 = vld [vmem:[%s0 + $0x74] sm:$0xf]
  %v33 = vld [vmem:[%s0 + $0x78] sm:$0xff]
  %v34 = vld [vmem:[%s0 + $0x80] sm:$0xff]
  %v35 = vld [vmem:[%s0 + $0x88] sm:$0xf]
  %v36 = vld [vmem:[%s0 + $0x8c] sm:$0xff]
  %v37 = vld [vmem:[%s0 + $0x94] sm:$0xff]
  %v38 = vld [vmem:[%s0 + $0x9c] sm:$0xf]
  %v39 = vld [vmem:[%s0 + $0xa0] sm:$0xff]
  %v40 = vld [vmem:[%s0 + $0xa8] sm:$0xff]
  %v41 = vld [vmem:[%s0 + $0xb0] sm:$0xf]
  %v42 = vld [vmem:[%s0 + $0xb4] sm:$0xff]
  %v43 = vld [vmem:[%s0 + $0xbc] sm:$0xff]
  %v44 = vld [vmem:[%s0 + $0xc4] sm:$0xf]
  %v45 = vld [vmem:[%s0 + $0xc8] sm:$0xff]
  %v46 = vld [vmem:[%s0 + $0xd0] sm:$0xff]
  %v47 = vld [vmem:[%s0 + $0xd8] sm:$0xf]
  %v48 = vld [vmem:[%s0 + $0xdc] sm:$0xff]
  %v49 = vld [vmem:[%s0 + $0xe4] sm:$0xff]
  %v50 = vld [vmem:[%s0 + $0xec] sm:$0xf]
  %v51 = vld [vmem:[%s0 + $0xf0] sm:$0xff]
  %v52 = vld [vmem:[%s0 + $0xf8] sm:$0xff]
  %v53 = vld [vmem:[%s0 + $0x100] sm:$0xf]
  %v54 = vld [vmem:[%s0 + $0x104] sm:$0xff]
  %v55 = vld [vmem:[%s0 + $0x10c] sm:$0xff]
  %v56 = vld [vmem:[%s0 + $0x114] sm:$0xf]
  %v57 = vld [vmem:[%s0 + $0x118] sm:$0xff]
  %v58 = vld [vmem:[%s0 + $0x120] sm:$0xff]
  %v59 = vld [vmem:[%s0 + $0x128] sm:$0xf]
  %v60 = vld [vmem:[%s0 + $0x12c] sm:$0xff]
  %v61 = vld [vmem:[%s0 + $0x134] sm:$0xff]
  %v62 = vld [vmem:[%s0 + $0x13c] sm:$0xf]
  %v63 = vld [vmem:[%s0 + $0x140] sm:$0xff]
  %v64 = vld [vmem:[%s0 + $0x148] sm:$0xff]
  %v65 = vld [vmem:[%s0 + $0x150] sm:$0xf]
  %v66 = vld [vmem:[%s0 + $0x154] sm:$0xff]
  %v67 = vld [vmem:[%s0 + $0x15c] sm:$0xff]
  %v68 = vld [vmem:[%s0 + $0x164] sm:$0xf]
  %v69 = vld [vmem:[%s0 + $0x168] sm:$0xff]
  %v70 = vld [vmem:[%s0 + $0x170] sm:$0xff]
  %v71 = vld [vmem:[%s0 + $0x178] sm:$0xf]
  %v72 = vld [vmem:[%s0 + $0x17c] sm:$0xff]
  %v73 = vld [vmem:[%s0 + $0x184] sm:$0xff]
  %v74 = vld [vmem:[%s0 + $0x18c] sm:$0xf]
  %v75 = vld [vmem:[%s0 + $0x190] sm:$0xff]
  %v76 = vld [vmem:[%s0 + $0x198] sm:$0xff]
  %v77 = vld [vmem:[%s0 + $0x1a0] sm:$0xf]
  %v78 = vld [vmem:[%s0 + $0x1a4] sm:$0xff]
  %v79 = vld [vmem:[%s0 + $0x1ac] sm:$0xff]
  %v80 = vld [vmem:[%s0 + $0x1b4] sm:$0xf]
  %v81 = vld [vmem:[%s0 + $0x1b8] sm:$0xff]
  %v82 = vld [vmem:[%s0 + $0x1c0] sm:$0xff]
  %v83 = vld [vmem:[%s0 + $0x1c8] sm:$0xf]
  %v84 = vld [vmem:[%s0 + $0x1cc] sm:$0xff]
  %v85 = vld [vmem:[%s0 + $0x1d4] sm:$0xff]
  %v86 = vld [vmem:[%s0 + $0x1dc] sm:$0xf]
  %v87 = vld [vmem:[%s0 + $0x1e0] sm:$0xff]
  %v88 = vld [vmem:[%s0 + $0x1e8] sm:$0xff]
  %v89 = vld [vmem:[%s0 + $0x1f0] sm:$0xf]
  %v90 = vld [vmem:[%s0 + $0x1f4] sm:$0xff]
  %v91 = vld [vmem:[%s0 + $0x1fc] sm:$0xff]
  %v92 = vld [vmem:[%s0 + $0x204] sm:$0xf]
  %v93 = vld [vmem:[%s0 + $0x208] sm:$0xff]
  %v94 = vld [vmem:[%s0 + $0x210] sm:$0xff]
  %v95 = vld [vmem:[%s0 + $0x218] sm:$0xf]
  %v96 = vld [vmem:[%s0 + $0x21c] sm:$0xff]
  %v97 = vld [vmem:[%s0 + $0x224] sm:$0xff]
  %v98 = vld [vmem:[%s0 + $0x22c] sm:$0xf]
  %v99 = vld [vmem:[%s0 + $0x230] sm:$0xff]
  %v100 = vld [vmem:[%s0 + $0x238] sm:$0xff]
  %v101 = vld [vmem:[%s0 + $0x240] sm:$0xf]
  %v102 = vld [vmem:[%s0 + $0x244] sm:$0xff]
  %v103 = vld [vmem:[%s0 + $0x24c] sm:$0xff]
  %v104 = vld [vmem:[%s0 + $0x254] sm:$0xf]
  %v105 = vld [vmem:[%s0 + $0x258] sm:$0xff]
  %v106 = vld [vmem:[%s0 + $0x260] sm:$0xff]
  %v107 = vld [vmem:[%s0 + $0x268] sm:$0xf]
  %v108 = vld [vmem:[%s0 + $0x26c] sm:$0xff]
  %v109 = vld [vmem:[%s0 + $0x274] sm:$0xff]
  %v110 = vld [vmem:[%s0 + $0x27c] sm:$0xf]
  %v111 = vld [vmem:[%s0 + $0x280] sm:$0xff]
  %v112 = vld [vmem:[%s0 + $0x288] sm:$0xff]
  %v113 = vld [vmem:[%s0 + $0x290] sm:$0xf]
  %v114 = vld [vmem:[%s0 + $0x294] sm:$0xff]
  %v115 = vld [vmem:[%s0 + $0x29c] sm:$0xff]
  %v116 = vld [vmem:[%s0 + $0x2a4] sm:$0xf]
  %v117 = vld [vmem:[%s0 + $0x2a8] sm:$0xff]
  %v118 = vld [vmem:[%s0 + $0x2b0] sm:$0xff]
  %v119 = vld [vmem:[%s0 + $0x2b8] sm:$0xf]
  %v120 = vld [vmem:[%s0 + $0x2bc] sm:$0xff]
  %v121 = vld [vmem:[%s0 + $0x2c4] sm:$0xff]
  %v122 = vld [vmem:[%s0 + $0x2cc] sm:$0xf]
  %v123 = vld [vmem:[%s0 + $0x2d0] sm:$0xff]
  %v124 = vld [vmem:[%s0 + $0x2d8] sm:$0xff]
  %v125 = vld [vmem:[%s0 + $0x2e0] sm:$0xf]
  %v126 = vld [vmem:[%s0 + $0x2e4] sm:$0xff]
  %v127 = vld [vmem:[%s0 + $0x2ec] sm:$0xff]
  %v128 = vld [vmem:[%s0 + $0x2f4] sm:$0xf]
  %v129 = vld [vmem:[%s0 + $0x2f8] sm:$0xff]
  %v130 = vld [vmem:[%s0 + $0x300] sm:$0xff]
  %v131 = vld [vmem:[%s0 + $0x308] sm:$0xf]
  %v132 = vld [vmem:[%s0 + $0x30c] sm:$0xff]
  %v133 = vld [vmem:[%s0 + $0x314] sm:$0xff]
  %v134 = vld [vmem:[%s0 + $0x31c] sm:$0xf]
  %v135 = vld [vmem:[%s0 + $0x320] sm:$0xff]
  %v136 = vld [vmem:[%s0 + $0x328] sm:$0xff]
  %v137 = vld [vmem:[%s0 + $0x330] sm:$0xf]
  %v138 = vld [vmem:[%s0 + $0x334] sm:$0xff]
  %v139 = vld [vmem:[%s0 + $0x33c] sm:$0xff]
  %v140 = vld [vmem:[%s0 + $0x344] sm:$0xf]
  %v141 = vld [vmem:[%s0 + $0x348] sm:$0xff]
  %v142 = vld [vmem:[%s0 + $0x350] sm:$0xff]
  %v143 = vld [vmem:[%s0 + $0x358] sm:$0xf]
  %v144 = vld [vmem:[%s0 + $0x35c] sm:$0xff]
  %v145 = vld [vmem:[%s0 + $0x364] sm:$0xff]
  %v146 = vld [vmem:[%s0 + $0x36c] sm:$0xf]
  %v147 = vld [vmem:[%s0 + $0x370] sm:$0xff]
  %v148 = vld [vmem:[%s0 + $0x378] sm:$0xff]
  %v149 = vld [vmem:[%s0 + $0x380] sm:$0xf]
  %v150 = vld [vmem:[%s0 + $0x384] sm:$0xff]
  %v151 = vld [vmem:[%s0 + $0x38c] sm:$0xff]
  %v152 = vld [vmem:[%s0 + $0x394] sm:$0xf]
  %v153 = vld [vmem:[%s0 + $0x398] sm:$0xff]
  %v154 = vld [vmem:[%s0 + $0x3a0] sm:$0xff]
  %v155 = vld [vmem:[%s0 + $0x3a8] sm:$0xf]
  %v156 = vld [vmem:[%s0 + $0x3ac] sm:$0xff]
  %v157 = vld [vmem:[%s0 + $0x3b4] sm:$0xff]
  %v158 = vld [vmem:[%s0 + $0x3bc] sm:$0xf]
  %v159 = vld [vmem:[%s0 + $0x3c0] sm:$0xff]
  %v160 = vld [vmem:[%s0 + $0x3c8] sm:$0xff]
  %v161 = vld [vmem:[%s0 + $0x3d0] sm:$0xf]
  %v162 = vld [vmem:[%s0 + $0x3d4] sm:$0xff]
  %v163 = vld [vmem:[%s0 + $0x3dc] sm:$0xff]
  %v164 = vld [vmem:[%s0 + $0x3e4] sm:$0xf]
  %v165 = vld [vmem:[%s0 + $0x3e8] sm:$0xff]
  %v166 = vld [vmem:[%s0 + $0x3f0] sm:$0xff]
  %v167 = vld [vmem:[%s0 + $0x3f8] sm:$0xf]
  %v168 = vld [vmem:[%s0 + $0x3fc] sm:$0xff]
  %v169 = vld [vmem:[%s0 + $0x404] sm:$0xff]
  %v170 = vld [vmem:[%s0 + $0x40c] sm:$0xf]
  %v171 = vld [vmem:[%s0 + $0x410] sm:$0xff]
  %v172 = vld [vmem:[%s0 + $0x418] sm:$0xff]
  %v173 = vld [vmem:[%s0 + $0x420] sm:$0xf]
  %v174 = vld [vmem:[%s0 + $0x424] sm:$0xff]
  %v175 = vld [vmem:[%s0 + $0x42c] sm:$0xff]
  %v176 = vld [vmem:[%s0 + $0x434] sm:$0xf]
  %v177 = vld [vmem:[%s0 + $0x438] sm:$0xff]
  %v178 = vld [vmem:[%s0 + $0x440] sm:$0xff]
  %v179 = vld [vmem:[%s0 + $0x448] sm:$0xf]
  %v180 = vld [vmem:[%s0 + $0x44c] sm:$0xff]
  %v181 = vld [vmem:[%s0 + $0x454] sm:$0xff]
  %v182 = vld [vmem:[%s0 + $0x45c] sm:$0xf]
  %v183 = vld [vmem:[%s0 + $0x460] sm:$0xff]
  %v184 = vld [vmem:[%s0 + $0x468] sm:$0xff]
  %v185 = vld [vmem:[%s0 + $0x470] sm:$0xf]
  %v186 = vld [vmem:[%s0 + $0x474] sm:$0xff]
  %v187 = vld [vmem:[%s0 + $0x47c] sm:$0xff]
  %v188 = vld [vmem:[%s0 + $0x484] sm:$0xf]
  %v189 = vld [vmem:[%s0 + $0x488] sm:$0xff]
  %v190 = vld [vmem:[%s0 + $0x490] sm:$0xff]
  %v191 = vld [vmem:[%s0 + $0x498] sm:$0xf]
  %v192 = vld [vmem:[%s0 + $0x49c] sm:$0xff]
  %v193 = vld [vmem:[%s0 + $0x4a4] sm:$0xff]
  %v194 = vld [vmem:[%s0 + $0x4ac] sm:$0xf]
  %v195 = vld [vmem:[%s0 + $0x4b0] sm:$0xff]
  %v196 = vld [vmem:[%s0 + $0x4b8] sm:$0xff]
  %v197 = vld [vmem:[%s0 + $0x4c0] sm:$0xf]
  %v198 = vld [vmem:[%s0 + $0x4c4] sm:$0xff]
  %v199 = vld [vmem:[%s0 + $0x4cc] sm:$0xff]
  %v200 = vld [vmem:[%s0 + $0x4d4] sm:$0xf]
  %v201 = vld [vmem:[%s0 + $0x4d8] sm:$0xff]
  %v202 = vld [vmem:[%s0 + $0x4e0] sm:$0xff]
  %v203 = vld [vmem:[%s0 + $0x4e8] sm:$0xf]
  %v204 = vld [vmem:[%s0 + $0x4ec] sm:$0xff]
  %v205 = vld [vmem:[%s0 + $0x4f4] sm:$0xff]
  %v206 = vld [vmem:[%s0 + $0x4fc] sm:$0xf]
  %v207 = vld [vmem:[%s1] sm:$0xff]
  %v208 = vld [vmem:[%s1 + $0x8] sm:$0xff]
  %v209 = vld [vmem:[%s1 + $0x10] sm:$0xff]
  %v210 = vld [vmem:[%s1 + $0x18] sm:$0xff]
  %v211 = vld [vmem:[%s1 + $0x20] sm:$0xff]
  %v212 = vld [vmem:[%s1 + $0x28] sm:$0xff]
  %v213 = vld [vmem:[%s1 + $0x30] sm:$0xff]
  %v214 = vld [vmem:[%s1 + $0x38] sm:$0xff]
  %v215 = vld [vmem:[%s1 + $0x40] sm:$0xff]
  %v216 = vld [vmem:[%s1 + $0x48] sm:$0xff]
  %v217 = vld [vmem:[%s1 + $0x50] sm:$0xff]
  %v218 = vld [vmem:[%s1 + $0x58] sm:$0xff]
  %v219 = vld [vmem:[%s1 + $0x60] sm:$0xff]
  %v220 = vld [vmem:[%s1 + $0x68] sm:$0xff]
  %v221 = vld [vmem:[%s1 + $0x70] sm:$0xff]
  %v222 = vld [vmem:[%s1 + $0x78] sm:$0xff]
  %v223 = vld [vmem:[%s1 + $0x80] sm:$0xff]
  %v224 = vld [vmem:[%s1 + $0x88] sm:$0xff]
  %v225 = vld [vmem:[%s1 + $0x90] sm:$0xff]
  %v226 = vld [vmem:[%s1 + $0x98] sm:$0xff]
  %v227 = vld [vmem:[%s1 + $0xa0] sm:$0xff]
  %v228 = vld [vmem:[%s1 + $0xa8] sm:$0xff]
  %v229 = vld [vmem:[%s1 + $0xb0] sm:$0xff]
  %v230 = vld [vmem:[%s1 + $0xb8] sm:$0xff]
  %v231 = vld [vmem:[%s1 + $0xc0] sm:$0xff]
  %v232 = vld [vmem:[%s1 + $0xc8] sm:$0xff]
  %v233 = vld [vmem:[%s1 + $0xd0] sm:$0xff]
  %v234 = vld [vmem:[%s1 + $0xd8] sm:$0xff]
  %v235 = vld [vmem:[%s1 + $0xe0] sm:$0xff]
  %v236 = vld [vmem:[%s1 + $0xe8] sm:$0xff]
  %v237 = vld [vmem:[%s1 + $0xf0] sm:$0xff]
  %v238 = vld [vmem:[%s1 + $0xf8] sm:$0xff]
  %v239 = vld [vmem:[%s1 + $0x100] sm:$0xff]
  %v240 = vld [vmem:[%s1 + $0x108] sm:$0xff]
  %v241 = vld [vmem:[%s1 + $0x110] sm:$0xff]
  %v242 = vld [vmem:[%s1 + $0x118] sm:$0xff]
  %v243 = vld [vmem:[%s1 + $0x120] sm:$0xff]
  %v244 = vld [vmem:[%s1 + $0x128] sm:$0xff]
  %v245 = vld [vmem:[%s1 + $0x130] sm:$0xff]
  %v246 = vld [vmem:[%s1 + $0x138] sm:$0xff]
  %v247 = vld [vmem:[%s1 + $0x140] sm:$0xff]
  %v248 = vld [vmem:[%s1 + $0x148] sm:$0xff]
  %v249 = vld [vmem:[%s1 + $0x150] sm:$0xff]
  %v250 = vld [vmem:[%s1 + $0x158] sm:$0xff]
  %v251 = vld [vmem:[%s1 + $0x160] sm:$0xff]
  %v252 = vld [vmem:[%s1 + $0x168] sm:$0xff]
  %v253 = vld [vmem:[%s1 + $0x170] sm:$0xff]
  %v254 = vld [vmem:[%s1 + $0x178] sm:$0xff]
  %v255 = vld [vmem:[%s1 + $0x180] sm:$0xff]
  %v256 = vld [vmem:[%s1 + $0x188] sm:$0xff]
  %v257 = vld [vmem:[%s1 + $0x190] sm:$0xff]
  %v258 = vld [vmem:[%s1 + $0x198] sm:$0xff]
  %v259 = vld [vmem:[%s1 + $0x1a0] sm:$0xff]
  %v260 = vld [vmem:[%s1 + $0x1a8] sm:$0xff]
  %v261 = vld [vmem:[%s1 + $0x1b0] sm:$0xff]
  %v262 = vld [vmem:[%s1 + $0x1b8] sm:$0xff]
  %v263 = vld [vmem:[%s1 + $0x1c0] sm:$0xff]
  %v264 = vld [vmem:[%s1 + $0x1c8] sm:$0xff]
  %v265 = vld [vmem:[%s1 + $0x1d0] sm:$0xff]
  %v266 = vld [vmem:[%s1 + $0x1d8] sm:$0xff]
  %v267 = vld [vmem:[%s1 + $0x1e0] sm:$0xff]
  %v268 = vld [vmem:[%s1 + $0x1e8] sm:$0xff]
  %v269 = vld [vmem:[%s1 + $0x1f0] sm:$0xff]
  %v270 = vld [vmem:[%s1 + $0x1f8] sm:$0xff]
  %v271 = vld [vmem:[%s1 + $0x200] sm:$0xff]
  %v272 = vld [vmem:[%s1 + $0x208] sm:$0xff]
  %v273 = vld [vmem:[%s1 + $0x210] sm:$0xff]
  %v274 = vld [vmem:[%s1 + $0x218] sm:$0xff]
  %v275 = vld [vmem:[%s1 + $0x220] sm:$0xff]
  %v276 = vld [vmem:[%s1 + $0x228] sm:$0xff]
  %v277 = vld [vmem:[%s1 + $0x230] sm:$0xff]
  %v278 = vld [vmem:[%s1 + $0x238] sm:$0xff]
  %v279 = vld [vmem:[%s2] sm:$0x3]
  %v281 = vlaneseq
  %v282 = vshrl.u32 %v281, 7
  %v283 = vsub.s32 0, %v282
  %v284 = vrot.slane %v279, %v283
  %v285 = vlaneseq
  %v286 = vshrl.u32 %v285, 7
  %v287 = vsub.s32 1, %v286
  %v288 = vrot.slane %v279, %v287
  %v483 = vunpack.c.l.b16 %v15
  %v484 = vunpack.c.h.b16 %v15
  %v485 = vunpack.c.l.b16 %v16
  %v486 = vunpack.c.h.b16 %v16
  %v487 = vunpack.c.l.b16 %v17
  %v488 = vunpack.c.l.b16 %v18
  %v489 = vunpack.c.h.b16 %v18
  %v490 = vunpack.c.l.b16 %v19
  %v491 = vunpack.c.h.b16 %v19
  %v492 = vunpack.c.l.b16 %v20
  %v493 = vunpack.c.l.b16 %v21
  %v494 = vunpack.c.h.b16 %v21
  %v495 = vunpack.c.l.b16 %v22
  %v496 = vunpack.c.h.b16 %v22
  %v497 = vunpack.c.l.b16 %v23
  %v498 = vunpack.c.l.b16 %v24
  %v499 = vunpack.c.h.b16 %v24
  %v500 = vunpack.c.l.b16 %v25
  %v501 = vunpack.c.h.b16 %v25
  %v502 = vunpack.c.l.b16 %v26
  %v503 = vunpack.c.l.b16 %v27
  %v504 = vunpack.c.h.b16 %v27
  %v505 = vunpack.c.l.b16 %v28
  %v506 = vunpack.c.h.b16 %v28
  %v507 = vunpack.c.l.b16 %v29
  %v508 = vunpack.c.l.b16 %v30
  %v509 = vunpack.c.h.b16 %v30
  %v510 = vunpack.c.l.b16 %v31
  %v511 = vunpack.c.h.b16 %v31
  %v512 = vunpack.c.l.b16 %v32
  %v513 = vunpack.c.l.b16 %v33
  %v514 = vunpack.c.h.b16 %v33
  %v515 = vunpack.c.l.b16 %v34
  %v516 = vunpack.c.h.b16 %v34
  %v517 = vunpack.c.l.b16 %v35
  %v518 = vunpack.c.l.b16 %v36
  %v519 = vunpack.c.h.b16 %v36
  %v520 = vunpack.c.l.b16 %v37
  %v521 = vunpack.c.h.b16 %v37
  %v522 = vunpack.c.l.b16 %v38
  %v523 = vunpack.c.l.b16 %v39
  %v524 = vunpack.c.h.b16 %v39
  %v525 = vunpack.c.l.b16 %v40
  %v526 = vunpack.c.h.b16 %v40
  %v527 = vunpack.c.l.b16 %v41
  %v528 = vunpack.c.l.b16 %v42
  %v529 = vunpack.c.h.b16 %v42
  %v530 = vunpack.c.l.b16 %v43
  %v531 = vunpack.c.h.b16 %v43
  %v532 = vunpack.c.l.b16 %v44
  %v533 = vunpack.c.l.b16 %v45
  %v534 = vunpack.c.h.b16 %v45
  %v535 = vunpack.c.l.b16 %v46
  %v536 = vunpack.c.h.b16 %v46
  %v537 = vunpack.c.l.b16 %v47
  %v538 = vunpack.c.l.b16 %v48
  %v539 = vunpack.c.h.b16 %v48
  %v540 = vunpack.c.l.b16 %v49
  %v541 = vunpack.c.h.b16 %v49
  %v542 = vunpack.c.l.b16 %v50
  %v543 = vunpack.c.l.b16 %v51
  %v544 = vunpack.c.h.b16 %v51
  %v545 = vunpack.c.l.b16 %v52
  %v546 = vunpack.c.h.b16 %v52
  %v547 = vunpack.c.l.b16 %v53
  %v548 = vunpack.c.l.b16 %v54
  %v549 = vunpack.c.h.b16 %v54
  %v550 = vunpack.c.l.b16 %v55
  %v551 = vunpack.c.h.b16 %v55
  %v552 = vunpack.c.l.b16 %v56
  %v553 = vunpack.c.l.b16 %v57
  %v554 = vunpack.c.h.b16 %v57
  %v555 = vunpack.c.l.b16 %v58
  %v556 = vunpack.c.h.b16 %v58
  %v557 = vunpack.c.l.b16 %v59
  %v558 = vunpack.c.l.b16 %v60
  %v559 = vunpack.c.h.b16 %v60
  %v560 = vunpack.c.l.b16 %v61
  %v561 = vunpack.c.h.b16 %v61
  %v562 = vunpack.c.l.b16 %v62
  %v563 = vunpack.c.l.b16 %v63
  %v564 = vunpack.c.h.b16 %v63
  %v565 = vunpack.c.l.b16 %v64
  %v566 = vunpack.c.h.b16 %v64
  %v567 = vunpack.c.l.b16 %v65
  %v568 = vunpack.c.l.b16 %v66
  %v569 = vunpack.c.h.b16 %v66
  %v570 = vunpack.c.l.b16 %v67
  %v571 = vunpack.c.h.b16 %v67
  %v572 = vunpack.c.l.b16 %v68
  %v573 = vunpack.c.l.b16 %v69
  %v574 = vunpack.c.h.b16 %v69
  %v575 = vunpack.c.l.b16 %v70
  %v576 = vunpack.c.h.b16 %v70
  %v577 = vunpack.c.l.b16 %v71
  %v578 = vunpack.c.l.b16 %v72
  %v579 = vunpack.c.h.b16 %v72
  %v580 = vunpack.c.l.b16 %v73
  %v581 = vunpack.c.h.b16 %v73
  %v582 = vunpack.c.l.b16 %v74
  %v583 = vunpack.c.l.b16 %v75
  %v584 = vunpack.c.h.b16 %v75
  %v585 = vunpack.c.l.b16 %v76
  %v586 = vunpack.c.h.b16 %v76
  %v587 = vunpack.c.l.b16 %v77
  %v588 = vunpack.c.l.b16 %v78
  %v589 = vunpack.c.h.b16 %v78
  %v590 = vunpack.c.l.b16 %v79
  %v591 = vunpack.c.h.b16 %v79
  %v592 = vunpack.c.l.b16 %v80
  %v593 = vunpack.c.l.b16 %v81
  %v594 = vunpack.c.h.b16 %v81
  %v595 = vunpack.c.l.b16 %v82
  %v596 = vunpack.c.h.b16 %v82
  %v597 = vunpack.c.l.b16 %v83
  %v598 = vunpack.c.l.b16 %v84
  %v599 = vunpack.c.h.b16 %v84
  %v600 = vunpack.c.l.b16 %v85
  %v601 = vunpack.c.h.b16 %v85
  %v602 = vunpack.c.l.b16 %v86
  %v603 = vunpack.c.l.b16 %v87
  %v604 = vunpack.c.h.b16 %v87
  %v605 = vunpack.c.l.b16 %v88
  %v606 = vunpack.c.h.b16 %v88
  %v607 = vunpack.c.l.b16 %v89
  %v608 = vunpack.c.l.b16 %v90
  %v609 = vunpack.c.h.b16 %v90
  %v610 = vunpack.c.l.b16 %v91
  %v611 = vunpack.c.h.b16 %v91
  %v612 = vunpack.c.l.b16 %v92
  %v613 = vunpack.c.l.b16 %v93
  %v614 = vunpack.c.h.b16 %v93
  %v615 = vunpack.c.l.b16 %v94
  %v616 = vunpack.c.h.b16 %v94
  %v617 = vunpack.c.l.b16 %v95
  %v618 = vunpack.c.l.b16 %v96
  %v619 = vunpack.c.h.b16 %v96
  %v620 = vunpack.c.l.b16 %v97
  %v621 = vunpack.c.h.b16 %v97
  %v622 = vunpack.c.l.b16 %v98
  %v623 = vunpack.c.l.b16 %v99
  %v624 = vunpack.c.h.b16 %v99
  %v625 = vunpack.c.l.b16 %v100
  %v626 = vunpack.c.h.b16 %v100
  %v627 = vunpack.c.l.b16 %v101
  %v628 = vunpack.c.l.b16 %v102
  %v629 = vunpack.c.h.b16 %v102
  %v630 = vunpack.c.l.b16 %v103
  %v631 = vunpack.c.h.b16 %v103
  %v632 = vunpack.c.l.b16 %v104
  %v633 = vunpack.c.l.b16 %v105
  %v634 = vunpack.c.h.b16 %v105
  %v635 = vunpack.c.l.b16 %v106
  %v636 = vunpack.c.h.b16 %v106
  %v637 = vunpack.c.l.b16 %v107
  %v638 = vunpack.c.l.b16 %v108
  %v639 = vunpack.c.h.b16 %v108
  %v640 = vunpack.c.l.b16 %v109
  %v641 = vunpack.c.h.b16 %v109
  %v642 = vunpack.c.l.b16 %v110
  %v643 = vunpack.c.l.b16 %v111
  %v644 = vunpack.c.h.b16 %v111
  %v645 = vunpack.c.l.b16 %v112
  %v646 = vunpack.c.h.b16 %v112
  %v647 = vunpack.c.l.b16 %v113
  %v648 = vunpack.c.l.b16 %v114
  %v649 = vunpack.c.h.b16 %v114
  %v650 = vunpack.c.l.b16 %v115
  %v651 = vunpack.c.h.b16 %v115
  %v652 = vunpack.c.l.b16 %v116
  %v653 = vunpack.c.l.b16 %v117
  %v654 = vunpack.c.h.b16 %v117
  %v655 = vunpack.c.l.b16 %v118
  %v656 = vunpack.c.h.b16 %v118
  %v657 = vunpack.c.l.b16 %v119
  %v658 = vunpack.c.l.b16 %v120
  %v659 = vunpack.c.h.b16 %v120
  %v660 = vunpack.c.l.b16 %v121
  %v661 = vunpack.c.h.b16 %v121
  %v662 = vunpack.c.l.b16 %v122
  %v663 = vunpack.c.l.b16 %v123
  %v664 = vunpack.c.h.b16 %v123
  %v665 = vunpack.c.l.b16 %v124
  %v666 = vunpack.c.h.b16 %v124
  %v667 = vunpack.c.l.b16 %v125
  %v668 = vunpack.c.l.b16 %v126
  %v669 = vunpack.c.h.b16 %v126
  %v670 = vunpack.c.l.b16 %v127
  %v671 = vunpack.c.h.b16 %v127
  %v672 = vunpack.c.l.b16 %v128
  %v673 = vunpack.c.l.b16 %v129
  %v674 = vunpack.c.h.b16 %v129
  %v675 = vunpack.c.l.b16 %v130
  %v676 = vunpack.c.h.b16 %v130
  %v677 = vunpack.c.l.b16 %v131
  %v678 = vunpack.c.l.b16 %v132
  %v679 = vunpack.c.h.b16 %v132
  %v680 = vunpack.c.l.b16 %v133
  %v681 = vunpack.c.h.b16 %v133
  %v682 = vunpack.c.l.b16 %v134
  %v683 = vunpack.c.l.b16 %v135
  %v684 = vunpack.c.h.b16 %v135
  %v685 = vunpack.c.l.b16 %v136
  %v686 = vunpack.c.h.b16 %v136
  %v687 = vunpack.c.l.b16 %v137
  %v688 = vunpack.c.l.b16 %v138
  %v689 = vunpack.c.h.b16 %v138
  %v690 = vunpack.c.l.b16 %v139
  %v691 = vunpack.c.h.b16 %v139
  %v692 = vunpack.c.l.b16 %v140
  %v693 = vunpack.c.l.b16 %v141
  %v694 = vunpack.c.h.b16 %v141
  %v695 = vunpack.c.l.b16 %v142
  %v696 = vunpack.c.h.b16 %v142
  %v697 = vunpack.c.l.b16 %v143
  %v698 = vunpack.c.l.b16 %v144
  %v699 = vunpack.c.h.b16 %v144
  %v700 = vunpack.c.l.b16 %v145
  %v701 = vunpack.c.h.b16 %v145
  %v702 = vunpack.c.l.b16 %v146
  %v703 = vunpack.c.l.b16 %v147
  %v704 = vunpack.c.h.b16 %v147
  %v705 = vunpack.c.l.b16 %v148
  %v706 = vunpack.c.h.b16 %v148
  %v707 = vunpack.c.l.b16 %v149
  %v708 = vunpack.c.l.b16 %v150
  %v709 = vunpack.c.h.b16 %v150
  %v710 = vunpack.c.l.b16 %v151
  %v711 = vunpack.c.h.b16 %v151
  %v712 = vunpack.c.l.b16 %v152
  %v713 = vunpack.c.l.b16 %v153
  %v714 = vunpack.c.h.b16 %v153
  %v715 = vunpack.c.l.b16 %v154
  %v716 = vunpack.c.h.b16 %v154
  %v717 = vunpack.c.l.b16 %v155
  %v718 = vunpack.c.l.b16 %v156
  %v719 = vunpack.c.h.b16 %v156
  %v720 = vunpack.c.l.b16 %v157
  %v721 = vunpack.c.h.b16 %v157
  %v722 = vunpack.c.l.b16 %v158
  %v723 = vunpack.c.l.b16 %v159
  %v724 = vunpack.c.h.b16 %v159
  %v725 = vunpack.c.l.b16 %v160
  %v726 = vunpack.c.h.b16 %v160
  %v727 = vunpack.c.l.b16 %v161
  %v728 = vunpack.c.l.b16 %v162
  %v729 = vunpack.c.h.b16 %v162
  %v730 = vunpack.c.l.b16 %v163
  %v731 = vunpack.c.h.b16 %v163
  %v732 = vunpack.c.l.b16 %v164
  %v733 = vunpack.c.l.b16 %v165
  %v734 = vunpack.c.h.b16 %v165
  %v735 = vunpack.c.l.b16 %v166
  %v736 = vunpack.c.h.b16 %v166
  %v737 = vunpack.c.l.b16 %v167
  %v738 = vunpack.c.l.b16 %v168
  %v739 = vunpack.c.h.b16 %v168
  %v740 = vunpack.c.l.b16 %v169
  %v741 = vunpack.c.h.b16 %v169
  %v742 = vunpack.c.l.b16 %v170
  %v743 = vunpack.c.l.b16 %v171
  %v744 = vunpack.c.h.b16 %v171
  %v745 = vunpack.c.l.b16 %v172
  %v746 = vunpack.c.h.b16 %v172
  %v747 = vunpack.c.l.b16 %v173
  %v748 = vunpack.c.l.b16 %v174
  %v749 = vunpack.c.h.b16 %v174
  %v750 = vunpack.c.l.b16 %v175
  %v751 = vunpack.c.h.b16 %v175
  %v752 = vunpack.c.l.b16 %v176
  %v753 = vunpack.c.l.b16 %v177
  %v754 = vunpack.c.h.b16 %v177
  %v755 = vunpack.c.l.b16 %v178
  %v756 = vunpack.c.h.b16 %v178
  %v757 = vunpack.c.l.b16 %v179
  %v758 = vunpack.c.l.b16 %v180
  %v759 = vunpack.c.h.b16 %v180
  %v760 = vunpack.c.l.b16 %v181
  %v761 = vunpack.c.h.b16 %v181
  %v762 = vunpack.c.l.b16 %v182
  %v763 = vunpack.c.l.b16 %v183
  %v764 = vunpack.c.h.b16 %v183
  %v765 = vunpack.c.l.b16 %v184
  %v766 = vunpack.c.h.b16 %v184
  %v767 = vunpack.c.l.b16 %v185
  %v768 = vunpack.c.l.b16 %v186
  %v769 = vunpack.c.h.b16 %v186
  %v770 = vunpack.c.l.b16 %v187
  %v771 = vunpack.c.h.b16 %v187
  %v772 = vunpack.c.l.b16 %v188
  %v773 = vunpack.c.l.b16 %v189
  %v774 = vunpack.c.h.b16 %v189
  %v775 = vunpack.c.l.b16 %v190
  %v776 = vunpack.c.h.b16 %v190
  %v777 = vunpack.c.l.b16 %v191
  %v778 = vunpack.c.l.b16 %v192
  %v779 = vunpack.c.h.b16 %v192
  %v780 = vunpack.c.l.b16 %v193
  %v781 = vunpack.c.h.b16 %v193
  %v782 = vunpack.c.l.b16 %v194
  %v783 = vunpack.c.l.b16 %v195
  %v784 = vunpack.c.h.b16 %v195
  %v785 = vunpack.c.l.b16 %v196
  %v786 = vunpack.c.h.b16 %v196
  %v787 = vunpack.c.l.b16 %v197
  %v788 = vunpack.c.l.b16 %v198
  %v789 = vunpack.c.h.b16 %v198
  %v790 = vunpack.c.l.b16 %v199
  %v791 = vunpack.c.h.b16 %v199
  %v792 = vunpack.c.l.b16 %v200
  %v793 = vunpack.c.l.b16 %v201
  %v794 = vunpack.c.h.b16 %v201
  %v795 = vunpack.c.l.b16 %v202
  %v796 = vunpack.c.h.b16 %v202
  %v797 = vunpack.c.l.b16 %v203
  %v798 = vunpack.c.l.b16 %v204
  %v799 = vunpack.c.h.b16 %v204
  %v800 = vunpack.c.l.b16 %v205
  %v801 = vunpack.c.h.b16 %v205
  %v802 = vunpack.c.l.b16 %v206
  %v803 = vpack.c.b16 %v488, %v483
  %v804 = vpack.c.b16 %v489, %v484
  %v805 = vpack.c.b16 %v490, %v485
  %v806 = vpack.c.b16 %v491, %v486
  %v807 = vpack.c.b16 %v492, %v487
  %v808 = vpack.c.b16 %v498, %v493
  %v809 = vpack.c.b16 %v499, %v494
  %v810 = vpack.c.b16 %v500, %v495
  %v811 = vpack.c.b16 %v501, %v496
  %v812 = vpack.c.b16 %v502, %v497
  %v813 = vpack.c.b16 %v508, %v503
  %v814 = vpack.c.b16 %v509, %v504
  %v815 = vpack.c.b16 %v510, %v505
  %v816 = vpack.c.b16 %v511, %v506
  %v817 = vpack.c.b16 %v512, %v507
  %v818 = vpack.c.b16 %v518, %v513
  %v819 = vpack.c.b16 %v519, %v514
  %v820 = vpack.c.b16 %v520, %v515
  %v821 = vpack.c.b16 %v521, %v516
  %v822 = vpack.c.b16 %v522, %v517
  %v823 = vpack.c.b16 %v528, %v523
  %v824 = vpack.c.b16 %v529, %v524
  %v825 = vpack.c.b16 %v530, %v525
  %v826 = vpack.c.b16 %v531, %v526
  %v827 = vpack.c.b16 %v532, %v527
  %v828 = vpack.c.b16 %v538, %v533
  %v829 = vpack.c.b16 %v539, %v534
  %v830 = vpack.c.b16 %v540, %v535
  %v831 = vpack.c.b16 %v541, %v536
  %v832 = vpack.c.b16 %v542, %v537
  %v833 = vpack.c.b16 %v548, %v543
  %v834 = vpack.c.b16 %v549, %v544
  %v835 = vpack.c.b16 %v550, %v545
  %v836 = vpack.c.b16 %v551, %v546
  %v837 = vpack.c.b16 %v552, %v547
  %v838 = vpack.c.b16 %v558, %v553
  %v839 = vpack.c.b16 %v559, %v554
  %v840 = vpack.c.b16 %v560, %v555
  %v841 = vpack.c.b16 %v561, %v556
  %v842 = vpack.c.b16 %v562, %v557
  %v843 = vpack.c.b16 %v568, %v563
  %v844 = vpack.c.b16 %v569, %v564
  %v845 = vpack.c.b16 %v570, %v565
  %v846 = vpack.c.b16 %v571, %v566
  %v847 = vpack.c.b16 %v572, %v567
  %v848 = vpack.c.b16 %v578, %v573
  %v849 = vpack.c.b16 %v579, %v574
  %v850 = vpack.c.b16 %v580, %v575
  %v851 = vpack.c.b16 %v581, %v576
  %v852 = vpack.c.b16 %v582, %v577
  %v853 = vpack.c.b16 %v588, %v583
  %v854 = vpack.c.b16 %v589, %v584
  %v855 = vpack.c.b16 %v590, %v585
  %v856 = vpack.c.b16 %v591, %v586
  %v857 = vpack.c.b16 %v592, %v587
  %v858 = vpack.c.b16 %v598, %v593
  %v859 = vpack.c.b16 %v599, %v594
  %v860 = vpack.c.b16 %v600, %v595
  %v861 = vpack.c.b16 %v601, %v596
  %v862 = vpack.c.b16 %v602, %v597
  %v863 = vpack.c.b16 %v608, %v603
  %v864 = vpack.c.b16 %v609, %v604
  %v865 = vpack.c.b16 %v610, %v605
  %v866 = vpack.c.b16 %v611, %v606
  %v867 = vpack.c.b16 %v612, %v607
  %v868 = vpack.c.b16 %v618, %v613
  %v869 = vpack.c.b16 %v619, %v614
  %v870 = vpack.c.b16 %v620, %v615
  %v871 = vpack.c.b16 %v621, %v616
  %v872 = vpack.c.b16 %v622, %v617
  %v873 = vpack.c.b16 %v628, %v623
  %v874 = vpack.c.b16 %v629, %v624
  %v875 = vpack.c.b16 %v630, %v625
  %v876 = vpack.c.b16 %v631, %v626
  %v877 = vpack.c.b16 %v632, %v627
  %v878 = vpack.c.b16 %v638, %v633
  %v879 = vpack.c.b16 %v639, %v634
  %v880 = vpack.c.b16 %v640, %v635
  %v881 = vpack.c.b16 %v641, %v636
  %v882 = vpack.c.b16 %v642, %v637
  %v883 = vpack.c.b16 %v648, %v643
  %v884 = vpack.c.b16 %v649, %v644
  %v885 = vpack.c.b16 %v650, %v645
  %v886 = vpack.c.b16 %v651, %v646
  %v887 = vpack.c.b16 %v652, %v647
  %v888 = vpack.c.b16 %v658, %v653
  %v889 = vpack.c.b16 %v659, %v654
  %v890 = vpack.c.b16 %v660, %v655
  %v891 = vpack.c.b16 %v661, %v656
  %v892 = vpack.c.b16 %v662, %v657
  %v893 = vpack.c.b16 %v668, %v663
  %v894 = vpack.c.b16 %v669, %v664
  %v895 = vpack.c.b16 %v670, %v665
  %v896 = vpack.c.b16 %v671, %v666
  %v897 = vpack.c.b16 %v672, %v667
  %v898 = vpack.c.b16 %v678, %v673
  %v899 = vpack.c.b16 %v679, %v674
  %v900 = vpack.c.b16 %v680, %v675
  %v901 = vpack.c.b16 %v681, %v676
  %v902 = vpack.c.b16 %v682, %v677
  %v903 = vpack.c.b16 %v688, %v683
  %v904 = vpack.c.b16 %v689, %v684
  %v905 = vpack.c.b16 %v690, %v685
  %v906 = vpack.c.b16 %v691, %v686
  %v907 = vpack.c.b16 %v692, %v687
  %v908 = vpack.c.b16 %v698, %v693
  %v909 = vpack.c.b16 %v699, %v694
  %v910 = vpack.c.b16 %v700, %v695
  %v911 = vpack.c.b16 %v701, %v696
  %v912 = vpack.c.b16 %v702, %v697
  %v913 = vpack.c.b16 %v708, %v703
  %v914 = vpack.c.b16 %v709, %v704
  %v915 = vpack.c.b16 %v710, %v705
  %v916 = vpack.c.b16 %v711, %v706
  %v917 = vpack.c.b16 %v712, %v707
  %v918 = vpack.c.b16 %v718, %v713
  %v919 = vpack.c.b16 %v719, %v714
  %v920 = vpack.c.b16 %v720, %v715
  %v921 = vpack.c.b16 %v721, %v716
  %v922 = vpack.c.b16 %v722, %v717
  %v923 = vpack.c.b16 %v728, %v723
  %v924 = vpack.c.b16 %v729, %v724
  %v925 = vpack.c.b16 %v730, %v725
  %v926 = vpack.c.b16 %v731, %v726
  %v927 = vpack.c.b16 %v732, %v727
  %v928 = vpack.c.b16 %v738, %v733
  %v929 = vpack.c.b16 %v739, %v734
  %v930 = vpack.c.b16 %v740, %v735
  %v931 = vpack.c.b16 %v741, %v736
  %v932 = vpack.c.b16 %v742, %v737
  %v933 = vpack.c.b16 %v748, %v743
  %v934 = vpack.c.b16 %v749, %v744
  %v935 = vpack.c.b16 %v750, %v745
  %v936 = vpack.c.b16 %v751, %v746
  %v937 = vpack.c.b16 %v752, %v747
  %v938 = vpack.c.b16 %v758, %v753
  %v939 = vpack.c.b16 %v759, %v754
  %v940 = vpack.c.b16 %v760, %v755
  %v941 = vpack.c.b16 %v761, %v756
  %v942 = vpack.c.b16 %v762, %v757
  %v943 = vpack.c.b16 %v768, %v763
  %v944 = vpack.c.b16 %v769, %v764
  %v945 = vpack.c.b16 %v770, %v765
  %v946 = vpack.c.b16 %v771, %v766
  %v947 = vpack.c.b16 %v772, %v767
  %v948 = vpack.c.b16 %v778, %v773
  %v949 = vpack.c.b16 %v779, %v774
  %v950 = vpack.c.b16 %v780, %v775
  %v951 = vpack.c.b16 %v781, %v776
  %v952 = vpack.c.b16 %v782, %v777
  %v953 = vpack.c.b16 %v788, %v783
  %v954 = vpack.c.b16 %v789, %v784
  %v955 = vpack.c.b16 %v790, %v785
  %v956 = vpack.c.b16 %v791, %v786
  %v957 = vpack.c.b16 %v792, %v787
  %v958 = vpack.c.b16 %v798, %v793
  %v959 = vpack.c.b16 %v799, %v794
  %v960 = vpack.c.b16 %v800, %v795
  %v961 = vpack.c.b16 %v801, %v796
  %v962 = vpack.c.b16 %v802, %v797
  %v1163 = vunpack.c.l.b16 %v207
  %v1164 = vunpack.c.h.b16 %v207
  %v1165 = vunpack.c.l.b16 %v208
  %v1166 = vunpack.c.h.b16 %v208
  %v1167 = vunpack.c.l.b16 %v209
  %v1168 = vunpack.c.h.b16 %v209
  %v1169 = vunpack.c.l.b16 %v210
  %v1170 = vunpack.c.h.b16 %v210
  %v1171 = vunpack.c.l.b16 %v211
  %v1172 = vunpack.c.h.b16 %v211
  %v1173 = vunpack.c.l.b16 %v212
  %v1174 = vunpack.c.h.b16 %v212
  %v1175 = vunpack.c.l.b16 %v213
  %v1176 = vunpack.c.h.b16 %v213
  %v1177 = vunpack.c.l.b16 %v214
  %v1178 = vunpack.c.h.b16 %v214
  %v1179 = vunpack.c.l.b16 %v215
  %v1180 = vunpack.c.h.b16 %v215
  %v1181 = vunpack.c.l.b16 %v216
  %v1182 = vunpack.c.h.b16 %v216
  %v1183 = vunpack.c.l.b16 %v217
  %v1184 = vunpack.c.h.b16 %v217
  %v1185 = vunpack.c.l.b16 %v218
  %v1186 = vunpack.c.h.b16 %v218
  %v1187 = vunpack.c.l.b16 %v219
  %v1188 = vunpack.c.h.b16 %v219
  %v1189 = vunpack.c.l.b16 %v220
  %v1190 = vunpack.c.h.b16 %v220
  %v1191 = vunpack.c.l.b16 %v221
  %v1192 = vunpack.c.h.b16 %v221
  %v1193 = vunpack.c.l.b16 %v222
  %v1194 = vunpack.c.h.b16 %v222
  %v1195 = vunpack.c.l.b16 %v223
  %v1196 = vunpack.c.h.b16 %v223
  %v1197 = vunpack.c.l.b16 %v224
  %v1198 = vunpack.c.h.b16 %v224
  %v1199 = vunpack.c.l.b16 %v225
  %v1200 = vunpack.c.h.b16 %v225
  %v1201 = vunpack.c.l.b16 %v226
  %v1202 = vunpack.c.h.b16 %v226
  %v1203 = vunpack.c.l.b16 %v227
  %v1204 = vunpack.c.h.b16 %v227
  %v1205 = vunpack.c.l.b16 %v228
  %v1206 = vunpack.c.h.b16 %v228
  %v1207 = vunpack.c.l.b16 %v229
  %v1208 = vunpack.c.h.b16 %v229
  %v1209 = vunpack.c.l.b16 %v230
  %v1210 = vunpack.c.h.b16 %v230
  %v1211 = vunpack.c.l.b16 %v231
  %v1212 = vunpack.c.h.b16 %v231
  %v1213 = vunpack.c.l.b16 %v232
  %v1214 = vunpack.c.h.b16 %v232
  %v1215 = vunpack.c.l.b16 %v233
  %v1216 = vunpack.c.h.b16 %v233
  %v1217 = vunpack.c.l.b16 %v234
  %v1218 = vunpack.c.h.b16 %v234
  %v1219 = vunpack.c.l.b16 %v235
  %v1220 = vunpack.c.h.b16 %v235
  %v1221 = vunpack.c.l.b16 %v236
  %v1222 = vunpack.c.h.b16 %v236
  %v1223 = vunpack.c.l.b16 %v237
  %v1224 = vunpack.c.h.b16 %v237
  %v1225 = vunpack.c.l.b16 %v238
  %v1226 = vunpack.c.h.b16 %v238
  %v1227 = vunpack.c.l.b16 %v239
  %v1228 = vunpack.c.h.b16 %v239
  %v1229 = vunpack.c.l.b16 %v240
  %v1230 = vunpack.c.h.b16 %v240
  %v1231 = vunpack.c.l.b16 %v241
  %v1232 = vunpack.c.h.b16 %v241
  %v1233 = vunpack.c.l.b16 %v242
  %v1234 = vunpack.c.h.b16 %v242
  %v1235 = vunpack.c.l.b16 %v243
  %v1236 = vunpack.c.h.b16 %v243
  %v1237 = vunpack.c.l.b16 %v244
  %v1238 = vunpack.c.h.b16 %v244
  %v1239 = vunpack.c.l.b16 %v245
  %v1240 = vunpack.c.h.b16 %v245
  %v1241 = vunpack.c.l.b16 %v246
  %v1242 = vunpack.c.h.b16 %v246
  %v1243 = vunpack.c.l.b16 %v247
  %v1244 = vunpack.c.h.b16 %v247
  %v1245 = vunpack.c.l.b16 %v248
  %v1246 = vunpack.c.h.b16 %v248
  %v1247 = vunpack.c.l.b16 %v249
  %v1248 = vunpack.c.h.b16 %v249
  %v1249 = vunpack.c.l.b16 %v250
  %v1250 = vunpack.c.h.b16 %v250
  %v1251 = vunpack.c.l.b16 %v251
  %v1252 = vunpack.c.h.b16 %v251
  %v1253 = vunpack.c.l.b16 %v252
  %v1254 = vunpack.c.h.b16 %v252
  %v1255 = vunpack.c.l.b16 %v253
  %v1256 = vunpack.c.h.b16 %v253
  %v1257 = vunpack.c.l.b16 %v254
  %v1258 = vunpack.c.h.b16 %v254
  %v1259 = vunpack.c.l.b16 %v255
  %v1260 = vunpack.c.h.b16 %v255
  %v1261 = vunpack.c.l.b16 %v256
  %v1262 = vunpack.c.h.b16 %v256
  %v1263 = vunpack.c.l.b16 %v257
  %v1264 = vunpack.c.h.b16 %v257
  %v1265 = vunpack.c.l.b16 %v258
  %v1266 = vunpack.c.h.b16 %v258
  %v1267 = vunpack.c.l.b16 %v259
  %v1268 = vunpack.c.h.b16 %v259
  %v1269 = vunpack.c.l.b16 %v260
  %v1270 = vunpack.c.h.b16 %v260
  %v1271 = vunpack.c.l.b16 %v261
  %v1272 = vunpack.c.h.b16 %v261
  %v1273 = vunpack.c.l.b16 %v262
  %v1274 = vunpack.c.h.b16 %v262
  %v1275 = vunpack.c.l.b16 %v263
  %v1276 = vunpack.c.h.b16 %v263
  %v1277 = vunpack.c.l.b16 %v264
  %v1278 = vunpack.c.h.b16 %v264
  %v1279 = vunpack.c.l.b16 %v265
  %v1280 = vunpack.c.h.b16 %v265
  %v1281 = vunpack.c.l.b16 %v266
  %v1282 = vunpack.c.h.b16 %v266
  %v1283 = vunpack.c.l.b16 %v267
  %v1284 = vunpack.c.h.b16 %v267
  %v1285 = vunpack.c.l.b16 %v268
  %v1286 = vunpack.c.h.b16 %v268
  %v1287 = vunpack.c.l.b16 %v269
  %v1288 = vunpack.c.h.b16 %v269
  %v1289 = vunpack.c.l.b16 %v270
  %v1290 = vunpack.c.h.b16 %v270
  %v1291 = vunpack.c.l.b16 %v271
  %v1292 = vunpack.c.h.b16 %v271
  %v1293 = vunpack.c.l.b16 %v272
  %v1294 = vunpack.c.h.b16 %v272
  %v1295 = vunpack.c.l.b16 %v273
  %v1296 = vunpack.c.h.b16 %v273
  %v1297 = vunpack.c.l.b16 %v274
  %v1298 = vunpack.c.h.b16 %v274
  %v1299 = vunpack.c.l.b16 %v275
  %v1300 = vunpack.c.h.b16 %v275
  %v1301 = vunpack.c.l.b16 %v276
  %v1302 = vunpack.c.h.b16 %v276
  %v1303 = vunpack.c.l.b16 %v277
  %v1304 = vunpack.c.h.b16 %v277
  %v1305 = vunpack.c.l.b16 %v278
  %v1306 = vunpack.c.h.b16 %v278
  %v1307 = vpack.c.b16 %v1165, %v1163
  %v1308 = vpack.c.b16 %v1166, %v1164
  %v1309 = vpack.c.b16 %v1169, %v1167
  %v1310 = vpack.c.b16 %v1170, %v1168
  %v1311 = vpack.c.b16 %v1173, %v1171
  %v1312 = vpack.c.b16 %v1174, %v1172
  %v1313 = vpack.c.b16 %v1177, %v1175
  %v1314 = vpack.c.b16 %v1178, %v1176
  %v1315 = vpack.c.b16 %v1181, %v1179
  %v1316 = vpack.c.b16 %v1182, %v1180
  %v1317 = vpack.c.b16 %v1185, %v1183
  %v1318 = vpack.c.b16 %v1186, %v1184
  %v1319 = vpack.c.b16 %v1189, %v1187
  %v1320 = vpack.c.b16 %v1190, %v1188
  %v1321 = vpack.c.b16 %v1193, %v1191
  %v1322 = vpack.c.b16 %v1194, %v1192
  %v1323 = vpack.c.b16 %v1197, %v1195
  %v1324 = vpack.c.b16 %v1198, %v1196
  %v1325 = vpack.c.b16 %v1201, %v1199
  %v1326 = vpack.c.b16 %v1202, %v1200
  %v1327 = vpack.c.b16 %v1205, %v1203
  %v1328 = vpack.c.b16 %v1206, %v1204
  %v1329 = vpack.c.b16 %v1209, %v1207
  %v1330 = vpack.c.b16 %v1210, %v1208
  %v1331 = vpack.c.b16 %v1213, %v1211
  %v1332 = vpack.c.b16 %v1214, %v1212
  %v1333 = vpack.c.b16 %v1217, %v1215
  %v1334 = vpack.c.b16 %v1218, %v1216
  %v1335 = vpack.c.b16 %v1221, %v1219
  %v1336 = vpack.c.b16 %v1222, %v1220
  %v1337 = vpack.c.b16 %v1225, %v1223
  %v1338 = vpack.c.b16 %v1226, %v1224
  %v1339 = vpack.c.b16 %v1229, %v1227
  %v1340 = vpack.c.b16 %v1230, %v1228
  %v1341 = vpack.c.b16 %v1233, %v1231
  %v1342 = vpack.c.b16 %v1234, %v1232
  %v1343 = vpack.c.b16 %v1237, %v1235
  %v1344 = vpack.c.b16 %v1238, %v1236
  %v1345 = vpack.c.b16 %v1241, %v1239
  %v1346 = vpack.c.b16 %v1242, %v1240
  %v1347 = vpack.c.b16 %v1245, %v1243
  %v1348 = vpack.c.b16 %v1246, %v1244
  %v1349 = vpack.c.b16 %v1249, %v1247
  %v1350 = vpack.c.b16 %v1250, %v1248
  %v1351 = vpack.c.b16 %v1253, %v1251
  %v1352 = vpack.c.b16 %v1254, %v1252
  %v1353 = vpack.c.b16 %v1257, %v1255
  %v1354 = vpack.c.b16 %v1258, %v1256
  %v1355 = vpack.c.b16 %v1261, %v1259
  %v1356 = vpack.c.b16 %v1262, %v1260
  %v1357 = vpack.c.b16 %v1265, %v1263
  %v1358 = vpack.c.b16 %v1266, %v1264
  %v1359 = vpack.c.b16 %v1269, %v1267
  %v1360 = vpack.c.b16 %v1270, %v1268
  %v1361 = vpack.c.b16 %v1273, %v1271
  %v1362 = vpack.c.b16 %v1274, %v1272
  %v1363 = vpack.c.b16 %v1277, %v1275
  %v1364 = vpack.c.b16 %v1278, %v1276
  %v1365 = vpack.c.b16 %v1281, %v1279
  %v1366 = vpack.c.b16 %v1282, %v1280
  %v1367 = vpack.c.b16 %v1285, %v1283
  %v1368 = vpack.c.b16 %v1286, %v1284
  %v1369 = vpack.c.b16 %v1289, %v1287
  %v1370 = vpack.c.b16 %v1290, %v1288
  %v1371 = vpack.c.b16 %v1293, %v1291
  %v1372 = vpack.c.b16 %v1294, %v1292
  %v1373 = vpack.c.b16 %v1297, %v1295
  %v1374 = vpack.c.b16 %v1298, %v1296
  %v1375 = vpack.c.b16 %v1301, %v1299
  %v1376 = vpack.c.b16 %v1302, %v1300
  %v1377 = vpack.c.b16 %v1305, %v1303
  %v1378 = vpack.c.b16 %v1306, %v1304
  %vm1451 = vcmask 523264
  %v1453 = vsel %vm1451, %v807, 0
  %v1456 = vsel %vm1451, %v812, 0
  %v1459 = vsel %vm1451, %v817, 0
  %v1462 = vsel %vm1451, %v822, 0
  %v1465 = vsel %vm1451, %v827, 0
  %v1468 = vsel %vm1451, %v832, 0
  %v1471 = vsel %vm1451, %v837, 0
  %v1474 = vsel %vm1451, %v842, 0
  %v1477 = vsel %vm1451, %v847, 0
  %v1480 = vsel %vm1451, %v852, 0
  %v1483 = vsel %vm1451, %v857, 0
  %v1486 = vsel %vm1451, %v862, 0
  %v1489 = vsel %vm1451, %v867, 0
  %v1492 = vsel %vm1451, %v872, 0
  %v1495 = vsel %vm1451, %v877, 0
  %v1498 = vsel %vm1451, %v882, 0
  %v1501 = vsel %vm1451, %v887, 0
  %v1504 = vsel %vm1451, %v892, 0
  %v1507 = vsel %vm1451, %v897, 0
  %v1510 = vsel %vm1451, %v902, 0
  %v1513 = vsel %vm1451, %v907, 0
  %v1516 = vsel %vm1451, %v912, 0
  %v1519 = vsel %vm1451, %v917, 0
  %v1522 = vsel %vm1451, %v922, 0
  %v1525 = vsel %vm1451, %v927, 0
  %v1528 = vsel %vm1451, %v932, 0
  %v1531 = vsel %vm1451, %v937, 0
  %v1534 = vsel %vm1451, %v942, 0
  %v1537 = vsel %vm1451, %v947, 0
  %v1540 = vsel %vm1451, %v952, 0
  %v1543 = vsel %vm1451, %v957, 0
  %v1546 = vsel %vm1451, %v962, 0
  %1548 = vmatprep.subr.bf16.mxu0 %v1308
  %1549 = vmatpush1.bf16.msra.mxu0 %v1307
  %1550 = vmatprep.subr.bf16.mxu0 %v1310
  %1551 = vmatpush1.bf16.msra.mxu0 %v1309
  %1552 = vmatprep.subr.bf16.mxu0 %v1312
  %1553 = vmatpush1.bf16.msra.mxu0 %v1311
  %1554 = vmatprep.subr.bf16.mxu0 %v1314
  %1555 = vmatpush1.bf16.msra.mxu0 %v1313
  %1556 = vmatprep.subr.bf16.mxu0 %v1316
  %1557 = vmatpush1.bf16.msra.mxu0 %v1315
  %1558 = vmatprep.subr.bf16.mxu0 %v1318
  %1559 = vmatpush1.bf16.msra.mxu0 %v1317
  %1560 = vmatprep.subr.bf16.mxu0 %v1320
  %1561 = vmatpush1.bf16.msra.mxu0 %v1319
  %1562 = vmatprep.subr.bf16.mxu0 %v1322
  %1563 = vmatpush1.bf16.msra.mxu0 %v1321
  %1564 = vmatprep.subr.bf16.mxu0 %v1324
  %1565 = vmatpush1.bf16.msra.mxu0 %v1323
  %1566 = vmatprep.subr.bf16.mxu0 %v1326
  %1567 = vmatpush1.bf16.msra.mxu0 %v1325
  %1568 = vmatprep.subr.bf16.mxu0 %v1328
  %1569 = vmatpush1.bf16.msra.mxu0 %v1327
  %1570 = vmatprep.subr.bf16.mxu0 %v1330
  %1571 = vmatpush1.bf16.msra.mxu0 %v1329
  %1572 = vmatprep.subr.bf16.mxu0 %v1332
  %1573 = vmatpush1.bf16.msra.mxu0 %v1331
  %1574 = vmatprep.subr.bf16.mxu0 %v1334
  %1575 = vmatpush1.bf16.msra.mxu0 %v1333
  %1576 = vmatprep.subr.bf16.mxu0 %v1336
  %1577 = vmatpush1.bf16.msra.mxu0 %v1335
  %1578 = vmatprep.subr.bf16.mxu0 %v1338
  %1579 = vmatpush1.bf16.msra.mxu0 %v1337
  %1580 = vmatprep.mubr.bf16.mxu0 %v804
  %1581 = vmatmul.mubr.bf16.gmra.mrb[0].mxu0 %v803
  %v1582 = vpop.f32.mrb[0].mxu0
  %v1583 = vadd.f32 %v284, %v1582
  %v1584 = vpop.f32.mrb[0].mxu0
  %v1585 = vadd.f32 %v288, %v1584
  %v1586 = vpop.f32.mrb[0].mxu0
  %v1587 = vadd.f32 %v284, %v1586
  %v1588 = vpop.f32.mrb[0].mxu0
  %v1589 = vadd.f32 %v288, %v1588
  %1590 = vmatprep.mubr.bf16.mxu0 %v809
  %1591 = vmatmul.mubr.bf16.gmra.mrb[0].mxu0 %v808
  %v1592 = vpop.f32.mrb[0].mxu0
  %v1593 = vadd.f32 %v284, %v1592
  %v1594 = vpop.f32.mrb[0].mxu0
  %v1595 = vadd.f32 %v288, %v1594
  %v1596 = vpop.f32.mrb[0].mxu0
  %v1597 = vadd.f32 %v284, %v1596
  %v1598 = vpop.f32.mrb[0].mxu0
  %v1599 = vadd.f32 %v288, %v1598
  %1600 = vmatprep.mubr.bf16.mxu0 %v814
  %1601 = vmatmul.mubr.bf16.gmra.mrb[0].mxu0 %v813
  %v1602 = vpop.f32.mrb[0].mxu0
  %v1603 = vadd.f32 %v284, %v1602
  %v1604 = vpop.f32.mrb[0].mxu0
  %v1605 = vadd.f32 %v288, %v1604
  %v1606 = vpop.f32.mrb[0].mxu0
  %v1607 = vadd.f32 %v284, %v1606
  %v1608 = vpop.f32.mrb[0].mxu0
  %v1609 = vadd.f32 %v288, %v1608
  %1610 = vmatprep.mubr.bf16.mxu0 %v819
  %1611 = vmatmul.mubr.bf16.gmra.mrb[0].mxu0 %v818
  %v1612 = vpop.f32.mrb[0].mxu0
  %v1613 = vadd.f32 %v284, %v1612
  %v1614 = vpop.f32.mrb[0].mxu0
  %v1615 = vadd.f32 %v288, %v1614
  %v1616 = vpop.f32.mrb[0].mxu0
  %v1617 = vadd.f32 %v284, %v1616
  %v1618 = vpop.f32.mrb[0].mxu0
  %v1619 = vadd.f32 %v288, %v1618
  %1620 = vmatprep.mubr.bf16.mxu0 %v824
  %1621 = vmatmul.mubr.bf16.gmra.mrb[0].mxu0 %v823
  %v1622 = vpop.f32.mrb[0].mxu0
  %v1623 = vadd.f32 %v284, %v1622
  %v1624 = vpop.f32.mrb[0].mxu0
  %v1625 = vadd.f32 %v288, %v1624
  %v1626 = vpop.f32.mrb[0].mxu0
  %v1627 = vadd.f32 %v284, %v1626
  %v1628 = vpop.f32.mrb[0].mxu0
  %v1629 = vadd.f32 %v288, %v1628
  %1630 = vmatprep.mubr.bf16.mxu0 %v829
  %1631 = vmatmul.mubr.bf16.gmra.mrb[0].mxu0 %v828
  %v1632 = vpop.f32.mrb[0].mxu0
  %v1633 = vadd.f32 %v284, %v1632
  %v1634 = vpop.f32.mrb[0].mxu0
  %v1635 = vadd.f32 %v288, %v1634
  %v1636 = vpop.f32.mrb[0].mxu0
  %v1637 = vadd.f32 %v284, %v1636
  %v1638 = vpop.f32.mrb[0].mxu0
  %v1639 = vadd.f32 %v288, %v1638
  %1640 = vmatprep.mubr.bf16.mxu0 %v834
  %1641 = vmatmul.mubr.bf16.gmra.mrb[0].mxu0 %v833
  %v1642 = vpop.f32.mrb[0].mxu0
  %v1643 = vadd.f32 %v284, %v1642
  %v1644 = vpop.f32.mrb[0].mxu0
  %v1645 = vadd.f32 %v288, %v1644
  %v1646 = vpop.f32.mrb[0].mxu0
  %v1647 = vadd.f32 %v284, %v1646
  %v1648 = vpop.f32.mrb[0].mxu0
  %v1649 = vadd.f32 %v288, %v1648
  %1650 = vmatprep.mubr.bf16.mxu0 %v839
  %1651 = vmatmul.mubr.bf16.gmra.mrb[0].mxu0 %v838
  %v1652 = vpop.f32.mrb[0].mxu0
  %v1653 = vadd.f32 %v284, %v1652
  %v1654 = vpop.f32.mrb[0].mxu0
  %v1655 = vadd.f32 %v288, %v1654
  %v1656 = vpop.f32.mrb[0].mxu0
  %v1657 = vadd.f32 %v284, %v1656
  %v1658 = vpop.f32.mrb[0].mxu0
  %v1659 = vadd.f32 %v288, %v1658
  %1660 = vmatprep.mubr.bf16.mxu0 %v844
  %1661 = vmatmul.mubr.bf16.gmra.mrb[0].mxu0 %v843
  %v1662 = vpop.f32.mrb[0].mxu0
  %v1663 = vadd.f32 %v284, %v1662
  %v1664 = vpop.f32.mrb[0].mxu0
  %v1665 = vadd.f32 %v288, %v1664
  %v1666 = vpop.f32.mrb[0].mxu0
  %v1667 = vadd.f32 %v284, %v1666
  %v1668 = vpop.f32.mrb[0].mxu0
  %v1669 = vadd.f32 %v288, %v1668
  %1670 = vmatprep.mubr.bf16.mxu0 %v849
  %1671 = vmatmul.mubr.bf16.gmra.mrb[0].mxu0 %v848
  %v1672 = vpop.f32.mrb[0].mxu0
  %v1673 = vadd.f32 %v284, %v1672
  %v1674 = vpop.f32.mrb[0].mxu0
  %v1675 = vadd.f32 %v288, %v1674
  %v1676 = vpop.f32.mrb[0].mxu0
  %v1677 = vadd.f32 %v284, %v1676
  %v1678 = vpop.f32.mrb[0].mxu0
  %v1679 = vadd.f32 %v288, %v1678
  %1680 = vmatprep.mubr.bf16.mxu0 %v854
  %1681 = vmatmul.mubr.bf16.gmra.mrb[0].mxu0 %v853
  %v1682 = vpop.f32.mrb[0].mxu0
  %v1683 = vadd.f32 %v284, %v1682
  %v1684 = vpop.f32.mrb[0].mxu0
  %v1685 = vadd.f32 %v288, %v1684
  %v1686 = vpop.f32.mrb[0].mxu0
  %v1687 = vadd.f32 %v284, %v1686
  %v1688 = vpop.f32.mrb[0].mxu0
  %v1689 = vadd.f32 %v288, %v1688
  %1690 = vmatprep.mubr.bf16.mxu0 %v859
  %1691 = vmatmul.mubr.bf16.gmra.mrb[0].mxu0 %v858
  %v1692 = vpop.f32.mrb[0].mxu0
  %v1693 = vadd.f32 %v284, %v1692
  %v1694 = vpop.f32.mrb[0].mxu0
  %v1695 = vadd.f32 %v288, %v1694
  %v1696 = vpop.f32.mrb[0].mxu0
  %v1697 = vadd.f32 %v284, %v1696
  %v1698 = vpop.f32.mrb[0].mxu0
  %v1699 = vadd.f32 %v288, %v1698
  %1700 = vmatprep.mubr.bf16.mxu0 %v864
  %1701 = vmatmul.mubr.bf16.gmra.mrb[0].mxu0 %v863
  %v1702 = vpop.f32.mrb[0].mxu0
  %v1703 = vadd.f32 %v284, %v1702
  %v1704 = vpop.f32.mrb[0].mxu0
  %v1705 = vadd.f32 %v288, %v1704
  %v1706 = vpop.f32.mrb[0].mxu0
  %v1707 = vadd.f32 %v284, %v1706
  %v1708 = vpop.f32.mrb[0].mxu0
  %v1709 = vadd.f32 %v288, %v1708
  %1710 = vmatprep.mubr.bf16.mxu0 %v869
  %1711 = vmatmul.mubr.bf16.gmra.mrb[0].mxu0 %v868
  %v1712 = vpop.f32.mrb[0].mxu0
  %v1713 = vadd.f32 %v284, %v1712
  %v1714 = vpop.f32.mrb[0].mxu0
  %v1715 = vadd.f32 %v288, %v1714
  %v1716 = vpop.f32.mrb[0].mxu0
  %v1717 = vadd.f32 %v284, %v1716
  %v1718 = vpop.f32.mrb[0].mxu0
  %v1719 = vadd.f32 %v288, %v1718
  %1720 = vmatprep.mubr.bf16.mxu0 %v874
  %1721 = vmatmul.mubr.bf16.gmra.mrb[0].mxu0 %v873
  %v1722 = vpop.f32.mrb[0].mxu0
  %v1723 = vadd.f32 %v284, %v1722
  %v1724 = vpop.f32.mrb[0].mxu0
  %v1725 = vadd.f32 %v288, %v1724
  %v1726 = vpop.f32.mrb[0].mxu0
  %v1727 = vadd.f32 %v284, %v1726
  %v1728 = vpop.f32.mrb[0].mxu0
  %v1729 = vadd.f32 %v288, %v1728
  %1730 = vmatprep.mubr.bf16.mxu0 %v879
  %1731 = vmatmul.mubr.bf16.gmra.mrb[0].mxu0 %v878
  %v1732 = vpop.f32.mrb[0].mxu0
  %v1733 = vadd.f32 %v284, %v1732
  %v1734 = vpop.f32.mrb[0].mxu0
  %v1735 = vadd.f32 %v288, %v1734
  %v1736 = vpop.f32.mrb[0].mxu0
  %v1737 = vadd.f32 %v284, %v1736
  %v1738 = vpop.f32.mrb[0].mxu0
  %v1739 = vadd.f32 %v288, %v1738
  %1740 = vmatprep.mubr.bf16.mxu0 %v884
  %1741 = vmatmul.mubr.bf16.gmra.mrb[0].mxu0 %v883
  %v1742 = vpop.f32.mrb[0].mxu0
  %v1743 = vadd.f32 %v284, %v1742
  %v1744 = vpop.f32.mrb[0].mxu0
  %v1745 = vadd.f32 %v288, %v1744
  %v1746 = vpop.f32.mrb[0].mxu0
  %v1747 = vadd.f32 %v284, %v1746
  %v1748 = vpop.f32.mrb[0].mxu0
  %v1749 = vadd.f32 %v288, %v1748
  %1750 = vmatprep.mubr.bf16.mxu0 %v889
  %1751 = vmatmul.mubr.bf16.gmra.mrb[0].mxu0 %v888
  %v1752 = vpop.f32.mrb[0].mxu0
  %v1753 = vadd.f32 %v284, %v1752
  %v1754 = vpop.f32.mrb[0].mxu0
  %v1755 = vadd.f32 %v288, %v1754
  %v1756 = vpop.f32.mrb[0].mxu0
  %v1757 = vadd.f32 %v284, %v1756
  %v1758 = vpop.f32.mrb[0].mxu0
  %v1759 = vadd.f32 %v288, %v1758
  %1760 = vmatprep.mubr.bf16.mxu0 %v894
  %1761 = vmatmul.mubr.bf16.gmra.mrb[0].mxu0 %v893
  %v1762 = vpop.f32.mrb[0].mxu0
  %v1763 = vadd.f32 %v284, %v1762
  %v1764 = vpop.f32.mrb[0].mxu0
  %v1765 = vadd.f32 %v288, %v1764
  %v1766 = vpop.f32.mrb[0].mxu0
  %v1767 = vadd.f32 %v284, %v1766
  %v1768 = vpop.f32.mrb[0].mxu0
  %v1769 = vadd.f32 %v288, %v1768
  %1770 = vmatprep.mubr.bf16.mxu0 %v899
  %1771 = vmatmul.mubr.bf16.gmra.mrb[0].mxu0 %v898
  %v1772 = vpop.f32.mrb[0].mxu0
  %v1773 = vadd.f32 %v284, %v1772
  %v1774 = vpop.f32.mrb[0].mxu0
  %v1775 = vadd.f32 %v288, %v1774
  %v1776 = vpop.f32.mrb[0].mxu0
  %v1777 = vadd.f32 %v284, %v1776
  %v1778 = vpop.f32.mrb[0].mxu0
  %v1779 = vadd.f32 %v288, %v1778
  %1780 = vmatprep.mubr.bf16.mxu0 %v904
  %1781 = vmatmul.mubr.bf16.gmra.mrb[0].mxu0 %v903
  %v1782 = vpop.f32.mrb[0].mxu0
  %v1783 = vadd.f32 %v284, %v1782
  %v1784 = vpop.f32.mrb[0].mxu0
  %v1785 = vadd.f32 %v288, %v1784
  %v1786 = vpop.f32.mrb[0].mxu0
  %v1787 = vadd.f32 %v284, %v1786
  %v1788 = vpop.f32.mrb[0].mxu0
  %v1789 = vadd.f32 %v288, %v1788
  %1790 = vmatprep.mubr.bf16.mxu0 %v909
  %1791 = vmatmul.mubr.bf16.gmra.mrb[0].mxu0 %v908
  %v1792 = vpop.f32.mrb[0].mxu0
  %v1793 = vadd.f32 %v284, %v1792
  %v1794 = vpop.f32.mrb[0].mxu0
  %v1795 = vadd.f32 %v288, %v1794
  %v1796 = vpop.f32.mrb[0].mxu0
  %v1797 = vadd.f32 %v284, %v1796
  %v1798 = vpop.f32.mrb[0].mxu0
  %v1799 = vadd.f32 %v288, %v1798
  %1800 = vmatprep.mubr.bf16.mxu0 %v914
  %1801 = vmatmul.mubr.bf16.gmra.mrb[0].mxu0 %v913
  %v1802 = vpop.f32.mrb[0].mxu0
  %v1803 = vadd.f32 %v284, %v1802
  %v1804 = vpop.f32.mrb[0].mxu0
  %v1805 = vadd.f32 %v288, %v1804
  %v1806 = vpop.f32.mrb[0].mxu0
  %v1807 = vadd.f32 %v284, %v1806
  %v1808 = vpop.f32.mrb[0].mxu0
  %v1809 = vadd.f32 %v288, %v1808
  %1810 = vmatprep.mubr.bf16.mxu0 %v919
  %1811 = vmatmul.mubr.bf16.gmra.mrb[0].mxu0 %v918
  %v1812 = vpop.f32.mrb[0].mxu0
  %v1813 = vadd.f32 %v284, %v1812
  %v1814 = vpop.f32.mrb[0].mxu0
  %v1815 = vadd.f32 %v288, %v1814
  %v1816 = vpop.f32.mrb[0].mxu0
  %v1817 = vadd.f32 %v284, %v1816
  %v1818 = vpop.f32.mrb[0].mxu0
  %v1819 = vadd.f32 %v288, %v1818
  %1820 = vmatprep.mubr.bf16.mxu0 %v924
  %1821 = vmatmul.mubr.bf16.gmra.mrb[0].mxu0 %v923
  %v1822 = vpop.f32.mrb[0].mxu0
  %v1823 = vadd.f32 %v284, %v1822
  %v1824 = vpop.f32.mrb[0].mxu0
  %v1825 = vadd.f32 %v288, %v1824
  %v1826 = vpop.f32.mrb[0].mxu0
  %v1827 = vadd.f32 %v284, %v1826
  %v1828 = vpop.f32.mrb[0].mxu0
  %v1829 = vadd.f32 %v288, %v1828
  %1830 = vmatprep.mubr.bf16.mxu0 %v929
  %1831 = vmatmul.mubr.bf16.gmra.mrb[0].mxu0 %v928
  %v1832 = vpop.f32.mrb[0].mxu0
  %v1833 = vadd.f32 %v284, %v1832
  %v1834 = vpop.f32.mrb[0].mxu0
  %v1835 = vadd.f32 %v288, %v1834
  %v1836 = vpop.f32.mrb[0].mxu0
  %v1837 = vadd.f32 %v284, %v1836
  %v1838 = vpop.f32.mrb[0].mxu0
  %v1839 = vadd.f32 %v288, %v1838
  %1840 = vmatprep.mubr.bf16.mxu0 %v934
  %1841 = vmatmul.mubr.bf16.gmra.mrb[0].mxu0 %v933
  %v1842 = vpop.f32.mrb[0].mxu0
  %v1843 = vadd.f32 %v284, %v1842
  %v1844 = vpop.f32.mrb[0].mxu0
  %v1845 = vadd.f32 %v288, %v1844
  %v1846 = vpop.f32.mrb[0].mxu0
  %v1847 = vadd.f32 %v284, %v1846
  %v1848 = vpop.f32.mrb[0].mxu0
  %v1849 = vadd.f32 %v288, %v1848
  %1850 = vmatprep.mubr.bf16.mxu0 %v939
  %1851 = vmatmul.mubr.bf16.gmra.mrb[0].mxu0 %v938
  %v1852 = vpop.f32.mrb[0].mxu0
  %v1853 = vadd.f32 %v284, %v1852
  %v1854 = vpop.f32.mrb[0].mxu0
  %v1855 = vadd.f32 %v288, %v1854
  %v1856 = vpop.f32.mrb[0].mxu0
  %v1857 = vadd.f32 %v284, %v1856
  %v1858 = vpop.f32.mrb[0].mxu0
  %v1859 = vadd.f32 %v288, %v1858
  %1860 = vmatprep.mubr.bf16.mxu0 %v944
  %1861 = vmatmul.mubr.bf16.gmra.mrb[0].mxu0 %v943
  %v1862 = vpop.f32.mrb[0].mxu0
  %v1863 = vadd.f32 %v284, %v1862
  %v1864 = vpop.f32.mrb[0].mxu0
  %v1865 = vadd.f32 %v288, %v1864
  %v1866 = vpop.f32.mrb[0].mxu0
  %v1867 = vadd.f32 %v284, %v1866
  %v1868 = vpop.f32.mrb[0].mxu0
  %v1869 = vadd.f32 %v288, %v1868
  %1870 = vmatprep.mubr.bf16.mxu0 %v949
  %1871 = vmatmul.mubr.bf16.gmra.mrb[0].mxu0 %v948
  %v1872 = vpop.f32.mrb[0].mxu0
  %v1873 = vadd.f32 %v284, %v1872
  %v1874 = vpop.f32.mrb[0].mxu0
  %v1875 = vadd.f32 %v288, %v1874
  %v1876 = vpop.f32.mrb[0].mxu0
  %v1877 = vadd.f32 %v284, %v1876
  %v1878 = vpop.f32.mrb[0].mxu0
  %v1879 = vadd.f32 %v288, %v1878
  %1880 = vmatprep.mubr.bf16.mxu0 %v954
  %1881 = vmatmul.mubr.bf16.gmra.mrb[0].mxu0 %v953
  %v1882 = vpop.f32.mrb[0].mxu0
  %v1883 = vadd.f32 %v284, %v1882
  %v1884 = vpop.f32.mrb[0].mxu0
  %v1885 = vadd.f32 %v288, %v1884
  %v1886 = vpop.f32.mrb[0].mxu0
  %v1887 = vadd.f32 %v284, %v1886
  %v1888 = vpop.f32.mrb[0].mxu0
  %v1889 = vadd.f32 %v288, %v1888
  %1890 = vmatprep.mubr.bf16.mxu0 %v959
  %1891 = vmatmul.mubr.bf16.gmra.mrb[0].mxu0 %v958
  %v1892 = vpop.f32.mrb[0].mxu0
  %v1893 = vadd.f32 %v284, %v1892
  %v1894 = vpop.f32.mrb[0].mxu0
  %v1895 = vadd.f32 %v288, %v1894
  %v1896 = vpop.f32.mrb[0].mxu0
  %v1897 = vadd.f32 %v284, %v1896
  %v1898 = vpop.f32.mrb[0].mxu0
  %v1899 = vadd.f32 %v288, %v1898
  %1900 = vdwg.mxu0
  %1901 = vmatprep.subr.bf16.mxu0 %v1340
  %1902 = vmatpush1.bf16.msra.mxu0 %v1339
  %1903 = vmatprep.subr.bf16.mxu0 %v1342
  %1904 = vmatpush1.bf16.msra.mxu0 %v1341
  %1905 = vmatprep.subr.bf16.mxu0 %v1344
  %1906 = vmatpush1.bf16.msra.mxu0 %v1343
  %1907 = vmatprep.subr.bf16.mxu0 %v1346
  %1908 = vmatpush1.bf16.msra.mxu0 %v1345
  %1909 = vmatprep.subr.bf16.mxu0 %v1348
  %1910 = vmatpush1.bf16.msra.mxu0 %v1347
  %1911 = vmatprep.subr.bf16.mxu0 %v1350
  %1912 = vmatpush1.bf16.msra.mxu0 %v1349
  %1913 = vmatprep.subr.bf16.mxu0 %v1352
  %1914 = vmatpush1.bf16.msra.mxu0 %v1351
  %1915 = vmatprep.subr.bf16.mxu0 %v1354
  %1916 = vmatpush1.bf16.msra.mxu0 %v1353
  %1917 = vmatprep.subr.bf16.mxu0 %v1356
  %1918 = vmatpush1.bf16.msra.mxu0 %v1355
  %1919 = vmatprep.subr.bf16.mxu0 %v1358
  %1920 = vmatpush1.bf16.msra.mxu0 %v1357
  %1921 = vmatprep.subr.bf16.mxu0 %v1360
  %1922 = vmatpush1.bf16.msra.mxu0 %v1359
  %1923 = vmatprep.subr.bf16.mxu0 %v1362
  %1924 = vmatpush1.bf16.msra.mxu0 %v1361
  %1925 = vmatprep.subr.bf16.mxu0 %v1364
  %1926 = vmatpush1.bf16.msra.mxu0 %v1363
  %1927 = vmatprep.subr.bf16.mxu0 %v1366
  %1928 = vmatpush1.bf16.msra.mxu0 %v1365
  %1929 = vmatprep.subr.bf16.mxu0 %v1368
  %1930 = vmatpush1.bf16.msra.mxu0 %v1367
  %1931 = vmatprep.subr.bf16.mxu0 %v1370
  %1932 = vmatpush1.bf16.msra.mxu0 %v1369
  %1933 = vmatprep.mubr.bf16.mxu0 %v806
  %1934 = vmatmul.mubr.bf16.gmra.mrb[0].mxu0 %v805
  %v1935 = vpop.f32.mrb[0].mxu0
  %v1936 = vadd.f32 %v1583, %v1935
  %v1937 = vpop.f32.mrb[0].mxu0
  %v1938 = vadd.f32 %v1585, %v1937
  %v1939 = vpop.f32.mrb[0].mxu0
  %v1940 = vadd.f32 %v1587, %v1939
  %v1941 = vpop.f32.mrb[0].mxu0
  %v1942 = vadd.f32 %v1589, %v1941
  %1943 = vmatprep.mubr.bf16.mxu0 %v811
  %1944 = vmatmul.mubr.bf16.gmra.mrb[0].mxu0 %v810
  %v1945 = vpop.f32.mrb[0].mxu0
  %v1946 = vadd.f32 %v1593, %v1945
  %v1947 = vpop.f32.mrb[0].mxu0
  %v1948 = vadd.f32 %v1595, %v1947
  %v1949 = vpop.f32.mrb[0].mxu0
  %v1950 = vadd.f32 %v1597, %v1949
  %v1951 = vpop.f32.mrb[0].mxu0
  %v1952 = vadd.f32 %v1599, %v1951
  %1953 = vmatprep.mubr.bf16.mxu0 %v816
  %1954 = vmatmul.mubr.bf16.gmra.mrb[0].mxu0 %v815
  %v1955 = vpop.f32.mrb[0].mxu0
  %v1956 = vadd.f32 %v1603, %v1955
  %v1957 = vpop.f32.mrb[0].mxu0
  %v1958 = vadd.f32 %v1605, %v1957
  %v1959 = vpop.f32.mrb[0].mxu0
  %v1960 = vadd.f32 %v1607, %v1959
  %v1961 = vpop.f32.mrb[0].mxu0
  %v1962 = vadd.f32 %v1609, %v1961
  %1963 = vmatprep.mubr.bf16.mxu0 %v821
  %1964 = vmatmul.mubr.bf16.gmra.mrb[0].mxu0 %v820
  %v1965 = vpop.f32.mrb[0].mxu0
  %v1966 = vadd.f32 %v1613, %v1965
  %v1967 = vpop.f32.mrb[0].mxu0
  %v1968 = vadd.f32 %v1615, %v1967
  %v1969 = vpop.f32.mrb[0].mxu0
  %v1970 = vadd.f32 %v1617, %v1969
  %v1971 = vpop.f32.mrb[0].mxu0
  %v1972 = vadd.f32 %v1619, %v1971
  %1973 = vmatprep.mubr.bf16.mxu0 %v826
  %1974 = vmatmul.mubr.bf16.gmra.mrb[0].mxu0 %v825
  %v1975 = vpop.f32.mrb[0].mxu0
  %v1976 = vadd.f32 %v1623, %v1975
  %v1977 = vpop.f32.mrb[0].mxu0
  %v1978 = vadd.f32 %v1625, %v1977
  %v1979 = vpop.f32.mrb[0].mxu0
  %v1980 = vadd.f32 %v1627, %v1979
  %v1981 = vpop.f32.mrb[0].mxu0
  %v1982 = vadd.f32 %v1629, %v1981
  %1983 = vmatprep.mubr.bf16.mxu0 %v831
  %1984 = vmatmul.mubr.bf16.gmra.mrb[0].mxu0 %v830
  %v1985 = vpop.f32.mrb[0].mxu0
  %v1986 = vadd.f32 %v1633, %v1985
  %v1987 = vpop.f32.mrb[0].mxu0
  %v1988 = vadd.f32 %v1635, %v1987
  %v1989 = vpop.f32.mrb[0].mxu0
  %v1990 = vadd.f32 %v1637, %v1989
  %v1991 = vpop.f32.mrb[0].mxu0
  %v1992 = vadd.f32 %v1639, %v1991
  %1993 = vmatprep.mubr.bf16.mxu0 %v836
  %1994 = vmatmul.mubr.bf16.gmra.mrb[0].mxu0 %v835
  %v1995 = vpop.f32.mrb[0].mxu0
  %v1996 = vadd.f32 %v1643, %v1995
  %v1997 = vpop.f32.mrb[0].mxu0
  %v1998 = vadd.f32 %v1645, %v1997
  %v1999 = vpop.f32.mrb[0].mxu0
  %v2000 = vadd.f32 %v1647, %v1999
  %v2001 = vpop.f32.mrb[0].mxu0
  %v2002 = vadd.f32 %v1649, %v2001
  %2003 = vmatprep.mubr.bf16.mxu0 %v841
  %2004 = vmatmul.mubr.bf16.gmra.mrb[0].mxu0 %v840
  %v2005 = vpop.f32.mrb[0].mxu0
  %v2006 = vadd.f32 %v1653, %v2005
  %v2007 = vpop.f32.mrb[0].mxu0
  %v2008 = vadd.f32 %v1655, %v2007
  %v2009 = vpop.f32.mrb[0].mxu0
  %v2010 = vadd.f32 %v1657, %v2009
  %v2011 = vpop.f32.mrb[0].mxu0
  %v2012 = vadd.f32 %v1659, %v2011
  %2013 = vmatprep.mubr.bf16.mxu0 %v846
  %2014 = vmatmul.mubr.bf16.gmra.mrb[0].mxu0 %v845
  %v2015 = vpop.f32.mrb[0].mxu0
  %v2016 = vadd.f32 %v1663, %v2015
  %v2017 = vpop.f32.mrb[0].mxu0
  %v2018 = vadd.f32 %v1665, %v2017
  %v2019 = vpop.f32.mrb[0].mxu0
  %v2020 = vadd.f32 %v1667, %v2019
  %v2021 = vpop.f32.mrb[0].mxu0
  %v2022 = vadd.f32 %v1669, %v2021
  %2023 = vmatprep.mubr.bf16.mxu0 %v851
  %2024 = vmatmul.mubr.bf16.gmra.mrb[0].mxu0 %v850
  %v2025 = vpop.f32.mrb[0].mxu0
  %v2026 = vadd.f32 %v1673, %v2025
  %v2027 = vpop.f32.mrb[0].mxu0
  %v2028 = vadd.f32 %v1675, %v2027
  %v2029 = vpop.f32.mrb[0].mxu0
  %v2030 = vadd.f32 %v1677, %v2029
  %v2031 = vpop.f32.mrb[0].mxu0
  %v2032 = vadd.f32 %v1679, %v2031
  %2033 = vmatprep.mubr.bf16.mxu0 %v856
  %2034 = vmatmul.mubr.bf16.gmra.mrb[0].mxu0 %v855
  %v2035 = vpop.f32.mrb[0].mxu0
  %v2036 = vadd.f32 %v1683, %v2035
  %v2037 = vpop.f32.mrb[0].mxu0
  %v2038 = vadd.f32 %v1685, %v2037
  %v2039 = vpop.f32.mrb[0].mxu0
  %v2040 = vadd.f32 %v1687, %v2039
  %v2041 = vpop.f32.mrb[0].mxu0
  %v2042 = vadd.f32 %v1689, %v2041
  %2043 = vmatprep.mubr.bf16.mxu0 %v861
  %2044 = vmatmul.mubr.bf16.gmra.mrb[0].mxu0 %v860
  %v2045 = vpop.f32.mrb[0].mxu0
  %v2046 = vadd.f32 %v1693, %v2045
  %v2047 = vpop.f32.mrb[0].mxu0
  %v2048 = vadd.f32 %v1695, %v2047
  %v2049 = vpop.f32.mrb[0].mxu0
  %v2050 = vadd.f32 %v1697, %v2049
  %v2051 = vpop.f32.mrb[0].mxu0
  %v2052 = vadd.f32 %v1699, %v2051
  %2053 = vmatprep.mubr.bf16.mxu0 %v866
  %2054 = vmatmul.mubr.bf16.gmra.mrb[0].mxu0 %v865
  %v2055 = vpop.f32.mrb[0].mxu0
  %v2056 = vadd.f32 %v1703, %v2055
  %v2057 = vpop.f32.mrb[0].mxu0
  %v2058 = vadd.f32 %v1705, %v2057
  %v2059 = vpop.f32.mrb[0].mxu0
  %v2060 = vadd.f32 %v1707, %v2059
  %v2061 = vpop.f32.mrb[0].mxu0
  %v2062 = vadd.f32 %v1709, %v2061
  %2063 = vmatprep.mubr.bf16.mxu0 %v871
  %2064 = vmatmul.mubr.bf16.gmra.mrb[0].mxu0 %v870
  %v2065 = vpop.f32.mrb[0].mxu0
  %v2066 = vadd.f32 %v1713, %v2065
  %v2067 = vpop.f32.mrb[0].mxu0
  %v2068 = vadd.f32 %v1715, %v2067
  %v2069 = vpop.f32.mrb[0].mxu0
  %v2070 = vadd.f32 %v1717, %v2069
  %v2071 = vpop.f32.mrb[0].mxu0
  %v2072 = vadd.f32 %v1719, %v2071
  %2073 = vmatprep.mubr.bf16.mxu0 %v876
  %2074 = vmatmul.mubr.bf16.gmra.mrb[0].mxu0 %v875
  %v2075 = vpop.f32.mrb[0].mxu0
  %v2076 = vadd.f32 %v1723, %v2075
  %v2077 = vpop.f32.mrb[0].mxu0
  %v2078 = vadd.f32 %v1725, %v2077
  %v2079 = vpop.f32.mrb[0].mxu0
  %v2080 = vadd.f32 %v1727, %v2079
  %v2081 = vpop.f32.mrb[0].mxu0
  %v2082 = vadd.f32 %v1729, %v2081
  %2083 = vmatprep.mubr.bf16.mxu0 %v881
  %2084 = vmatmul.mubr.bf16.gmra.mrb[0].mxu0 %v880
  %v2085 = vpop.f32.mrb[0].mxu0
  %v2086 = vadd.f32 %v1733, %v2085
  %v2087 = vpop.f32.mrb[0].mxu0
  %v2088 = vadd.f32 %v1735, %v2087
  %v2089 = vpop.f32.mrb[0].mxu0
  %v2090 = vadd.f32 %v1737, %v2089
  %v2091 = vpop.f32.mrb[0].mxu0
  %v2092 = vadd.f32 %v1739, %v2091
  %2093 = vmatprep.mubr.bf16.mxu0 %v886
  %2094 = vmatmul.mubr.bf16.gmra.mrb[0].mxu0 %v885
  %v2095 = vpop.f32.mrb[0].mxu0
  %v2096 = vadd.f32 %v1743, %v2095
  %v2097 = vpop.f32.mrb[0].mxu0
  %v2098 = vadd.f32 %v1745, %v2097
  %v2099 = vpop.f32.mrb[0].mxu0
  %v2100 = vadd.f32 %v1747, %v2099
  %v2101 = vpop.f32.mrb[0].mxu0
  %v2102 = vadd.f32 %v1749, %v2101
  %2103 = vmatprep.mubr.bf16.mxu0 %v891
  %2104 = vmatmul.mubr.bf16.gmra.mrb[0].mxu0 %v890
  %v2105 = vpop.f32.mrb[0].mxu0
  %v2106 = vadd.f32 %v1753, %v2105
  %v2107 = vpop.f32.mrb[0].mxu0
  %v2108 = vadd.f32 %v1755, %v2107
  %v2109 = vpop.f32.mrb[0].mxu0
  %v2110 = vadd.f32 %v1757, %v2109
  %v2111 = vpop.f32.mrb[0].mxu0
  %v2112 = vadd.f32 %v1759, %v2111
  %2113 = vmatprep.mubr.bf16.mxu0 %v896
  %2114 = vmatmul.mubr.bf16.gmra.mrb[0].mxu0 %v895
  %v2115 = vpop.f32.mrb[0].mxu0
  %v2116 = vadd.f32 %v1763, %v2115
  %v2117 = vpop.f32.mrb[0].mxu0
  %v2118 = vadd.f32 %v1765, %v2117
  %v2119 = vpop.f32.mrb[0].mxu0
  %v2120 = vadd.f32 %v1767, %v2119
  %v2121 = vpop.f32.mrb[0].mxu0
  %v2122 = vadd.f32 %v1769, %v2121
  %2123 = vmatprep.mubr.bf16.mxu0 %v901
  %2124 = vmatmul.mubr.bf16.gmra.mrb[0].mxu0 %v900
  %v2125 = vpop.f32.mrb[0].mxu0
  %v2126 = vadd.f32 %v1773, %v2125
  %v2127 = vpop.f32.mrb[0].mxu0
  %v2128 = vadd.f32 %v1775, %v2127
  %v2129 = vpop.f32.mrb[0].mxu0
  %v2130 = vadd.f32 %v1777, %v2129
  %v2131 = vpop.f32.mrb[0].mxu0
  %v2132 = vadd.f32 %v1779, %v2131
  %2133 = vmatprep.mubr.bf16.mxu0 %v906
  %2134 = vmatmul.mubr.bf16.gmra.mrb[0].mxu0 %v905
  %v2135 = vpop.f32.mrb[0].mxu0
  %v2136 = vadd.f32 %v1783, %v2135
  %v2137 = vpop.f32.mrb[0].mxu0
  %v2138 = vadd.f32 %v1785, %v2137
  %v2139 = vpop.f32.mrb[0].mxu0
  %v2140 = vadd.f32 %v1787, %v2139
  %v2141 = vpop.f32.mrb[0].mxu0
  %v2142 = vadd.f32 %v1789, %v2141
  %2143 = vmatprep.mubr.bf16.mxu0 %v911
  %2144 = vmatmul.mubr.bf16.gmra.mrb[0].mxu0 %v910
  %v2145 = vpop.f32.mrb[0].mxu0
  %v2146 = vadd.f32 %v1793, %v2145
  %v2147 = vpop.f32.mrb[0].mxu0
  %v2148 = vadd.f32 %v1795, %v2147
  %v2149 = vpop.f32.mrb[0].mxu0
  %v2150 = vadd.f32 %v1797, %v2149
  %v2151 = vpop.f32.mrb[0].mxu0
  %v2152 = vadd.f32 %v1799, %v2151
  %2153 = vmatprep.mubr.bf16.mxu0 %v916
  %2154 = vmatmul.mubr.bf16.gmra.mrb[0].mxu0 %v915
  %v2155 = vpop.f32.mrb[0].mxu0
  %v2156 = vadd.f32 %v1803, %v2155
  %v2157 = vpop.f32.mrb[0].mxu0
  %v2158 = vadd.f32 %v1805, %v2157
  %v2159 = vpop.f32.mrb[0].mxu0
  %v2160 = vadd.f32 %v1807, %v2159
  %v2161 = vpop.f32.mrb[0].mxu0
  %v2162 = vadd.f32 %v1809, %v2161
  %2163 = vmatprep.mubr.bf16.mxu0 %v921
  %2164 = vmatmul.mubr.bf16.gmra.mrb[0].mxu0 %v920
  %v2165 = vpop.f32.mrb[0].mxu0
  %v2166 = vadd.f32 %v1813, %v2165
  %v2167 = vpop.f32.mrb[0].mxu0
  %v2168 = vadd.f32 %v1815, %v2167
  %v2169 = vpop.f32.mrb[0].mxu0
  %v2170 = vadd.f32 %v1817, %v2169
  %v2171 = vpop.f32.mrb[0].mxu0
  %v2172 = vadd.f32 %v1819, %v2171
  %2173 = vmatprep.mubr.bf16.mxu0 %v926
  %2174 = vmatmul.mubr.bf16.gmra.mrb[0].mxu0 %v925
  %v2175 = vpop.f32.mrb[0].mxu0
  %v2176 = vadd.f32 %v1823, %v2175
  %v2177 = vpop.f32.mrb[0].mxu0
  %v2178 = vadd.f32 %v1825, %v2177
  %v2179 = vpop.f32.mrb[0].mxu0
  %v2180 = vadd.f32 %v1827, %v2179
  %v2181 = vpop.f32.mrb[0].mxu0
  %v2182 = vadd.f32 %v1829, %v2181
  %2183 = vmatprep.mubr.bf16.mxu0 %v931
  %2184 = vmatmul.mubr.bf16.gmra.mrb[0].mxu0 %v930
  %v2185 = vpop.f32.mrb[0].mxu0
  %v2186 = vadd.f32 %v1833, %v2185
  %v2187 = vpop.f32.mrb[0].mxu0
  %v2188 = vadd.f32 %v1835, %v2187
  %v2189 = vpop.f32.mrb[0].mxu0
  %v2190 = vadd.f32 %v1837, %v2189
  %v2191 = vpop.f32.mrb[0].mxu0
  %v2192 = vadd.f32 %v1839, %v2191
  %2193 = vmatprep.mubr.bf16.mxu0 %v936
  %2194 = vmatmul.mubr.bf16.gmra.mrb[0].mxu0 %v935
  %v2195 = vpop.f32.mrb[0].mxu0
  %v2196 = vadd.f32 %v1843, %v2195
  %v2197 = vpop.f32.mrb[0].mxu0
  %v2198 = vadd.f32 %v1845, %v2197
  %v2199 = vpop.f32.mrb[0].mxu0
  %v2200 = vadd.f32 %v1847, %v2199
  %v2201 = vpop.f32.mrb[0].mxu0
  %v2202 = vadd.f32 %v1849, %v2201
  %2203 = vmatprep.mubr.bf16.mxu0 %v941
  %2204 = vmatmul.mubr.bf16.gmra.mrb[0].mxu0 %v940
  %v2205 = vpop.f32.mrb[0].mxu0
  %v2206 = vadd.f32 %v1853, %v2205
  %v2207 = vpop.f32.mrb[0].mxu0
  %v2208 = vadd.f32 %v1855, %v2207
  %v2209 = vpop.f32.mrb[0].mxu0
  %v2210 = vadd.f32 %v1857, %v2209
  %v2211 = vpop.f32.mrb[0].mxu0
  %v2212 = vadd.f32 %v1859, %v2211
  %2213 = vmatprep.mubr.bf16.mxu0 %v946
  %2214 = vmatmul.mubr.bf16.gmra.mrb[0].mxu0 %v945
  %v2215 = vpop.f32.mrb[0].mxu0
  %v2216 = vadd.f32 %v1863, %v2215
  %v2217 = vpop.f32.mrb[0].mxu0
  %v2218 = vadd.f32 %v1865, %v2217
  %v2219 = vpop.f32.mrb[0].mxu0
  %v2220 = vadd.f32 %v1867, %v2219
  %v2221 = vpop.f32.mrb[0].mxu0
  %v2222 = vadd.f32 %v1869, %v2221
  %2223 = vmatprep.mubr.bf16.mxu0 %v951
  %2224 = vmatmul.mubr.bf16.gmra.mrb[0].mxu0 %v950
  %v2225 = vpop.f32.mrb[0].mxu0
  %v2226 = vadd.f32 %v1873, %v2225
  %v2227 = vpop.f32.mrb[0].mxu0
  %v2228 = vadd.f32 %v1875, %v2227
  %v2229 = vpop.f32.mrb[0].mxu0
  %v2230 = vadd.f32 %v1877, %v2229
  %v2231 = vpop.f32.mrb[0].mxu0
  %v2232 = vadd.f32 %v1879, %v2231
  %2233 = vmatprep.mubr.bf16.mxu0 %v956
  %2234 = vmatmul.mubr.bf16.gmra.mrb[0].mxu0 %v955
  %v2235 = vpop.f32.mrb[0].mxu0
  %v2236 = vadd.f32 %v1883, %v2235
  %v2237 = vpop.f32.mrb[0].mxu0
  %v2238 = vadd.f32 %v1885, %v2237
  %v2239 = vpop.f32.mrb[0].mxu0
  %v2240 = vadd.f32 %v1887, %v2239
  %v2241 = vpop.f32.mrb[0].mxu0
  %v2242 = vadd.f32 %v1889, %v2241
  %2243 = vmatprep.mubr.bf16.mxu0 %v961
  %2244 = vmatmul.mubr.bf16.gmra.mrb[0].mxu0 %v960
  %v2245 = vpop.f32.mrb[0].mxu0
  %v2246 = vadd.f32 %v1893, %v2245
  %v2247 = vpop.f32.mrb[0].mxu0
  %v2248 = vadd.f32 %v1895, %v2247
  %v2249 = vpop.f32.mrb[0].mxu0
  %v2250 = vadd.f32 %v1897, %v2249
  %v2251 = vpop.f32.mrb[0].mxu0
  %v2252 = vadd.f32 %v1899, %v2251
  %2253 = vdwg.mxu0
  %2254 = vmatprep.subr.bf16.mxu0 %v1372
  %2255 = vmatpush1.bf16.msra.mxu0 %v1371
  %2256 = vmatprep.subr.bf16.mxu0 %v1374
  %2257 = vmatpush1.bf16.msra.mxu0 %v1373
  %2258 = vmatprep.subr.bf16.mxu0 %v1376
  %2259 = vmatpush1.bf16.msra.mxu0 %v1375
  %2260 = vmatprep.subr.bf16.mxu0 %v1378
  %2261 = vmatpush1.bf16.msra.mxu0 %v1377
  %2262 = vmatprep.subr.bf16.mxu0 0
  %2263 = vmatpush1.bf16.msra.mxu0 0
  %2264 = vmatprep.subr.bf16.mxu0 0
  %2265 = vmatpush1.bf16.msra.mxu0 0
  %2266 = vmatprep.subr.bf16.mxu0 0
  %2267 = vmatpush1.bf16.msra.mxu0 0
  %2268 = vmatprep.subr.bf16.mxu0 0
  %2269 = vmatpush1.bf16.msra.mxu0 0
  %2270 = vmatprep.subr.bf16.mxu0 0
  %2271 = vmatpush1.bf16.msra.mxu0 0
  %2272 = vmatprep.subr.bf16.mxu0 0
  %2273 = vmatpush1.bf16.msra.mxu0 0
  %2274 = vmatprep.subr.bf16.mxu0 0
  %2275 = vmatpush1.bf16.msra.mxu0 0
  %2276 = vmatprep.subr.bf16.mxu0 0
  %2277 = vmatpush1.bf16.msra.mxu0 0
  %2278 = vmatprep.subr.bf16.mxu0 0
  %2279 = vmatpush1.bf16.msra.mxu0 0
  %2280 = vmatprep.subr.bf16.mxu0 0
  %2281 = vmatpush1.bf16.msra.mxu0 0
  %2282 = vmatprep.subr.bf16.mxu0 0
  %2283 = vmatpush1.bf16.msra.mxu0 0
  %2284 = vmatprep.subr.bf16.mxu0 0
  %2285 = vmatpush1.bf16.msra.mxu0 0
  %2286 = vmatprep.mubr.bf16.mxu0 0
  %2287 = vmatmul.mubr.bf16.gmra.mrb[0].mxu0 %v1453
  %v2288 = vpop.f32.mrb[0].mxu0
  %v2289 = vadd.f32 %v1936, %v2288
  %v2290 = vpop.f32.mrb[0].mxu0
  %v2291 = vadd.f32 %v1938, %v2290
  %v2292 = vpop.f32.mrb[0].mxu0
  %v2293 = vadd.f32 %v1940, %v2292
  %v2294 = vpop.f32.mrb[0].mxu0
  %v2295 = vadd.f32 %v1942, %v2294
  %2296 = vmatprep.mubr.bf16.mxu0 0
  %2297 = vmatmul.mubr.bf16.gmra.mrb[0].mxu0 %v1456
  %v2298 = vpop.f32.mrb[0].mxu0
  %v2299 = vadd.f32 %v1946, %v2298
  %v2300 = vpop.f32.mrb[0].mxu0
  %v2301 = vadd.f32 %v1948, %v2300
  %v2302 = vpop.f32.mrb[0].mxu0
  %v2303 = vadd.f32 %v1950, %v2302
  %v2304 = vpop.f32.mrb[0].mxu0
  %v2305 = vadd.f32 %v1952, %v2304
  %2306 = vmatprep.mubr.bf16.mxu0 0
  %2307 = vmatmul.mubr.bf16.gmra.mrb[0].mxu0 %v1459
  %v2308 = vpop.f32.mrb[0].mxu0
  %v2309 = vadd.f32 %v1956, %v2308
  %v2310 = vpop.f32.mrb[0].mxu0
  %v2311 = vadd.f32 %v1958, %v2310
  %v2312 = vpop.f32.mrb[0].mxu0
  %v2313 = vadd.f32 %v1960, %v2312
  %v2314 = vpop.f32.mrb[0].mxu0
  %v2315 = vadd.f32 %v1962, %v2314
  %2316 = vmatprep.mubr.bf16.mxu0 0
  %2317 = vmatmul.mubr.bf16.gmra.mrb[0].mxu0 %v1462
  %v2318 = vpop.f32.mrb[0].mxu0
  %v2319 = vadd.f32 %v1966, %v2318
  %v2320 = vpop.f32.mrb[0].mxu0
  %v2321 = vadd.f32 %v1968, %v2320
  %v2322 = vpop.f32.mrb[0].mxu0
  %v2323 = vadd.f32 %v1970, %v2322
  %v2324 = vpop.f32.mrb[0].mxu0
  %v2325 = vadd.f32 %v1972, %v2324
  %2326 = vmatprep.mubr.bf16.mxu0 0
  %2327 = vmatmul.mubr.bf16.gmra.mrb[0].mxu0 %v1465
  %v2328 = vpop.f32.mrb[0].mxu0
  %v2329 = vadd.f32 %v1976, %v2328
  %v2330 = vpop.f32.mrb[0].mxu0
  %v2331 = vadd.f32 %v1978, %v2330
  %v2332 = vpop.f32.mrb[0].mxu0
  %v2333 = vadd.f32 %v1980, %v2332
  %v2334 = vpop.f32.mrb[0].mxu0
  %v2335 = vadd.f32 %v1982, %v2334
  %2336 = vmatprep.mubr.bf16.mxu0 0
  %2337 = vmatmul.mubr.bf16.gmra.mrb[0].mxu0 %v1468
  %v2338 = vpop.f32.mrb[0].mxu0
  %v2339 = vadd.f32 %v1986, %v2338
  %v2340 = vpop.f32.mrb[0].mxu0
  %v2341 = vadd.f32 %v1988, %v2340
  %v2342 = vpop.f32.mrb[0].mxu0
  %v2343 = vadd.f32 %v1990, %v2342
  %v2344 = vpop.f32.mrb[0].mxu0
  %v2345 = vadd.f32 %v1992, %v2344
  %2346 = vmatprep.mubr.bf16.mxu0 0
  %2347 = vmatmul.mubr.bf16.gmra.mrb[0].mxu0 %v1471
  %v2348 = vpop.f32.mrb[0].mxu0
  %v2349 = vadd.f32 %v1996, %v2348
  %v2350 = vpop.f32.mrb[0].mxu0
  %v2351 = vadd.f32 %v1998, %v2350
  %v2352 = vpop.f32.mrb[0].mxu0
  %v2353 = vadd.f32 %v2000, %v2352
  %v2354 = vpop.f32.mrb[0].mxu0
  %v2355 = vadd.f32 %v2002, %v2354
  %2356 = vmatprep.mubr.bf16.mxu0 0
  %2357 = vmatmul.mubr.bf16.gmra.mrb[0].mxu0 %v1474
  %v2358 = vpop.f32.mrb[0].mxu0
  %v2359 = vadd.f32 %v2006, %v2358
  %v2360 = vpop.f32.mrb[0].mxu0
  %v2361 = vadd.f32 %v2008, %v2360
  %v2362 = vpop.f32.mrb[0].mxu0
  %v2363 = vadd.f32 %v2010, %v2362
  %v2364 = vpop.f32.mrb[0].mxu0
  %v2365 = vadd.f32 %v2012, %v2364
  %2366 = vmatprep.mubr.bf16.mxu0 0
  %2367 = vmatmul.mubr.bf16.gmra.mrb[0].mxu0 %v1477
  %v2368 = vpop.f32.mrb[0].mxu0
  %v2369 = vadd.f32 %v2016, %v2368
  %v2370 = vpop.f32.mrb[0].mxu0
  %v2371 = vadd.f32 %v2018, %v2370
  %v2372 = vpop.f32.mrb[0].mxu0
  %v2373 = vadd.f32 %v2020, %v2372
  %v2374 = vpop.f32.mrb[0].mxu0
  %v2375 = vadd.f32 %v2022, %v2374
  %2376 = vmatprep.mubr.bf16.mxu0 0
  %2377 = vmatmul.mubr.bf16.gmra.mrb[0].mxu0 %v1480
  %v2378 = vpop.f32.mrb[0].mxu0
  %v2379 = vadd.f32 %v2026, %v2378
  %v2380 = vpop.f32.mrb[0].mxu0
  %v2381 = vadd.f32 %v2028, %v2380
  %v2382 = vpop.f32.mrb[0].mxu0
  %v2383 = vadd.f32 %v2030, %v2382
  %v2384 = vpop.f32.mrb[0].mxu0
  %v2385 = vadd.f32 %v2032, %v2384
  %2386 = vmatprep.mubr.bf16.mxu0 0
  %2387 = vmatmul.mubr.bf16.gmra.mrb[0].mxu0 %v1483
  %v2388 = vpop.f32.mrb[0].mxu0
  %v2389 = vadd.f32 %v2036, %v2388
  %v2390 = vpop.f32.mrb[0].mxu0
  %v2391 = vadd.f32 %v2038, %v2390
  %v2392 = vpop.f32.mrb[0].mxu0
  %v2393 = vadd.f32 %v2040, %v2392
  %v2394 = vpop.f32.mrb[0].mxu0
  %v2395 = vadd.f32 %v2042, %v2394
  %2396 = vmatprep.mubr.bf16.mxu0 0
  %2397 = vmatmul.mubr.bf16.gmra.mrb[0].mxu0 %v1486
  %v2398 = vpop.f32.mrb[0].mxu0
  %v2399 = vadd.f32 %v2046, %v2398
  %v2400 = vpop.f32.mrb[0].mxu0
  %v2401 = vadd.f32 %v2048, %v2400
  %v2402 = vpop.f32.mrb[0].mxu0
  %v2403 = vadd.f32 %v2050, %v2402
  %v2404 = vpop.f32.mrb[0].mxu0
  %v2405 = vadd.f32 %v2052, %v2404
  %2406 = vmatprep.mubr.bf16.mxu0 0
  %2407 = vmatmul.mubr.bf16.gmra.mrb[0].mxu0 %v1489
  %v2408 = vpop.f32.mrb[0].mxu0
  %v2409 = vadd.f32 %v2056, %v2408
  %v2410 = vpop.f32.mrb[0].mxu0
  %v2411 = vadd.f32 %v2058, %v2410
  %v2412 = vpop.f32.mrb[0].mxu0
  %v2413 = vadd.f32 %v2060, %v2412
  %v2414 = vpop.f32.mrb[0].mxu0
  %v2415 = vadd.f32 %v2062, %v2414
  %2416 = vmatprep.mubr.bf16.mxu0 0
  %2417 = vmatmul.mubr.bf16.gmra.mrb[0].mxu0 %v1492
  %v2418 = vpop.f32.mrb[0].mxu0
  %v2419 = vadd.f32 %v2066, %v2418
  %v2420 = vpop.f32.mrb[0].mxu0
  %v2421 = vadd.f32 %v2068, %v2420
  %v2422 = vpop.f32.mrb[0].mxu0
  %v2423 = vadd.f32 %v2070, %v2422
  %v2424 = vpop.f32.mrb[0].mxu0
  %v2425 = vadd.f32 %v2072, %v2424
  %2426 = vmatprep.mubr.bf16.mxu0 0
  %2427 = vmatmul.mubr.bf16.gmra.mrb[0].mxu0 %v1495
  %v2428 = vpop.f32.mrb[0].mxu0
  %v2429 = vadd.f32 %v2076, %v2428
  %v2430 = vpop.f32.mrb[0].mxu0
  %v2431 = vadd.f32 %v2078, %v2430
  %v2432 = vpop.f32.mrb[0].mxu0
  %v2433 = vadd.f32 %v2080, %v2432
  %v2434 = vpop.f32.mrb[0].mxu0
  %v2435 = vadd.f32 %v2082, %v2434
  %2436 = vmatprep.mubr.bf16.mxu0 0
  %2437 = vmatmul.mubr.bf16.gmra.mrb[0].mxu0 %v1498
  %v2438 = vpop.f32.mrb[0].mxu0
  %v2439 = vadd.f32 %v2086, %v2438
  %v2440 = vpop.f32.mrb[0].mxu0
  %v2441 = vadd.f32 %v2088, %v2440
  %v2442 = vpop.f32.mrb[0].mxu0
  %v2443 = vadd.f32 %v2090, %v2442
  %v2444 = vpop.f32.mrb[0].mxu0
  %v2445 = vadd.f32 %v2092, %v2444
  %2446 = vmatprep.mubr.bf16.mxu0 0
  %2447 = vmatmul.mubr.bf16.gmra.mrb[0].mxu0 %v1501
  %v2448 = vpop.f32.mrb[0].mxu0
  %v2449 = vadd.f32 %v2096, %v2448
  %v2450 = vpop.f32.mrb[0].mxu0
  %v2451 = vadd.f32 %v2098, %v2450
  %v2452 = vpop.f32.mrb[0].mxu0
  %v2453 = vadd.f32 %v2100, %v2452
  %v2454 = vpop.f32.mrb[0].mxu0
  %v2455 = vadd.f32 %v2102, %v2454
  %2456 = vmatprep.mubr.bf16.mxu0 0
  %2457 = vmatmul.mubr.bf16.gmra.mrb[0].mxu0 %v1504
  %v2458 = vpop.f32.mrb[0].mxu0
  %v2459 = vadd.f32 %v2106, %v2458
  %v2460 = vpop.f32.mrb[0].mxu0
  %v2461 = vadd.f32 %v2108, %v2460
  %v2462 = vpop.f32.mrb[0].mxu0
  %v2463 = vadd.f32 %v2110, %v2462
  %v2464 = vpop.f32.mrb[0].mxu0
  %v2465 = vadd.f32 %v2112, %v2464
  %2466 = vmatprep.mubr.bf16.mxu0 0
  %2467 = vmatmul.mubr.bf16.gmra.mrb[0].mxu0 %v1507
  %v2468 = vpop.f32.mrb[0].mxu0
  %v2469 = vadd.f32 %v2116, %v2468
  %v2470 = vpop.f32.mrb[0].mxu0
  %v2471 = vadd.f32 %v2118, %v2470
  %v2472 = vpop.f32.mrb[0].mxu0
  %v2473 = vadd.f32 %v2120, %v2472
  %v2474 = vpop.f32.mrb[0].mxu0
  %v2475 = vadd.f32 %v2122, %v2474
  %2476 = vmatprep.mubr.bf16.mxu0 0
  %2477 = vmatmul.mubr.bf16.gmra.mrb[0].mxu0 %v1510
  %v2478 = vpop.f32.mrb[0].mxu0
  %v2479 = vadd.f32 %v2126, %v2478
  %v2480 = vpop.f32.mrb[0].mxu0
  %v2481 = vadd.f32 %v2128, %v2480
  %v2482 = vpop.f32.mrb[0].mxu0
  %v2483 = vadd.f32 %v2130, %v2482
  %v2484 = vpop.f32.mrb[0].mxu0
  %v2485 = vadd.f32 %v2132, %v2484
  %2486 = vmatprep.mubr.bf16.mxu0 0
  %2487 = vmatmul.mubr.bf16.gmra.mrb[0].mxu0 %v1513
  %v2488 = vpop.f32.mrb[0].mxu0
  %v2489 = vadd.f32 %v2136, %v2488
  %v2490 = vpop.f32.mrb[0].mxu0
  %v2491 = vadd.f32 %v2138, %v2490
  %v2492 = vpop.f32.mrb[0].mxu0
  %v2493 = vadd.f32 %v2140, %v2492
  %v2494 = vpop.f32.mrb[0].mxu0
  %v2495 = vadd.f32 %v2142, %v2494
  %2496 = vmatprep.mubr.bf16.mxu0 0
  %2497 = vmatmul.mubr.bf16.gmra.mrb[0].mxu0 %v1516
  %v2498 = vpop.f32.mrb[0].mxu0
  %v2499 = vadd.f32 %v2146, %v2498
  %v2500 = vpop.f32.mrb[0].mxu0
  %v2501 = vadd.f32 %v2148, %v2500
  %v2502 = vpop.f32.mrb[0].mxu0
  %v2503 = vadd.f32 %v2150, %v2502
  %v2504 = vpop.f32.mrb[0].mxu0
  %v2505 = vadd.f32 %v2152, %v2504
  %2506 = vmatprep.mubr.bf16.mxu0 0
  %2507 = vmatmul.mubr.bf16.gmra.mrb[0].mxu0 %v1519
  %v2508 = vpop.f32.mrb[0].mxu0
  %v2509 = vadd.f32 %v2156, %v2508
  %v2510 = vpop.f32.mrb[0].mxu0
  %v2511 = vadd.f32 %v2158, %v2510
  %v2512 = vpop.f32.mrb[0].mxu0
  %v2513 = vadd.f32 %v2160, %v2512
  %v2514 = vpop.f32.mrb[0].mxu0
  %v2515 = vadd.f32 %v2162, %v2514
  %2516 = vmatprep.mubr.bf16.mxu0 0
  %2517 = vmatmul.mubr.bf16.gmra.mrb[0].mxu0 %v1522
  %v2518 = vpop.f32.mrb[0].mxu0
  %v2519 = vadd.f32 %v2166, %v2518
  %v2520 = vpop.f32.mrb[0].mxu0
  %v2521 = vadd.f32 %v2168, %v2520
  %v2522 = vpop.f32.mrb[0].mxu0
  %v2523 = vadd.f32 %v2170, %v2522
  %v2524 = vpop.f32.mrb[0].mxu0
  %v2525 = vadd.f32 %v2172, %v2524
  %2526 = vmatprep.mubr.bf16.mxu0 0
  %2527 = vmatmul.mubr.bf16.gmra.mrb[0].mxu0 %v1525
  %v2528 = vpop.f32.mrb[0].mxu0
  %v2529 = vadd.f32 %v2176, %v2528
  %v2530 = vpop.f32.mrb[0].mxu0
  %v2531 = vadd.f32 %v2178, %v2530
  %v2532 = vpop.f32.mrb[0].mxu0
  %v2533 = vadd.f32 %v2180, %v2532
  %v2534 = vpop.f32.mrb[0].mxu0
  %v2535 = vadd.f32 %v2182, %v2534
  %2536 = vmatprep.mubr.bf16.mxu0 0
  %2537 = vmatmul.mubr.bf16.gmra.mrb[0].mxu0 %v1528
  %v2538 = vpop.f32.mrb[0].mxu0
  %v2539 = vadd.f32 %v2186, %v2538
  %v2540 = vpop.f32.mrb[0].mxu0
  %v2541 = vadd.f32 %v2188, %v2540
  %v2542 = vpop.f32.mrb[0].mxu0
  %v2543 = vadd.f32 %v2190, %v2542
  %v2544 = vpop.f32.mrb[0].mxu0
  %v2545 = vadd.f32 %v2192, %v2544
  %2546 = vmatprep.mubr.bf16.mxu0 0
  %2547 = vmatmul.mubr.bf16.gmra.mrb[0].mxu0 %v1531
  %v2548 = vpop.f32.mrb[0].mxu0
  %v2549 = vadd.f32 %v2196, %v2548
  %v2550 = vpop.f32.mrb[0].mxu0
  %v2551 = vadd.f32 %v2198, %v2550
  %v2552 = vpop.f32.mrb[0].mxu0
  %v2553 = vadd.f32 %v2200, %v2552
  %v2554 = vpop.f32.mrb[0].mxu0
  %v2555 = vadd.f32 %v2202, %v2554
  %2556 = vmatprep.mubr.bf16.mxu0 0
  %2557 = vmatmul.mubr.bf16.gmra.mrb[0].mxu0 %v1534
  %v2558 = vpop.f32.mrb[0].mxu0
  %v2559 = vadd.f32 %v2206, %v2558
  %v2560 = vpop.f32.mrb[0].mxu0
  %v2561 = vadd.f32 %v2208, %v2560
  %v2562 = vpop.f32.mrb[0].mxu0
  %v2563 = vadd.f32 %v2210, %v2562
  %v2564 = vpop.f32.mrb[0].mxu0
  %v2565 = vadd.f32 %v2212, %v2564
  %2566 = vmatprep.mubr.bf16.mxu0 0
  %2567 = vmatmul.mubr.bf16.gmra.mrb[0].mxu0 %v1537
  %v2568 = vpop.f32.mrb[0].mxu0
  %v2569 = vadd.f32 %v2216, %v2568
  %v2570 = vpop.f32.mrb[0].mxu0
  %v2571 = vadd.f32 %v2218, %v2570
  %v2572 = vpop.f32.mrb[0].mxu0
  %v2573 = vadd.f32 %v2220, %v2572
  %v2574 = vpop.f32.mrb[0].mxu0
  %v2575 = vadd.f32 %v2222, %v2574
  %2576 = vmatprep.mubr.bf16.mxu0 0
  %2577 = vmatmul.mubr.bf16.gmra.mrb[0].mxu0 %v1540
  %v2578 = vpop.f32.mrb[0].mxu0
  %v2579 = vadd.f32 %v2226, %v2578
  %v2580 = vpop.f32.mrb[0].mxu0
  %v2581 = vadd.f32 %v2228, %v2580
  %v2582 = vpop.f32.mrb[0].mxu0
  %v2583 = vadd.f32 %v2230, %v2582
  %v2584 = vpop.f32.mrb[0].mxu0
  %v2585 = vadd.f32 %v2232, %v2584
  %2586 = vmatprep.mubr.bf16.mxu0 0
  %2587 = vmatmul.mubr.bf16.gmra.mrb[0].mxu0 %v1543
  %v2588 = vpop.f32.mrb[0].mxu0
  %v2589 = vadd.f32 %v2236, %v2588
  %v2590 = vpop.f32.mrb[0].mxu0
  %v2591 = vadd.f32 %v2238, %v2590
  %v2592 = vpop.f32.mrb[0].mxu0
  %v2593 = vadd.f32 %v2240, %v2592
  %v2594 = vpop.f32.mrb[0].mxu0
  %v2595 = vadd.f32 %v2242, %v2594
  %2596 = vmatprep.mubr.bf16.mxu0 0
  %2597 = vmatmul.mubr.bf16.gmra.mrb[0].mxu0 %v1546
  %v2598 = vpop.f32.mrb[0].mxu0
  %v2599 = vadd.f32 %v2246, %v2598
  %v2600 = vpop.f32.mrb[0].mxu0
  %v2601 = vadd.f32 %v2248, %v2600
  %v2602 = vpop.f32.mrb[0].mxu0
  %v2603 = vadd.f32 %v2250, %v2602
  %v2604 = vpop.f32.mrb[0].mxu0
  %v2605 = vadd.f32 %v2252, %v2604
  %2606 = vdwg.mxu0
  %v2607 = vmax.f32 %v2289, 0.0
  %v2608 = vmax.f32 %v2291, 0.0
  %v2609 = vmax.f32 %v2293, 0.0
  %v2610 = vmax.f32 %v2295, 0.0
  %v2611 = vmax.f32 %v2299, 0.0
  %v2612 = vmax.f32 %v2301, 0.0
  %v2613 = vmax.f32 %v2303, 0.0
  %v2614 = vmax.f32 %v2305, 0.0
  %v2615 = vmax.f32 %v2309, 0.0
  %v2616 = vmax.f32 %v2311, 0.0
  %v2617 = vmax.f32 %v2313, 0.0
  %v2618 = vmax.f32 %v2315, 0.0
  %v2619 = vmax.f32 %v2319, 0.0
  %v2620 = vmax.f32 %v2321, 0.0
  %v2621 = vmax.f32 %v2323, 0.0
  %v2622 = vmax.f32 %v2325, 0.0
  %v2623 = vmax.f32 %v2329, 0.0
  %v2624 = vmax.f32 %v2331, 0.0
  %v2625 = vmax.f32 %v2333, 0.0
  %v2626 = vmax.f32 %v2335, 0.0
  %v2627 = vmax.f32 %v2339, 0.0
  %v2628 = vmax.f32 %v2341, 0.0
  %v2629 = vmax.f32 %v2343, 0.0
  %v2630 = vmax.f32 %v2345, 0.0
  %v2631 = vmax.f32 %v2349, 0.0
  %v2632 = vmax.f32 %v2351, 0.0
  %v2633 = vmax.f32 %v2353, 0.0
  %v2634 = vmax.f32 %v2355, 0.0
  %v2635 = vmax.f32 %v2359, 0.0
  %v2636 = vmax.f32 %v2361, 0.0
  %v2637 = vmax.f32 %v2363, 0.0
  %v2638 = vmax.f32 %v2365, 0.0
  %v2639 = vmax.f32 %v2369, 0.0
  %v2640 = vmax.f32 %v2371, 0.0
  %v2641 = vmax.f32 %v2373, 0.0
  %v2642 = vmax.f32 %v2375, 0.0
  %v2643 = vmax.f32 %v2379, 0.0
  %v2644 = vmax.f32 %v2381, 0.0
  %v2645 = vmax.f32 %v2383, 0.0
  %v2646 = vmax.f32 %v2385, 0.0
  %v2647 = vmax.f32 %v2389, 0.0
  %v2648 = vmax.f32 %v2391, 0.0
  %v2649 = vmax.f32 %v2393, 0.0
  %v2650 = vmax.f32 %v2395, 0.0
  %v2651 = vmax.f32 %v2399, 0.0
  %v2652 = vmax.f32 %v2401, 0.0
  %v2653 = vmax.f32 %v2403, 0.0
  %v2654 = vmax.f32 %v2405, 0.0
  %v2655 = vmax.f32 %v2409, 0.0
  %v2656 = vmax.f32 %v2411, 0.0
  %v2657 = vmax.f32 %v2413, 0.0
  %v2658 = vmax.f32 %v2415, 0.0
  %v2659 = vmax.f32 %v2419, 0.0
  %v2660 = vmax.f32 %v2421, 0.0
  %v2661 = vmax.f32 %v2423, 0.0
  %v2662 = vmax.f32 %v2425, 0.0
  %v2663 = vmax.f32 %v2429, 0.0
  %v2664 = vmax.f32 %v2431, 0.0
  %v2665 = vmax.f32 %v2433, 0.0
  %v2666 = vmax.f32 %v2435, 0.0
  %v2667 = vmax.f32 %v2439, 0.0
  %v2668 = vmax.f32 %v2441, 0.0
  %v2669 = vmax.f32 %v2443, 0.0
  %v2670 = vmax.f32 %v2445, 0.0
  %v2671 = vmax.f32 %v2449, 0.0
  %v2672 = vmax.f32 %v2451, 0.0
  %v2673 = vmax.f32 %v2453, 0.0
  %v2674 = vmax.f32 %v2455, 0.0
  %v2675 = vmax.f32 %v2459, 0.0
  %v2676 = vmax.f32 %v2461, 0.0
  %v2677 = vmax.f32 %v2463, 0.0
  %v2678 = vmax.f32 %v2465, 0.0
  %v2679 = vmax.f32 %v2469, 0.0
  %v2680 = vmax.f32 %v2471, 0.0
  %v2681 = vmax.f32 %v2473, 0.0
  %v2682 = vmax.f32 %v2475, 0.0
  %v2683 = vmax.f32 %v2479, 0.0
  %v2684 = vmax.f32 %v2481, 0.0
  %v2685 = vmax.f32 %v2483, 0.0
  %v2686 = vmax.f32 %v2485, 0.0
  %v2687 = vmax.f32 %v2489, 0.0
  %v2688 = vmax.f32 %v2491, 0.0
  %v2689 = vmax.f32 %v2493, 0.0
  %v2690 = vmax.f32 %v2495, 0.0
  %v2691 = vmax.f32 %v2499, 0.0
  %v2692 = vmax.f32 %v2501, 0.0
  %v2693 = vmax.f32 %v2503, 0.0
  %v2694 = vmax.f32 %v2505, 0.0
  %v2695 = vmax.f32 %v2509, 0.0
  %v2696 = vmax.f32 %v2511, 0.0
  %v2697 = vmax.f32 %v2513, 0.0
  %v2698 = vmax.f32 %v2515, 0.0
  %v2699 = vmax.f32 %v2519, 0.0
  %v2700 = vmax.f32 %v2521, 0.0
  %v2701 = vmax.f32 %v2523, 0.0
  %v2702 = vmax.f32 %v2525, 0.0
  %v2703 = vmax.f32 %v2529, 0.0
  %v2704 = vmax.f32 %v2531, 0.0
  %v2705 = vmax.f32 %v2533, 0.0
  %v2706 = vmax.f32 %v2535, 0.0
  %v2707 = vmax.f32 %v2539, 0.0
  %v2708 = vmax.f32 %v2541, 0.0
  %v2709 = vmax.f32 %v2543, 0.0
  %v2710 = vmax.f32 %v2545, 0.0
  %v2711 = vmax.f32 %v2549, 0.0
  %v2712 = vmax.f32 %v2551, 0.0
  %v2713 = vmax.f32 %v2553, 0.0
  %v2714 = vmax.f32 %v2555, 0.0
  %v2715 = vmax.f32 %v2559, 0.0
  %v2716 = vmax.f32 %v2561, 0.0
  %v2717 = vmax.f32 %v2563, 0.0
  %v2718 = vmax.f32 %v2565, 0.0
  %v2719 = vmax.f32 %v2569, 0.0
  %v2720 = vmax.f32 %v2571, 0.0
  %v2721 = vmax.f32 %v2573, 0.0
  %v2722 = vmax.f32 %v2575, 0.0
  %v2723 = vmax.f32 %v2579, 0.0
  %v2724 = vmax.f32 %v2581, 0.0
  %v2725 = vmax.f32 %v2583, 0.0
  %v2726 = vmax.f32 %v2585, 0.0
  %v2727 = vmax.f32 %v2589, 0.0
  %v2728 = vmax.f32 %v2591, 0.0
  %v2729 = vmax.f32 %v2593, 0.0
  %v2730 = vmax.f32 %v2595, 0.0
  %v2731 = vmax.f32 %v2599, 0.0
  %v2732 = vmax.f32 %v2601, 0.0
  %v2733 = vmax.f32 %v2603, 0.0
  %v2734 = vmax.f32 %v2605, 0.0
  %v2735 = vpack.c.bf16 %v2609, %v2607
  %v2736 = vpack.c.bf16 %v2610, %v2608
  %v2737 = vpack.c.bf16 %v2613, %v2611
  %v2738 = vpack.c.bf16 %v2614, %v2612
  %v2739 = vpack.c.bf16 %v2617, %v2615
  %v2740 = vpack.c.bf16 %v2618, %v2616
  %v2741 = vpack.c.bf16 %v2621, %v2619
  %v2742 = vpack.c.bf16 %v2622, %v2620
  %v2743 = vpack.c.bf16 %v2625, %v2623
  %v2744 = vpack.c.bf16 %v2626, %v2624
  %v2745 = vpack.c.bf16 %v2629, %v2627
  %v2746 = vpack.c.bf16 %v2630, %v2628
  %v2747 = vpack.c.bf16 %v2633, %v2631
  %v2748 = vpack.c.bf16 %v2634, %v2632
  %v2749 = vpack.c.bf16 %v2637, %v2635
  %v2750 = vpack.c.bf16 %v2638, %v2636
  %v2751 = vpack.c.bf16 %v2641, %v2639
  %v2752 = vpack.c.bf16 %v2642, %v2640
  %v2753 = vpack.c.bf16 %v2645, %v2643
  %v2754 = vpack.c.bf16 %v2646, %v2644
  %v2755 = vpack.c.bf16 %v2649, %v2647
  %v2756 = vpack.c.bf16 %v2650, %v2648
  %v2757 = vpack.c.bf16 %v2653, %v2651
  %v2758 = vpack.c.bf16 %v2654, %v2652
  %v2759 = vpack.c.bf16 %v2657, %v2655
  %v2760 = vpack.c.bf16 %v2658, %v2656
  %v2761 = vpack.c.bf16 %v2661, %v2659
  %v2762 = vpack.c.bf16 %v2662, %v2660
  %v2763 = vpack.c.bf16 %v2665, %v2663
  %v2764 = vpack.c.bf16 %v2666, %v2664
  %v2765 = vpack.c.bf16 %v2669, %v2667
  %v2766 = vpack.c.bf16 %v2670, %v2668
  %v2767 = vpack.c.bf16 %v2673, %v2671
  %v2768 = vpack.c.bf16 %v2674, %v2672
  %v2769 = vpack.c.bf16 %v2677, %v2675
  %v2770 = vpack.c.bf16 %v2678, %v2676
  %v2771 = vpack.c.bf16 %v2681, %v2679
  %v2772 = vpack.c.bf16 %v2682, %v2680
  %v2773 = vpack.c.bf16 %v2685, %v2683
  %v2774 = vpack.c.bf16 %v2686, %v2684
  %v2775 = vpack.c.bf16 %v2689, %v2687
  %v2776 = vpack.c.bf16 %v2690, %v2688
  %v2777 = vpack.c.bf16 %v2693, %v2691
  %v2778 = vpack.c.bf16 %v2694, %v2692
  %v2779 = vpack.c.bf16 %v2697, %v2695
  %v2780 = vpack.c.bf16 %v2698, %v2696
  %v2781 = vpack.c.bf16 %v2701, %v2699
  %v2782 = vpack.c.bf16 %v2702, %v2700
  %v2783 = vpack.c.bf16 %v2705, %v2703
  %v2784 = vpack.c.bf16 %v2706, %v2704
  %v2785 = vpack.c.bf16 %v2709, %v2707
  %v2786 = vpack.c.bf16 %v2710, %v2708
  %v2787 = vpack.c.bf16 %v2713, %v2711
  %v2788 = vpack.c.bf16 %v2714, %v2712
  %v2789 = vpack.c.bf16 %v2717, %v2715
  %v2790 = vpack.c.bf16 %v2718, %v2716
  %v2791 = vpack.c.bf16 %v2721, %v2719
  %v2792 = vpack.c.bf16 %v2722, %v2720
  %v2793 = vpack.c.bf16 %v2725, %v2723
  %v2794 = vpack.c.bf16 %v2726, %v2724
  %v2795 = vpack.c.bf16 %v2729, %v2727
  %v2796 = vpack.c.bf16 %v2730, %v2728
  %v2797 = vpack.c.bf16 %v2733, %v2731
  %v2798 = vpack.c.bf16 %v2734, %v2732
  %v2863 = vunpack.c.l.b16 %v2735
  %v2864 = vunpack.c.l.b16 %v2736
  %v2865 = vunpack.c.h.b16 %v2735
  %v2866 = vunpack.c.h.b16 %v2736
  %v2867 = vunpack.c.l.b16 %v2737
  %v2868 = vunpack.c.l.b16 %v2738
  %v2869 = vunpack.c.h.b16 %v2737
  %v2870 = vunpack.c.h.b16 %v2738
  %v2871 = vunpack.c.l.b16 %v2739
  %v2872 = vunpack.c.l.b16 %v2740
  %v2873 = vunpack.c.h.b16 %v2739
  %v2874 = vunpack.c.h.b16 %v2740
  %v2875 = vunpack.c.l.b16 %v2741
  %v2876 = vunpack.c.l.b16 %v2742
  %v2877 = vunpack.c.h.b16 %v2741
  %v2878 = vunpack.c.h.b16 %v2742
  %v2879 = vunpack.c.l.b16 %v2743
  %v2880 = vunpack.c.l.b16 %v2744
  %v2881 = vunpack.c.h.b16 %v2743
  %v2882 = vunpack.c.h.b16 %v2744
  %v2883 = vunpack.c.l.b16 %v2745
  %v2884 = vunpack.c.l.b16 %v2746
  %v2885 = vunpack.c.h.b16 %v2745
  %v2886 = vunpack.c.h.b16 %v2746
  %v2887 = vunpack.c.l.b16 %v2747
  %v2888 = vunpack.c.l.b16 %v2748
  %v2889 = vunpack.c.h.b16 %v2747
  %v2890 = vunpack.c.h.b16 %v2748
  %v2891 = vunpack.c.l.b16 %v2749
  %v2892 = vunpack.c.l.b16 %v2750
  %v2893 = vunpack.c.h.b16 %v2749
  %v2894 = vunpack.c.h.b16 %v2750
  %v2895 = vunpack.c.l.b16 %v2751
  %v2896 = vunpack.c.l.b16 %v2752
  %v2897 = vunpack.c.h.b16 %v2751
  %v2898 = vunpack.c.h.b16 %v2752
  %v2899 = vunpack.c.l.b16 %v2753
  %v2900 = vunpack.c.l.b16 %v2754
  %v2901 = vunpack.c.h.b16 %v2753
  %v2902 = vunpack.c.h.b16 %v2754
  %v2903 = vunpack.c.l.b16 %v2755
  %v2904 = vunpack.c.l.b16 %v2756
  %v2905 = vunpack.c.h.b16 %v2755
  %v2906 = vunpack.c.h.b16 %v2756
  %v2907 = vunpack.c.l.b16 %v2757
  %v2908 = vunpack.c.l.b16 %v2758
  %v2909 = vunpack.c.h.b16 %v2757
  %v2910 = vunpack.c.h.b16 %v2758
  %v2911 = vunpack.c.l.b16 %v2759
  %v2912 = vunpack.c.l.b16 %v2760
  %v2913 = vunpack.c.h.b16 %v2759
  %v2914 = vunpack.c.h.b16 %v2760
  %v2915 = vunpack.c.l.b16 %v2761
  %v2916 = vunpack.c.l.b16 %v2762
  %v2917 = vunpack.c.h.b16 %v2761
  %v2918 = vunpack.c.h.b16 %v2762
  %v2919 = vunpack.c.l.b16 %v2763
  %v2920 = vunpack.c.l.b16 %v2764
  %v2921 = vunpack.c.h.b16 %v2763
  %v2922 = vunpack.c.h.b16 %v2764
  %v2923 = vunpack.c.l.b16 %v2765
  %v2924 = vunpack.c.l.b16 %v2766
  %v2925 = vunpack.c.h.b16 %v2765
  %v2926 = vunpack.c.h.b16 %v2766
  %v2927 = vunpack.c.l.b16 %v2767
  %v2928 = vunpack.c.l.b16 %v2768
  %v2929 = vunpack.c.h.b16 %v2767
  %v2930 = vunpack.c.h.b16 %v2768
  %v2931 = vunpack.c.l.b16 %v2769
  %v2932 = vunpack.c.l.b16 %v2770
  %v2933 = vunpack.c.h.b16 %v2769
  %v2934 = vunpack.c.h.b16 %v2770
  %v2935 = vunpack.c.l.b16 %v2771
  %v2936 = vunpack.c.l.b16 %v2772
  %v2937 = vunpack.c.h.b16 %v2771
  %v2938 = vunpack.c.h.b16 %v2772
  %v2939 = vunpack.c.l.b16 %v2773
  %v2940 = vunpack.c.l.b16 %v2774
  %v2941 = vunpack.c.h.b16 %v2773
  %v2942 = vunpack.c.h.b16 %v2774
  %v2943 = vunpack.c.l.b16 %v2775
  %v2944 = vunpack.c.l.b16 %v2776
  %v2945 = vunpack.c.h.b16 %v2775
  %v2946 = vunpack.c.h.b16 %v2776
  %v2947 = vunpack.c.l.b16 %v2777
  %v2948 = vunpack.c.l.b16 %v2778
  %v2949 = vunpack.c.h.b16 %v2777
  %v2950 = vunpack.c.h.b16 %v2778
  %v2951 = vunpack.c.l.b16 %v2779
  %v2952 = vunpack.c.l.b16 %v2780
  %v2953 = vunpack.c.h.b16 %v2779
  %v2954 = vunpack.c.h.b16 %v2780
  %v2955 = vunpack.c.l.b16 %v2781
  %v2956 = vunpack.c.l.b16 %v2782
  %v2957 = vunpack.c.h.b16 %v2781
  %v2958 = vunpack.c.h.b16 %v2782
  %v2959 = vunpack.c.l.b16 %v2783
  %v2960 = vunpack.c.l.b16 %v2784
  %v2961 = vunpack.c.h.b16 %v2783
  %v2962 = vunpack.c.h.b16 %v2784
  %v2963 = vunpack.c.l.b16 %v2785
  %v2964 = vunpack.c.l.b16 %v2786
  %v2965 = vunpack.c.h.b16 %v2785
  %v2966 = vunpack.c.h.b16 %v2786
  %v2967 = vunpack.c.l.b16 %v2787
  %v2968 = vunpack.c.l.b16 %v2788
  %v2969 = vunpack.c.h.b16 %v2787
  %v2970 = vunpack.c.h.b16 %v2788
  %v2971 = vunpack.c.l.b16 %v2789
  %v2972 = vunpack.c.l.b16 %v2790
  %v2973 = vunpack.c.h.b16 %v2789
  %v2974 = vunpack.c.h.b16 %v2790
  %v2975 = vunpack.c.l.b16 %v2791
  %v2976 = vunpack.c.l.b16 %v2792
  %v2977 = vunpack.c.h.b16 %v2791
  %v2978 = vunpack.c.h.b16 %v2792
  %v2979 = vunpack.c.l.b16 %v2793
  %v2980 = vunpack.c.l.b16 %v2794
  %v2981 = vunpack.c.h.b16 %v2793
  %v2982 = vunpack.c.h.b16 %v2794
  %v2983 = vunpack.c.l.b16 %v2795
  %v2984 = vunpack.c.l.b16 %v2796
  %v2985 = vunpack.c.h.b16 %v2795
  %v2986 = vunpack.c.h.b16 %v2796
  %v2987 = vunpack.c.l.b16 %v2797
  %v2988 = vunpack.c.l.b16 %v2798
  %v2989 = vunpack.c.h.b16 %v2797
  %v2990 = vunpack.c.h.b16 %v2798
  %v2991 = vpack.c.b16 %v2864, %v2863
  %v2992 = vpack.c.b16 %v2866, %v2865
  %v2993 = vpack.c.b16 %v2868, %v2867
  %v2994 = vpack.c.b16 %v2870, %v2869
  %v2995 = vpack.c.b16 %v2872, %v2871
  %v2996 = vpack.c.b16 %v2874, %v2873
  %v2997 = vpack.c.b16 %v2876, %v2875
  %v2998 = vpack.c.b16 %v2878, %v2877
  %v2999 = vpack.c.b16 %v2880, %v2879
  %v3000 = vpack.c.b16 %v2882, %v2881
  %v3001 = vpack.c.b16 %v2884, %v2883
  %v3002 = vpack.c.b16 %v2886, %v2885
  %v3003 = vpack.c.b16 %v2888, %v2887
  %v3004 = vpack.c.b16 %v2890, %v2889
  %v3005 = vpack.c.b16 %v2892, %v2891
  %v3006 = vpack.c.b16 %v2894, %v2893
  %v3007 = vpack.c.b16 %v2896, %v2895
  %v3008 = vpack.c.b16 %v2898, %v2897
  %v3009 = vpack.c.b16 %v2900, %v2899
  %v3010 = vpack.c.b16 %v2902, %v2901
  %v3011 = vpack.c.b16 %v2904, %v2903
  %v3012 = vpack.c.b16 %v2906, %v2905
  %v3013 = vpack.c.b16 %v2908, %v2907
  %v3014 = vpack.c.b16 %v2910, %v2909
  %v3015 = vpack.c.b16 %v2912, %v2911
  %v3016 = vpack.c.b16 %v2914, %v2913
  %v3017 = vpack.c.b16 %v2916, %v2915
  %v3018 = vpack.c.b16 %v2918, %v2917
  %v3019 = vpack.c.b16 %v2920, %v2919
  %v3020 = vpack.c.b16 %v2922, %v2921
  %v3021 = vpack.c.b16 %v2924, %v2923
  %v3022 = vpack.c.b16 %v2926, %v2925
  %v3023 = vpack.c.b16 %v2928, %v2927
  %v3024 = vpack.c.b16 %v2930, %v2929
  %v3025 = vpack.c.b16 %v2932, %v2931
  %v3026 = vpack.c.b16 %v2934, %v2933
  %v3027 = vpack.c.b16 %v2936, %v2935
  %v3028 = vpack.c.b16 %v2938, %v2937
  %v3029 = vpack.c.b16 %v2940, %v2939
  %v3030 = vpack.c.b16 %v2942, %v2941
  %v3031 = vpack.c.b16 %v2944, %v2943
  %v3032 = vpack.c.b16 %v2946, %v2945
  %v3033 = vpack.c.b16 %v2948, %v2947
  %v3034 = vpack.c.b16 %v2950, %v2949
  %v3035 = vpack.c.b16 %v2952, %v2951
  %v3036 = vpack.c.b16 %v2954, %v2953
  %v3037 = vpack.c.b16 %v2956, %v2955
  %v3038 = vpack.c.b16 %v2958, %v2957
  %v3039 = vpack.c.b16 %v2960, %v2959
  %v3040 = vpack.c.b16 %v2962, %v2961
  %v3041 = vpack.c.b16 %v2964, %v2963
  %v3042 = vpack.c.b16 %v2966, %v2965
  %v3043 = vpack.c.b16 %v2968, %v2967
  %v3044 = vpack.c.b16 %v2970, %v2969
  %v3045 = vpack.c.b16 %v2972, %v2971
  %v3046 = vpack.c.b16 %v2974, %v2973
  %v3047 = vpack.c.b16 %v2976, %v2975
  %v3048 = vpack.c.b16 %v2978, %v2977
  %v3049 = vpack.c.b16 %v2980, %v2979
  %v3050 = vpack.c.b16 %v2982, %v2981
  %v3051 = vpack.c.b16 %v2984, %v2983
  %v3052 = vpack.c.b16 %v2986, %v2985
  %v3053 = vpack.c.b16 %v2988, %v2987
  %v3054 = vpack.c.b16 %v2990, %v2989
  %3119 = vst [vmem:[%s3] sm:$0xff] %v2991
  %3120 = vst [vmem:[%s3 + $0x8] sm:$0xff] %v2992
  %3121 = vst [vmem:[%s3 + $0x10] sm:$0xff] %v2993
  %3122 = vst [vmem:[%s3 + $0x18] sm:$0xff] %v2994
  %3123 = vst [vmem:[%s3 + $0x20] sm:$0xff] %v2995
  %3124 = vst [vmem:[%s3 + $0x28] sm:$0xff] %v2996
  %3125 = vst [vmem:[%s3 + $0x30] sm:$0xff] %v2997
  %3126 = vst [vmem:[%s3 + $0x38] sm:$0xff] %v2998
  %3127 = vst [vmem:[%s3 + $0x40] sm:$0xff] %v2999
  %3128 = vst [vmem:[%s3 + $0x48] sm:$0xff] %v3000
  %3129 = vst [vmem:[%s3 + $0x50] sm:$0xff] %v3001
  %3130 = vst [vmem:[%s3 + $0x58] sm:$0xff] %v3002
  %3131 = vst [vmem:[%s3 + $0x60] sm:$0xff] %v3003
  %3132 = vst [vmem:[%s3 + $0x68] sm:$0xff] %v3004
  %3133 = vst [vmem:[%s3 + $0x70] sm:$0xff] %v3005
  %3134 = vst [vmem:[%s3 + $0x78] sm:$0xff] %v3006
  %3135 = vst [vmem:[%s3 + $0x80] sm:$0xff] %v3007
  %3136 = vst [vmem:[%s3 + $0x88] sm:$0xff] %v3008
  %3137 = vst [vmem:[%s3 + $0x90] sm:$0xff] %v3009
  %3138 = vst [vmem:[%s3 + $0x98] sm:$0xff] %v3010
  %3139 = vst [vmem:[%s3 + $0xa0] sm:$0xff] %v3011
  %3140 = vst [vmem:[%s3 + $0xa8] sm:$0xff] %v3012
  %3141 = vst [vmem:[%s3 + $0xb0] sm:$0xff] %v3013
  %3142 = vst [vmem:[%s3 + $0xb8] sm:$0xff] %v3014
  %3143 = vst [vmem:[%s3 + $0xc0] sm:$0xff] %v3015
  %3144 = vst [vmem:[%s3 + $0xc8] sm:$0xff] %v3016
  %3145 = vst [vmem:[%s3 + $0xd0] sm:$0xff] %v3017
  %3146 = vst [vmem:[%s3 + $0xd8] sm:$0xff] %v3018
  %3147 = vst [vmem:[%s3 + $0xe0] sm:$0xff] %v3019
  %3148 = vst [vmem:[%s3 + $0xe8] sm:$0xff] %v3020
  %3149 = vst [vmem:[%s3 + $0xf0] sm:$0xff] %v3021
  %3150 = vst [vmem:[%s3 + $0xf8] sm:$0xff] %v3022
  %3151 = vst [vmem:[%s3 + $0x100] sm:$0xff] %v3023
  %3152 = vst [vmem:[%s3 + $0x108] sm:$0xff] %v3024
  %3153 = vst [vmem:[%s3 + $0x110] sm:$0xff] %v3025
  %3154 = vst [vmem:[%s3 + $0x118] sm:$0xff] %v3026
  %3155 = vst [vmem:[%s3 + $0x120] sm:$0xff] %v3027
  %3156 = vst [vmem:[%s3 + $0x128] sm:$0xff] %v3028
  %3157 = vst [vmem:[%s3 + $0x130] sm:$0xff] %v3029
  %3158 = vst [vmem:[%s3 + $0x138] sm:$0xff] %v3030
  %3159 = vst [vmem:[%s3 + $0x140] sm:$0xff] %v3031
  %3160 = vst [vmem:[%s3 + $0x148] sm:$0xff] %v3032
  %3161 = vst [vmem:[%s3 + $0x150] sm:$0xff] %v3033
  %3162 = vst [vmem:[%s3 + $0x158] sm:$0xff] %v3034
  %3163 = vst [vmem:[%s3 + $0x160] sm:$0xff] %v3035
  %3164 = vst [vmem:[%s3 + $0x168] sm:$0xff] %v3036
  %3165 = vst [vmem:[%s3 + $0x170] sm:$0xff] %v3037
  %3166 = vst [vmem:[%s3 + $0x178] sm:$0xff] %v3038
  %3167 = vst [vmem:[%s3 + $0x180] sm:$0xff] %v3039
  %3168 = vst [vmem:[%s3 + $0x188] sm:$0xff] %v3040
  %3169 = vst [vmem:[%s3 + $0x190] sm:$0xff] %v3041
  %3170 = vst [vmem:[%s3 + $0x198] sm:$0xff] %v3042
  %3171 = vst [vmem:[%s3 + $0x1a0] sm:$0xff] %v3043
  %3172 = vst [vmem:[%s3 + $0x1a8] sm:$0xff] %v3044
  %3173 = vst [vmem:[%s3 + $0x1b0] sm:$0xff] %v3045
  %3174 = vst [vmem:[%s3 + $0x1b8] sm:$0xff] %v3046
  %3175 = vst [vmem:[%s3 + $0x1c0] sm:$0xff] %v3047
  %3176 = vst [vmem:[%s3 + $0x1c8] sm:$0xff] %v3048
  %3177 = vst [vmem:[%s3 + $0x1d0] sm:$0xff] %v3049
  %3178 = vst [vmem:[%s3 + $0x1d8] sm:$0xff] %v3050
  %3179 = vst [vmem:[%s3 + $0x1e0] sm:$0xff] %v3051
  %3180 = vst [vmem:[%s3 + $0x1e8] sm:$0xff] %v3052
  %3181 = vst [vmem:[%s3 + $0x1f0] sm:$0xff] %v3053
  %3182 = vst [vmem:[%s3 + $0x1f8] sm:$0xff] %v3054
  // Predicated region
  $region14: #{dpc_forward.5} parent=0 // pred_check
    _
  $region15: #{dpc_forward.5} parent=0 // pred_check_branch
    %3184 = sbr.rel (0) target = $region17
  $region16: #{dpc_forward.5} parent=0 // pred_region
    _
  $region17: #{dpc_forward.5} parent=0 // pred_fallthru
    _
  // Predicated region
  $region18: #{dpc_forward.5} parent=0 // pred_check
    _
  $region19: #{dpc_forward.5} parent=0 // pred_check_branch
    %3186 = sbr.rel (0) target = $region21
  $region20: #{dpc_forward.5} parent=0 // pred_region
    _
  $region21: #{dpc_forward.5} parent=0 // pred_fallthru
    _

// kernel: dpc_forward.8
$region0: #{dpc_forward.8}
  #allocation0 [shape = 'u32[]', space=smem, size = 0x4, offset = 0x4, fixed_abs, tag = 'smem constant byte address 0x4 - core index']
  #allocation1 [shape = 'u32[144,128]{1,0:T(1,128)}', space=vmem, size = 0x12000, scoped, tag = 'internal scratch']
  %s0 = inlined_call_operand.vmem [shape: bf16[512,2304], index: 0, kind: input, shape index: {}]
  %s1 = inlined_call_operand.vmem [shape: bf16[2304,256], index: 1, kind: input, shape index: {}]
  %s2 = inlined_call_operand.vmem [shape: f32[1,256], index: 2, kind: input, shape index: {}]
  %s3 = inlined_call_operand.vmem [shape: bf16[512,256], index: 3, kind: output, shape index: {}]
  %s4 = sld [smem:[#allocation0]]
  $region22: #{dpc_forward.8} parent=0
    _
  %s6 = ssub.s32 1, %s4
  %s7 = scalar_select 0, %s6, %s4
  // Predicated region
  $region2: #{dpc_forward.8} parent=0 // pred_check
    _
  $region3: #{dpc_forward.8} parent=0 // pred_check_branch
    %9 = sbr.rel (0) target = $region5
  $region4: #{dpc_forward.8} parent=0 // pred_region
    _
  $region5: #{dpc_forward.8} parent=0 // pred_fallthru
    _
  // Predicated region
  $region6: #{dpc_forward.8} parent=0 // pred_check
    _
  $region7: #{dpc_forward.8} parent=0 // pred_check_branch
    %11 = sbr.rel (0) target = $region9
  $region8: #{dpc_forward.8} parent=0 // pred_region
    _
  $region9: #{dpc_forward.8} parent=0 // pred_fallthru
    _
  // Predicated region
  $region10: #{dpc_forward.8} parent=0 // pred_check
    _
  $region11: #{dpc_forward.8} parent=0 // pred_check_branch
    %13 = sbr.rel (0) target = $region13
  $region12: #{dpc_forward.8} parent=0 // pred_region
    _
  $region13: #{dpc_forward.8} parent=0 // pred_fallthru
    _
  %v14 = vld [vmem:[%s0] sm:$0xff]
  %v15 = vld [vmem:[%s0 + $0x8] sm:$0xff]
  %v16 = vld [vmem:[%s0 + $0x10] sm:$0xff]
  %v17 = vld [vmem:[%s0 + $0x18] sm:$0xff]
  %v18 = vld [vmem:[%s0 + $0x20] sm:$0xff]
  %v19 = vld [vmem:[%s0 + $0x28] sm:$0xff]
  %v20 = vld [vmem:[%s0 + $0x30] sm:$0xff]
  %v21 = vld [vmem:[%s0 + $0x38] sm:$0xff]
  %v22 = vld [vmem:[%s0 + $0x40] sm:$0xff]
  %v23 = vld [vmem:[%s0 + $0x48] sm:$0xff]
  %v24 = vld [vmem:[%s0 + $0x50] sm:$0xff]
  %v25 = vld [vmem:[%s0 + $0x58] sm:$0xff]
  %v26 = vld [vmem:[%s0 + $0x60] sm:$0xff]
  %v27 = vld [vmem:[%s0 + $0x68] sm:$0xff]
  %v28 = vld [vmem:[%s0 + $0x70] sm:$0xff]
  %v29 = vld [vmem:[%s0 + $0x78] sm:$0xff]
  %v30 = vld [vmem:[%s0 + $0x80] sm:$0xff]
  %v31 = vld [vmem:[%s0 + $0x88] sm:$0xff]
  %v32 = vld [vmem:[%s0 + $0x90] sm:$0xff]
  %v33 = vld [vmem:[%s0 + $0x98] sm:$0xff]
  %v34 = vld [vmem:[%s0 + $0xa0] sm:$0xff]
  %v35 = vld [vmem:[%s0 + $0xa8] sm:$0xff]
  %v36 = vld [vmem:[%s0 + $0xb0] sm:$0xff]
  %v37 = vld [vmem:[%s0 + $0xb8] sm:$0xff]
  %v38 = vld [vmem:[%s0 + $0xc0] sm:$0xff]
  %v39 = vld [vmem:[%s0 + $0xc8] sm:$0xff]
  %v40 = vld [vmem:[%s0 + $0xd0] sm:$0xff]
  %v41 = vld [vmem:[%s0 + $0xd8] sm:$0xff]
  %v42 = vld [vmem:[%s0 + $0xe0] sm:$0xff]
  %v43 = vld [vmem:[%s0 + $0xe8] sm:$0xff]
  %v44 = vld [vmem:[%s0 + $0xf0] sm:$0xff]
  %v45 = vld [vmem:[%s0 + $0xf8] sm:$0xff]
  %v46 = vld [vmem:[%s0 + $0x100] sm:$0xff]
  %v47 = vld [vmem:[%s0 + $0x108] sm:$0xff]
  %v48 = vld [vmem:[%s0 + $0x110] sm:$0xff]
  %v49 = vld [vmem:[%s0 + $0x118] sm:$0xff]
  %v50 = vld [vmem:[%s0 + $0x120] sm:$0xff]
  %v51 = vld [vmem:[%s0 + $0x128] sm:$0xff]
  %v52 = vld [vmem:[%s0 + $0x130] sm:$0xff]
  %v53 = vld [vmem:[%s0 + $0x138] sm:$0xff]
  %v54 = vld [vmem:[%s0 + $0x140] sm:$0xff]
  %v55 = vld [vmem:[%s0 + $0x148] sm:$0xff]
  %v56 = vld [vmem:[%s0 + $0x150] sm:$0xff]
  %v57 = vld [vmem:[%s0 + $0x158] sm:$0xff]
  %v58 = vld [vmem:[%s0 + $0x160] sm:$0xff]
  %v59 = vld [vmem:[%s0 + $0x168] sm:$0xff]
  %v60 = vld [vmem:[%s0 + $0x170] sm:$0xff]
  %v61 = vld [vmem:[%s0 + $0x178] sm:$0xff]
  %v62 = vld [vmem:[%s0 + $0x180] sm:$0xff]
  %v63 = vld [vmem:[%s0 + $0x188] sm:$0xff]
  %v64 = vld [vmem:[%s0 + $0x190] sm:$0xff]
  %v65 = vld [vmem:[%s0 + $0x198] sm:$0xff]
  %v66 = vld [vmem:[%s0 + $0x1a0] sm:$0xff]
  %v67 = vld [vmem:[%s0 + $0x1a8] sm:$0xff]
  %v68 = vld [vmem:[%s0 + $0x1b0] sm:$0xff]
  %v69 = vld [vmem:[%s0 + $0x1b8] sm:$0xff]
  %v70 = vld [vmem:[%s0 + $0x1c0] sm:$0xff]
  %v71 = vld [vmem:[%s0 + $0x1c8] sm:$0xff]
  %v72 = vld [vmem:[%s0 + $0x1d0] sm:$0xff]
  %v73 = vld [vmem:[%s0 + $0x1d8] sm:$0xff]
  %v74 = vld [vmem:[%s0 + $0x1e0] sm:$0xff]
  %v75 = vld [vmem:[%s0 + $0x1e8] sm:$0xff]
  %v76 = vld [vmem:[%s0 + $0x1f0] sm:$0xff]
  %v77 = vld [vmem:[%s0 + $0x1f8] sm:$0xff]
  %v78 = vld [vmem:[%s0 + $0x200] sm:$0xff]
  %v79 = vld [vmem:[%s0 + $0x208] sm:$0xff]
  %v80 = vld [vmem:[%s0 + $0x210] sm:$0xff]
  %v81 = vld [vmem:[%s0 + $0x218] sm:$0xff]
  %v82 = vld [vmem:[%s0 + $0x220] sm:$0xff]
  %v83 = vld [vmem:[%s0 + $0x228] sm:$0xff]
  %v84 = vld [vmem:[%s0 + $0x230] sm:$0xff]
  %v85 = vld [vmem:[%s0 + $0x238] sm:$0xff]
  %v86 = vld [vmem:[%s0 + $0x240] sm:$0xff]
  %v87 = vld [vmem:[%s0 + $0x248] sm:$0xff]
  %v88 = vld [vmem:[%s0 + $0x250] sm:$0xff]
  %v89 = vld [vmem:[%s0 + $0x258] sm:$0xff]
  %v90 = vld [vmem:[%s0 + $0x260] sm:$0xff]
  %v91 = vld [vmem:[%s0 + $0x268] sm:$0xff]
  %v92 = vld [vmem:[%s0 + $0x270] sm:$0xff]
  %v93 = vld [vmem:[%s0 + $0x278] sm:$0xff]
  %v94 = vld [vmem:[%s0 + $0x280] sm:$0xff]
  %v95 = vld [vmem:[%s0 + $0x288] sm:$0xff]
  %v96 = vld [vmem:[%s0 + $0x290] sm:$0xff]
  %v97 = vld [vmem:[%s0 + $0x298] sm:$0xff]
  %v98 = vld [vmem:[%s0 + $0x2a0] sm:$0xff]
  %v99 = vld [vmem:[%s0 + $0x2a8] sm:$0xff]
  %v100 = vld [vmem:[%s0 + $0x2b0] sm:$0xff]
  %v101 = vld [vmem:[%s0 + $0x2b8] sm:$0xff]
  %v102 = vld [vmem:[%s0 + $0x2c0] sm:$0xff]
  %v103 = vld [vmem:[%s0 + $0x2c8] sm:$0xff]
  %v104 = vld [vmem:[%s0 + $0x2d0] sm:$0xff]
  %v105 = vld [vmem:[%s0 + $0x2d8] sm:$0xff]
  %v106 = vld [vmem:[%s0 + $0x2e0] sm:$0xff]
  %v107 = vld [vmem:[%s0 + $0x2e8] sm:$0xff]
  %v108 = vld [vmem:[%s0 + $0x2f0] sm:$0xff]
  %v109 = vld [vmem:[%s0 + $0x2f8] sm:$0xff]
  %v110 = vld [vmem:[%s0 + $0x300] sm:$0xff]
  %v111 = vld [vmem:[%s0 + $0x308] sm:$0xff]
  %v112 = vld [vmem:[%s0 + $0x310] sm:$0xff]
  %v113 = vld [vmem:[%s0 + $0x318] sm:$0xff]
  %v114 = vld [vmem:[%s0 + $0x320] sm:$0xff]
  %v115 = vld [vmem:[%s0 + $0x328] sm:$0xff]
  %v116 = vld [vmem:[%s0 + $0x330] sm:$0xff]
  %v117 = vld [vmem:[%s0 + $0x338] sm:$0xff]
  %v118 = vld [vmem:[%s0 + $0x340] sm:$0xff]
  %v119 = vld [vmem:[%s0 + $0x348] sm:$0xff]
  %v120 = vld [vmem:[%s0 + $0x350] sm:$0xff]
  %v121 = vld [vmem:[%s0 + $0x358] sm:$0xff]
  %v122 = vld [vmem:[%s0 + $0x360] sm:$0xff]
  %v123 = vld [vmem:[%s0 + $0x368] sm:$0xff]
  %v124 = vld [vmem:[%s0 + $0x370] sm:$0xff]
  %v125 = vld [vmem:[%s0 + $0x378] sm:$0xff]
  %v126 = vld [vmem:[%s0 + $0x380] sm:$0xff]
  %v127 = vld [vmem:[%s0 + $0x388] sm:$0xff]
  %v128 = vld [vmem:[%s0 + $0x390] sm:$0xff]
  %v129 = vld [vmem:[%s0 + $0x398] sm:$0xff]
  %v130 = vld [vmem:[%s0 + $0x3a0] sm:$0xff]
  %v131 = vld [vmem:[%s0 + $0x3a8] sm:$0xff]
  %v132 = vld [vmem:[%s0 + $0x3b0] sm:$0xff]
  %v133 = vld [vmem:[%s0 + $0x3b8] sm:$0xff]
  %v134 = vld [vmem:[%s0 + $0x3c0] sm:$0xff]
  %v135 = vld [vmem:[%s0 + $0x3c8] sm:$0xff]
  %v136 = vld [vmem:[%s0 + $0x3d0] sm:$0xff]
  %v137 = vld [vmem:[%s0 + $0x3d8] sm:$0xff]
  %v138 = vld [vmem:[%s0 + $0x3e0] sm:$0xff]
  %v139 = vld [vmem:[%s0 + $0x3e8] sm:$0xff]
  %v140 = vld [vmem:[%s0 + $0x3f0] sm:$0xff]
  %v141 = vld [vmem:[%s0 + $0x3f8] sm:$0xff]
  %v142 = vld [vmem:[%s0 + $0x400] sm:$0xff]
  %v143 = vld [vmem:[%s0 + $0x408] sm:$0xff]
  %v144 = vld [vmem:[%s0 + $0x410] sm:$0xff]
  %v145 = vld [vmem:[%s0 + $0x418] sm:$0xff]
  %v146 = vld [vmem:[%s0 + $0x420] sm:$0xff]
  %v147 = vld [vmem:[%s0 + $0x428] sm:$0xff]
  %v148 = vld [vmem:[%s0 + $0x430] sm:$0xff]
  %v149 = vld [vmem:[%s0 + $0x438] sm:$0xff]
  %v150 = vld [vmem:[%s0 + $0x440] sm:$0xff]
  %v151 = vld [vmem:[%s0 + $0x448] sm:$0xff]
  %v152 = vld [vmem:[%s0 + $0x450] sm:$0xff]
  %v153 = vld [vmem:[%s0 + $0x458] sm:$0xff]
  %v154 = vld [vmem:[%s0 + $0x460] sm:$0xff]
  %v155 = vld [vmem:[%s0 + $0x468] sm:$0xff]
  %v156 = vld [vmem:[%s0 + $0x470] sm:$0xff]
  %v157 = vld [vmem:[%s0 + $0x478] sm:$0xff]
  %v158 = vld [vmem:[%s0 + $0x480] sm:$0xff]
  %v159 = vld [vmem:[%s0 + $0x488] sm:$0xff]
  %v160 = vld [vmem:[%s0 + $0x490] sm:$0xff]
  %v161 = vld [vmem:[%s0 + $0x498] sm:$0xff]
  %v162 = vld [vmem:[%s0 + $0x4a0] sm:$0xff]
  %v163 = vld [vmem:[%s0 + $0x4a8] sm:$0xff]
  %v164 = vld [vmem:[%s0 + $0x4b0] sm:$0xff]
  %v165 = vld [vmem:[%s0 + $0x4b8] sm:$0xff]
  %v166 = vld [vmem:[%s0 + $0x4c0] sm:$0xff]
  %v167 = vld [vmem:[%s0 + $0x4c8] sm:$0xff]
  %v168 = vld [vmem:[%s0 + $0x4d0] sm:$0xff]
  %v169 = vld [vmem:[%s0 + $0x4d8] sm:$0xff]
  %v170 = vld [vmem:[%s0 + $0x4e0] sm:$0xff]
  %v171 = vld [vmem:[%s0 + $0x4e8] sm:$0xff]
  %v172 = vld [vmem:[%s0 + $0x4f0] sm:$0xff]
  %v173 = vld [vmem:[%s0 + $0x4f8] sm:$0xff]
  %v174 = vld [vmem:[%s0 + $0x500] sm:$0xff]
  %v175 = vld [vmem:[%s0 + $0x508] sm:$0xff]
  %v176 = vld [vmem:[%s0 + $0x510] sm:$0xff]
  %v177 = vld [vmem:[%s0 + $0x518] sm:$0xff]
  %v178 = vld [vmem:[%s0 + $0x520] sm:$0xff]
  %v179 = vld [vmem:[%s0 + $0x528] sm:$0xff]
  %v180 = vld [vmem:[%s0 + $0x530] sm:$0xff]
  %v181 = vld [vmem:[%s0 + $0x538] sm:$0xff]
  %v182 = vld [vmem:[%s0 + $0x540] sm:$0xff]
  %v183 = vld [vmem:[%s0 + $0x548] sm:$0xff]
  %v184 = vld [vmem:[%s0 + $0x550] sm:$0xff]
  %v185 = vld [vmem:[%s0 + $0x558] sm:$0xff]
  %v186 = vld [vmem:[%s0 + $0x560] sm:$0xff]
  %v187 = vld [vmem:[%s0 + $0x568] sm:$0xff]
  %v188 = vld [vmem:[%s0 + $0x570] sm:$0xff]
  %v189 = vld [vmem:[%s0 + $0x578] sm:$0xff]
  %v190 = vld [vmem:[%s0 + $0x580] sm:$0xff]
  %v191 = vld [vmem:[%s0 + $0x588] sm:$0xff]
  %v192 = vld [vmem:[%s0 + $0x590] sm:$0xff]
  %v193 = vld [vmem:[%s0 + $0x598] sm:$0xff]
  %v194 = vld [vmem:[%s0 + $0x5a0] sm:$0xff]
  %v195 = vld [vmem:[%s0 + $0x5a8] sm:$0xff]
  %v196 = vld [vmem:[%s0 + $0x5b0] sm:$0xff]
  %v197 = vld [vmem:[%s0 + $0x5b8] sm:$0xff]
  %v198 = vld [vmem:[%s0 + $0x5c0] sm:$0xff]
  %v199 = vld [vmem:[%s0 + $0x5c8] sm:$0xff]
  %v200 = vld [vmem:[%s0 + $0x5d0] sm:$0xff]
  %v201 = vld [vmem:[%s0 + $0x5d8] sm:$0xff]
  %v202 = vld [vmem:[%s0 + $0x5e0] sm:$0xff]
  %v203 = vld [vmem:[%s0 + $0x5e8] sm:$0xff]
  %v204 = vld [vmem:[%s0 + $0x5f0] sm:$0xff]
  %v205 = vld [vmem:[%s0 + $0x5f8] sm:$0xff]
  %v206 = vld [vmem:[%s0 + $0x600] sm:$0xff]
  %v207 = vld [vmem:[%s0 + $0x608] sm:$0xff]
  %v208 = vld [vmem:[%s0 + $0x610] sm:$0xff]
  %v209 = vld [vmem:[%s0 + $0x618] sm:$0xff]
  %v210 = vld [vmem:[%s0 + $0x620] sm:$0xff]
  %v211 = vld [vmem:[%s0 + $0x628] sm:$0xff]
  %v212 = vld [vmem:[%s0 + $0x630] sm:$0xff]
  %v213 = vld [vmem:[%s0 + $0x638] sm:$0xff]
  %v214 = vld [vmem:[%s0 + $0x640] sm:$0xff]
  %v215 = vld [vmem:[%s0 + $0x648] sm:$0xff]
  %v216 = vld [vmem:[%s0 + $0x650] sm:$0xff]
  %v217 = vld [vmem:[%s0 + $0x658] sm:$0xff]
  %v218 = vld [vmem:[%s0 + $0x660] sm:$0xff]
  %v219 = vld [vmem:[%s0 + $0x668] sm:$0xff]
  %v220 = vld [vmem:[%s0 + $0x670] sm:$0xff]
  %v221 = vld [vmem:[%s0 + $0x678] sm:$0xff]
  %v222 = vld [vmem:[%s0 + $0x680] sm:$0xff]
  %v223 = vld [vmem:[%s0 + $0x688] sm:$0xff]
  %v224 = vld [vmem:[%s0 + $0x690] sm:$0xff]
  %v225 = vld [vmem:[%s0 + $0x698] sm:$0xff]
  %v226 = vld [vmem:[%s0 + $0x6a0] sm:$0xff]
  %v227 = vld [vmem:[%s0 + $0x6a8] sm:$0xff]
  %v228 = vld [vmem:[%s0 + $0x6b0] sm:$0xff]
  %v229 = vld [vmem:[%s0 + $0x6b8] sm:$0xff]
  %v230 = vld [vmem:[%s0 + $0x6c0] sm:$0xff]
  %v231 = vld [vmem:[%s0 + $0x6c8] sm:$0xff]
  %v232 = vld [vmem:[%s0 + $0x6d0] sm:$0xff]
  %v233 = vld [vmem:[%s0 + $0x6d8] sm:$0xff]
  %v234 = vld [vmem:[%s0 + $0x6e0] sm:$0xff]
  %v235 = vld [vmem:[%s0 + $0x6e8] sm:$0xff]
  %v236 = vld [vmem:[%s0 + $0x6f0] sm:$0xff]
  %v237 = vld [vmem:[%s0 + $0x6f8] sm:$0xff]
  %v238 = vld [vmem:[%s0 + $0x700] sm:$0xff]
  %v239 = vld [vmem:[%s0 + $0x708] sm:$0xff]
  %v240 = vld [vmem:[%s0 + $0x710] sm:$0xff]
  %v241 = vld [vmem:[%s0 + $0x718] sm:$0xff]
  %v242 = vld [vmem:[%s0 + $0x720] sm:$0xff]
  %v243 = vld [vmem:[%s0 + $0x728] sm:$0xff]
  %v244 = vld [vmem:[%s0 + $0x730] sm:$0xff]
  %v245 = vld [vmem:[%s0 + $0x738] sm:$0xff]
  %v246 = vld [vmem:[%s0 + $0x740] sm:$0xff]
  %v247 = vld [vmem:[%s0 + $0x748] sm:$0xff]
  %v248 = vld [vmem:[%s0 + $0x750] sm:$0xff]
  %v249 = vld [vmem:[%s0 + $0x758] sm:$0xff]
  %v250 = vld [vmem:[%s0 + $0x760] sm:$0xff]
  %v251 = vld [vmem:[%s0 + $0x768] sm:$0xff]
  %v252 = vld [vmem:[%s0 + $0x770] sm:$0xff]
  %v253 = vld [vmem:[%s0 + $0x778] sm:$0xff]
  %v254 = vld [vmem:[%s0 + $0x780] sm:$0xff]
  %v255 = vld [vmem:[%s0 + $0x788] sm:$0xff]
  %v256 = vld [vmem:[%s0 + $0x790] sm:$0xff]
  %v257 = vld [vmem:[%s0 + $0x798] sm:$0xff]
  %v258 = vld [vmem:[%s0 + $0x7a0] sm:$0xff]
  %v259 = vld [vmem:[%s0 + $0x7a8] sm:$0xff]
  %v260 = vld [vmem:[%s0 + $0x7b0] sm:$0xff]
  %v261 = vld [vmem:[%s0 + $0x7b8] sm:$0xff]
  %v262 = vld [vmem:[%s0 + $0x7c0] sm:$0xff]
  %v263 = vld [vmem:[%s0 + $0x7c8] sm:$0xff]
  %v264 = vld [vmem:[%s0 + $0x7d0] sm:$0xff]
  %v265 = vld [vmem:[%s0 + $0x7d8] sm:$0xff]
  %v266 = vld [vmem:[%s0 + $0x7e0] sm:$0xff]
  %v267 = vld [vmem:[%s0 + $0x7e8] sm:$0xff]
  %v268 = vld [vmem:[%s0 + $0x7f0] sm:$0xff]
  %v269 = vld [vmem:[%s0 + $0x7f8] sm:$0xff]
  %v270 = vld [vmem:[%s0 + $0x800] sm:$0xff]
  %v271 = vld [vmem:[%s0 + $0x808] sm:$0xff]
  %v272 = vld [vmem:[%s0 + $0x810] sm:$0xff]
  %v273 = vld [vmem:[%s0 + $0x818] sm:$0xff]
  %v274 = vld [vmem:[%s0 + $0x820] sm:$0xff]
  %v275 = vld [vmem:[%s0 + $0x828] sm:$0xff]
  %v276 = vld [vmem:[%s0 + $0x830] sm:$0xff]
  %v277 = vld [vmem:[%s0 + $0x838] sm:$0xff]
  %v278 = vld [vmem:[%s0 + $0x840] sm:$0xff]
  %v279 = vld [vmem:[%s0 + $0x848] sm:$0xff]
  %v280 = vld [vmem:[%s0 + $0x850] sm:$0xff]
  %v281 = vld [vmem:[%s0 + $0x858] sm:$0xff]
  %v282 = vld [vmem:[%s0 + $0x860] sm:$0xff]
  %v283 = vld [vmem:[%s0 + $0x868] sm:$0xff]
  %v284 = vld [vmem:[%s0 + $0x870] sm:$0xff]
  %v285 = vld [vmem:[%s0 + $0x878] sm:$0xff]
  %v286 = vld [vmem:[%s0 + $0x880] sm:$0xff]
  %v287 = vld [vmem:[%s0 + $0x888] sm:$0xff]
  %v288 = vld [vmem:[%s0 + $0x890] sm:$0xff]
  %v289 = vld [vmem:[%s0 + $0x898] sm:$0xff]
  %v290 = vld [vmem:[%s0 + $0x8a0] sm:$0xff]
  %v291 = vld [vmem:[%s0 + $0x8a8] sm:$0xff]
  %v292 = vld [vmem:[%s0 + $0x8b0] sm:$0xff]
  %v293 = vld [vmem:[%s0 + $0x8b8] sm:$0xff]
  %v294 = vld [vmem:[%s0 + $0x8c0] sm:$0xff]
  %v295 = vld [vmem:[%s0 + $0x8c8] sm:$0xff]
  %v296 = vld [vmem:[%s0 + $0x8d0] sm:$0xff]
  %v297 = vld [vmem:[%s0 + $0x8d8] sm:$0xff]
  %v298 = vld [vmem:[%s0 + $0x8e0] sm:$0xff]
  %v299 = vld [vmem:[%s0 + $0x8e8] sm:$0xff]
  %v300 = vld [vmem:[%s0 + $0x8f0] sm:$0xff]
  %v301 = vld [vmem:[%s0 + $0x8f8] sm:$0xff]
  %v302 = vld [vmem:[%s0 + $0x900] sm:$0xff]
  %v303 = vld [vmem:[%s0 + $0x908] sm:$0xff]
  %v304 = vld [vmem:[%s0 + $0x910] sm:$0xff]
  %v305 = vld [vmem:[%s0 + $0x918] sm:$0xff]
  %v306 = vld [vmem:[%s0 + $0x920] sm:$0xff]
  %v307 = vld [vmem:[%s0 + $0x928] sm:$0xff]
  %v308 = vld [vmem:[%s0 + $0x930] sm:$0xff]
  %v309 = vld [vmem:[%s0 + $0x938] sm:$0xff]
  %v310 = vld [vmem:[%s0 + $0x940] sm:$0xff]
  %v311 = vld [vmem:[%s0 + $0x948] sm:$0xff]
  %v312 = vld [vmem:[%s0 + $0x950] sm:$0xff]
  %v313 = vld [vmem:[%s0 + $0x958] sm:$0xff]
  %v314 = vld [vmem:[%s0 + $0x960] sm:$0xff]
  %v315 = vld [vmem:[%s0 + $0x968] sm:$0xff]
  %v316 = vld [vmem:[%s0 + $0x970] sm:$0xff]
  %v317 = vld [vmem:[%s0 + $0x978] sm:$0xff]
  %v318 = vld [vmem:[%s0 + $0x980] sm:$0xff]
  %v319 = vld [vmem:[%s0 + $0x988] sm:$0xff]
  %v320 = vld [vmem:[%s0 + $0x990] sm:$0xff]
  %v321 = vld [vmem:[%s0 + $0x998] sm:$0xff]
  %v322 = vld [vmem:[%s0 + $0x9a0] sm:$0xff]
  %v323 = vld [vmem:[%s0 + $0x9a8] sm:$0xff]
  %v324 = vld [vmem:[%s0 + $0x9b0] sm:$0xff]
  %v325 = vld [vmem:[%s0 + $0x9b8] sm:$0xff]
  %v326 = vld [vmem:[%s0 + $0x9c0] sm:$0xff]
  %v327 = vld [vmem:[%s0 + $0x9c8] sm:$0xff]
  %v328 = vld [vmem:[%s0 + $0x9d0] sm:$0xff]
  %v329 = vld [vmem:[%s0 + $0x9d8] sm:$0xff]
  %v330 = vld [vmem:[%s0 + $0x9e0] sm:$0xff]
  %v331 = vld [vmem:[%s0 + $0x9e8] sm:$0xff]
  %v332 = vld [vmem:[%s0 + $0x9f0] sm:$0xff]
  %v333 = vld [vmem:[%s0 + $0x9f8] sm:$0xff]
  %v334 = vld [vmem:[%s0 + $0xa00] sm:$0xff]
  %v335 = vld [vmem:[%s0 + $0xa08] sm:$0xff]
  %v336 = vld [vmem:[%s0 + $0xa10] sm:$0xff]
  %v337 = vld [vmem:[%s0 + $0xa18] sm:$0xff]
  %v338 = vld [vmem:[%s0 + $0xa20] sm:$0xff]
  %v339 = vld [vmem:[%s0 + $0xa28] sm:$0xff]
  %v340 = vld [vmem:[%s0 + $0xa30] sm:$0xff]
  %v341 = vld [vmem:[%s0 + $0xa38] sm:$0xff]
  %v342 = vld [vmem:[%s0 + $0xa40] sm:$0xff]
  %v343 = vld [vmem:[%s0 + $0xa48] sm:$0xff]
  %v344 = vld [vmem:[%s0 + $0xa50] sm:$0xff]
  %v345 = vld [vmem:[%s0 + $0xa58] sm:$0xff]
  %v346 = vld [vmem:[%s0 + $0xa60] sm:$0xff]
  %v347 = vld [vmem:[%s0 + $0xa68] sm:$0xff]
  %v348 = vld [vmem:[%s0 + $0xa70] sm:$0xff]
  %v349 = vld [vmem:[%s0 + $0xa78] sm:$0xff]
  %v350 = vld [vmem:[%s0 + $0xa80] sm:$0xff]
  %v351 = vld [vmem:[%s0 + $0xa88] sm:$0xff]
  %v352 = vld [vmem:[%s0 + $0xa90] sm:$0xff]
  %v353 = vld [vmem:[%s0 + $0xa98] sm:$0xff]
  %v354 = vld [vmem:[%s0 + $0xaa0] sm:$0xff]
  %v355 = vld [vmem:[%s0 + $0xaa8] sm:$0xff]
  %v356 = vld [vmem:[%s0 + $0xab0] sm:$0xff]
  %v357 = vld [vmem:[%s0 + $0xab8] sm:$0xff]
  %v358 = vld [vmem:[%s0 + $0xac0] sm:$0xff]
  %v359 = vld [vmem:[%s0 + $0xac8] sm:$0xff]
  %v360 = vld [vmem:[%s0 + $0xad0] sm:$0xff]
  %v361 = vld [vmem:[%s0 + $0xad8] sm:$0xff]
  %v362 = vld [vmem:[%s0 + $0xae0] sm:$0xff]
  %v363 = vld [vmem:[%s0 + $0xae8] sm:$0xff]
  %v364 = vld [vmem:[%s0 + $0xaf0] sm:$0xff]
  %v365 = vld [vmem:[%s0 + $0xaf8] sm:$0xff]
  %v366 = vld [vmem:[%s0 + $0xb00] sm:$0xff]
  %v367 = vld [vmem:[%s0 + $0xb08] sm:$0xff]
  %v368 = vld [vmem:[%s0 + $0xb10] sm:$0xff]
  %v369 = vld [vmem:[%s0 + $0xb18] sm:$0xff]
  %v370 = vld [vmem:[%s0 + $0xb20] sm:$0xff]
  %v371 = vld [vmem:[%s0 + $0xb28] sm:$0xff]
  %v372 = vld [vmem:[%s0 + $0xb30] sm:$0xff]
  %v373 = vld [vmem:[%s0 + $0xb38] sm:$0xff]
  %v374 = vld [vmem:[%s0 + $0xb40] sm:$0xff]
  %v375 = vld [vmem:[%s0 + $0xb48] sm:$0xff]
  %v376 = vld [vmem:[%s0 + $0xb50] sm:$0xff]
  %v377 = vld [vmem:[%s0 + $0xb58] sm:$0xff]
  %v378 = vld [vmem:[%s0 + $0xb60] sm:$0xff]
  %v379 = vld [vmem:[%s0 + $0xb68] sm:$0xff]
  %v380 = vld [vmem:[%s0 + $0xb70] sm:$0xff]
  %v381 = vld [vmem:[%s0 + $0xb78] sm:$0xff]
  %v382 = vld [vmem:[%s0 + $0xb80] sm:$0xff]
  %v383 = vld [vmem:[%s0 + $0xb88] sm:$0xff]
  %v384 = vld [vmem:[%s0 + $0xb90] sm:$0xff]
  %v385 = vld [vmem:[%s0 + $0xb98] sm:$0xff]
  %v386 = vld [vmem:[%s0 + $0xba0] sm:$0xff]
  %v387 = vld [vmem:[%s0 + $0xba8] sm:$0xff]
  %v388 = vld [vmem:[%s0 + $0xbb0] sm:$0xff]
  %v389 = vld [vmem:[%s0 + $0xbb8] sm:$0xff]
  %v390 = vld [vmem:[%s0 + $0xbc0] sm:$0xff]
  %v391 = vld [vmem:[%s0 + $0xbc8] sm:$0xff]
  %v392 = vld [vmem:[%s0 + $0xbd0] sm:$0xff]
  %v393 = vld [vmem:[%s0 + $0xbd8] sm:$0xff]
  %v394 = vld [vmem:[%s0 + $0xbe0] sm:$0xff]
  %v395 = vld [vmem:[%s0 + $0xbe8] sm:$0xff]
  %v396 = vld [vmem:[%s0 + $0xbf0] sm:$0xff]
  %v397 = vld [vmem:[%s0 + $0xbf8] sm:$0xff]
  %v398 = vld [vmem:[%s0 + $0xc00] sm:$0xff]
  %v399 = vld [vmem:[%s0 + $0xc08] sm:$0xff]
  %v400 = vld [vmem:[%s0 + $0xc10] sm:$0xff]
  %v401 = vld [vmem:[%s0 + $0xc18] sm:$0xff]
  %v402 = vld [vmem:[%s0 + $0xc20] sm:$0xff]
  %v403 = vld [vmem:[%s0 + $0xc28] sm:$0xff]
  %v404 = vld [vmem:[%s0 + $0xc30] sm:$0xff]
  %v405 = vld [vmem:[%s0 + $0xc38] sm:$0xff]
  %v406 = vld [vmem:[%s0 + $0xc40] sm:$0xff]
  %v407 = vld [vmem:[%s0 + $0xc48] sm:$0xff]
  %v408 = vld [vmem:[%s0 + $0xc50] sm:$0xff]
  %v409 = vld [vmem:[%s0 + $0xc58] sm:$0xff]
  %v410 = vld [vmem:[%s0 + $0xc60] sm:$0xff]
  %v411 = vld [vmem:[%s0 + $0xc68] sm:$0xff]
  %v412 = vld [vmem:[%s0 + $0xc70] sm:$0xff]
  %v413 = vld [vmem:[%s0 + $0xc78] sm:$0xff]
  %v414 = vld [vmem:[%s0 + $0xc80] sm:$0xff]
  %v415 = vld [vmem:[%s0 + $0xc88] sm:$0xff]
  %v416 = vld [vmem:[%s0 + $0xc90] sm:$0xff]
  %v417 = vld [vmem:[%s0 + $0xc98] sm:$0xff]
  %v418 = vld [vmem:[%s0 + $0xca0] sm:$0xff]
  %v419 = vld [vmem:[%s0 + $0xca8] sm:$0xff]
  %v420 = vld [vmem:[%s0 + $0xcb0] sm:$0xff]
  %v421 = vld [vmem:[%s0 + $0xcb8] sm:$0xff]
  %v422 = vld [vmem:[%s0 + $0xcc0] sm:$0xff]
  %v423 = vld [vmem:[%s0 + $0xcc8] sm:$0xff]
  %v424 = vld [vmem:[%s0 + $0xcd0] sm:$0xff]
  %v425 = vld [vmem:[%s0 + $0xcd8] sm:$0xff]
  %v426 = vld [vmem:[%s0 + $0xce0] sm:$0xff]
  %v427 = vld [vmem:[%s0 + $0xce8] sm:$0xff]
  %v428 = vld [vmem:[%s0 + $0xcf0] sm:$0xff]
  %v429 = vld [vmem:[%s0 + $0xcf8] sm:$0xff]
  %v430 = vld [vmem:[%s0 + $0xd00] sm:$0xff]
  %v431 = vld [vmem:[%s0 + $0xd08] sm:$0xff]
  %v432 = vld [vmem:[%s0 + $0xd10] sm:$0xff]
  %v433 = vld [vmem:[%s0 + $0xd18] sm:$0xff]
  %v434 = vld [vmem:[%s0 + $0xd20] sm:$0xff]
  %v435 = vld [vmem:[%s0 + $0xd28] sm:$0xff]
  %v436 = vld [vmem:[%s0 + $0xd30] sm:$0xff]
  %v437 = vld [vmem:[%s0 + $0xd38] sm:$0xff]
  %v438 = vld [vmem:[%s0 + $0xd40] sm:$0xff]
  %v439 = vld [vmem:[%s0 + $0xd48] sm:$0xff]
  %v440 = vld [vmem:[%s0 + $0xd50] sm:$0xff]
  %v441 = vld [vmem:[%s0 + $0xd58] sm:$0xff]
  %v442 = vld [vmem:[%s0 + $0xd60] sm:$0xff]
  %v443 = vld [vmem:[%s0 + $0xd68] sm:$0xff]
  %v444 = vld [vmem:[%s0 + $0xd70] sm:$0xff]
  %v445 = vld [vmem:[%s0 + $0xd78] sm:$0xff]
  %v446 = vld [vmem:[%s0 + $0xd80] sm:$0xff]
  %v447 = vld [vmem:[%s0 + $0xd88] sm:$0xff]
  %v448 = vld [vmem:[%s0 + $0xd90] sm:$0xff]
  %v449 = vld [vmem:[%s0 + $0xd98] sm:$0xff]
  %v450 = vld [vmem:[%s0 + $0xda0] sm:$0xff]
  %v451 = vld [vmem:[%s0 + $0xda8] sm:$0xff]
  %v452 = vld [vmem:[%s0 + $0xdb0] sm:$0xff]
  %v453 = vld [vmem:[%s0 + $0xdb8] sm:$0xff]
  %v454 = vld [vmem:[%s0 + $0xdc0] sm:$0xff]
  %v455 = vld [vmem:[%s0 + $0xdc8] sm:$0xff]
  %v456 = vld [vmem:[%s0 + $0xdd0] sm:$0xff]
  %v457 = vld [vmem:[%s0 + $0xdd8] sm:$0xff]
  %v458 = vld [vmem:[%s0 + $0xde0] sm:$0xff]
  %v459 = vld [vmem:[%s0 + $0xde8] sm:$0xff]
  %v460 = vld [vmem:[%s0 + $0xdf0] sm:$0xff]
  %v461 = vld [vmem:[%s0 + $0xdf8] sm:$0xff]
  %v462 = vld [vmem:[%s0 + $0xe00] sm:$0xff]
  %v463 = vld [vmem:[%s0 + $0xe08] sm:$0xff]
  %v464 = vld [vmem:[%s0 + $0xe10] sm:$0xff]
  %v465 = vld [vmem:[%s0 + $0xe18] sm:$0xff]
  %v466 = vld [vmem:[%s0 + $0xe20] sm:$0xff]
  %v467 = vld [vmem:[%s0 + $0xe28] sm:$0xff]
  %v468 = vld [vmem:[%s0 + $0xe30] sm:$0xff]
  %v469 = vld [vmem:[%s0 + $0xe38] sm:$0xff]
  %v470 = vld [vmem:[%s0 + $0xe40] sm:$0xff]
  %v471 = vld [vmem:[%s0 + $0xe48] sm:$0xff]
  %v472 = vld [vmem:[%s0 + $0xe50] sm:$0xff]
  %v473 = vld [vmem:[%s0 + $0xe58] sm:$0xff]
  %v474 = vld [vmem:[%s0 + $0xe60] sm:$0xff]
  %v475 = vld [vmem:[%s0 + $0xe68] sm:$0xff]
  %v476 = vld [vmem:[%s0 + $0xe70] sm:$0xff]
  %v477 = vld [vmem:[%s0 + $0xe78] sm:$0xff]
  %v478 = vld [vmem:[%s0 + $0xe80] sm:$0xff]
  %v479 = vld [vmem:[%s0 + $0xe88] sm:$0xff]
  %v480 = vld [vmem:[%s0 + $0xe90] sm:$0xff]
  %v481 = vld [vmem:[%s0 + $0xe98] sm:$0xff]
  %v482 = vld [vmem:[%s0 + $0xea0] sm:$0xff]
  %v483 = vld [vmem:[%s0 + $0xea8] sm:$0xff]
  %v484 = vld [vmem:[%s0 + $0xeb0] sm:$0xff]
  %v485 = vld [vmem:[%s0 + $0xeb8] sm:$0xff]
  %v486 = vld [vmem:[%s0 + $0xec0] sm:$0xff]
  %v487 = vld [vmem:[%s0 + $0xec8] sm:$0xff]
  %v488 = vld [vmem:[%s0 + $0xed0] sm:$0xff]
  %v489 = vld [vmem:[%s0 + $0xed8] sm:$0xff]
  %v490 = vld [vmem:[%s0 + $0xee0] sm:$0xff]
  %v491 = vld [vmem:[%s0 + $0xee8] sm:$0xff]
  %v492 = vld [vmem:[%s0 + $0xef0] sm:$0xff]
  %v493 = vld [vmem:[%s0 + $0xef8] sm:$0xff]
  %v494 = vld [vmem:[%s0 + $0xf00] sm:$0xff]
  %v495 = vld [vmem:[%s0 + $0xf08] sm:$0xff]
  %v496 = vld [vmem:[%s0 + $0xf10] sm:$0xff]
  %v497 = vld [vmem:[%s0 + $0xf18] sm:$0xff]
  %v498 = vld [vmem:[%s0 + $0xf20] sm:$0xff]
  %v499 = vld [vmem:[%s0 + $0xf28] sm:$0xff]
  %v500 = vld [vmem:[%s0 + $0xf30] sm:$0xff]
  %v501 = vld [vmem:[%s0 + $0xf38] sm:$0xff]
  %v502 = vld [vmem:[%s0 + $0xf40] sm:$0xff]
  %v503 = vld [vmem:[%s0 + $0xf48] sm:$0xff]
  %v504 = vld [vmem:[%s0 + $0xf50] sm:$0xff]
  %v505 = vld [vmem:[%s0 + $0xf58] sm:$0xff]
  %v506 = vld [vmem:[%s0 + $0xf60] sm:$0xff]
  %v507 = vld [vmem:[%s0 + $0xf68] sm:$0xff]
  %v508 = vld [vmem:[%s0 + $0xf70] sm:$0xff]
  %v509 = vld [vmem:[%s0 + $0xf78] sm:$0xff]
  %v510 = vld [vmem:[%s0 + $0xf80] sm:$0xff]
  %v511 = vld [vmem:[%s0 + $0xf88] sm:$0xff]
  %v512 = vld [vmem:[%s0 + $0xf90] sm:$0xff]
  %v513 = vld [vmem:[%s0 + $0xf98] sm:$0xff]
  %v514 = vld [vmem:[%s0 + $0xfa0] sm:$0xff]
  %v515 = vld [vmem:[%s0 + $0xfa8] sm:$0xff]
  %v516 = vld [vmem:[%s0 + $0xfb0] sm:$0xff]
  %v517 = vld [vmem:[%s0 + $0xfb8] sm:$0xff]
  %v518 = vld [vmem:[%s0 + $0xfc0] sm:$0xff]
  %v519 = vld [vmem:[%s0 + $0xfc8] sm:$0xff]
  %v520 = vld [vmem:[%s0 + $0xfd0] sm:$0xff]
  %v521 = vld [vmem:[%s0 + $0xfd8] sm:$0xff]
  %v522 = vld [vmem:[%s0 + $0xfe0] sm:$0xff]
  %v523 = vld [vmem:[%s0 + $0xfe8] sm:$0xff]
  %v524 = vld [vmem:[%s0 + $0xff0] sm:$0xff]
  %v525 = vld [vmem:[%s0 + $0xff8] sm:$0xff]
  %v526 = vld [vmem:[%s0 + $0x1000] sm:$0xff]
  %v527 = vld [vmem:[%s0 + $0x1008] sm:$0xff]
  %v528 = vld [vmem:[%s0 + $0x1010] sm:$0xff]
  %v529 = vld [vmem:[%s0 + $0x1018] sm:$0xff]
  %v530 = vld [vmem:[%s0 + $0x1020] sm:$0xff]
  %v531 = vld [vmem:[%s0 + $0x1028] sm:$0xff]
  %v532 = vld [vmem:[%s0 + $0x1030] sm:$0xff]
  %v533 = vld [vmem:[%s0 + $0x1038] sm:$0xff]
  %v534 = vld [vmem:[%s0 + $0x1040] sm:$0xff]
  %v535 = vld [vmem:[%s0 + $0x1048] sm:$0xff]
  %v536 = vld [vmem:[%s0 + $0x1050] sm:$0xff]
  %v537 = vld [vmem:[%s0 + $0x1058] sm:$0xff]
  %v538 = vld [vmem:[%s0 + $0x1060] sm:$0xff]
  %v539 = vld [vmem:[%s0 + $0x1068] sm:$0xff]
  %v540 = vld [vmem:[%s0 + $0x1070] sm:$0xff]
  %v541 = vld [vmem:[%s0 + $0x1078] sm:$0xff]
  %v542 = vld [vmem:[%s0 + $0x1080] sm:$0xff]
  %v543 = vld [vmem:[%s0 + $0x1088] sm:$0xff]
  %v544 = vld [vmem:[%s0 + $0x1090] sm:$0xff]
  %v545 = vld [vmem:[%s0 + $0x1098] sm:$0xff]
  %v546 = vld [vmem:[%s0 + $0x10a0] sm:$0xff]
  %v547 = vld [vmem:[%s0 + $0x10a8] sm:$0xff]
  %v548 = vld [vmem:[%s0 + $0x10b0] sm:$0xff]
  %v549 = vld [vmem:[%s0 + $0x10b8] sm:$0xff]
  %v550 = vld [vmem:[%s0 + $0x10c0] sm:$0xff]
  %v551 = vld [vmem:[%s0 + $0x10c8] sm:$0xff]
  %v552 = vld [vmem:[%s0 + $0x10d0] sm:$0xff]
  %v553 = vld [vmem:[%s0 + $0x10d8] sm:$0xff]
  %v554 = vld [vmem:[%s0 + $0x10e0] sm:$0xff]
  %v555 = vld [vmem:[%s0 + $0x10e8] sm:$0xff]
  %v556 = vld [vmem:[%s0 + $0x10f0] sm:$0xff]
  %v557 = vld [vmem:[%s0 + $0x10f8] sm:$0xff]
  %v558 = vld [vmem:[%s0 + $0x1100] sm:$0xff]
  %v559 = vld [vmem:[%s0 + $0x1108] sm:$0xff]
  %v560 = vld [vmem:[%s0 + $0x1110] sm:$0xff]
  %v561 = vld [vmem:[%s0 + $0x1118] sm:$0xff]
  %v562 = vld [vmem:[%s0 + $0x1120] sm:$0xff]
  %v563 = vld [vmem:[%s0 + $0x1128] sm:$0xff]
  %v564 = vld [vmem:[%s0 + $0x1130] sm:$0xff]
  %v565 = vld [vmem:[%s0 + $0x1138] sm:$0xff]
  %v566 = vld [vmem:[%s0 + $0x1140] sm:$0xff]
  %v567 = vld [vmem:[%s0 + $0x1148] sm:$0xff]
  %v568 = vld [vmem:[%s0 + $0x1150] sm:$0xff]
  %v569 = vld [vmem:[%s0 + $0x1158] sm:$0xff]
  %v570 = vld [vmem:[%s0 + $0x1160] sm:$0xff]
  %v571 = vld [vmem:[%s0 + $0x1168] sm:$0xff]
  %v572 = vld [vmem:[%s0 + $0x1170] sm:$0xff]
  %v573 = vld [vmem:[%s0 + $0x1178] sm:$0xff]
  %v574 = vld [vmem:[%s0 + $0x1180] sm:$0xff]
  %v575 = vld [vmem:[%s0 + $0x1188] sm:$0xff]
  %v576 = vld [vmem:[%s0 + $0x1190] sm:$0xff]
  %v577 = vld [vmem:[%s0 + $0x1198] sm:$0xff]
  %v578 = vld [vmem:[%s0 + $0x11a0] sm:$0xff]
  %v579 = vld [vmem:[%s0 + $0x11a8] sm:$0xff]
  %v580 = vld [vmem:[%s0 + $0x11b0] sm:$0xff]
  %v581 = vld [vmem:[%s0 + $0x11b8] sm:$0xff]
  %v582 = vld [vmem:[%s0 + $0x11c0] sm:$0xff]
  %v583 = vld [vmem:[%s0 + $0x11c8] sm:$0xff]
  %v584 = vld [vmem:[%s0 + $0x11d0] sm:$0xff]
  %v585 = vld [vmem:[%s0 + $0x11d8] sm:$0xff]
  %v586 = vld [vmem:[%s0 + $0x11e0] sm:$0xff]
  %v587 = vld [vmem:[%s0 + $0x11e8] sm:$0xff]
  %v588 = vld [vmem:[%s0 + $0x11f0] sm:$0xff]
  %v589 = vld [vmem:[%s0 + $0x11f8] sm:$0xff]
  %v590 = vld [vmem:[%s1] sm:$0xff]
  %v591 = vld [vmem:[%s1 + $0x8] sm:$0xff]
  %v592 = vld [vmem:[%s1 + $0x10] sm:$0xff]
  %v593 = vld [vmem:[%s1 + $0x18] sm:$0xff]
  %v594 = vld [vmem:[%s1 + $0x20] sm:$0xff]
  %v595 = vld [vmem:[%s1 + $0x28] sm:$0xff]
  %v596 = vld [vmem:[%s1 + $0x30] sm:$0xff]
  %v597 = vld [vmem:[%s1 + $0x38] sm:$0xff]
  %v598 = vld [vmem:[%s1 + $0x40] sm:$0xff]
  %v599 = vld [vmem:[%s1 + $0x48] sm:$0xff]
  %v600 = vld [vmem:[%s1 + $0x50] sm:$0xff]
  %v601 = vld [vmem:[%s1 + $0x58] sm:$0xff]
  %v602 = vld [vmem:[%s1 + $0x60] sm:$0xff]
  %v603 = vld [vmem:[%s1 + $0x68] sm:$0xff]
  %v604 = vld [vmem:[%s1 + $0x70] sm:$0xff]
  %v605 = vld [vmem:[%s1 + $0x78] sm:$0xff]
  %v606 = vld [vmem:[%s1 + $0x80] sm:$0xff]
  %v607 = vld [vmem:[%s1 + $0x88] sm:$0xff]
  %v608 = vld [vmem:[%s1 + $0x90] sm:$0xff]
  %v609 = vld [vmem:[%s1 + $0x98] sm:$0xff]
  %v610 = vld [vmem:[%s1 + $0xa0] sm:$0xff]
  %v611 = vld [vmem:[%s1 + $0xa8] sm:$0xff]
  %v612 = vld [vmem:[%s1 + $0xb0] sm:$0xff]
  %v613 = vld [vmem:[%s1 + $0xb8] sm:$0xff]
  %v614 = vld [vmem:[%s1 + $0xc0] sm:$0xff]
  %v615 = vld [vmem:[%s1 + $0xc8] sm:$0xff]
  %v616 = vld [vmem:[%s1 + $0xd0] sm:$0xff]
  %v617 = vld [vmem:[%s1 + $0xd8] sm:$0xff]
  %v618 = vld [vmem:[%s1 + $0xe0] sm:$0xff]
  %v619 = vld [vmem:[%s1 + $0xe8] sm:$0xff]
  %v620 = vld [vmem:[%s1 + $0xf0] sm:$0xff]
  %v621 = vld [vmem:[%s1 + $0xf8] sm:$0xff]
  %v622 = vld [vmem:[%s1 + $0x100] sm:$0xff]
  %v623 = vld [vmem:[%s1 + $0x108] sm:$0xff]
  %v624 = vld [vmem:[%s1 + $0x110] sm:$0xff]
  %v625 = vld [vmem:[%s1 + $0x118] sm:$0xff]
  %v626 = vld [vmem:[%s1 + $0x120] sm:$0xff]
  %v627 = vld [vmem:[%s1 + $0x128] sm:$0xff]
  %v628 = vld [vmem:[%s1 + $0x130] sm:$0xff]
  %v629 = vld [vmem:[%s1 + $0x138] sm:$0xff]
  %v630 = vld [vmem:[%s1 + $0x140] sm:$0xff]
  %v631 = vld [vmem:[%s1 + $0x148] sm:$0xff]
  %v632 = vld [vmem:[%s1 + $0x150] sm:$0xff]
  %v633 = vld [vmem:[%s1 + $0x158] sm:$0xff]
  %v634 = vld [vmem:[%s1 + $0x160] sm:$0xff]
  %v635 = vld [vmem:[%s1 + $0x168] sm:$0xff]
  %v636 = vld [vmem:[%s1 + $0x170] sm:$0xff]
  %v637 = vld [vmem:[%s1 + $0x178] sm:$0xff]
  %v638 = vld [vmem:[%s1 + $0x180] sm:$0xff]
  %v639 = vld [vmem:[%s1 + $0x188] sm:$0xff]
  %v640 = vld [vmem:[%s1 + $0x190] sm:$0xff]
  %v641 = vld [vmem:[%s1 + $0x198] sm:$0xff]
  %v642 = vld [vmem:[%s1 + $0x1a0] sm:$0xff]
  %v643 = vld [vmem:[%s1 + $0x1a8] sm:$0xff]
  %v644 = vld [vmem:[%s1 + $0x1b0] sm:$0xff]
  %v645 = vld [vmem:[%s1 + $0x1b8] sm:$0xff]
  %v646 = vld [vmem:[%s1 + $0x1c0] sm:$0xff]
  %v647 = vld [vmem:[%s1 + $0x1c8] sm:$0xff]
  %v648 = vld [vmem:[%s1 + $0x1d0] sm:$0xff]
  %v649 = vld [vmem:[%s1 + $0x1d8] sm:$0xff]
  %v650 = vld [vmem:[%s1 + $0x1e0] sm:$0xff]
  %v651 = vld [vmem:[%s1 + $0x1e8] sm:$0xff]
  %v652 = vld [vmem:[%s1 + $0x1f0] sm:$0xff]
  %v653 = vld [vmem:[%s1 + $0x1f8] sm:$0xff]
  %v654 = vld [vmem:[%s1 + $0x200] sm:$0xff]
  %v655 = vld [vmem:[%s1 + $0x208] sm:$0xff]
  %v656 = vld [vmem:[%s1 + $0x210] sm:$0xff]
  %v657 = vld [vmem:[%s1 + $0x218] sm:$0xff]
  %v658 = vld [vmem:[%s1 + $0x220] sm:$0xff]
  %v659 = vld [vmem:[%s1 + $0x228] sm:$0xff]
  %v660 = vld [vmem:[%s1 + $0x230] sm:$0xff]
  %v661 = vld [vmem:[%s1 + $0x238] sm:$0xff]
  %v662 = vld [vmem:[%s1 + $0x240] sm:$0xff]
  %v663 = vld [vmem:[%s1 + $0x248] sm:$0xff]
  %v664 = vld [vmem:[%s1 + $0x250] sm:$0xff]
  %v665 = vld [vmem:[%s1 + $0x258] sm:$0xff]
  %v666 = vld [vmem:[%s1 + $0x260] sm:$0xff]
  %v667 = vld [vmem:[%s1 + $0x268] sm:$0xff]
  %v668 = vld [vmem:[%s1 + $0x270] sm:$0xff]
  %v669 = vld [vmem:[%s1 + $0x278] sm:$0xff]
  %v670 = vld [vmem:[%s1 + $0x280] sm:$0xff]
  %v671 = vld [vmem:[%s1 + $0x288] sm:$0xff]
  %v672 = vld [vmem:[%s1 + $0x290] sm:$0xff]
  %v673 = vld [vmem:[%s1 + $0x298] sm:$0xff]
  %v674 = vld [vmem:[%s1 + $0x2a0] sm:$0xff]
  %v675 = vld [vmem:[%s1 + $0x2a8] sm:$0xff]
  %v676 = vld [vmem:[%s1 + $0x2b0] sm:$0xff]
  %v677 = vld [vmem:[%s1 + $0x2b8] sm:$0xff]
  %v678 = vld [vmem:[%s1 + $0x2c0] sm:$0xff]
  %v679 = vld [vmem:[%s1 + $0x2c8] sm:$0xff]
  %v680 = vld [vmem:[%s1 + $0x2d0] sm:$0xff]
  %v681 = vld [vmem:[%s1 + $0x2d8] sm:$0xff]
  %v682 = vld [vmem:[%s1 + $0x2e0] sm:$0xff]
  %v683 = vld [vmem:[%s1 + $0x2e8] sm:$0xff]
  %v684 = vld [vmem:[%s1 + $0x2f0] sm:$0xff]
  %v685 = vld [vmem:[%s1 + $0x2f8] sm:$0xff]
  %v686 = vld [vmem:[%s1 + $0x300] sm:$0xff]
  %v687 = vld [vmem:[%s1 + $0x308] sm:$0xff]
  %v688 = vld [vmem:[%s1 + $0x310] sm:$0xff]
  %v689 = vld [vmem:[%s1 + $0x318] sm:$0xff]
  %v690 = vld [vmem:[%s1 + $0x320] sm:$0xff]
  %v691 = vld [vmem:[%s1 + $0x328] sm:$0xff]
  %v692 = vld [vmem:[%s1 + $0x330] sm:$0xff]
  %v693 = vld [vmem:[%s1 + $0x338] sm:$0xff]
  %v694 = vld [vmem:[%s1 + $0x340] sm:$0xff]
  %v695 = vld [vmem:[%s1 + $0x348] sm:$0xff]
  %v696 = vld [vmem:[%s1 + $0x350] sm:$0xff]
  %v697 = vld [vmem:[%s1 + $0x358] sm:$0xff]
  %v698 = vld [vmem:[%s1 + $0x360] sm:$0xff]
  %v699 = vld [vmem:[%s1 + $0x368] sm:$0xff]
  %v700 = vld [vmem:[%s1 + $0x370] sm:$0xff]
  %v701 = vld [vmem:[%s1 + $0x378] sm:$0xff]
  %v702 = vld [vmem:[%s1 + $0x380] sm:$0xff]
  %v703 = vld [vmem:[%s1 + $0x388] sm:$0xff]
  %v704 = vld [vmem:[%s1 + $0x390] sm:$0xff]
  %v705 = vld [vmem:[%s1 + $0x398] sm:$0xff]
  %v706 = vld [vmem:[%s1 + $0x3a0] sm:$0xff]
  %v707 = vld [vmem:[%s1 + $0x3a8] sm:$0xff]
  %v708 = vld [vmem:[%s1 + $0x3b0] sm:$0xff]
  %v709 = vld [vmem:[%s1 + $0x3b8] sm:$0xff]
  %v710 = vld [vmem:[%s1 + $0x3c0] sm:$0xff]
  %v711 = vld [vmem:[%s1 + $0x3c8] sm:$0xff]
  %v712 = vld [vmem:[%s1 + $0x3d0] sm:$0xff]
  %v713 = vld [vmem:[%s1 + $0x3d8] sm:$0xff]
  %v714 = vld [vmem:[%s1 + $0x3e0] sm:$0xff]
  %v715 = vld [vmem:[%s1 + $0x3e8] sm:$0xff]
  %v716 = vld [vmem:[%s1 + $0x3f0] sm:$0xff]
  %v717 = vld [vmem:[%s1 + $0x3f8] sm:$0xff]
  %v718 = vld [vmem:[%s1 + $0x400] sm:$0xff]
  %v719 = vld [vmem:[%s1 + $0x408] sm:$0xff]
  %v720 = vld [vmem:[%s1 + $0x410] sm:$0xff]
  %v721 = vld [vmem:[%s1 + $0x418] sm:$0xff]
  %v722 = vld [vmem:[%s1 + $0x420] sm:$0xff]
  %v723 = vld [vmem:[%s1 + $0x428] sm:$0xff]
  %v724 = vld [vmem:[%s1 + $0x430] sm:$0xff]
  %v725 = vld [vmem:[%s1 + $0x438] sm:$0xff]
  %v726 = vld [vmem:[%s1 + $0x440] sm:$0xff]
  %v727 = vld [vmem:[%s1 + $0x448] sm:$0xff]
  %v728 = vld [vmem:[%s1 + $0x450] sm:$0xff]
  %v729 = vld [vmem:[%s1 + $0x458] sm:$0xff]
  %v730 = vld [vmem:[%s1 + $0x460] sm:$0xff]
  %v731 = vld [vmem:[%s1 + $0x468] sm:$0xff]
  %v732 = vld [vmem:[%s1 + $0x470] sm:$0xff]
  %v733 = vld [vmem:[%s1 + $0x478] sm:$0xff]
  %v734 = vld [vmem:[%s1 + $0x480] sm:$0xff]
  %v735 = vld [vmem:[%s1 + $0x488] sm:$0xff]
  %v736 = vld [vmem:[%s1 + $0x490] sm:$0xff]
  %v737 = vld [vmem:[%s1 + $0x498] sm:$0xff]
  %v738 = vld [vmem:[%s1 + $0x4a0] sm:$0xff]
  %v739 = vld [vmem:[%s1 + $0x4a8] sm:$0xff]
  %v740 = vld [vmem:[%s1 + $0x4b0] sm:$0xff]
  %v741 = vld [vmem:[%s1 + $0x4b8] sm:$0xff]
  %v742 = vld [vmem:[%s1 + $0x4c0] sm:$0xff]
  %v743 = vld [vmem:[%s1 + $0x4c8] sm:$0xff]
  %v744 = vld [vmem:[%s1 + $0x4d0] sm:$0xff]
  %v745 = vld [vmem:[%s1 + $0x4d8] sm:$0xff]
  %v746 = vld [vmem:[%s1 + $0x4e0] sm:$0xff]
  %v747 = vld [vmem:[%s1 + $0x4e8] sm:$0xff]
  %v748 = vld [vmem:[%s1 + $0x4f0] sm:$0xff]
  %v749 = vld [vmem:[%s1 + $0x4f8] sm:$0xff]
  %v750 = vld [vmem:[%s1 + $0x500] sm:$0xff]
  %v751 = vld [vmem:[%s1 + $0x508] sm:$0xff]
  %v752 = vld [vmem:[%s1 + $0x510] sm:$0xff]
  %v753 = vld [vmem:[%s1 + $0x518] sm:$0xff]
  %v754 = vld [vmem:[%s1 + $0x520] sm:$0xff]
  %v755 = vld [vmem:[%s1 + $0x528] sm:$0xff]
  %v756 = vld [vmem:[%s1 + $0x530] sm:$0xff]
  %v757 = vld [vmem:[%s1 + $0x538] sm:$0xff]
  %v758 = vld [vmem:[%s1 + $0x540] sm:$0xff]
  %v759 = vld [vmem:[%s1 + $0x548] sm:$0xff]
  %v760 = vld [vmem:[%s1 + $0x550] sm:$0xff]
  %v761 = vld [vmem:[%s1 + $0x558] sm:$0xff]
  %v762 = vld [vmem:[%s1 + $0x560] sm:$0xff]
  %v763 = vld [vmem:[%s1 + $0x568] sm:$0xff]
  %v764 = vld [vmem:[%s1 + $0x570] sm:$0xff]
  %v765 = vld [vmem:[%s1 + $0x578] sm:$0xff]
  %v766 = vld [vmem:[%s1 + $0x580] sm:$0xff]
  %v767 = vld [vmem:[%s1 + $0x588] sm:$0xff]
  %v768 = vld [vmem:[%s1 + $0x590] sm:$0xff]
  %v769 = vld [vmem:[%s1 + $0x598] sm:$0xff]
  %v770 = vld [vmem:[%s1 + $0x5a0] sm:$0xff]
  %v771 = vld [vmem:[%s1 + $0x5a8] sm:$0xff]
  %v772 = vld [vmem:[%s1 + $0x5b0] sm:$0xff]
  %v773 = vld [vmem:[%s1 + $0x5b8] sm:$0xff]
  %v774 = vld [vmem:[%s1 + $0x5c0] sm:$0xff]
  %v775 = vld [vmem:[%s1 + $0x5c8] sm:$0xff]
  %v776 = vld [vmem:[%s1 + $0x5d0] sm:$0xff]
  %v777 = vld [vmem:[%s1 + $0x5d8] sm:$0xff]
  %v778 = vld [vmem:[%s1 + $0x5e0] sm:$0xff]
  %v779 = vld [vmem:[%s1 + $0x5e8] sm:$0xff]
  %v780 = vld [vmem:[%s1 + $0x5f0] sm:$0xff]
  %v781 = vld [vmem:[%s1 + $0x5f8] sm:$0xff]
  %v782 = vld [vmem:[%s1 + $0x600] sm:$0xff]
  %v783 = vld [vmem:[%s1 + $0x608] sm:$0xff]
  %v784 = vld [vmem:[%s1 + $0x610] sm:$0xff]
  %v785 = vld [vmem:[%s1 + $0x618] sm:$0xff]
  %v786 = vld [vmem:[%s1 + $0x620] sm:$0xff]
  %v787 = vld [vmem:[%s1 + $0x628] sm:$0xff]
  %v788 = vld [vmem:[%s1 + $0x630] sm:$0xff]
  %v789 = vld [vmem:[%s1 + $0x638] sm:$0xff]
  %v790 = vld [vmem:[%s1 + $0x640] sm:$0xff]
  %v791 = vld [vmem:[%s1 + $0x648] sm:$0xff]
  %v792 = vld [vmem:[%s1 + $0x650] sm:$0xff]
  %v793 = vld [vmem:[%s1 + $0x658] sm:$0xff]
  %v794 = vld [vmem:[%s1 + $0x660] sm:$0xff]
  %v795 = vld [vmem:[%s1 + $0x668] sm:$0xff]
  %v796 = vld [vmem:[%s1 + $0x670] sm:$0xff]
  %v797 = vld [vmem:[%s1 + $0x678] sm:$0xff]
  %v798 = vld [vmem:[%s1 + $0x680] sm:$0xff]
  %v799 = vld [vmem:[%s1 + $0x688] sm:$0xff]
  %v800 = vld [vmem:[%s1 + $0x690] sm:$0xff]
  %v801 = vld [vmem:[%s1 + $0x698] sm:$0xff]
  %v802 = vld [vmem:[%s1 + $0x6a0] sm:$0xff]
  %v803 = vld [vmem:[%s1 + $0x6a8] sm:$0xff]
  %v804 = vld [vmem:[%s1 + $0x6b0] sm:$0xff]
  %v805 = vld [vmem:[%s1 + $0x6b8] sm:$0xff]
  %v806 = vld [vmem:[%s1 + $0x6c0] sm:$0xff]
  %v807 = vld [vmem:[%s1 + $0x6c8] sm:$0xff]
  %v808 = vld [vmem:[%s1 + $0x6d0] sm:$0xff]
  %v809 = vld [vmem:[%s1 + $0x6d8] sm:$0xff]
  %v810 = vld [vmem:[%s1 + $0x6e0] sm:$0xff]
  %v811 = vld [vmem:[%s1 + $0x6e8] sm:$0xff]
  %v812 = vld [vmem:[%s1 + $0x6f0] sm:$0xff]
  %v813 = vld [vmem:[%s1 + $0x6f8] sm:$0xff]
  %v814 = vld [vmem:[%s1 + $0x700] sm:$0xff]
  %v815 = vld [vmem:[%s1 + $0x708] sm:$0xff]
  %v816 = vld [vmem:[%s1 + $0x710] sm:$0xff]
  %v817 = vld [vmem:[%s1 + $0x718] sm:$0xff]
  %v818 = vld [vmem:[%s1 + $0x720] sm:$0xff]
  %v819 = vld [vmem:[%s1 + $0x728] sm:$0xff]
  %v820 = vld [vmem:[%s1 + $0x730] sm:$0xff]
  %v821 = vld [vmem:[%s1 + $0x738] sm:$0xff]
  %v822 = vld [vmem:[%s1 + $0x740] sm:$0xff]
  %v823 = vld [vmem:[%s1 + $0x748] sm:$0xff]
  %v824 = vld [vmem:[%s1 + $0x750] sm:$0xff]
  %v825 = vld [vmem:[%s1 + $0x758] sm:$0xff]
  %v826 = vld [vmem:[%s1 + $0x760] sm:$0xff]
  %v827 = vld [vmem:[%s1 + $0x768] sm:$0xff]
  %v828 = vld [vmem:[%s1 + $0x770] sm:$0xff]
  %v829 = vld [vmem:[%s1 + $0x778] sm:$0xff]
  %v830 = vld [vmem:[%s1 + $0x780] sm:$0xff]
  %v831 = vld [vmem:[%s1 + $0x788] sm:$0xff]
  %v832 = vld [vmem:[%s1 + $0x790] sm:$0xff]
  %v833 = vld [vmem:[%s1 + $0x798] sm:$0xff]
  %v834 = vld [vmem:[%s1 + $0x7a0] sm:$0xff]
  %v835 = vld [vmem:[%s1 + $0x7a8] sm:$0xff]
  %v836 = vld [vmem:[%s1 + $0x7b0] sm:$0xff]
  %v837 = vld [vmem:[%s1 + $0x7b8] sm:$0xff]
  %v838 = vld [vmem:[%s1 + $0x7c0] sm:$0xff]
  %v839 = vld [vmem:[%s1 + $0x7c8] sm:$0xff]
  %v840 = vld [vmem:[%s1 + $0x7d0] sm:$0xff]
  %v841 = vld [vmem:[%s1 + $0x7d8] sm:$0xff]
  %v842 = vld [vmem:[%s1 + $0x7e0] sm:$0xff]
  %v843 = vld [vmem:[%s1 + $0x7e8] sm:$0xff]
  %v844 = vld [vmem:[%s1 + $0x7f0] sm:$0xff]
  %v845 = vld [vmem:[%s1 + $0x7f8] sm:$0xff]
  %v846 = vld [vmem:[%s1 + $0x800] sm:$0xff]
  %v847 = vld [vmem:[%s1 + $0x808] sm:$0xff]
  %v848 = vld [vmem:[%s1 + $0x810] sm:$0xff]
  %v849 = vld [vmem:[%s1 + $0x818] sm:$0xff]
  %v850 = vld [vmem:[%s1 + $0x820] sm:$0xff]
  %v851 = vld [vmem:[%s1 + $0x828] sm:$0xff]
  %v852 = vld [vmem:[%s1 + $0x830] sm:$0xff]
  %v853 = vld [vmem:[%s1 + $0x838] sm:$0xff]
  %v854 = vld [vmem:[%s1 + $0x840] sm:$0xff]
  %v855 = vld [vmem:[%s1 + $0x848] sm:$0xff]
  %v856 = vld [vmem:[%s1 + $0x850] sm:$0xff]
  %v857 = vld [vmem:[%s1 + $0x858] sm:$0xff]
  %v858 = vld [vmem:[%s1 + $0x860] sm:$0xff]
  %v859 = vld [vmem:[%s1 + $0x868] sm:$0xff]
  %v860 = vld [vmem:[%s1 + $0x870] sm:$0xff]
  %v861 = vld [vmem:[%s1 + $0x878] sm:$0xff]
  %v862 = vld [vmem:[%s1 + $0x880] sm:$0xff]
  %v863 = vld [vmem:[%s1 + $0x888] sm:$0xff]
  %v864 = vld [vmem:[%s1 + $0x890] sm:$0xff]
  %v865 = vld [vmem:[%s1 + $0x898] sm:$0xff]
  %v866 = vld [vmem:[%s1 + $0x8a0] sm:$0xff]
  %v867 = vld [vmem:[%s1 + $0x8a8] sm:$0xff]
  %v868 = vld [vmem:[%s1 + $0x8b0] sm:$0xff]
  %v869 = vld [vmem:[%s1 + $0x8b8] sm:$0xff]
  %v870 = vld [vmem:[%s1 + $0x8c0] sm:$0xff]
  %v871 = vld [vmem:[%s1 + $0x8c8] sm:$0xff]
  %v872 = vld [vmem:[%s1 + $0x8d0] sm:$0xff]
  %v873 = vld [vmem:[%s1 + $0x8d8] sm:$0xff]
  %v874 = vld [vmem:[%s1 + $0x8e0] sm:$0xff]
  %v875 = vld [vmem:[%s1 + $0x8e8] sm:$0xff]
  %v876 = vld [vmem:[%s1 + $0x8f0] sm:$0xff]
  %v877 = vld [vmem:[%s1 + $0x8f8] sm:$0xff]
  %v878 = vld [vmem:[%s2] sm:$0x3]
  %v880 = vlaneseq
  %v881 = vshrl.u32 %v880, 7
  %v882 = vsub.s32 0, %v881
  %v883 = vrot.slane %v878, %v882
  %v884 = vlaneseq
  %v885 = vshrl.u32 %v884, 7
  %v886 = vsub.s32 1, %v885
  %v887 = vrot.slane %v878, %v886
  %v1466 = vunpack.c.l.b16 %v14
  %v1467 = vunpack.c.h.b16 %v14
  %v1468 = vunpack.c.l.b16 %v15
  %v1469 = vunpack.c.h.b16 %v15
  %v1470 = vunpack.c.l.b16 %v16
  %v1471 = vunpack.c.h.b16 %v16
  %v1472 = vunpack.c.l.b16 %v17
  %v1473 = vunpack.c.h.b16 %v17
  %v1474 = vunpack.c.l.b16 %v18
  %v1475 = vunpack.c.h.b16 %v18
  %v1476 = vunpack.c.l.b16 %v19
  %v1477 = vunpack.c.h.b16 %v19
  %v1478 = vunpack.c.l.b16 %v20
  %v1479 = vunpack.c.h.b16 %v20
  %v1480 = vunpack.c.l.b16 %v21
  %v1481 = vunpack.c.h.b16 %v21
  %v1482 = vunpack.c.l.b16 %v22
  %v1483 = vunpack.c.h.b16 %v22
  %v1484 = vunpack.c.l.b16 %v23
  %v1485 = vunpack.c.h.b16 %v23
  %v1486 = vunpack.c.l.b16 %v24
  %v1487 = vunpack.c.h.b16 %v24
  %v1488 = vunpack.c.l.b16 %v25
  %v1489 = vunpack.c.h.b16 %v25
  %v1490 = vunpack.c.l.b16 %v26
  %v1491 = vunpack.c.h.b16 %v26
  %v1492 = vunpack.c.l.b16 %v27
  %v1493 = vunpack.c.h.b16 %v27
  %v1494 = vunpack.c.l.b16 %v28
  %v1495 = vunpack.c.h.b16 %v28
  %v1496 = vunpack.c.l.b16 %v29
  %v1497 = vunpack.c.h.b16 %v29
  %v1498 = vunpack.c.l.b16 %v30
  %v1499 = vunpack.c.h.b16 %v30
  %v1500 = vunpack.c.l.b16 %v31
  %v1501 = vunpack.c.h.b16 %v31
  %v1502 = vunpack.c.l.b16 %v32
  %v1503 = vunpack.c.h.b16 %v32
  %v1504 = vunpack.c.l.b16 %v33
  %v1505 = vunpack.c.h.b16 %v33
  %v1506 = vunpack.c.l.b16 %v34
  %v1507 = vunpack.c.h.b16 %v34
  %v1508 = vunpack.c.l.b16 %v35
  %v1509 = vunpack.c.h.b16 %v35
  %v1510 = vunpack.c.l.b16 %v36
  %v1511 = vunpack.c.h.b16 %v36
  %v1512 = vunpack.c.l.b16 %v37
  %v1513 = vunpack.c.h.b16 %v37
  %v1514 = vunpack.c.l.b16 %v38
  %v1515 = vunpack.c.h.b16 %v38
  %v1516 = vunpack.c.l.b16 %v39
  %v1517 = vunpack.c.h.b16 %v39
  %v1518 = vunpack.c.l.b16 %v40
  %v1519 = vunpack.c.h.b16 %v40
  %v1520 = vunpack.c.l.b16 %v41
  %v1521 = vunpack.c.h.b16 %v41
  %v1522 = vunpack.c.l.b16 %v42
  %v1523 = vunpack.c.h.b16 %v42
  %v1524 = vunpack.c.l.b16 %v43
  %v1525 = vunpack.c.h.b16 %v43
  %v1526 = vunpack.c.l.b16 %v44
  %v1527 = vunpack.c.h.b16 %v44
  %v1528 = vunpack.c.l.b16 %v45
  %v1529 = vunpack.c.h.b16 %v45
  %v1530 = vunpack.c.l.b16 %v46
  %v1531 = vunpack.c.h.b16 %v46
  %v1532 = vunpack.c.l.b16 %v47
  %v1533 = vunpack.c.h.b16 %v47
  %v1534 = vunpack.c.l.b16 %v48
  %v1535 = vunpack.c.h.b16 %v48
  %v1536 = vunpack.c.l.b16 %v49
  %v1537 = vunpack.c.h.b16 %v49
  %v1538 = vunpack.c.l.b16 %v50
  %v1539 = vunpack.c.h.b16 %v50
  %v1540 = vunpack.c.l.b16 %v51
  %v1541 = vunpack.c.h.b16 %v51
  %v1542 = vunpack.c.l.b16 %v52
  %v1543 = vunpack.c.h.b16 %v52
  %v1544 = vunpack.c.l.b16 %v53
  %v1545 = vunpack.c.h.b16 %v53
  %v1546 = vunpack.c.l.b16 %v54
  %v1547 = vunpack.c.h.b16 %v54
  %v1548 = vunpack.c.l.b16 %v55
  %v1549 = vunpack.c.h.b16 %v55
  %v1550 = vunpack.c.l.b16 %v56
  %v1551 = vunpack.c.h.b16 %v56
  %v1552 = vunpack.c.l.b16 %v57
  %v1553 = vunpack.c.h.b16 %v57
  %v1554 = vunpack.c.l.b16 %v58
  %v1555 = vunpack.c.h.b16 %v58
  %v1556 = vunpack.c.l.b16 %v59
  %v1557 = vunpack.c.h.b16 %v59
  %v1558 = vunpack.c.l.b16 %v60
  %v1559 = vunpack.c.h.b16 %v60
  %v1560 = vunpack.c.l.b16 %v61
  %v1561 = vunpack.c.h.b16 %v61
  %v1562 = vunpack.c.l.b16 %v62
  %v1563 = vunpack.c.h.b16 %v62
  %v1564 = vunpack.c.l.b16 %v63
  %v1565 = vunpack.c.h.b16 %v63
  %v1566 = vunpack.c.l.b16 %v64
  %v1567 = vunpack.c.h.b16 %v64
  %v1568 = vunpack.c.l.b16 %v65
  %v1569 = vunpack.c.h.b16 %v65
  %v1570 = vunpack.c.l.b16 %v66
  %v1571 = vunpack.c.h.b16 %v66
  %v1572 = vunpack.c.l.b16 %v67
  %v1573 = vunpack.c.h.b16 %v67
  %v1574 = vunpack.c.l.b16 %v68
  %v1575 = vunpack.c.h.b16 %v68
  %v1576 = vunpack.c.l.b16 %v69
  %v1577 = vunpack.c.h.b16 %v69
  %v1578 = vunpack.c.l.b16 %v70
  %v1579 = vunpack.c.h.b16 %v70
  %v1580 = vunpack.c.l.b16 %v71
  %v1581 = vunpack.c.h.b16 %v71
  %v1582 = vunpack.c.l.b16 %v72
  %v1583 = vunpack.c.h.b16 %v72
  %v1584 = vunpack.c.l.b16 %v73
  %v1585 = vunpack.c.h.b16 %v73
  %v1586 = vunpack.c.l.b16 %v74
  %v1587 = vunpack.c.h.b16 %v74
  %v1588 = vunpack.c.l.b16 %v75
  %v1589 = vunpack.c.h.b16 %v75
  %v1590 = vunpack.c.l.b16 %v76
  %v1591 = vunpack.c.h.b16 %v76
  %v1592 = vunpack.c.l.b16 %v77
  %v1593 = vunpack.c.h.b16 %v77
  %v1594 = vunpack.c.l.b16 %v78
  %v1595 = vunpack.c.h.b16 %v78
  %v1596 = vunpack.c.l.b16 %v79
  %v1597 = vunpack.c.h.b16 %v79
  %v1598 = vunpack.c.l.b16 %v80
  %v1599 = vunpack.c.h.b16 %v80
  %v1600 = vunpack.c.l.b16 %v81
  %v1601 = vunpack.c.h.b16 %v81
  %v1602 = vunpack.c.l.b16 %v82
  %v1603 = vunpack.c.h.b16 %v82
  %v1604 = vunpack.c.l.b16 %v83
  %v1605 = vunpack.c.h.b16 %v83
  %v1606 = vunpack.c.l.b16 %v84
  %v1607 = vunpack.c.h.b16 %v84
  %v1608 = vunpack.c.l.b16 %v85
  %v1609 = vunpack.c.h.b16 %v85
  %v1610 = vunpack.c.l.b16 %v86
  %v1611 = vunpack.c.h.b16 %v86
  %v1612 = vunpack.c.l.b16 %v87
  %v1613 = vunpack.c.h.b16 %v87
  %v1614 = vunpack.c.l.b16 %v88
  %v1615 = vunpack.c.h.b16 %v88
  %v1616 = vunpack.c.l.b16 %v89
  %v1617 = vunpack.c.h.b16 %v89
  %v1618 = vunpack.c.l.b16 %v90
  %v1619 = vunpack.c.h.b16 %v90
  %v1620 = vunpack.c.l.b16 %v91
  %v1621 = vunpack.c.h.b16 %v91
  %v1622 = vunpack.c.l.b16 %v92
  %v1623 = vunpack.c.h.b16 %v92
  %v1624 = vunpack.c.l.b16 %v93
  %v1625 = vunpack.c.h.b16 %v93
  %v1626 = vunpack.c.l.b16 %v94
  %v1627 = vunpack.c.h.b16 %v94
  %v1628 = vunpack.c.l.b16 %v95
  %v1629 = vunpack.c.h.b16 %v95
  %v1630 = vunpack.c.l.b16 %v96
  %v1631 = vunpack.c.h.b16 %v96
  %v1632 = vunpack.c.l.b16 %v97
  %v1633 = vunpack.c.h.b16 %v97
  %v1634 = vunpack.c.l.b16 %v98
  %v1635 = vunpack.c.h.b16 %v98
  %v1636 = vunpack.c.l.b16 %v99
  %v1637 = vunpack.c.h.b16 %v99
  %v1638 = vunpack.c.l.b16 %v100
  %v1639 = vunpack.c.h.b16 %v100
  %v1640 = vunpack.c.l.b16 %v101
  %v1641 = vunpack.c.h.b16 %v101
  %v1642 = vunpack.c.l.b16 %v102
  %v1643 = vunpack.c.h.b16 %v102
  %v1644 = vunpack.c.l.b16 %v103
  %v1645 = vunpack.c.h.b16 %v103
  %v1646 = vunpack.c.l.b16 %v104
  %v1647 = vunpack.c.h.b16 %v104
  %v1648 = vunpack.c.l.b16 %v105
  %v1649 = vunpack.c.h.b16 %v105
  %v1650 = vunpack.c.l.b16 %v106
  %v1651 = vunpack.c.h.b16 %v106
  %v1652 = vunpack.c.l.b16 %v107
  %v1653 = vunpack.c.h.b16 %v107
  %v1654 = vunpack.c.l.b16 %v108
  %v1655 = vunpack.c.h.b16 %v108
  %v1656 = vunpack.c.l.b16 %v109
  %v1657 = vunpack.c.h.b16 %v109
  %v1658 = vunpack.c.l.b16 %v110
  %v1659 = vunpack.c.h.b16 %v110
  %v1660 = vunpack.c.l.b16 %v111
  %v1661 = vunpack.c.h.b16 %v111
  %v1662 = vunpack.c.l.b16 %v112
  %v1663 = vunpack.c.h.b16 %v112
  %v1664 = vunpack.c.l.b16 %v113
  %v1665 = vunpack.c.h.b16 %v113
  %v1666 = vunpack.c.l.b16 %v114
  %v1667 = vunpack.c.h.b16 %v114
  %v1668 = vunpack.c.l.b16 %v115
  %v1669 = vunpack.c.h.b16 %v115
  %v1670 = vunpack.c.l.b16 %v116
  %v1671 = vunpack.c.h.b16 %v116
  %v1672 = vunpack.c.l.b16 %v117
  %v1673 = vunpack.c.h.b16 %v117
  %v1674 = vunpack.c.l.b16 %v118
  %v1675 = vunpack.c.h.b16 %v118
  %v1676 = vunpack.c.l.b16 %v119
  %v1677 = vunpack.c.h.b16 %v119
  %v1678 = vunpack.c.l.b16 %v120
  %v1679 = vunpack.c.h.b16 %v120
  %v1680 = vunpack.c.l.b16 %v121
  %v1681 = vunpack.c.h.b16 %v121
  %v1682 = vunpack.c.l.b16 %v122
  %v1683 = vunpack.c.h.b16 %v122
  %v1684 = vunpack.c.l.b16 %v123
  %v1685 = vunpack.c.h.b16 %v123
  %v1686 = vunpack.c.l.b16 %v124
  %v1687 = vunpack.c.h.b16 %v124
  %v1688 = vunpack.c.l.b16 %v125
  %v1689 = vunpack.c.h.b16 %v125
  %v1690 = vunpack.c.l.b16 %v126
  %v1691 = vunpack.c.h.b16 %v126
  %v1692 = vunpack.c.l.b16 %v127
  %v1693 = vunpack.c.h.b16 %v127
  %v1694 = vunpack.c.l.b16 %v128
  %v1695 = vunpack.c.h.b16 %v128
  %v1696 = vunpack.c.l.b16 %v129
  %v1697 = vunpack.c.h.b16 %v129
  %v1698 = vunpack.c.l.b16 %v130
  %v1699 = vunpack.c.h.b16 %v130
  %v1700 = vunpack.c.l.b16 %v131
  %v1701 = vunpack.c.h.b16 %v131
  %v1702 = vunpack.c.l.b16 %v132
  %v1703 = vunpack.c.h.b16 %v132
  %v1704 = vunpack.c.l.b16 %v133
  %v1705 = vunpack.c.h.b16 %v133
  %v1706 = vunpack.c.l.b16 %v134
  %v1707 = vunpack.c.h.b16 %v134
  %v1708 = vunpack.c.l.b16 %v135
  %v1709 = vunpack.c.h.b16 %v135
  %v1710 = vunpack.c.l.b16 %v136
  %v1711 = vunpack.c.h.b16 %v136
  %v1712 = vunpack.c.l.b16 %v137
  %v1713 = vunpack.c.h.b16 %v137
  %v1714 = vunpack.c.l.b16 %v138
  %v1715 = vunpack.c.h.b16 %v138
  %v1716 = vunpack.c.l.b16 %v139
  %v1717 = vunpack.c.h.b16 %v139
  %v1718 = vunpack.c.l.b16 %v140
  %v1719 = vunpack.c.h.b16 %v140
  %v1720 = vunpack.c.l.b16 %v141
  %v1721 = vunpack.c.h.b16 %v141
  %v1722 = vunpack.c.l.b16 %v142
  %v1723 = vunpack.c.h.b16 %v142
  %v1724 = vunpack.c.l.b16 %v143
  %v1725 = vunpack.c.h.b16 %v143
  %v1726 = vunpack.c.l.b16 %v144
  %v1727 = vunpack.c.h.b16 %v144
  %v1728 = vunpack.c.l.b16 %v145
  %v1729 = vunpack.c.h.b16 %v145
  %v1730 = vunpack.c.l.b16 %v146
  %v1731 = vunpack.c.h.b16 %v146
  %v1732 = vunpack.c.l.b16 %v147
  %v1733 = vunpack.c.h.b16 %v147
  %v1734 = vunpack.c.l.b16 %v148
  %v1735 = vunpack.c.h.b16 %v148
  %v1736 = vunpack.c.l.b16 %v149
  %v1737 = vunpack.c.h.b16 %v149
  %v1738 = vunpack.c.l.b16 %v150
  %v1739 = vunpack.c.h.b16 %v150
  %v1740 = vunpack.c.l.b16 %v151
  %v1741 = vunpack.c.h.b16 %v151
  %v1742 = vunpack.c.l.b16 %v152
  %v1743 = vunpack.c.h.b16 %v152
  %v1744 = vunpack.c.l.b16 %v153
  %v1745 = vunpack.c.h.b16 %v153
  %v1746 = vunpack.c.l.b16 %v154
  %v1747 = vunpack.c.h.b16 %v154
  %v1748 = vunpack.c.l.b16 %v155
  %v1749 = vunpack.c.h.b16 %v155
  %v1750 = vunpack.c.l.b16 %v156
  %v1751 = vunpack.c.h.b16 %v156
  %v1752 = vunpack.c.l.b16 %v157
  %v1753 = vunpack.c.h.b16 %v157
  %v1754 = vunpack.c.l.b16 %v158
  %v1755 = vunpack.c.h.b16 %v158
  %v1756 = vunpack.c.l.b16 %v159
  %v1757 = vunpack.c.h.b16 %v159
  %v1758 = vunpack.c.l.b16 %v160
  %v1759 = vunpack.c.h.b16 %v160
  %v1760 = vunpack.c.l.b16 %v161
  %v1761 = vunpack.c.h.b16 %v161
  %v1762 = vunpack.c.l.b16 %v162
  %v1763 = vunpack.c.h.b16 %v162
  %v1764 = vunpack.c.l.b16 %v163
  %v1765 = vunpack.c.h.b16 %v163
  %v1766 = vunpack.c.l.b16 %v164
  %v1767 = vunpack.c.h.b16 %v164
  %v1768 = vunpack.c.l.b16 %v165
  %v1769 = vunpack.c.h.b16 %v165
  %v1770 = vunpack.c.l.b16 %v166
  %v1771 = vunpack.c.h.b16 %v166
  %v1772 = vunpack.c.l.b16 %v167
  %v1773 = vunpack.c.h.b16 %v167
  %v1774 = vunpack.c.l.b16 %v168
  %v1775 = vunpack.c.h.b16 %v168
  %v1776 = vunpack.c.l.b16 %v169
  %v1777 = vunpack.c.h.b16 %v169
  %v1778 = vunpack.c.l.b16 %v170
  %v1779 = vunpack.c.h.b16 %v170
  %v1780 = vunpack.c.l.b16 %v171
  %v1781 = vunpack.c.h.b16 %v171
  %v1782 = vunpack.c.l.b16 %v172
  %v1783 = vunpack.c.h.b16 %v172
  %v1784 = vunpack.c.l.b16 %v173
  %v1785 = vunpack.c.h.b16 %v173
  %v1786 = vunpack.c.l.b16 %v174
  %v1787 = vunpack.c.h.b16 %v174
  %v1788 = vunpack.c.l.b16 %v175
  %v1789 = vunpack.c.h.b16 %v175
  %v1790 = vunpack.c.l.b16 %v176
  %v1791 = vunpack.c.h.b16 %v176
  %v1792 = vunpack.c.l.b16 %v177
  %v1793 = vunpack.c.h.b16 %v177
  %v1794 = vunpack.c.l.b16 %v178
  %v1795 = vunpack.c.h.b16 %v178
  %v1796 = vunpack.c.l.b16 %v179
  %v1797 = vunpack.c.h.b16 %v179
  %v1798 = vunpack.c.l.b16 %v180
  %v1799 = vunpack.c.h.b16 %v180
  %v1800 = vunpack.c.l.b16 %v181
  %v1801 = vunpack.c.h.b16 %v181
  %v1802 = vunpack.c.l.b16 %v182
  %v1803 = vunpack.c.h.b16 %v182
  %v1804 = vunpack.c.l.b16 %v183
  %v1805 = vunpack.c.h.b16 %v183
  %v1806 = vunpack.c.l.b16 %v184
  %v1807 = vunpack.c.h.b16 %v184
  %v1808 = vunpack.c.l.b16 %v185
  %v1809 = vunpack.c.h.b16 %v185
  %v1810 = vunpack.c.l.b16 %v186
  %v1811 = vunpack.c.h.b16 %v186
  %v1812 = vunpack.c.l.b16 %v187
  %v1813 = vunpack.c.h.b16 %v187
  %v1814 = vunpack.c.l.b16 %v188
  %v1815 = vunpack.c.h.b16 %v188
  %v1816 = vunpack.c.l.b16 %v189
  %v1817 = vunpack.c.h.b16 %v189
  %v1818 = vunpack.c.l.b16 %v190
  %v1819 = vunpack.c.h.b16 %v190
  %v1820 = vunpack.c.l.b16 %v191
  %v1821 = vunpack.c.h.b16 %v191
  %v1822 = vunpack.c.l.b16 %v192
  %v1823 = vunpack.c.h.b16 %v192
  %v1824 = vunpack.c.l.b16 %v193
  %v1825 = vunpack.c.h.b16 %v193
  %v1826 = vunpack.c.l.b16 %v194
  %v1827 = vunpack.c.h.b16 %v194
  %v1828 = vunpack.c.l.b16 %v195
  %v1829 = vunpack.c.h.b16 %v195
  %v1830 = vunpack.c.l.b16 %v196
  %v1831 = vunpack.c.h.b16 %v196
  %v1832 = vunpack.c.l.b16 %v197
  %v1833 = vunpack.c.h.b16 %v197
  %v1834 = vunpack.c.l.b16 %v198
  %v1835 = vunpack.c.h.b16 %v198
  %v1836 = vunpack.c.l.b16 %v199
  %v1837 = vunpack.c.h.b16 %v199
  %v1838 = vunpack.c.l.b16 %v200
  %v1839 = vunpack.c.h.b16 %v200
  %v1840 = vunpack.c.l.b16 %v201
  %v1841 = vunpack.c.h.b16 %v201
  %v1842 = vunpack.c.l.b16 %v202
  %v1843 = vunpack.c.h.b16 %v202
  %v1844 = vunpack.c.l.b16 %v203
  %v1845 = vunpack.c.h.b16 %v203
  %v1846 = vunpack.c.l.b16 %v204
  %v1847 = vunpack.c.h.b16 %v204
  %v1848 = vunpack.c.l.b16 %v205
  %v1849 = vunpack.c.h.b16 %v205
  %v1850 = vunpack.c.l.b16 %v206
  %v1851 = vunpack.c.h.b16 %v206
  %v1852 = vunpack.c.l.b16 %v207
  %v1853 = vunpack.c.h.b16 %v207
  %v1854 = vunpack.c.l.b16 %v208
  %v1855 = vunpack.c.h.b16 %v208
  %v1856 = vunpack.c.l.b16 %v209
  %v1857 = vunpack.c.h.b16 %v209
  %v1858 = vunpack.c.l.b16 %v210
  %v1859 = vunpack.c.h.b16 %v210
  %v1860 = vunpack.c.l.b16 %v211
  %v1861 = vunpack.c.h.b16 %v211
  %v1862 = vunpack.c.l.b16 %v212
  %v1863 = vunpack.c.h.b16 %v212
  %v1864 = vunpack.c.l.b16 %v213
  %v1865 = vunpack.c.h.b16 %v213
  %v1866 = vunpack.c.l.b16 %v214
  %v1867 = vunpack.c.h.b16 %v214
  %v1868 = vunpack.c.l.b16 %v215
  %v1869 = vunpack.c.h.b16 %v215
  %v1870 = vunpack.c.l.b16 %v216
  %v1871 = vunpack.c.h.b16 %v216
  %v1872 = vunpack.c.l.b16 %v217
  %v1873 = vunpack.c.h.b16 %v217
  %v1874 = vunpack.c.l.b16 %v218
  %v1875 = vunpack.c.h.b16 %v218
  %v1876 = vunpack.c.l.b16 %v219
  %v1877 = vunpack.c.h.b16 %v219
  %v1878 = vunpack.c.l.b16 %v220
  %v1879 = vunpack.c.h.b16 %v220
  %v1880 = vunpack.c.l.b16 %v221
  %v1881 = vunpack.c.h.b16 %v221
  %v1882 = vunpack.c.l.b16 %v222
  %v1883 = vunpack.c.h.b16 %v222
  %v1884 = vunpack.c.l.b16 %v223
  %v1885 = vunpack.c.h.b16 %v223
  %v1886 = vunpack.c.l.b16 %v224
  %v1887 = vunpack.c.h.b16 %v224
  %v1888 = vunpack.c.l.b16 %v225
  %v1889 = vunpack.c.h.b16 %v225
  %v1890 = vunpack.c.l.b16 %v226
  %v1891 = vunpack.c.h.b16 %v226
  %v1892 = vunpack.c.l.b16 %v227
  %v1893 = vunpack.c.h.b16 %v227
  %v1894 = vunpack.c.l.b16 %v228
  %v1895 = vunpack.c.h.b16 %v228
  %v1896 = vunpack.c.l.b16 %v229
  %v1897 = vunpack.c.h.b16 %v229
  %v1898 = vunpack.c.l.b16 %v230
  %v1899 = vunpack.c.h.b16 %v230
  %v1900 = vunpack.c.l.b16 %v231
  %v1901 = vunpack.c.h.b16 %v231
  %v1902 = vunpack.c.l.b16 %v232
  %v1903 = vunpack.c.h.b16 %v232
  %v1904 = vunpack.c.l.b16 %v233
  %v1905 = vunpack.c.h.b16 %v233
  %v1906 = vunpack.c.l.b16 %v234
  %v1907 = vunpack.c.h.b16 %v234
  %v1908 = vunpack.c.l.b16 %v235
  %v1909 = vunpack.c.h.b16 %v235
  %v1910 = vunpack.c.l.b16 %v236
  %v1911 = vunpack.c.h.b16 %v236
  %v1912 = vunpack.c.l.b16 %v237
  %v1913 = vunpack.c.h.b16 %v237
  %v1914 = vunpack.c.l.b16 %v238
  %v1915 = vunpack.c.h.b16 %v238
  %v1916 = vunpack.c.l.b16 %v239
  %v1917 = vunpack.c.h.b16 %v239
  %v1918 = vunpack.c.l.b16 %v240
  %v1919 = vunpack.c.h.b16 %v240
  %v1920 = vunpack.c.l.b16 %v241
  %v1921 = vunpack.c.h.b16 %v241
  %v1922 = vunpack.c.l.b16 %v242
  %v1923 = vunpack.c.h.b16 %v242
  %v1924 = vunpack.c.l.b16 %v243
  %v1925 = vunpack.c.h.b16 %v243
  %v1926 = vunpack.c.l.b16 %v244
  %v1927 = vunpack.c.h.b16 %v244
  %v1928 = vunpack.c.l.b16 %v245
  %v1929 = vunpack.c.h.b16 %v245
  %v1930 = vunpack.c.l.b16 %v246
  %v1931 = vunpack.c.h.b16 %v246
  %v1932 = vunpack.c.l.b16 %v247
  %v1933 = vunpack.c.h.b16 %v247
  %v1934 = vunpack.c.l.b16 %v248
  %v1935 = vunpack.c.h.b16 %v248
  %v1936 = vunpack.c.l.b16 %v249
  %v1937 = vunpack.c.h.b16 %v249
  %v1938 = vunpack.c.l.b16 %v250
  %v1939 = vunpack.c.h.b16 %v250
  %v1940 = vunpack.c.l.b16 %v251
  %v1941 = vunpack.c.h.b16 %v251
  %v1942 = vunpack.c.l.b16 %v252
  %v1943 = vunpack.c.h.b16 %v252
  %v1944 = vunpack.c.l.b16 %v253
  %v1945 = vunpack.c.h.b16 %v253
  %v1946 = vunpack.c.l.b16 %v254
  %v1947 = vunpack.c.h.b16 %v254
  %v1948 = vunpack.c.l.b16 %v255
  %v1949 = vunpack.c.h.b16 %v255
  %v1950 = vunpack.c.l.b16 %v256
  %v1951 = vunpack.c.h.b16 %v256
  %v1952 = vunpack.c.l.b16 %v257
  %v1953 = vunpack.c.h.b16 %v257
  %v1954 = vunpack.c.l.b16 %v258
  %v1955 = vunpack.c.h.b16 %v258
  %v1956 = vunpack.c.l.b16 %v259
  %v1957 = vunpack.c.h.b16 %v259
  %v1958 = vunpack.c.l.b16 %v260
  %v1959 = vunpack.c.h.b16 %v260
  %v1960 = vunpack.c.l.b16 %v261
  %v1961 = vunpack.c.h.b16 %v261
  %v1962 = vunpack.c.l.b16 %v262
  %v1963 = vunpack.c.h.b16 %v262
  %v1964 = vunpack.c.l.b16 %v263
  %v1965 = vunpack.c.h.b16 %v263
  %v1966 = vunpack.c.l.b16 %v264
  %v1967 = vunpack.c.h.b16 %v264
  %v1968 = vunpack.c.l.b16 %v265
  %v1969 = vunpack.c.h.b16 %v265
  %v1970 = vunpack.c.l.b16 %v266
  %v1971 = vunpack.c.h.b16 %v266
  %v1972 = vunpack.c.l.b16 %v267
  %v1973 = vunpack.c.h.b16 %v267
  %v1974 = vunpack.c.l.b16 %v268
  %v1975 = vunpack.c.h.b16 %v268
  %v1976 = vunpack.c.l.b16 %v269
  %v1977 = vunpack.c.h.b16 %v269
  %v1978 = vunpack.c.l.b16 %v270
  %v1979 = vunpack.c.h.b16 %v270
  %v1980 = vunpack.c.l.b16 %v271
  %v1981 = vunpack.c.h.b16 %v271
  %v1982 = vunpack.c.l.b16 %v272
  %v1983 = vunpack.c.h.b16 %v272
  %v1984 = vunpack.c.l.b16 %v273
  %v1985 = vunpack.c.h.b16 %v273
  %v1986 = vunpack.c.l.b16 %v274
  %v1987 = vunpack.c.h.b16 %v274
  %v1988 = vunpack.c.l.b16 %v275
  %v1989 = vunpack.c.h.b16 %v275
  %v1990 = vunpack.c.l.b16 %v276
  %v1991 = vunpack.c.h.b16 %v276
  %v1992 = vunpack.c.l.b16 %v277
  %v1993 = vunpack.c.h.b16 %v277
  %v1994 = vunpack.c.l.b16 %v278
  %v1995 = vunpack.c.h.b16 %v278
  %v1996 = vunpack.c.l.b16 %v279
  %v1997 = vunpack.c.h.b16 %v279
  %v1998 = vunpack.c.l.b16 %v280
  %v1999 = vunpack.c.h.b16 %v280
  %v2000 = vunpack.c.l.b16 %v281
  %v2001 = vunpack.c.h.b16 %v281
  %v2002 = vunpack.c.l.b16 %v282
  %v2003 = vunpack.c.h.b16 %v282
  %v2004 = vunpack.c.l.b16 %v283
  %v2005 = vunpack.c.h.b16 %v283
  %v2006 = vunpack.c.l.b16 %v284
  %v2007 = vunpack.c.h.b16 %v284
  %v2008 = vunpack.c.l.b16 %v285
  %v2009 = vunpack.c.h.b16 %v285
  %v2010 = vunpack.c.l.b16 %v286
  %v2011 = vunpack.c.h.b16 %v286
  %v2012 = vunpack.c.l.b16 %v287
  %v2013 = vunpack.c.h.b16 %v287
  %v2014 = vunpack.c.l.b16 %v288
  %v2015 = vunpack.c.h.b16 %v288
  %v2016 = vunpack.c.l.b16 %v289
  %v2017 = vunpack.c.h.b16 %v289
  %v2018 = vunpack.c.l.b16 %v290
  %v2019 = vunpack.c.h.b16 %v290
  %v2020 = vunpack.c.l.b16 %v291
  %v2021 = vunpack.c.h.b16 %v291
  %v2022 = vunpack.c.l.b16 %v292
  %v2023 = vunpack.c.h.b16 %v292
  %v2024 = vunpack.c.l.b16 %v293
  %v2025 = vunpack.c.h.b16 %v293
  %v2026 = vunpack.c.l.b16 %v294
  %v2027 = vunpack.c.h.b16 %v294
  %v2028 = vunpack.c.l.b16 %v295
  %v2029 = vunpack.c.h.b16 %v295
  %v2030 = vunpack.c.l.b16 %v296
  %v2031 = vunpack.c.h.b16 %v296
  %v2032 = vunpack.c.l.b16 %v297
  %v2033 = vunpack.c.h.b16 %v297
  %v2034 = vunpack.c.l.b16 %v298
  %v2035 = vunpack.c.h.b16 %v298
  %v2036 = vunpack.c.l.b16 %v299
  %v2037 = vunpack.c.h.b16 %v299
  %v2038 = vunpack.c.l.b16 %v300
  %v2039 = vunpack.c.h.b16 %v300
  %v2040 = vunpack.c.l.b16 %v301
  %v2041 = vunpack.c.h.b16 %v301
  %v2042 = vunpack.c.l.b16 %v302
  %v2043 = vunpack.c.h.b16 %v302
  %v2044 = vunpack.c.l.b16 %v303
  %v2045 = vunpack.c.h.b16 %v303
  %v2046 = vunpack.c.l.b16 %v304
  %v2047 = vunpack.c.h.b16 %v304
  %v2048 = vunpack.c.l.b16 %v305
  %v2049 = vunpack.c.h.b16 %v305
  %v2050 = vunpack.c.l.b16 %v306
  %v2051 = vunpack.c.h.b16 %v306
  %v2052 = vunpack.c.l.b16 %v307
  %v2053 = vunpack.c.h.b16 %v307
  %v2054 = vunpack.c.l.b16 %v308
  %v2055 = vunpack.c.h.b16 %v308
  %v2056 = vunpack.c.l.b16 %v309
  %v2057 = vunpack.c.h.b16 %v309
  %v2058 = vunpack.c.l.b16 %v310
  %v2059 = vunpack.c.h.b16 %v310
  %v2060 = vunpack.c.l.b16 %v311
  %v2061 = vunpack.c.h.b16 %v311
  %v2062 = vunpack.c.l.b16 %v312
  %v2063 = vunpack.c.h.b16 %v312
  %v2064 = vunpack.c.l.b16 %v313
  %v2065 = vunpack.c.h.b16 %v313
  %v2066 = vunpack.c.l.b16 %v314
  %v2067 = vunpack.c.h.b16 %v314
  %v2068 = vunpack.c.l.b16 %v315
  %v2069 = vunpack.c.h.b16 %v315
  %v2070 = vunpack.c.l.b16 %v316
  %v2071 = vunpack.c.h.b16 %v316
  %v2072 = vunpack.c.l.b16 %v317
  %v2073 = vunpack.c.h.b16 %v317
  %v2074 = vunpack.c.l.b16 %v318
  %v2075 = vunpack.c.h.b16 %v318
  %v2076 = vunpack.c.l.b16 %v319
  %v2077 = vunpack.c.h.b16 %v319
  %v2078 = vunpack.c.l.b16 %v320
  %v2079 = vunpack.c.h.b16 %v320
  %v2080 = vunpack.c.l.b16 %v321
  %v2081 = vunpack.c.h.b16 %v321
  %v2082 = vunpack.c.l.b16 %v322
  %v2083 = vunpack.c.h.b16 %v322
  %v2084 = vunpack.c.l.b16 %v323
  %v2085 = vunpack.c.h.b16 %v323
  %v2086 = vunpack.c.l.b16 %v324
  %v2087 = vunpack.c.h.b16 %v324
  %v2088 = vunpack.c.l.b16 %v325
  %v2089 = vunpack.c.h.b16 %v325
  %v2090 = vunpack.c.l.b16 %v326
  %v2091 = vunpack.c.h.b16 %v326
  %v2092 = vunpack.c.l.b16 %v327
  %v2093 = vunpack.c.h.b16 %v327
  %v2094 = vunpack.c.l.b16 %v328
  %v2095 = vunpack.c.h.b16 %v328
  %v2096 = vunpack.c.l.b16 %v329
  %v2097 = vunpack.c.h.b16 %v329
  %v2098 = vunpack.c.l.b16 %v330
  %v2099 = vunpack.c.h.b16 %v330
  %v2100 = vunpack.c.l.b16 %v331
  %v2101 = vunpack.c.h.b16 %v331
  %v2102 = vunpack.c.l.b16 %v332
  %v2103 = vunpack.c.h.b16 %v332
  %v2104 = vunpack.c.l.b16 %v333
  %v2105 = vunpack.c.h.b16 %v333
  %v2106 = vunpack.c.l.b16 %v334
  %v2107 = vunpack.c.h.b16 %v334
  %v2108 = vunpack.c.l.b16 %v335
  %v2109 = vunpack.c.h.b16 %v335
  %v2110 = vunpack.c.l.b16 %v336
  %v2111 = vunpack.c.h.b16 %v336
  %v2112 = vunpack.c.l.b16 %v337
  %v2113 = vunpack.c.h.b16 %v337
  %v2114 = vunpack.c.l.b16 %v338
  %v2115 = vunpack.c.h.b16 %v338
  %v2116 = vunpack.c.l.b16 %v339
  %v2117 = vunpack.c.h.b16 %v339
  %v2118 = vunpack.c.l.b16 %v340
  %v2119 = vunpack.c.h.b16 %v340
  %v2120 = vunpack.c.l.b16 %v341
  %v2121 = vunpack.c.h.b16 %v341
  %v2122 = vunpack.c.l.b16 %v342
  %v2123 = vunpack.c.h.b16 %v342
  %v2124 = vunpack.c.l.b16 %v343
  %v2125 = vunpack.c.h.b16 %v343
  %v2126 = vunpack.c.l.b16 %v344
  %v2127 = vunpack.c.h.b16 %v344
  %v2128 = vunpack.c.l.b16 %v345
  %v2129 = vunpack.c.h.b16 %v345
  %v2130 = vunpack.c.l.b16 %v346
  %v2131 = vunpack.c.h.b16 %v346
  %v2132 = vunpack.c.l.b16 %v347
  %v2133 = vunpack.c.h.b16 %v347
  %v2134 = vunpack.c.l.b16 %v348
  %v2135 = vunpack.c.h.b16 %v348
  %v2136 = vunpack.c.l.b16 %v349
  %v2137 = vunpack.c.h.b16 %v349
  %v2138 = vunpack.c.l.b16 %v350
  %v2139 = vunpack.c.h.b16 %v350
  %v2140 = vunpack.c.l.b16 %v351
  %v2141 = vunpack.c.h.b16 %v351
  %v2142 = vunpack.c.l.b16 %v352
  %v2143 = vunpack.c.h.b16 %v352
  %v2144 = vunpack.c.l.b16 %v353
  %v2145 = vunpack.c.h.b16 %v353
  %v2146 = vunpack.c.l.b16 %v354
  %v2147 = vunpack.c.h.b16 %v354
  %v2148 = vunpack.c.l.b16 %v355
  %v2149 = vunpack.c.h.b16 %v355
  %v2150 = vunpack.c.l.b16 %v356
  %v2151 = vunpack.c.h.b16 %v356
  %v2152 = vunpack.c.l.b16 %v357
  %v2153 = vunpack.c.h.b16 %v357
  %v2154 = vunpack.c.l.b16 %v358
  %v2155 = vunpack.c.h.b16 %v358
  %v2156 = vunpack.c.l.b16 %v359
  %v2157 = vunpack.c.h.b16 %v359
  %v2158 = vunpack.c.l.b16 %v360
  %v2159 = vunpack.c.h.b16 %v360
  %v2160 = vunpack.c.l.b16 %v361
  %v2161 = vunpack.c.h.b16 %v361
  %v2162 = vunpack.c.l.b16 %v362
  %v2163 = vunpack.c.h.b16 %v362
  %v2164 = vunpack.c.l.b16 %v363
  %v2165 = vunpack.c.h.b16 %v363
  %v2166 = vunpack.c.l.b16 %v364
  %v2167 = vunpack.c.h.b16 %v364
  %v2168 = vunpack.c.l.b16 %v365
  %v2169 = vunpack.c.h.b16 %v365
  %v2170 = vunpack.c.l.b16 %v366
  %v2171 = vunpack.c.h.b16 %v366
  %v2172 = vunpack.c.l.b16 %v367
  %v2173 = vunpack.c.h.b16 %v367
  %v2174 = vunpack.c.l.b16 %v368
  %v2175 = vunpack.c.h.b16 %v368
  %v2176 = vunpack.c.l.b16 %v369
  %v2177 = vunpack.c.h.b16 %v369
  %v2178 = vunpack.c.l.b16 %v370
  %v2179 = vunpack.c.h.b16 %v370
  %v2180 = vunpack.c.l.b16 %v371
  %v2181 = vunpack.c.h.b16 %v371
  %v2182 = vunpack.c.l.b16 %v372
  %v2183 = vunpack.c.h.b16 %v372
  %v2184 = vunpack.c.l.b16 %v373
  %v2185 = vunpack.c.h.b16 %v373
  %v2186 = vunpack.c.l.b16 %v374
  %v2187 = vunpack.c.h.b16 %v374
  %v2188 = vunpack.c.l.b16 %v375
  %v2189 = vunpack.c.h.b16 %v375
  %v2190 = vunpack.c.l.b16 %v376
  %v2191 = vunpack.c.h.b16 %v376
  %v2192 = vunpack.c.l.b16 %v377
  %v2193 = vunpack.c.h.b16 %v377
  %v2194 = vunpack.c.l.b16 %v378
  %v2195 = vunpack.c.h.b16 %v378
  %v2196 = vunpack.c.l.b16 %v379
  %v2197 = vunpack.c.h.b16 %v379
  %v2198 = vunpack.c.l.b16 %v380
  %v2199 = vunpack.c.h.b16 %v380
  %v2200 = vunpack.c.l.b16 %v381
  %v2201 = vunpack.c.h.b16 %v381
  %v2202 = vunpack.c.l.b16 %v382
  %v2203 = vunpack.c.h.b16 %v382
  %v2204 = vunpack.c.l.b16 %v383
  %v2205 = vunpack.c.h.b16 %v383
  %v2206 = vunpack.c.l.b16 %v384
  %v2207 = vunpack.c.h.b16 %v384
  %v2208 = vunpack.c.l.b16 %v385
  %v2209 = vunpack.c.h.b16 %v385
  %v2210 = vunpack.c.l.b16 %v386
  %v2211 = vunpack.c.h.b16 %v386
  %v2212 = vunpack.c.l.b16 %v387
  %v2213 = vunpack.c.h.b16 %v387
  %v2214 = vunpack.c.l.b16 %v388
  %v2215 = vunpack.c.h.b16 %v388
  %v2216 = vunpack.c.l.b16 %v389
  %v2217 = vunpack.c.h.b16 %v389
  %v2218 = vunpack.c.l.b16 %v390
  %v2219 = vunpack.c.h.b16 %v390
  %v2220 = vunpack.c.l.b16 %v391
  %v2221 = vunpack.c.h.b16 %v391
  %v2222 = vunpack.c.l.b16 %v392
  %v2223 = vunpack.c.h.b16 %v392
  %v2224 = vunpack.c.l.b16 %v393
  %v2225 = vunpack.c.h.b16 %v393
  %v2226 = vunpack.c.l.b16 %v394
  %v2227 = vunpack.c.h.b16 %v394
  %v2228 = vunpack.c.l.b16 %v395
  %v2229 = vunpack.c.h.b16 %v395
  %v2230 = vunpack.c.l.b16 %v396
  %v2231 = vunpack.c.h.b16 %v396
  %v2232 = vunpack.c.l.b16 %v397
  %v2233 = vunpack.c.h.b16 %v397
  %v2234 = vunpack.c.l.b16 %v398
  %v2235 = vunpack.c.h.b16 %v398
  %v2236 = vunpack.c.l.b16 %v399
  %v2237 = vunpack.c.h.b16 %v399
  %v2238 = vunpack.c.l.b16 %v400
  %v2239 = vunpack.c.h.b16 %v400
  %v2240 = vunpack.c.l.b16 %v401
  %v2241 = vunpack.c.h.b16 %v401
  %v2242 = vunpack.c.l.b16 %v402
  %v2243 = vunpack.c.h.b16 %v402
  %v2244 = vunpack.c.l.b16 %v403
  %v2245 = vunpack.c.h.b16 %v403
  %v2246 = vunpack.c.l.b16 %v404
  %v2247 = vunpack.c.h.b16 %v404
  %v2248 = vunpack.c.l.b16 %v405
  %v2249 = vunpack.c.h.b16 %v405
  %v2250 = vunpack.c.l.b16 %v406
  %v2251 = vunpack.c.h.b16 %v406
  %v2252 = vunpack.c.l.b16 %v407
  %v2253 = vunpack.c.h.b16 %v407
  %v2254 = vunpack.c.l.b16 %v408
  %v2255 = vunpack.c.h.b16 %v408
  %v2256 = vunpack.c.l.b16 %v409
  %v2257 = vunpack.c.h.b16 %v409
  %v2258 = vunpack.c.l.b16 %v410
  %v2259 = vunpack.c.h.b16 %v410
  %v2260 = vunpack.c.l.b16 %v411
  %v2261 = vunpack.c.h.b16 %v411
  %v2262 = vunpack.c.l.b16 %v412
  %v2263 = vunpack.c.h.b16 %v412
  %v2264 = vunpack.c.l.b16 %v413
  %v2265 = vunpack.c.h.b16 %v413
  %v2266 = vunpack.c.l.b16 %v414
  %v2267 = vunpack.c.h.b16 %v414
  %v2268 = vunpack.c.l.b16 %v415
  %v2269 = vunpack.c.h.b16 %v415
  %v2270 = vunpack.c.l.b16 %v416
  %v2271 = vunpack.c.h.b16 %v416
  %v2272 = vunpack.c.l.b16 %v417
  %v2273 = vunpack.c.h.b16 %v417
  %v2274 = vunpack.c.l.b16 %v418
  %v2275 = vunpack.c.h.b16 %v418
  %v2276 = vunpack.c.l.b16 %v419
  %v2277 = vunpack.c.h.b16 %v419
  %v2278 = vunpack.c.l.b16 %v420
  %v2279 = vunpack.c.h.b16 %v420
  %v2280 = vunpack.c.l.b16 %v421
  %v2281 = vunpack.c.h.b16 %v421
  %v2282 = vunpack.c.l.b16 %v422
  %v2283 = vunpack.c.h.b16 %v422
  %v2284 = vunpack.c.l.b16 %v423
  %v2285 = vunpack.c.h.b16 %v423
  %v2286 = vunpack.c.l.b16 %v424
  %v2287 = vunpack.c.h.b16 %v424
  %v2288 = vunpack.c.l.b16 %v425
  %v2289 = vunpack.c.h.b16 %v425
  %v2290 = vunpack.c.l.b16 %v426
  %v2291 = vunpack.c.h.b16 %v426
  %v2292 = vunpack.c.l.b16 %v427
  %v2293 = vunpack.c.h.b16 %v427
  %v2294 = vunpack.c.l.b16 %v428
  %v2295 = vunpack.c.h.b16 %v428
  %v2296 = vunpack.c.l.b16 %v429
  %v2297 = vunpack.c.h.b16 %v429
  %v2298 = vunpack.c.l.b16 %v430
  %v2299 = vunpack.c.h.b16 %v430
  %v2300 = vunpack.c.l.b16 %v431
  %v2301 = vunpack.c.h.b16 %v431
  %v2302 = vunpack.c.l.b16 %v432
  %v2303 = vunpack.c.h.b16 %v432
  %v2304 = vunpack.c.l.b16 %v433
  %v2305 = vunpack.c.h.b16 %v433
  %v2306 = vunpack.c.l.b16 %v434
  %v2307 = vunpack.c.h.b16 %v434
  %v2308 = vunpack.c.l.b16 %v435
  %v2309 = vunpack.c.h.b16 %v435
  %v2310 = vunpack.c.l.b16 %v436
  %v2311 = vunpack.c.h.b16 %v436
  %v2312 = vunpack.c.l.b16 %v437
  %v2313 = vunpack.c.h.b16 %v437
  %v2314 = vunpack.c.l.b16 %v438
  %v2315 = vunpack.c.h.b16 %v438
  %v2316 = vunpack.c.l.b16 %v439
  %v2317 = vunpack.c.h.b16 %v439
  %v2318 = vunpack.c.l.b16 %v440
  %v2319 = vunpack.c.h.b16 %v440
  %v2320 = vunpack.c.l.b16 %v441
  %v2321 = vunpack.c.h.b16 %v441
  %v2322 = vunpack.c.l.b16 %v442
  %v2323 = vunpack.c.h.b16 %v442
  %v2324 = vunpack.c.l.b16 %v443
  %v2325 = vunpack.c.h.b16 %v443
  %v2326 = vunpack.c.l.b16 %v444
  %v2327 = vunpack.c.h.b16 %v444
  %v2328 = vunpack.c.l.b16 %v445
  %v2329 = vunpack.c.h.b16 %v445
  %v2330 = vunpack.c.l.b16 %v446
  %v2331 = vunpack.c.h.b16 %v446
  %v2332 = vunpack.c.l.b16 %v447
  %v2333 = vunpack.c.h.b16 %v447
  %v2334 = vunpack.c.l.b16 %v448
  %v2335 = vunpack.c.h.b16 %v448
  %v2336 = vunpack.c.l.b16 %v449
  %v2337 = vunpack.c.h.b16 %v449
  %v2338 = vunpack.c.l.b16 %v450
  %v2339 = vunpack.c.h.b16 %v450
  %v2340 = vunpack.c.l.b16 %v451
  %v2341 = vunpack.c.h.b16 %v451
  %v2342 = vunpack.c.l.b16 %v452
  %v2343 = vunpack.c.h.b16 %v452
  %v2344 = vunpack.c.l.b16 %v453
  %v2345 = vunpack.c.h.b16 %v453
  %v2346 = vunpack.c.l.b16 %v454
  %v2347 = vunpack.c.h.b16 %v454
  %v2348 = vunpack.c.l.b16 %v455
  %v2349 = vunpack.c.h.b16 %v455
  %v2350 = vunpack.c.l.b16 %v456
  %v2351 = vunpack.c.h.b16 %v456
  %v2352 = vunpack.c.l.b16 %v457
  %v2353 = vunpack.c.h.b16 %v457
  %v2354 = vunpack.c.l.b16 %v458
  %v2355 = vunpack.c.h.b16 %v458
  %v2356 = vunpack.c.l.b16 %v459
  %v2357 = vunpack.c.h.b16 %v459
  %v2358 = vunpack.c.l.b16 %v460
  %v2359 = vunpack.c.h.b16 %v460
  %v2360 = vunpack.c.l.b16 %v461
  %v2361 = vunpack.c.h.b16 %v461
  %v2362 = vunpack.c.l.b16 %v462
  %v2363 = vunpack.c.h.b16 %v462
  %v2364 = vunpack.c.l.b16 %v463
  %v2365 = vunpack.c.h.b16 %v463
  %v2366 = vunpack.c.l.b16 %v464
  %v2367 = vunpack.c.h.b16 %v464
  %v2368 = vunpack.c.l.b16 %v465
  %v2369 = vunpack.c.h.b16 %v465
  %v2370 = vunpack.c.l.b16 %v466
  %v2371 = vunpack.c.h.b16 %v466
  %v2372 = vunpack.c.l.b16 %v467
  %v2373 = vunpack.c.h.b16 %v467
  %v2374 = vunpack.c.l.b16 %v468
  %v2375 = vunpack.c.h.b16 %v468
  %v2376 = vunpack.c.l.b16 %v469
  %v2377 = vunpack.c.h.b16 %v469
  %v2378 = vunpack.c.l.b16 %v470
  %v2379 = vunpack.c.h.b16 %v470
  %v2380 = vunpack.c.l.b16 %v471
  %v2381 = vunpack.c.h.b16 %v471
  %v2382 = vunpack.c.l.b16 %v472
  %v2383 = vunpack.c.h.b16 %v472
  %v2384 = vunpack.c.l.b16 %v473
  %v2385 = vunpack.c.h.b16 %v473
  %v2386 = vunpack.c.l.b16 %v474
  %v2387 = vunpack.c.h.b16 %v474
  %v2388 = vunpack.c.l.b16 %v475
  %v2389 = vunpack.c.h.b16 %v475
  %v2390 = vunpack.c.l.b16 %v476
  %v2391 = vunpack.c.h.b16 %v476
  %v2392 = vunpack.c.l.b16 %v477
  %v2393 = vunpack.c.h.b16 %v477
  %v2394 = vunpack.c.l.b16 %v478
  %v2395 = vunpack.c.h.b16 %v478
  %v2396 = vunpack.c.l.b16 %v479
  %v2397 = vunpack.c.h.b16 %v479
  %v2398 = vunpack.c.l.b16 %v480
  %v2399 = vunpack.c.h.b16 %v480
  %v2400 = vunpack.c.l.b16 %v481
  %v2401 = vunpack.c.h.b16 %v481
  %v2402 = vunpack.c.l.b16 %v482
  %v2403 = vunpack.c.h.b16 %v482
  %v2404 = vunpack.c.l.b16 %v483
  %v2405 = vunpack.c.h.b16 %v483
  %v2406 = vunpack.c.l.b16 %v484
  %v2407 = vunpack.c.h.b16 %v484
  %v2408 = vunpack.c.l.b16 %v485
  %v2409 = vunpack.c.h.b16 %v485
  %v2410 = vunpack.c.l.b16 %v486
  %v2411 = vunpack.c.h.b16 %v486
  %v2412 = vunpack.c.l.b16 %v487
  %v2413 = vunpack.c.h.b16 %v487
  %v2414 = vunpack.c.l.b16 %v488
  %v2415 = vunpack.c.h.b16 %v488
  %v2416 = vunpack.c.l.b16 %v489
  %v2417 = vunpack.c.h.b16 %v489
  %v2418 = vunpack.c.l.b16 %v490
  %v2419 = vunpack.c.h.b16 %v490
  %v2420 = vunpack.c.l.b16 %v491
  %v2421 = vunpack.c.h.b16 %v491
  %v2422 = vunpack.c.l.b16 %v492
  %v2423 = vunpack.c.h.b16 %v492
  %v2424 = vunpack.c.l.b16 %v493
  %v2425 = vunpack.c.h.b16 %v493
  %v2426 = vunpack.c.l.b16 %v494
  %v2427 = vunpack.c.h.b16 %v494
  %v2428 = vunpack.c.l.b16 %v495
  %v2429 = vunpack.c.h.b16 %v495
  %v2430 = vunpack.c.l.b16 %v496
  %v2431 = vunpack.c.h.b16 %v496
  %v2432 = vunpack.c.l.b16 %v497
  %v2433 = vunpack.c.h.b16 %v497
  %v2434 = vunpack.c.l.b16 %v498
  %v2435 = vunpack.c.h.b16 %v498
  %v2436 = vunpack.c.l.b16 %v499
  %v2437 = vunpack.c.h.b16 %v499
  %v2438 = vunpack.c.l.b16 %v500
  %v2439 = vunpack.c.h.b16 %v500
  %v2440 = vunpack.c.l.b16 %v501
  %v2441 = vunpack.c.h.b16 %v501
  %v2442 = vunpack.c.l.b16 %v502
  %v2443 = vunpack.c.h.b16 %v502
  %v2444 = vunpack.c.l.b16 %v503
  %v2445 = vunpack.c.h.b16 %v503
  %v2446 = vunpack.c.l.b16 %v504
  %v2447 = vunpack.c.h.b16 %v504
  %v2448 = vunpack.c.l.b16 %v505
  %v2449 = vunpack.c.h.b16 %v505
  %v2450 = vunpack.c.l.b16 %v506
  %v2451 = vunpack.c.h.b16 %v506
  %v2452 = vunpack.c.l.b16 %v507
  %v2453 = vunpack.c.h.b16 %v507
  %v2454 = vunpack.c.l.b16 %v508
  %v2455 = vunpack.c.h.b16 %v508
  %v2456 = vunpack.c.l.b16 %v509
  %v2457 = vunpack.c.h.b16 %v509
  %v2458 = vunpack.c.l.b16 %v510
  %v2459 = vunpack.c.h.b16 %v510
  %v2460 = vunpack.c.l.b16 %v511
  %v2461 = vunpack.c.h.b16 %v511
  %v2462 = vunpack.c.l.b16 %v512
  %v2463 = vunpack.c.h.b16 %v512
  %v2464 = vunpack.c.l.b16 %v513
  %v2465 = vunpack.c.h.b16 %v513
  %v2466 = vunpack.c.l.b16 %v514
  %v2467 = vunpack.c.h.b16 %v514
  %v2468 = vunpack.c.l.b16 %v515
  %v2469 = vunpack.c.h.b16 %v515
  %v2470 = vunpack.c.l.b16 %v516
  %v2471 = vunpack.c.h.b16 %v516
  %v2472 = vunpack.c.l.b16 %v517
  %v2473 = vunpack.c.h.b16 %v517
  %v2474 = vunpack.c.l.b16 %v518
  %v2475 = vunpack.c.h.b16 %v518
  %v2476 = vunpack.c.l.b16 %v519
  %v2477 = vunpack.c.h.b16 %v519
  %v2478 = vunpack.c.l.b16 %v520
  %v2479 = vunpack.c.h.b16 %v520
  %v2480 = vunpack.c.l.b16 %v521
  %v2481 = vunpack.c.h.b16 %v521
  %v2482 = vunpack.c.l.b16 %v522
  %v2483 = vunpack.c.h.b16 %v522
  %v2484 = vunpack.c.l.b16 %v523
  %v2485 = vunpack.c.h.b16 %v523
  %v2486 = vunpack.c.l.b16 %v524
  %v2487 = vunpack.c.h.b16 %v524
  %v2488 = vunpack.c.l.b16 %v525
  %v2489 = vunpack.c.h.b16 %v525
  %v2490 = vunpack.c.l.b16 %v526
  %v2491 = vunpack.c.h.b16 %v526
  %v2492 = vunpack.c.l.b16 %v527
  %v2493 = vunpack.c.h.b16 %v527
  %v2494 = vunpack.c.l.b16 %v528
  %v2495 = vunpack.c.h.b16 %v528
  %v2496 = vunpack.c.l.b16 %v529
  %v2497 = vunpack.c.h.b16 %v529
  %v2498 = vunpack.c.l.b16 %v530
  %v2499 = vunpack.c.h.b16 %v530
  %v2500 = vunpack.c.l.b16 %v531
  %v2501 = vunpack.c.h.b16 %v531
  %v2502 = vunpack.c.l.b16 %v532
  %v2503 = vunpack.c.h.b16 %v532
  %v2504 = vunpack.c.l.b16 %v533
  %v2505 = vunpack.c.h.b16 %v533
  %v2506 = vunpack.c.l.b16 %v534
  %v2507 = vunpack.c.h.b16 %v534
  %v2508 = vunpack.c.l.b16 %v535
  %v2509 = vunpack.c.h.b16 %v535
  %v2510 = vunpack.c.l.b16 %v536
  %v2511 = vunpack.c.h.b16 %v536
  %v2512 = vunpack.c.l.b16 %v537
  %v2513 = vunpack.c.h.b16 %v537
  %v2514 = vunpack.c.l.b16 %v538
  %v2515 = vunpack.c.h.b16 %v538
  %v2516 = vunpack.c.l.b16 %v539
  %v2517 = vunpack.c.h.b16 %v539
  %v2518 = vunpack.c.l.b16 %v540
  %v2519 = vunpack.c.h.b16 %v540
  %v2520 = vunpack.c.l.b16 %v541
  %v2521 = vunpack.c.h.b16 %v541
  %v2522 = vunpack.c.l.b16 %v542
  %v2523 = vunpack.c.h.b16 %v542
  %v2524 = vunpack.c.l.b16 %v543
  %v2525 = vunpack.c.h.b16 %v543
  %v2526 = vunpack.c.l.b16 %v544
  %v2527 = vunpack.c.h.b16 %v544
  %v2528 = vunpack.c.l.b16 %v545
  %v2529 = vunpack.c.h.b16 %v545
  %v2530 = vunpack.c.l.b16 %v546
  %v2531 = vunpack.c.h.b16 %v546
  %v2532 = vunpack.c.l.b16 %v547
  %v2533 = vunpack.c.h.b16 %v547
  %v2534 = vunpack.c.l.b16 %v548
  %v2535 = vunpack.c.h.b16 %v548
  %v2536 = vunpack.c.l.b16 %v549
  %v2537 = vunpack.c.h.b16 %v549
  %v2538 = vunpack.c.l.b16 %v550
  %v2539 = vunpack.c.h.b16 %v550
  %v2540 = vunpack.c.l.b16 %v551
  %v2541 = vunpack.c.h.b16 %v551
  %v2542 = vunpack.c.l.b16 %v552
  %v2543 = vunpack.c.h.b16 %v552
  %v2544 = vunpack.c.l.b16 %v553
  %v2545 = vunpack.c.h.b16 %v553
  %v2546 = vunpack.c.l.b16 %v554
  %v2547 = vunpack.c.h.b16 %v554
  %v2548 = vunpack.c.l.b16 %v555
  %v2549 = vunpack.c.h.b16 %v555
  %v2550 = vunpack.c.l.b16 %v556
  %v2551 = vunpack.c.h.b16 %v556
  %v2552 = vunpack.c.l.b16 %v557
  %v2553 = vunpack.c.h.b16 %v557
  %v2554 = vunpack.c.l.b16 %v558
  %v2555 = vunpack.c.h.b16 %v558
  %v2556 = vunpack.c.l.b16 %v559
  %v2557 = vunpack.c.h.b16 %v559
  %v2558 = vunpack.c.l.b16 %v560
  %v2559 = vunpack.c.h.b16 %v560
  %v2560 = vunpack.c.l.b16 %v561
  %v2561 = vunpack.c.h.b16 %v561
  %v2562 = vunpack.c.l.b16 %v562
  %v2563 = vunpack.c.h.b16 %v562
  %v2564 = vunpack.c.l.b16 %v563
  %v2565 = vunpack.c.h.b16 %v563
  %v2566 = vunpack.c.l.b16 %v564
  %v2567 = vunpack.c.h.b16 %v564
  %v2568 = vunpack.c.l.b16 %v565
  %v2569 = vunpack.c.h.b16 %v565
  %v2570 = vunpack.c.l.b16 %v566
  %v2571 = vunpack.c.h.b16 %v566
  %v2572 = vunpack.c.l.b16 %v567
  %v2573 = vunpack.c.h.b16 %v567
  %v2574 = vunpack.c.l.b16 %v568
  %v2575 = vunpack.c.h.b16 %v568
  %v2576 = vunpack.c.l.b16 %v569
  %v2577 = vunpack.c.h.b16 %v569
  %v2578 = vunpack.c.l.b16 %v570
  %v2579 = vunpack.c.h.b16 %v570
  %v2580 = vunpack.c.l.b16 %v571
  %v2581 = vunpack.c.h.b16 %v571
  %v2582 = vunpack.c.l.b16 %v572
  %v2583 = vunpack.c.h.b16 %v572
  %v2584 = vunpack.c.l.b16 %v573
  %v2585 = vunpack.c.h.b16 %v573
  %v2586 = vunpack.c.l.b16 %v574
  %v2587 = vunpack.c.h.b16 %v574
  %v2588 = vunpack.c.l.b16 %v575
  %v2589 = vunpack.c.h.b16 %v575
  %v2590 = vunpack.c.l.b16 %v576
  %v2591 = vunpack.c.h.b16 %v576
  %v2592 = vunpack.c.l.b16 %v577
  %v2593 = vunpack.c.h.b16 %v577
  %v2594 = vunpack.c.l.b16 %v578
  %v2595 = vunpack.c.h.b16 %v578
  %v2596 = vunpack.c.l.b16 %v579
  %v2597 = vunpack.c.h.b16 %v579
  %v2598 = vunpack.c.l.b16 %v580
  %v2599 = vunpack.c.h.b16 %v580
  %v2600 = vunpack.c.l.b16 %v581
  %v2601 = vunpack.c.h.b16 %v581
  %v2602 = vunpack.c.l.b16 %v582
  %v2603 = vunpack.c.h.b16 %v582
  %v2604 = vunpack.c.l.b16 %v583
  %v2605 = vunpack.c.h.b16 %v583
  %v2606 = vunpack.c.l.b16 %v584
  %v2607 = vunpack.c.h.b16 %v584
  %v2608 = vunpack.c.l.b16 %v585
  %v2609 = vunpack.c.h.b16 %v585
  %v2610 = vunpack.c.l.b16 %v586
  %v2611 = vunpack.c.h.b16 %v586
  %v2612 = vunpack.c.l.b16 %v587
  %v2613 = vunpack.c.h.b16 %v587
  %v2614 = vunpack.c.l.b16 %v588
  %v2615 = vunpack.c.h.b16 %v588
  %v2616 = vunpack.c.l.b16 %v589
  %v2617 = vunpack.c.h.b16 %v589
  %v2618 = vpack.c.b16 %v1484, %v1466
  %v2619 = vpack.c.b16 %v1485, %v1467
  %v2620 = vpack.c.b16 %v1486, %v1468
  %v2621 = vpack.c.b16 %v1487, %v1469
  %v2622 = vpack.c.b16 %v1488, %v1470
  %v2623 = vpack.c.b16 %v1489, %v1471
  %v2624 = vpack.c.b16 %v1490, %v1472
  %v2625 = vpack.c.b16 %v1491, %v1473
  %v2626 = vpack.c.b16 %v1492, %v1474
  %v2627 = vpack.c.b16 %v1493, %v1475
  %v2628 = vpack.c.b16 %v1494, %v1476
  %v2629 = vpack.c.b16 %v1495, %v1477
  %v2630 = vpack.c.b16 %v1496, %v1478
  %v2631 = vpack.c.b16 %v1497, %v1479
  %v2632 = vpack.c.b16 %v1498, %v1480
  %v2633 = vpack.c.b16 %v1499, %v1481
  %v2634 = vpack.c.b16 %v1500, %v1482
  %v2635 = vpack.c.b16 %v1501, %v1483
  %v2636 = vpack.c.b16 %v1520, %v1502
  %v2637 = vpack.c.b16 %v1521, %v1503
  %v2638 = vpack.c.b16 %v1522, %v1504
  %v2639 = vpack.c.b16 %v1523, %v1505
  %v2640 = vpack.c.b16 %v1524, %v1506
  %v2641 = vpack.c.b16 %v1525, %v1507
  %v2642 = vpack.c.b16 %v1526, %v1508
  %v2643 = vpack.c.b16 %v1527, %v1509
  %v2644 = vpack.c.b16 %v1528, %v1510
  %v2645 = vpack.c.b16 %v1529, %v1511
  %v2646 = vpack.c.b16 %v1530, %v1512
  %v2647 = vpack.c.b16 %v1531, %v1513
  %v2648 = vpack.c.b16 %v1532, %v1514
  %v2649 = vpack.c.b16 %v1533, %v1515
  %v2650 = vpack.c.b16 %v1534, %v1516
  %v2651 = vpack.c.b16 %v1535, %v1517
  %v2652 = vpack.c.b16 %v1536, %v1518
  %v2653 = vpack.c.b16 %v1537, %v1519
  %v2654 = vpack.c.b16 %v1556, %v1538
  %v2655 = vpack.c.b16 %v1557, %v1539
  %v2656 = vpack.c.b16 %v1558, %v1540
  %v2657 = vpack.c.b16 %v1559, %v1541
  %v2658 = vpack.c.b16 %v1560, %v1542
  %v2659 = vpack.c.b16 %v1561, %v1543
  %v2660 = vpack.c.b16 %v1562, %v1544
  %v2661 = vpack.c.b16 %v1563, %v1545
  %v2662 = vpack.c.b16 %v1564, %v1546
  %v2663 = vpack.c.b16 %v1565, %v1547
  %v2664 = vpack.c.b16 %v1566, %v1548
  %v2665 = vpack.c.b16 %v1567, %v1549
  %v2666 = vpack.c.b16 %v1568, %v1550
  %v2667 = vpack.c.b16 %v1569, %v1551
  %v2668 = vpack.c.b16 %v1570, %v1552
  %v2669 = vpack.c.b16 %v1571, %v1553
  %v2670 = vpack.c.b16 %v1572, %v1554
  %v2671 = vpack.c.b16 %v1573, %v1555
  %v2672 = vpack.c.b16 %v1592, %v1574
  %v2673 = vpack.c.b16 %v1593, %v1575
  %v2674 = vpack.c.b16 %v1594, %v1576
  %v2675 = vpack.c.b16 %v1595, %v1577
  %v2676 = vpack.c.b16 %v1596, %v1578
  %v2677 = vpack.c.b16 %v1597, %v1579
  %v2678 = vpack.c.b16 %v1598, %v1580
  %v2679 = vpack.c.b16 %v1599, %v1581
  %v2680 = vpack.c.b16 %v1600, %v1582
  %v2681 = vpack.c.b16 %v1601, %v1583
  %v2682 = vpack.c.b16 %v1602, %v1584
  %v2683 = vpack.c.b16 %v1603, %v1585
  %v2684 = vpack.c.b16 %v1604, %v1586
  %v2685 = vpack.c.b16 %v1605, %v1587
  %v2686 = vpack.c.b16 %v1606, %v1588
  %v2687 = vpack.c.b16 %v1607, %v1589
  %v2688 = vpack.c.b16 %v1608, %v1590
  %v2689 = vpack.c.b16 %v1609, %v1591
  %v2690 = vpack.c.b16 %v1628, %v1610
  %v2691 = vpack.c.b16 %v1629, %v1611
  %v2692 = vpack.c.b16 %v1630, %v1612
  %v2693 = vpack.c.b16 %v1631, %v1613
  %v2694 = vpack.c.b16 %v1632, %v1614
  %v2695 = vpack.c.b16 %v1633, %v1615
  %v2696 = vpack.c.b16 %v1634, %v1616
  %v2697 = vpack.c.b16 %v1635, %v1617
  %v2698 = vpack.c.b16 %v1636, %v1618
  %v2699 = vpack.c.b16 %v1637, %v1619
  %v2700 = vpack.c.b16 %v1638, %v1620
  %v2701 = vpack.c.b16 %v1639, %v1621
  %v2702 = vpack.c.b16 %v1640, %v1622
  %v2703 = vpack.c.b16 %v1641, %v1623
  %v2704 = vpack.c.b16 %v1642, %v1624
  %v2705 = vpack.c.b16 %v1643, %v1625
  %v2706 = vpack.c.b16 %v1644, %v1626
  %v2707 = vpack.c.b16 %v1645, %v1627
  %v2708 = vpack.c.b16 %v1664, %v1646
  %v2709 = vpack.c.b16 %v1665, %v1647
  %v2710 = vpack.c.b16 %v1666, %v1648
  %v2711 = vpack.c.b16 %v1667, %v1649
  %v2712 = vpack.c.b16 %v1668, %v1650
  %v2713 = vpack.c.b16 %v1669, %v1651
  %v2714 = vpack.c.b16 %v1670, %v1652
  %v2715 = vpack.c.b16 %v1671, %v1653
  %v2716 = vpack.c.b16 %v1672, %v1654
  %v2717 = vpack.c.b16 %v1673, %v1655
  %v2718 = vpack.c.b16 %v1674, %v1656
  %v2719 = vpack.c.b16 %v1675, %v1657
  %v2720 = vpack.c.b16 %v1676, %v1658
  %v2721 = vpack.c.b16 %v1677, %v1659
  %v2722 = vpack.c.b16 %v1678, %v1660
  %v2723 = vpack.c.b16 %v1679, %v1661
  %v2724 = vpack.c.b16 %v1680, %v1662
  %v2725 = vpack.c.b16 %v1681, %v1663
  %v2726 = vpack.c.b16 %v1700, %v1682
  %v2727 = vpack.c.b16 %v1701, %v1683
  %v2728 = vpack.c.b16 %v1702, %v1684
  %v2729 = vpack.c.b16 %v1703, %v1685
  %v2730 = vpack.c.b16 %v1704, %v1686
  %v2731 = vpack.c.b16 %v1705, %v1687
  %v2732 = vpack.c.b16 %v1706, %v1688
  %v2733 = vpack.c.b16 %v1707, %v1689
  %v2734 = vpack.c.b16 %v1708, %v1690
  %v2735 = vpack.c.b16 %v1709, %v1691
  %v2736 = vpack.c.b16 %v1710, %v1692
  %v2737 = vpack.c.b16 %v1711, %v1693
  %v2738 = vpack.c.b16 %v1712, %v1694
  %v2739 = vpack.c.b16 %v1713, %v1695
  %v2740 = vpack.c.b16 %v1714, %v1696
  %v2741 = vpack.c.b16 %v1715, %v1697
  %v2742 = vpack.c.b16 %v1716, %v1698
  %v2743 = vpack.c.b16 %v1717, %v1699
  %v2744 = vpack.c.b16 %v1736, %v1718
  %v2745 = vpack.c.b16 %v1737, %v1719
  %v2746 = vpack.c.b16 %v1738, %v1720
  %v2747 = vpack.c.b16 %v1739, %v1721
  %v2748 = vpack.c.b16 %v1740, %v1722
  %v2749 = vpack.c.b16 %v1741, %v1723
  %v2750 = vpack.c.b16 %v1742, %v1724
  %v2751 = vpack.c.b16 %v1743, %v1725
  %v2752 = vpack.c.b16 %v1744, %v1726
  %v2753 = vpack.c.b16 %v1745, %v1727
  %v2754 = vpack.c.b16 %v1746, %v1728
  %v2755 = vpack.c.b16 %v1747, %v1729
  %v2756 = vpack.c.b16 %v1748, %v1730
  %v2757 = vpack.c.b16 %v1749, %v1731
  %v2758 = vpack.c.b16 %v1750, %v1732
  %v2759 = vpack.c.b16 %v1751, %v1733
  %v2760 = vpack.c.b16 %v1752, %v1734
  %v2761 = vpack.c.b16 %v1753, %v1735
  %v2762 = vpack.c.b16 %v1772, %v1754
  %v2763 = vpack.c.b16 %v1773, %v1755
  %v2764 = vpack.c.b16 %v1774, %v1756
  %v2765 = vpack.c.b16 %v1775, %v1757
  %v2766 = vpack.c.b16 %v1776, %v1758
  %v2767 = vpack.c.b16 %v1777, %v1759
  %v2768 = vpack.c.b16 %v1778, %v1760
  %v2769 = vpack.c.b16 %v1779, %v1761
  %v2770 = vpack.c.b16 %v1780, %v1762
  %v2771 = vpack.c.b16 %v1781, %v1763
  %v2772 = vpack.c.b16 %v1782, %v1764
  %v2773 = vpack.c.b16 %v1783, %v1765
  %v2774 = vpack.c.b16 %v1784, %v1766
  %v2775 = vpack.c.b16 %v1785, %v1767
  %v2776 = vpack.c.b16 %v1786, %v1768
  %v2777 = vpack.c.b16 %v1787, %v1769
  %v2778 = vpack.c.b16 %v1788, %v1770
  %v2779 = vpack.c.b16 %v1789, %v1771
  %v2780 = vpack.c.b16 %v1808, %v1790
  %v2781 = vpack.c.b16 %v1809, %v1791
  %v2782 = vpack.c.b16 %v1810, %v1792
  %v2783 = vpack.c.b16 %v1811, %v1793
  %v2784 = vpack.c.b16 %v1812, %v1794
  %v2785 = vpack.c.b16 %v1813, %v1795
  %v2786 = vpack.c.b16 %v1814, %v1796
  %v2787 = vpack.c.b16 %v1815, %v1797
  %v2788 = vpack.c.b16 %v1816, %v1798
  %v2789 = vpack.c.b16 %v1817, %v1799
  %v2790 = vpack.c.b16 %v1818, %v1800
  %v2791 = vpack.c.b16 %v1819, %v1801
  %v2792 = vpack.c.b16 %v1820, %v1802
  %v2793 = vpack.c.b16 %v1821, %v1803
  %v2794 = vpack.c.b16 %v1822, %v1804
  %v2795 = vpack.c.b16 %v1823, %v1805
  %v2796 = vpack.c.b16 %v1824, %v1806
  %v2797 = vpack.c.b16 %v1825, %v1807
  %v2798 = vpack.c.b16 %v1844, %v1826
  %v2799 = vpack.c.b16 %v1845, %v1827
  %v2800 = vpack.c.b16 %v1846, %v1828
  %v2801 = vpack.c.b16 %v1847, %v1829
  %v2802 = vpack.c.b16 %v1848, %v1830
  %v2803 = vpack.c.b16 %v1849, %v1831
  %v2804 = vpack.c.b16 %v1850, %v1832
  %v2805 = vpack.c.b16 %v1851, %v1833
  %v2806 = vpack.c.b16 %v1852, %v1834
  %v2807 = vpack.c.b16 %v1853, %v1835
  %v2808 = vpack.c.b16 %v1854, %v1836
  %v2809 = vpack.c.b16 %v1855, %v1837
  %v2810 = vpack.c.b16 %v1856, %v1838
  %v2811 = vpack.c.b16 %v1857, %v1839
  %v2812 = vpack.c.b16 %v1858, %v1840
  %v2813 = vpack.c.b16 %v1859, %v1841
  %v2814 = vpack.c.b16 %v1860, %v1842
  %v2815 = vpack.c.b16 %v1861, %v1843
  %v2816 = vpack.c.b16 %v1880, %v1862
  %v2817 = vpack.c.b16 %v1881, %v1863
  %v2818 = vpack.c.b16 %v1882, %v1864
  %v2819 = vpack.c.b16 %v1883, %v1865
  %v2820 = vpack.c.b16 %v1884, %v1866
  %v2821 = vpack.c.b16 %v1885, %v1867
  %v2822 = vpack.c.b16 %v1886, %v1868
  %v2823 = vpack.c.b16 %v1887, %v1869
  %v2824 = vpack.c.b16 %v1888, %v1870
  %v2825 = vpack.c.b16 %v1889, %v1871
  %v2826 = vpack.c.b16 %v1890, %v1872
  %v2827 = vpack.c.b16 %v1891, %v1873
  %v2828 = vpack.c.b16 %v1892, %v1874
  %v2829 = vpack.c.b16 %v1893, %v1875
  %v2830 = vpack.c.b16 %v1894, %v1876
  %v2831 = vpack.c.b16 %v1895, %v1877
  %v2832 = vpack.c.b16 %v1896, %v1878
  %v2833 = vpack.c.b16 %v1897, %v1879
  %v2834 = vpack.c.b16 %v1916, %v1898
  %v2835 = vpack.c.b16 %v1917, %v1899
  %v2836 = vpack.c.b16 %v1918, %v1900
  %v2837 = vpack.c.b16 %v1919, %v1901
  %v2838 = vpack.c.b16 %v1920, %v1902
  %v2839 = vpack.c.b16 %v1921, %v1903
  %v2840 = vpack.c.b16 %v1922, %v1904
  %v2841 = vpack.c.b16 %v1923, %v1905
  %v2842 = vpack.c.b16 %v1924, %v1906
  %v2843 = vpack.c.b16 %v1925, %v1907
  %v2844 = vpack.c.b16 %v1926, %v1908
  %v2845 = vpack.c.b16 %v1927, %v1909
  %v2846 = vpack.c.b16 %v1928, %v1910
  %v2847 = vpack.c.b16 %v1929, %v1911
  %v2848 = vpack.c.b16 %v1930, %v1912
  %v2849 = vpack.c.b16 %v1931, %v1913
  %v2850 = vpack.c.b16 %v1932, %v1914
  %v2851 = vpack.c.b16 %v1933, %v1915
  %v2852 = vpack.c.b16 %v1952, %v1934
  %v2853 = vpack.c.b16 %v1953, %v1935
  %v2854 = vpack.c.b16 %v1954, %v1936
  %v2855 = vpack.c.b16 %v1955, %v1937
  %v2856 = vpack.c.b16 %v1956, %v1938
  %v2857 = vpack.c.b16 %v1957, %v1939
  %v2858 = vpack.c.b16 %v1958, %v1940
  %v2859 = vpack.c.b16 %v1959, %v1941
  %v2860 = vpack.c.b16 %v1960, %v1942
  %v2861 = vpack.c.b16 %v1961, %v1943
  %v2862 = vpack.c.b16 %v1962, %v1944
  %v2863 = vpack.c.b16 %v1963, %v1945
  %v2864 = vpack.c.b16 %v1964, %v1946
  %v2865 = vpack.c.b16 %v1965, %v1947
  %v2866 = vpack.c.b16 %v1966, %v1948
  %v2867 = vpack.c.b16 %v1967, %v1949
  %v2868 = vpack.c.b16 %v1968, %v1950
  %v2869 = vpack.c.b16 %v1969, %v1951
  %v2870 = vpack.c.b16 %v1988, %v1970
  %v2871 = vpack.c.b16 %v1989, %v1971
  %v2872 = vpack.c.b16 %v1990, %v1972
  %v2873 = vpack.c.b16 %v1991, %v1973
  %v2874 = vpack.c.b16 %v1992, %v1974
  %v2875 = vpack.c.b16 %v1993, %v1975
  %v2876 = vpack.c.b16 %v1994, %v1976
  %v2877 = vpack.c.b16 %v1995, %v1977
  %v2878 = vpack.c.b16 %v1996, %v1978
  %v2879 = vpack.c.b16 %v1997, %v1979
  %v2880 = vpack.c.b16 %v1998, %v1980
  %v2881 = vpack.c.b16 %v1999, %v1981
  %v2882 = vpack.c.b16 %v2000, %v1982
  %v2883 = vpack.c.b16 %v2001, %v1983
  %v2884 = vpack.c.b16 %v2002, %v1984
  %v2885 = vpack.c.b16 %v2003, %v1985
  %v2886 = vpack.c.b16 %v2004, %v1986
  %v2887 = vpack.c.b16 %v2005, %v1987
  %v2888 = vpack.c.b16 %v2024, %v2006
  %v2889 = vpack.c.b16 %v2025, %v2007
  %v2890 = vpack.c.b16 %v2026, %v2008
  %v2891 = vpack.c.b16 %v2027, %v2009
  %v2892 = vpack.c.b16 %v2028, %v2010
  %v2893 = vpack.c.b16 %v2029, %v2011
  %v2894 = vpack.c.b16 %v2030, %v2012
  %v2895 = vpack.c.b16 %v2031, %v2013
  %v2896 = vpack.c.b16 %v2032, %v2014
  %v2897 = vpack.c.b16 %v2033, %v2015
  %v2898 = vpack.c.b16 %v2034, %v2016
  %v2899 = vpack.c.b16 %v2035, %v2017
  %v2900 = vpack.c.b16 %v2036, %v2018
  %v2901 = vpack.c.b16 %v2037, %v2019
  %v2902 = vpack.c.b16 %v2038, %v2020
  %v2903 = vpack.c.b16 %v2039, %v2021
  %v2904 = vpack.c.b16 %v2040, %v2022
  %v2905 = vpack.c.b16 %v2041, %v2023
  %v2906 = vpack.c.b16 %v2060, %v2042
  %v2907 = vpack.c.b16 %v2061, %v2043
  %v2908 = vpack.c.b16 %v2062, %v2044
  %v2909 = vpack.c.b16 %v2063, %v2045
  %v2910 = vpack.c.b16 %v2064, %v2046
  %v2911 = vpack.c.b16 %v2065, %v2047
  %v2912 = vpack.c.b16 %v2066, %v2048
  %v2913 = vpack.c.b16 %v2067, %v2049
  %v2914 = vpack.c.b16 %v2068, %v2050
  %v2915 = vpack.c.b16 %v2069, %v2051
  %v2916 = vpack.c.b16 %v2070, %v2052
  %v2917 = vpack.c.b16 %v2071, %v2053
  %v2918 = vpack.c.b16 %v2072, %v2054
  %v2919 = vpack.c.b16 %v2073, %v2055
  %v2920 = vpack.c.b16 %v2074, %v2056
  %v2921 = vpack.c.b16 %v2075, %v2057
  %v2922 = vpack.c.b16 %v2076, %v2058
  %v2923 = vpack.c.b16 %v2077, %v2059
  %v2924 = vpack.c.b16 %v2096, %v2078
  %v2925 = vpack.c.b16 %v2097, %v2079
  %v2926 = vpack.c.b16 %v2098, %v2080
  %v2927 = vpack.c.b16 %v2099, %v2081
  %v2928 = vpack.c.b16 %v2100, %v2082
  %v2929 = vpack.c.b16 %v2101, %v2083
  %v2930 = vpack.c.b16 %v2102, %v2084
  %v2931 = vpack.c.b16 %v2103, %v2085
  %v2932 = vpack.c.b16 %v2104, %v2086
  %v2933 = vpack.c.b16 %v2105, %v2087
  %v2934 = vpack.c.b16 %v2106, %v2088
  %v2935 = vpack.c.b16 %v2107, %v2089
  %v2936 = vpack.c.b16 %v2108, %v2090
  %v2937 = vpack.c.b16 %v2109, %v2091
  %v2938 = vpack.c.b16 %v2110, %v2092
  %v2939 = vpack.c.b16 %v2111, %v2093
  %v2940 = vpack.c.b16 %v2112, %v2094
  %v2941 = vpack.c.b16 %v2113, %v2095
  %v2942 = vpack.c.b16 %v2132, %v2114
  %v2943 = vpack.c.b16 %v2133, %v2115
  %v2944 = vpack.c.b16 %v2134, %v2116
  %v2945 = vpack.c.b16 %v2135, %v2117
  %v2946 = vpack.c.b16 %v2136, %v2118
  %v2947 = vpack.c.b16 %v2137, %v2119
  %v2948 = vpack.c.b16 %v2138, %v2120
  %v2949 = vpack.c.b16 %v2139, %v2121
  %v2950 = vpack.c.b16 %v2140, %v2122
  %v2951 = vpack.c.b16 %v2141, %v2123
  %v2952 = vpack.c.b16 %v2142, %v2124
  %v2953 = vpack.c.b16 %v2143, %v2125
  %v2954 = vpack.c.b16 %v2144, %v2126
  %v2955 = vpack.c.b16 %v2145, %v2127
  %v2956 = vpack.c.b16 %v2146, %v2128
  %v2957 = vpack.c.b16 %v2147, %v2129
  %v2958 = vpack.c.b16 %v2148, %v2130
  %v2959 = vpack.c.b16 %v2149, %v2131
  %v2960 = vpack.c.b16 %v2168, %v2150
  %v2961 = vpack.c.b16 %v2169, %v2151
  %v2962 = vpack.c.b16 %v2170, %v2152
  %v2963 = vpack.c.b16 %v2171, %v2153
  %v2964 = vpack.c.b16 %v2172, %v2154
  %v2965 = vpack.c.b16 %v2173, %v2155
  %v2966 = vpack.c.b16 %v2174, %v2156
  %v2967 = vpack.c.b16 %v2175, %v2157
  %v2968 = vpack.c.b16 %v2176, %v2158
  %v2969 = vpack.c.b16 %v2177, %v2159
  %v2970 = vpack.c.b16 %v2178, %v2160
  %v2971 = vpack.c.b16 %v2179, %v2161
  %v2972 = vpack.c.b16 %v2180, %v2162
  %v2973 = vpack.c.b16 %v2181, %v2163
  %v2974 = vpack.c.b16 %v2182, %v2164
  %v2975 = vpack.c.b16 %v2183, %v2165
  %v2976 = vpack.c.b16 %v2184, %v2166
  %v2977 = vpack.c.b16 %v2185, %v2167
  %v2978 = vpack.c.b16 %v2204, %v2186
  %v2979 = vpack.c.b16 %v2205, %v2187
  %v2980 = vpack.c.b16 %v2206, %v2188
  %v2981 = vpack.c.b16 %v2207, %v2189
  %v2982 = vpack.c.b16 %v2208, %v2190
  %v2983 = vpack.c.b16 %v2209, %v2191
  %v2984 = vpack.c.b16 %v2210, %v2192
  %v2985 = vpack.c.b16 %v2211, %v2193
  %v2986 = vpack.c.b16 %v2212, %v2194
  %v2987 = vpack.c.b16 %v2213, %v2195
  %v2988 = vpack.c.b16 %v2214, %v2196
  %v2989 = vpack.c.b16 %v2215, %v2197
  %v2990 = vpack.c.b16 %v2216, %v2198
  %v2991 = vpack.c.b16 %v2217, %v2199
  %v2992 = vpack.c.b16 %v2218, %v2200
  %v2993 = vpack.c.b16 %v2219, %v2201
  %v2994 = vpack.c.b16 %v2220, %v2202
  %v2995 = vpack.c.b16 %v2221, %v2203
  %v2996 = vpack.c.b16 %v2240, %v2222
  %v2997 = vpack.c.b16 %v2241, %v2223
  %v2998 = vpack.c.b16 %v2242, %v2224
  %v2999 = vpack.c.b16 %v2243, %v2225
  %v3000 = vpack.c.b16 %v2244, %v2226
  %v3001 = vpack.c.b16 %v2245, %v2227
  %v3002 = vpack.c.b16 %v2246, %v2228
  %v3003 = vpack.c.b16 %v2247, %v2229
  %v3004 = vpack.c.b16 %v2248, %v2230
  %v3005 = vpack.c.b16 %v2249, %v2231
  %v3006 = vpack.c.b16 %v2250, %v2232
  %v3007 = vpack.c.b16 %v2251, %v2233
  %v3008 = vpack.c.b16 %v2252, %v2234
  %v3009 = vpack.c.b16 %v2253, %v2235
  %v3010 = vpack.c.b16 %v2254, %v2236
  %v3011 = vpack.c.b16 %v2255, %v2237
  %v3012 = vpack.c.b16 %v2256, %v2238
  %v3013 = vpack.c.b16 %v2257, %v2239
  %v3014 = vpack.c.b16 %v2276, %v2258
  %v3015 = vpack.c.b16 %v2277, %v2259
  %v3016 = vpack.c.b16 %v2278, %v2260
  %v3017 = vpack.c.b16 %v2279, %v2261
  %v3018 = vpack.c.b16 %v2280, %v2262
  %v3019 = vpack.c.b16 %v2281, %v2263
  %v3020 = vpack.c.b16 %v2282, %v2264
  %v3021 = vpack.c.b16 %v2283, %v2265
  %v3022 = vpack.c.b16 %v2284, %v2266
  %v3023 = vpack.c.b16 %v2285, %v2267
  %v3024 = vpack.c.b16 %v2286, %v2268
  %v3025 = vpack.c.b16 %v2287, %v2269
  %v3026 = vpack.c.b16 %v2288, %v2270
  %v3027 = vpack.c.b16 %v2289, %v2271
  %v3028 = vpack.c.b16 %v2290, %v2272
  %v3029 = vpack.c.b16 %v2291, %v2273
  %v3030 = vpack.c.b16 %v2292, %v2274
  %v3031 = vpack.c.b16 %v2293, %v2275
  %v3032 = vpack.c.b16 %v2312, %v2294
  %v3033 = vpack.c.b16 %v2313, %v2295
  %v3034 = vpack.c.b16 %v2314, %v2296
  %v3035 = vpack.c.b16 %v2315, %v2297
  %v3036 = vpack.c.b16 %v2316, %v2298
  %v3037 = vpack.c.b16 %v2317, %v2299
  %v3038 = vpack.c.b16 %v2318, %v2300
  %v3039 = vpack.c.b16 %v2319, %v2301
  %v3040 = vpack.c.b16 %v2320, %v2302
  %v3041 = vpack.c.b16 %v2321, %v2303
  %v3042 = vpack.c.b16 %v2322, %v2304
  %v3043 = vpack.c.b16 %v2323, %v2305
  %v3044 = vpack.c.b16 %v2324, %v2306
  %v3045 = vpack.c.b16 %v2325, %v2307
  %v3046 = vpack.c.b16 %v2326, %v2308
  %v3047 = vpack.c.b16 %v2327, %v2309
  %v3048 = vpack.c.b16 %v2328, %v2310
  %v3049 = vpack.c.b16 %v2329, %v2311
  %v3050 = vpack.c.b16 %v2348, %v2330
  %v3051 = vpack.c.b16 %v2349, %v2331
  %v3052 = vpack.c.b16 %v2350, %v2332
  %v3053 = vpack.c.b16 %v2351, %v2333
  %v3054 = vpack.c.b16 %v2352, %v2334
  %v3055 = vpack.c.b16 %v2353, %v2335
  %v3056 = vpack.c.b16 %v2354, %v2336
  %v3057 = vpack.c.b16 %v2355, %v2337
  %v3058 = vpack.c.b16 %v2356, %v2338
  %v3059 = vpack.c.b16 %v2357, %v2339
  %v3060 = vpack.c.b16 %v2358, %v2340
  %v3061 = vpack.c.b16 %v2359, %v2341
  %v3062 = vpack.c.b16 %v2360, %v2342
  %v3063 = vpack.c.b16 %v2361, %v2343
  %v3064 = vpack.c.b16 %v2362, %v2344
  %v3065 = vpack.c.b16 %v2363, %v2345
  %v3066 = vpack.c.b16 %v2364, %v2346
  %v3067 = vpack.c.b16 %v2365, %v2347
  %v3068 = vpack.c.b16 %v2384, %v2366
  %v3069 = vpack.c.b16 %v2385, %v2367
  %v3070 = vpack.c.b16 %v2386, %v2368
  %v3071 = vpack.c.b16 %v2387, %v2369
  %v3072 = vpack.c.b16 %v2388, %v2370
  %v3073 = vpack.c.b16 %v2389, %v2371
  %v3074 = vpack.c.b16 %v2390, %v2372
  %v3075 = vpack.c.b16 %v2391, %v2373
  %v3076 = vpack.c.b16 %v2392, %v2374
  %v3077 = vpack.c.b16 %v2393, %v2375
  %v3078 = vpack.c.b16 %v2394, %v2376
  %v3079 = vpack.c.b16 %v2395, %v2377
  %v3080 = vpack.c.b16 %v2396, %v2378
  %v3081 = vpack.c.b16 %v2397, %v2379
  %v3082 = vpack.c.b16 %v2398, %v2380
  %v3083 = vpack.c.b16 %v2399, %v2381
  %v3084 = vpack.c.b16 %v2400, %v2382
  %v3085 = vpack.c.b16 %v2401, %v2383
  %v3086 = vpack.c.b16 %v2420, %v2402
  %v3087 = vpack.c.b16 %v2421, %v2403
  %v3088 = vpack.c.b16 %v2422, %v2404
  %v3089 = vpack.c.b16 %v2423, %v2405
  %v3090 = vpack.c.b16 %v2424, %v2406
  %v3091 = vpack.c.b16 %v2425, %v2407
  %v3092 = vpack.c.b16 %v2426, %v2408
  %v3093 = vpack.c.b16 %v2427, %v2409
  %v3094 = vpack.c.b16 %v2428, %v2410
  %v3095 = vpack.c.b16 %v2429, %v2411
  %v3096 = vpack.c.b16 %v2430, %v2412
  %v3097 = vpack.c.b16 %v2431, %v2413
  %v3098 = vpack.c.b16 %v2432, %v2414
  %v3099 = vpack.c.b16 %v2433, %v2415
  %v3100 = vpack.c.b16 %v2434, %v2416
  %v3101 = vpack.c.b16 %v2435, %v2417
  %v3102 = vpack.c.b16 %v2436, %v2418
  %v3103 = vpack.c.b16 %v2437, %v2419
  %v3104 = vpack.c.b16 %v2456, %v2438
  %v3105 = vpack.c.b16 %v2457, %v2439
  %v3106 = vpack.c.b16 %v2458, %v2440
  %v3107 = vpack.c.b16 %v2459, %v2441
  %v3108 = vpack.c.b16 %v2460, %v2442
  %v3109 = vpack.c.b16 %v2461, %v2443
  %v3110 = vpack.c.b16 %v2462, %v2444
  %v3111 = vpack.c.b16 %v2463, %v2445
  %v3112 = vpack.c.b16 %v2464, %v2446
  %v3113 = vpack.c.b16 %v2465, %v2447
  %v3114 = vpack.c.b16 %v2466, %v2448
  %v3115 = vpack.c.b16 %v2467, %v2449
  %v3116 = vpack.c.b16 %v2468, %v2450
  %v3117 = vpack.c.b16 %v2469, %v2451
  %v3118 = vpack.c.b16 %v2470, %v2452
  %v3119 = vpack.c.b16 %v2471, %v2453
  %v3120 = vpack.c.b16 %v2472, %v2454
  %v3121 = vpack.c.b16 %v2473, %v2455
  %v3122 = vpack.c.b16 %v2492, %v2474
  %v3123 = vpack.c.b16 %v2493, %v2475
  %v3124 = vpack.c.b16 %v2494, %v2476
  %v3125 = vpack.c.b16 %v2495, %v2477
  %v3126 = vpack.c.b16 %v2496, %v2478
  %v3127 = vpack.c.b16 %v2497, %v2479
  %v3128 = vpack.c.b16 %v2498, %v2480
  %v3129 = vpack.c.b16 %v2499, %v2481
  %v3130 = vpack.c.b16 %v2500, %v2482
  %v3131 = vpack.c.b16 %v2501, %v2483
  %v3132 = vpack.c.b16 %v2502, %v2484
  %v3133 = vpack.c.b16 %v2503, %v2485
  %v3134 = vpack.c.b16 %v2504, %v2486
  %v3135 = vpack.c.b16 %v2505, %v2487
  %v3136 = vpack.c.b16 %v2506, %v2488
  %v3137 = vpack.c.b16 %v2507, %v2489
  %v3138 = vpack.c.b16 %v2508, %v2490
  %v3139 = vpack.c.b16 %v2509, %v2491
  %v3140 = vpack.c.b16 %v2528, %v2510
  %v3141 = vpack.c.b16 %v2529, %v2511
  %v3142 = vpack.c.b16 %v2530, %v2512
  %v3143 = vpack.c.b16 %v2531, %v2513
  %v3144 = vpack.c.b16 %v2532, %v2514
  %v3145 = vpack.c.b16 %v2533, %v2515
  %v3146 = vpack.c.b16 %v2534, %v2516
  %v3147 = vpack.c.b16 %v2535, %v2517
  %v3148 = vpack.c.b16 %v2536, %v2518
  %v3149 = vpack.c.b16 %v2537, %v2519
  %v3150 = vpack.c.b16 %v2538, %v2520
  %v3151 = vpack.c.b16 %v2539, %v2521
  %v3152 = vpack.c.b16 %v2540, %v2522
  %v3153 = vpack.c.b16 %v2541, %v2523
  %v3154 = vpack.c.b16 %v2542, %v2524
  %v3155 = vpack.c.b16 %v2543, %v2525
  %v3156 = vpack.c.b16 %v2544, %v2526
  %v3157 = vpack.c.b16 %v2545, %v2527
  %v3158 = vpack.c.b16 %v2564, %v2546
  %v3159 = vpack.c.b16 %v2565, %v2547
  %v3160 = vpack.c.b16 %v2566, %v2548
  %v3161 = vpack.c.b16 %v2567, %v2549
  %v3162 = vpack.c.b16 %v2568, %v2550
  %v3163 = vpack.c.b16 %v2569, %v2551
  %v3164 = vpack.c.b16 %v2570, %v2552
  %v3165 = vpack.c.b16 %v2571, %v2553
  %v3166 = vpack.c.b16 %v2572, %v2554
  %v3167 = vpack.c.b16 %v2573, %v2555
  %v3168 = vpack.c.b16 %v2574, %v2556
  %v3169 = vpack.c.b16 %v2575, %v2557
  %v3170 = vpack.c.b16 %v2576, %v2558
  %v3171 = vpack.c.b16 %v2577, %v2559
  %v3172 = vpack.c.b16 %v2578, %v2560
  %v3173 = vpack.c.b16 %v2579, %v2561
  %v3174 = vpack.c.b16 %v2580, %v2562
  %v3175 = vpack.c.b16 %v2581, %v2563
  %v3176 = vpack.c.b16 %v2600, %v2582
  %v3177 = vpack.c.b16 %v2601, %v2583
  %v3178 = vpack.c.b16 %v2602, %v2584
  %v3179 = vpack.c.b16 %v2603, %v2585
  %v3180 = vpack.c.b16 %v2604, %v2586
  %v3181 = vpack.c.b16 %v2605, %v2587
  %v3182 = vpack.c.b16 %v2606, %v2588
  %v3183 = vpack.c.b16 %v2607, %v2589
  %v3184 = vpack.c.b16 %v2608, %v2590
  %v3185 = vpack.c.b16 %v2609, %v2591
  %v3186 = vpack.c.b16 %v2610, %v2592
  %v3187 = vpack.c.b16 %v2611, %v2593
  %v3188 = vpack.c.b16 %v2612, %v2594
  %v3189 = vpack.c.b16 %v2613, %v2595
  %v3190 = vpack.c.b16 %v2614, %v2596
  %v3191 = vpack.c.b16 %v2615, %v2597
  %v3192 = vpack.c.b16 %v2616, %v2598
  %v3193 = vpack.c.b16 %v2617, %v2599
  %v4058 = vunpack.c.l.b16 %v590
  %v4059 = vunpack.c.h.b16 %v590
  %v4060 = vunpack.c.l.b16 %v591
  %v4061 = vunpack.c.h.b16 %v591
  %v4062 = vunpack.c.l.b16 %v592
  %v4063 = vunpack.c.h.b16 %v592
  %v4064 = vunpack.c.l.b16 %v593
  %v4065 = vunpack.c.h.b16 %v593
  %v4066 = vunpack.c.l.b16 %v594
  %v4067 = vunpack.c.h.b16 %v594
  %v4068 = vunpack.c.l.b16 %v595
  %v4069 = vunpack.c.h.b16 %v595
  %v4070 = vunpack.c.l.b16 %v596
  %v4071 = vunpack.c.h.b16 %v596
  %v4072 = vunpack.c.l.b16 %v597
  %v4073 = vunpack.c.h.b16 %v597
  %v4074 = vunpack.c.l.b16 %v598
  %v4075 = vunpack.c.h.b16 %v598
  %v4076 = vunpack.c.l.b16 %v599
  %v4077 = vunpack.c.h.b16 %v599
  %v4078 = vunpack.c.l.b16 %v600
  %v4079 = vunpack.c.h.b16 %v600
  %v4080 = vunpack.c.l.b16 %v601
  %v4081 = vunpack.c.h.b16 %v601
  %v4082 = vunpack.c.l.b16 %v602
  %v4083 = vunpack.c.h.b16 %v602
  %v4084 = vunpack.c.l.b16 %v603
  %v4085 = vunpack.c.h.b16 %v603
  %v4086 = vunpack.c.l.b16 %v604
  %v4087 = vunpack.c.h.b16 %v604
  %v4088 = vunpack.c.l.b16 %v605
  %v4089 = vunpack.c.h.b16 %v605
  %v4090 = vunpack.c.l.b16 %v606
  %v4091 = vunpack.c.h.b16 %v606
  %v4092 = vunpack.c.l.b16 %v607
  %v4093 = vunpack.c.h.b16 %v607
  %v4094 = vunpack.c.l.b16 %v608
  %v4095 = vunpack.c.h.b16 %v608
  %v4096 = vunpack.c.l.b16 %v609
  %v4097 = vunpack.c.h.b16 %v609
  %v4098 = vunpack.c.l.b16 %v610
  %v4099 = vunpack.c.h.b16 %v610
  %v4100 = vunpack.c.l.b16 %v611
  %v4101 = vunpack.c.h.b16 %v611
  %v4102 = vunpack.c.l.b16 %v612
  %v4103 = vunpack.c.h.b16 %v612
  %v4104 = vunpack.c.l.b16 %v613
  %v4105 = vunpack.c.h.b16 %v613
  %v4106 = vunpack.c.l.b16 %v614
  %v4107 = vunpack.c.h.b16 %v614
  %v4108 = vunpack.c.l.b16 %v615
  %v4109 = vunpack.c.h.b16 %v615
  %v4110 = vunpack.c.l.b16 %v616
  %v4111 = vunpack.c.h.b16 %v616
  %v4112 = vunpack.c.l.b16 %v617
  %v4113 = vunpack.c.h.b16 %v617
  %v4114 = vunpack.c.l.b16 %v618
  %v4115 = vunpack.c.h.b16 %v618
  %v4116 = vunpack.c.l.b16 %v619
  %v4117 = vunpack.c.h.b16 %v619
  %v4118 = vunpack.c.l.b16 %v620
  %v4119 = vunpack.c.h.b16 %v620
  %v4120 = vunpack.c.l.b16 %v621
  %v4121 = vunpack.c.h.b16 %v621
  %v4122 = vunpack.c.l.b16 %v622
  %v4123 = vunpack.c.h.b16 %v622
  %v4124 = vunpack.c.l.b16 %v623
  %v4125 = vunpack.c.h.b16 %v623
  %v4126 = vunpack.c.l.b16 %v624
  %v4127 = vunpack.c.h.b16 %v624
  %v4128 = vunpack.c.l.b16 %v625
  %v4129 = vunpack.c.h.b16 %v625
  %v4130 = vunpack.c.l.b16 %v626
  %v4131 = vunpack.c.h.b16 %v626
  %v4132 = vunpack.c.l.b16 %v627
  %v4133 = vunpack.c.h.b16 %v627
  %v4134 = vunpack.c.l.b16 %v628
  %v4135 = vunpack.c.h.b16 %v628
  %v4136 = vunpack.c.l.b16 %v629
  %v4137 = vunpack.c.h.b16 %v629
  %v4138 = vunpack.c.l.b16 %v630
  %v4139 = vunpack.c.h.b16 %v630
  %v4140 = vunpack.c.l.b16 %v631
  %v4141 = vunpack.c.h.b16 %v631
  %v4142 = vunpack.c.l.b16 %v632
  %v4143 = vunpack.c.h.b16 %v632
  %v4144 = vunpack.c.l.b16 %v633
  %v4145 = vunpack.c.h.b16 %v633
  %v4146 = vunpack.c.l.b16 %v634
  %v4147 = vunpack.c.h.b16 %v634
  %v4148 = vunpack.c.l.b16 %v635
  %v4149 = vunpack.c.h.b16 %v635
  %v4150 = vunpack.c.l.b16 %v636
  %v4151 = vunpack.c.h.b16 %v636
  %v4152 = vunpack.c.l.b16 %v637
  %v4153 = vunpack.c.h.b16 %v637
  %v4154 = vunpack.c.l.b16 %v638
  %v4155 = vunpack.c.h.b16 %v638
  %v4156 = vunpack.c.l.b16 %v639
  %v4157 = vunpack.c.h.b16 %v639
  %v4158 = vunpack.c.l.b16 %v640
  %v4159 = vunpack.c.h.b16 %v640
  %v4160 = vunpack.c.l.b16 %v641
  %v4161 = vunpack.c.h.b16 %v641
  %v4162 = vunpack.c.l.b16 %v642
  %v4163 = vunpack.c.h.b16 %v642
  %v4164 = vunpack.c.l.b16 %v643
  %v4165 = vunpack.c.h.b16 %v643
  %v4166 = vunpack.c.l.b16 %v644
  %v4167 = vunpack.c.h.b16 %v644
  %v4168 = vunpack.c.l.b16 %v645
  %v4169 = vunpack.c.h.b16 %v645
  %v4170 = vunpack.c.l.b16 %v646
  %v4171 = vunpack.c.h.b16 %v646
  %v4172 = vunpack.c.l.b16 %v647
  %v4173 = vunpack.c.h.b16 %v647
  %v4174 = vunpack.c.l.b16 %v648
  %v4175 = vunpack.c.h.b16 %v648
  %v4176 = vunpack.c.l.b16 %v649
  %v4177 = vunpack.c.h.b16 %v649
  %v4178 = vunpack.c.l.b16 %v650
  %v4179 = vunpack.c.h.b16 %v650
  %v4180 = vunpack.c.l.b16 %v651
  %v4181 = vunpack.c.h.b16 %v651
  %v4182 = vunpack.c.l.b16 %v652
  %v4183 = vunpack.c.h.b16 %v652
  %v4184 = vunpack.c.l.b16 %v653
  %v4185 = vunpack.c.h.b16 %v653
  %v4186 = vunpack.c.l.b16 %v654
  %v4187 = vunpack.c.h.b16 %v654
  %v4188 = vunpack.c.l.b16 %v655
  %v4189 = vunpack.c.h.b16 %v655
  %v4190 = vunpack.c.l.b16 %v656
  %v4191 = vunpack.c.h.b16 %v656
  %v4192 = vunpack.c.l.b16 %v657
  %v4193 = vunpack.c.h.b16 %v657
  %v4194 = vunpack.c.l.b16 %v658
  %v4195 = vunpack.c.h.b16 %v658
  %v4196 = vunpack.c.l.b16 %v659
  %v4197 = vunpack.c.h.b16 %v659
  %v4198 = vunpack.c.l.b16 %v660
  %v4199 = vunpack.c.h.b16 %v660
  %v4200 = vunpack.c.l.b16 %v661
  %v4201 = vunpack.c.h.b16 %v661
  %v4202 = vunpack.c.l.b16 %v662
  %v4203 = vunpack.c.h.b16 %v662
  %v4204 = vunpack.c.l.b16 %v663
  %v4205 = vunpack.c.h.b16 %v663
  %v4206 = vunpack.c.l.b16 %v664
  %v4207 = vunpack.c.h.b16 %v664
  %v4208 = vunpack.c.l.b16 %v665
  %v4209 = vunpack.c.h.b16 %v665
  %v4210 = vunpack.c.l.b16 %v666
  %v4211 = vunpack.c.h.b16 %v666
  %v4212 = vunpack.c.l.b16 %v667
  %v4213 = vunpack.c.h.b16 %v667
  %v4214 = vunpack.c.l.b16 %v668
  %v4215 = vunpack.c.h.b16 %v668
  %v4216 = vunpack.c.l.b16 %v669
  %v4217 = vunpack.c.h.b16 %v669
  %v4218 = vunpack.c.l.b16 %v670
  %v4219 = vunpack.c.h.b16 %v670
  %v4220 = vunpack.c.l.b16 %v671
  %v4221 = vunpack.c.h.b16 %v671
  %v4222 = vunpack.c.l.b16 %v672
  %v4223 = vunpack.c.h.b16 %v672
  %v4224 = vunpack.c.l.b16 %v673
  %v4225 = vunpack.c.h.b16 %v673
  %v4226 = vunpack.c.l.b16 %v674
  %v4227 = vunpack.c.h.b16 %v674
  %v4228 = vunpack.c.l.b16 %v675
  %v4229 = vunpack.c.h.b16 %v675
  %v4230 = vunpack.c.l.b16 %v676
  %v4231 = vunpack.c.h.b16 %v676
  %v4232 = vunpack.c.l.b16 %v677
  %v4233 = vunpack.c.h.b16 %v677
  %v4234 = vunpack.c.l.b16 %v678
  %v4235 = vunpack.c.h.b16 %v678
  %v4236 = vunpack.c.l.b16 %v679
  %v4237 = vunpack.c.h.b16 %v679
  %v4238 = vunpack.c.l.b16 %v680
  %v4239 = vunpack.c.h.b16 %v680
  %v4240 = vunpack.c.l.b16 %v681
  %v4241 = vunpack.c.h.b16 %v681
  %v4242 = vunpack.c.l.b16 %v682
  %v4243 = vunpack.c.h.b16 %v682
  %v4244 = vunpack.c.l.b16 %v683
  %v4245 = vunpack.c.h.b16 %v683
  %v4246 = vunpack.c.l.b16 %v684
  %v4247 = vunpack.c.h.b16 %v684
  %v4248 = vunpack.c.l.b16 %v685
  %v4249 = vunpack.c.h.b16 %v685
  %v4250 = vunpack.c.l.b16 %v686
  %v4251 = vunpack.c.h.b16 %v686
  %v4252 = vunpack.c.l.b16 %v687
  %v4253 = vunpack.c.h.b16 %v687
  %v4254 = vunpack.c.l.b16 %v688
  %v4255 = vunpack.c.h.b16 %v688
  %v4256 = vunpack.c.l.b16 %v689
  %v4257 = vunpack.c.h.b16 %v689
  %v4258 = vunpack.c.l.b16 %v690
  %v4259 = vunpack.c.h.b16 %v690
  %v4260 = vunpack.c.l.b16 %v691
  %v4261 = vunpack.c.h.b16 %v691
  %v4262 = vunpack.c.l.b16 %v692
  %v4263 = vunpack.c.h.b16 %v692
  %v4264 = vunpack.c.l.b16 %v693
  %v4265 = vunpack.c.h.b16 %v693
  %v4266 = vunpack.c.l.b16 %v694
  %v4267 = vunpack.c.h.b16 %v694
  %v4268 = vunpack.c.l.b16 %v695
  %v4269 = vunpack.c.h.b16 %v695
  %v4270 = vunpack.c.l.b16 %v696
  %v4271 = vunpack.c.h.b16 %v696
  %v4272 = vunpack.c.l.b16 %v697
  %v4273 = vunpack.c.h.b16 %v697
  %v4274 = vunpack.c.l.b16 %v698
  %v4275 = vunpack.c.h.b16 %v698
  %v4276 = vunpack.c.l.b16 %v699
  %v4277 = vunpack.c.h.b16 %v699
  %v4278 = vunpack.c.l.b16 %v700
  %v4279 = vunpack.c.h.b16 %v700
  %v4280 = vunpack.c.l.b16 %v701
  %v4281 = vunpack.c.h.b16 %v701
  %v4282 = vunpack.c.l.b16 %v702
  %v4283 = vunpack.c.h.b16 %v702
  %v4284 = vunpack.c.l.b16 %v703
  %v4285 = vunpack.c.h.b16 %v703
  %v4286 = vunpack.c.l.b16 %v704
  %v4287 = vunpack.c.h.b16 %v704
  %v4288 = vunpack.c.l.b16 %v705
  %v4289 = vunpack.c.h.b16 %v705
  %v4290 = vunpack.c.l.b16 %v706
  %v4291 = vunpack.c.h.b16 %v706
  %v4292 = vunpack.c.l.b16 %v707
  %v4293 = vunpack.c.h.b16 %v707
  %v4294 = vunpack.c.l.b16 %v708
  %v4295 = vunpack.c.h.b16 %v708
  %v4296 = vunpack.c.l.b16 %v709
  %v4297 = vunpack.c.h.b16 %v709
  %v4298 = vunpack.c.l.b16 %v710
  %v4299 = vunpack.c.h.b16 %v710
  %v4300 = vunpack.c.l.b16 %v711
  %v4301 = vunpack.c.h.b16 %v711
  %v4302 = vunpack.c.l.b16 %v712
  %v4303 = vunpack.c.h.b16 %v712
  %v4304 = vunpack.c.l.b16 %v713
  %v4305 = vunpack.c.h.b16 %v713
  %v4306 = vunpack.c.l.b16 %v714
  %v4307 = vunpack.c.h.b16 %v714
  %v4308 = vunpack.c.l.b16 %v715
  %v4309 = vunpack.c.h.b16 %v715
  %v4310 = vunpack.c.l.b16 %v716
  %v4311 = vunpack.c.h.b16 %v716
  %v4312 = vunpack.c.l.b16 %v717
  %v4313 = vunpack.c.h.b16 %v717
  %v4314 = vunpack.c.l.b16 %v718
  %v4315 = vunpack.c.h.b16 %v718
  %v4316 = vunpack.c.l.b16 %v719
  %v4317 = vunpack.c.h.b16 %v719
  %v4318 = vunpack.c.l.b16 %v720
  %v4319 = vunpack.c.h.b16 %v720
  %v4320 = vunpack.c.l.b16 %v721
  %v4321 = vunpack.c.h.b16 %v721
  %v4322 = vunpack.c.l.b16 %v722
  %v4323 = vunpack.c.h.b16 %v722
  %v4324 = vunpack.c.l.b16 %v723
  %v4325 = vunpack.c.h.b16 %v723
  %v4326 = vunpack.c.l.b16 %v724
  %v4327 = vunpack.c.h.b16 %v724
  %v4328 = vunpack.c.l.b16 %v725
  %v4329 = vunpack.c.h.b16 %v725
  %v4330 = vunpack.c.l.b16 %v726
  %v4331 = vunpack.c.h.b16 %v726
  %v4332 = vunpack.c.l.b16 %v727
  %v4333 = vunpack.c.h.b16 %v727
  %v4334 = vunpack.c.l.b16 %v728
  %v4335 = vunpack.c.h.b16 %v728
  %v4336 = vunpack.c.l.b16 %v729
  %v4337 = vunpack.c.h.b16 %v729
  %v4338 = vunpack.c.l.b16 %v730
  %v4339 = vunpack.c.h.b16 %v730
  %v4340 = vunpack.c.l.b16 %v731
  %v4341 = vunpack.c.h.b16 %v731
  %v4342 = vunpack.c.l.b16 %v732
  %v4343 = vunpack.c.h.b16 %v732
  %v4344 = vunpack.c.l.b16 %v733
  %v4345 = vunpack.c.h.b16 %v733
  %v4346 = vunpack.c.l.b16 %v734
  %v4347 = vunpack.c.h.b16 %v734
  %v4348 = vunpack.c.l.b16 %v735
  %v4349 = vunpack.c.h.b16 %v735
  %v4350 = vunpack.c.l.b16 %v736
  %v4351 = vunpack.c.h.b16 %v736
  %v4352 = vunpack.c.l.b16 %v737
  %v4353 = vunpack.c.h.b16 %v737
  %v4354 = vunpack.c.l.b16 %v738
  %v4355 = vunpack.c.h.b16 %v738
  %v4356 = vunpack.c.l.b16 %v739
  %v4357 = vunpack.c.h.b16 %v739
  %v4358 = vunpack.c.l.b16 %v740
  %v4359 = vunpack.c.h.b16 %v740
  %v4360 = vunpack.c.l.b16 %v741
  %v4361 = vunpack.c.h.b16 %v741
  %v4362 = vunpack.c.l.b16 %v742
  %v4363 = vunpack.c.h.b16 %v742
  %v4364 = vunpack.c.l.b16 %v743
  %v4365 = vunpack.c.h.b16 %v743
  %v4366 = vunpack.c.l.b16 %v744
  %v4367 = vunpack.c.h.b16 %v744
  %v4368 = vunpack.c.l.b16 %v745
  %v4369 = vunpack.c.h.b16 %v745
  %v4370 = vunpack.c.l.b16 %v746
  %v4371 = vunpack.c.h.b16 %v746
  %v4372 = vunpack.c.l.b16 %v747
  %v4373 = vunpack.c.h.b16 %v747
  %v4374 = vunpack.c.l.b16 %v748
  %v4375 = vunpack.c.h.b16 %v748
  %v4376 = vunpack.c.l.b16 %v749
  %v4377 = vunpack.c.h.b16 %v749
  %v4378 = vunpack.c.l.b16 %v750
  %v4379 = vunpack.c.h.b16 %v750
  %v4380 = vunpack.c.l.b16 %v751
  %v4381 = vunpack.c.h.b16 %v751
  %v4382 = vunpack.c.l.b16 %v752
  %v4383 = vunpack.c.h.b16 %v752
  %v4384 = vunpack.c.l.b16 %v753
  %v4385 = vunpack.c.h.b16 %v753
  %v4386 = vunpack.c.l.b16 %v754
  %v4387 = vunpack.c.h.b16 %v754
  %v4388 = vunpack.c.l.b16 %v755
  %v4389 = vunpack.c.h.b16 %v755
  %v4390 = vunpack.c.l.b16 %v756
  %v4391 = vunpack.c.h.b16 %v756
  %v4392 = vunpack.c.l.b16 %v757
  %v4393 = vunpack.c.h.b16 %v757
  %v4394 = vunpack.c.l.b16 %v758
  %v4395 = vunpack.c.h.b16 %v758
  %v4396 = vunpack.c.l.b16 %v759
  %v4397 = vunpack.c.h.b16 %v759
  %v4398 = vunpack.c.l.b16 %v760
  %v4399 = vunpack.c.h.b16 %v760
  %v4400 = vunpack.c.l.b16 %v761
  %v4401 = vunpack.c.h.b16 %v761
  %v4402 = vunpack.c.l.b16 %v762
  %v4403 = vunpack.c.h.b16 %v762
  %v4404 = vunpack.c.l.b16 %v763
  %v4405 = vunpack.c.h.b16 %v763
  %v4406 = vunpack.c.l.b16 %v764
  %v4407 = vunpack.c.h.b16 %v764
  %v4408 = vunpack.c.l.b16 %v765
  %v4409 = vunpack.c.h.b16 %v765
  %v4410 = vunpack.c.l.b16 %v766
  %v4411 = vunpack.c.h.b16 %v766
  %v4412 = vunpack.c.l.b16 %v767
  %v4413 = vunpack.c.h.b16 %v767
  %v4414 = vunpack.c.l.b16 %v768
  %v4415 = vunpack.c.h.b16 %v768
  %v4416 = vunpack.c.l.b16 %v769
  %v4417 = vunpack.c.h.b16 %v769
  %v4418 = vunpack.c.l.b16 %v770
  %v4419 = vunpack.c.h.b16 %v770
  %v4420 = vunpack.c.l.b16 %v771
  %v4421 = vunpack.c.h.b16 %v771
  %v4422 = vunpack.c.l.b16 %v772
  %v4423 = vunpack.c.h.b16 %v772
  %v4424 = vunpack.c.l.b16 %v773
  %v4425 = vunpack.c.h.b16 %v773
  %v4426 = vunpack.c.l.b16 %v774
  %v4427 = vunpack.c.h.b16 %v774
  %v4428 = vunpack.c.l.b16 %v775
  %v4429 = vunpack.c.h.b16 %v775
  %v4430 = vunpack.c.l.b16 %v776
  %v4431 = vunpack.c.h.b16 %v776
  %v4432 = vunpack.c.l.b16 %v777
  %v4433 = vunpack.c.h.b16 %v777
  %v4434 = vunpack.c.l.b16 %v778
  %v4435 = vunpack.c.h.b16 %v778
  %v4436 = vunpack.c.l.b16 %v779
  %v4437 = vunpack.c.h.b16 %v779
  %v4438 = vunpack.c.l.b16 %v780
  %v4439 = vunpack.c.h.b16 %v780
  %v4440 = vunpack.c.l.b16 %v781
  %v4441 = vunpack.c.h.b16 %v781
  %v4442 = vunpack.c.l.b16 %v782
  %v4443 = vunpack.c.h.b16 %v782
  %v4444 = vunpack.c.l.b16 %v783
  %v4445 = vunpack.c.h.b16 %v783
  %v4446 = vunpack.c.l.b16 %v784
  %v4447 = vunpack.c.h.b16 %v784
  %v4448 = vunpack.c.l.b16 %v785
  %v4449 = vunpack.c.h.b16 %v785
  %v4450 = vunpack.c.l.b16 %v786
  %v4451 = vunpack.c.h.b16 %v786
  %v4452 = vunpack.c.l.b16 %v787
  %v4453 = vunpack.c.h.b16 %v787
  %v4454 = vunpack.c.l.b16 %v788
  %v4455 = vunpack.c.h.b16 %v788
  %v4456 = vunpack.c.l.b16 %v789
  %v4457 = vunpack.c.h.b16 %v789
  %v4458 = vunpack.c.l.b16 %v790
  %v4459 = vunpack.c.h.b16 %v790
  %v4460 = vunpack.c.l.b16 %v791
  %v4461 = vunpack.c.h.b16 %v791
  %v4462 = vunpack.c.l.b16 %v792
  %v4463 = vunpack.c.h.b16 %v792
  %v4464 = vunpack.c.l.b16 %v793
  %v4465 = vunpack.c.h.b16 %v793
  %v4466 = vunpack.c.l.b16 %v794
  %v4467 = vunpack.c.h.b16 %v794
  %v4468 = vunpack.c.l.b16 %v795
  %v4469 = vunpack.c.h.b16 %v795
  %v4470 = vunpack.c.l.b16 %v796
  %v4471 = vunpack.c.h.b16 %v796
  %v4472 = vunpack.c.l.b16 %v797
  %v4473 = vunpack.c.h.b16 %v797
  %v4474 = vunpack.c.l.b16 %v798
  %v4475 = vunpack.c.h.b16 %v798
  %v4476 = vunpack.c.l.b16 %v799
  %v4477 = vunpack.c.h.b16 %v799
  %v4478 = vunpack.c.l.b16 %v800
  %v4479 = vunpack.c.h.b16 %v800
  %v4480 = vunpack.c.l.b16 %v801
  %v4481 = vunpack.c.h.b16 %v801
  %v4482 = vunpack.c.l.b16 %v802
  %v4483 = vunpack.c.h.b16 %v802
  %v4484 = vunpack.c.l.b16 %v803
  %v4485 = vunpack.c.h.b16 %v803
  %v4486 = vunpack.c.l.b16 %v804
  %v4487 = vunpack.c.h.b16 %v804
  %v4488 = vunpack.c.l.b16 %v805
  %v4489 = vunpack.c.h.b16 %v805
  %v4490 = vunpack.c.l.b16 %v806
  %v4491 = vunpack.c.h.b16 %v806
  %v4492 = vunpack.c.l.b16 %v807
  %v4493 = vunpack.c.h.b16 %v807
  %v4494 = vunpack.c.l.b16 %v808
  %v4495 = vunpack.c.h.b16 %v808
  %v4496 = vunpack.c.l.b16 %v809
  %v4497 = vunpack.c.h.b16 %v809
  %v4498 = vunpack.c.l.b16 %v810
  %v4499 = vunpack.c.h.b16 %v810
  %v4500 = vunpack.c.l.b16 %v811
  %v4501 = vunpack.c.h.b16 %v811
  %v4502 = vunpack.c.l.b16 %v812
  %v4503 = vunpack.c.h.b16 %v812
  %v4504 = vunpack.c.l.b16 %v813
  %v4505 = vunpack.c.h.b16 %v813
  %v4506 = vunpack.c.l.b16 %v814
  %v4507 = vunpack.c.h.b16 %v814
  %v4508 = vunpack.c.l.b16 %v815
  %v4509 = vunpack.c.h.b16 %v815
  %v4510 = vunpack.c.l.b16 %v816
  %v4511 = vunpack.c.h.b16 %v816
  %v4512 = vunpack.c.l.b16 %v817
  %v4513 = vunpack.c.h.b16 %v817
  %v4514 = vunpack.c.l.b16 %v818
  %v4515 = vunpack.c.h.b16 %v818
  %v4516 = vunpack.c.l.b16 %v819
  %v4517 = vunpack.c.h.b16 %v819
  %v4518 = vunpack.c.l.b16 %v820
  %v4519 = vunpack.c.h.b16 %v820
  %v4520 = vunpack.c.l.b16 %v821
  %v4521 = vunpack.c.h.b16 %v821
  %v4522 = vunpack.c.l.b16 %v822
  %v4523 = vunpack.c.h.b16 %v822
  %v4524 = vunpack.c.l.b16 %v823
  %v4525 = vunpack.c.h.b16 %v823
  %v4526 = vunpack.c.l.b16 %v824
  %v4527 = vunpack.c.h.b16 %v824
  %v4528 = vunpack.c.l.b16 %v825
  %v4529 = vunpack.c.h.b16 %v825
  %v4530 = vunpack.c.l.b16 %v826
  %v4531 = vunpack.c.h.b16 %v826
  %v4532 = vunpack.c.l.b16 %v827
  %v4533 = vunpack.c.h.b16 %v827
  %v4534 = vunpack.c.l.b16 %v828
  %v4535 = vunpack.c.h.b16 %v828
  %v4536 = vunpack.c.l.b16 %v829
  %v4537 = vunpack.c.h.b16 %v829
  %v4538 = vunpack.c.l.b16 %v830
  %v4539 = vunpack.c.h.b16 %v830
  %v4540 = vunpack.c.l.b16 %v831
  %v4541 = vunpack.c.h.b16 %v831
  %v4542 = vunpack.c.l.b16 %v832
  %v4543 = vunpack.c.h.b16 %v832
  %v4544 = vunpack.c.l.b16 %v833
  %v4545 = vunpack.c.h.b16 %v833
  %v4546 = vunpack.c.l.b16 %v834
  %v4547 = vunpack.c.h.b16 %v834
  %v4548 = vunpack.c.l.b16 %v835
  %v4549 = vunpack.c.h.b16 %v835
  %v4550 = vunpack.c.l.b16 %v836
  %v4551 = vunpack.c.h.b16 %v836
  %v4552 = vunpack.c.l.b16 %v837
  %v4553 = vunpack.c.h.b16 %v837
  %v4554 = vunpack.c.l.b16 %v838
  %v4555 = vunpack.c.h.b16 %v838
  %v4556 = vunpack.c.l.b16 %v839
  %v4557 = vunpack.c.h.b16 %v839
  %v4558 = vunpack.c.l.b16 %v840
  %v4559 = vunpack.c.h.b16 %v840
  %v4560 = vunpack.c.l.b16 %v841
  %v4561 = vunpack.c.h.b16 %v841
  %v4562 = vunpack.c.l.b16 %v842
  %v4563 = vunpack.c.h.b16 %v842
  %v4564 = vunpack.c.l.b16 %v843
  %v4565 = vunpack.c.h.b16 %v843
  %v4566 = vunpack.c.l.b16 %v844
  %v4567 = vunpack.c.h.b16 %v844
  %v4568 = vunpack.c.l.b16 %v845
  %v4569 = vunpack.c.h.b16 %v845
  %v4570 = vunpack.c.l.b16 %v846
  %v4571 = vunpack.c.h.b16 %v846
  %v4572 = vunpack.c.l.b16 %v847
  %v4573 = vunpack.c.h.b16 %v847
  %v4574 = vunpack.c.l.b16 %v848
  %v4575 = vunpack.c.h.b16 %v848
  %v4576 = vunpack.c.l.b16 %v849
  %v4577 = vunpack.c.h.b16 %v849
  %v4578 = vunpack.c.l.b16 %v850
  %v4579 = vunpack.c.h.b16 %v850
  %v4580 = vunpack.c.l.b16 %v851
  %v4581 = vunpack.c.h.b16 %v851
  %v4582 = vunpack.c.l.b16 %v852
  %v4583 = vunpack.c.h.b16 %v852
  %v4584 = vunpack.c.l.b16 %v853
  %v4585 = vunpack.c.h.b16 %v853
  %v4586 = vunpack.c.l.b16 %v854
  %v4587 = vunpack.c.h.b16 %v854
  %v4588 = vunpack.c.l.b16 %v855
  %v4589 = vunpack.c.h.b16 %v855
  %v4590 = vunpack.c.l.b16 %v856
  %v4591 = vunpack.c.h.b16 %v856
  %v4592 = vunpack.c.l.b16 %v857
  %v4593 = vunpack.c.h.b16 %v857
  %v4594 = vunpack.c.l.b16 %v858
  %v4595 = vunpack.c.h.b16 %v858
  %v4596 = vunpack.c.l.b16 %v859
  %v4597 = vunpack.c.h.b16 %v859
  %v4598 = vunpack.c.l.b16 %v860
  %v4599 = vunpack.c.h.b16 %v860
  %v4600 = vunpack.c.l.b16 %v861
  %v4601 = vunpack.c.h.b16 %v861
  %v4602 = vunpack.c.l.b16 %v862
  %v4603 = vunpack.c.h.b16 %v862
  %v4604 = vunpack.c.l.b16 %v863
  %v4605 = vunpack.c.h.b16 %v863
  %v4606 = vunpack.c.l.b16 %v864
  %v4607 = vunpack.c.h.b16 %v864
  %v4608 = vunpack.c.l.b16 %v865
  %v4609 = vunpack.c.h.b16 %v865
  %v4610 = vunpack.c.l.b16 %v866
  %v4611 = vunpack.c.h.b16 %v866
  %v4612 = vunpack.c.l.b16 %v867
  %v4613 = vunpack.c.h.b16 %v867
  %v4614 = vunpack.c.l.b16 %v868
  %v4615 = vunpack.c.h.b16 %v868
  %v4616 = vunpack.c.l.b16 %v869
  %v4617 = vunpack.c.h.b16 %v869
  %v4618 = vunpack.c.l.b16 %v870
  %v4619 = vunpack.c.h.b16 %v870
  %v4620 = vunpack.c.l.b16 %v871
  %v4621 = vunpack.c.h.b16 %v871
  %v4622 = vunpack.c.l.b16 %v872
  %v4623 = vunpack.c.h.b16 %v872
  %v4624 = vunpack.c.l.b16 %v873
  %v4625 = vunpack.c.h.b16 %v873
  %v4626 = vunpack.c.l.b16 %v874
  %v4627 = vunpack.c.h.b16 %v874
  %v4628 = vunpack.c.l.b16 %v875
  %v4629 = vunpack.c.h.b16 %v875
  %v4630 = vunpack.c.l.b16 %v876
  %v4631 = vunpack.c.h.b16 %v876
  %v4632 = vunpack.c.l.b16 %v877
  %v4633 = vunpack.c.h.b16 %v877
  %v4634 = vpack.c.b16 %v4060, %v4058
  %v4635 = vpack.c.b16 %v4061, %v4059
  %v4636 = vpack.c.b16 %v4064, %v4062
  %v4637 = vpack.c.b16 %v4065, %v4063
  %v4638 = vpack.c.b16 %v4068, %v4066
  %v4639 = vpack.c.b16 %v4069, %v4067
  %v4640 = vpack.c.b16 %v4072, %v4070
  %v4641 = vpack.c.b16 %v4073, %v4071
  %v4642 = vpack.c.b16 %v4076, %v4074
  %v4643 = vpack.c.b16 %v4077, %v4075
  %v4644 = vpack.c.b16 %v4080, %v4078
  %v4645 = vpack.c.b16 %v4081, %v4079
  %v4646 = vpack.c.b16 %v4084, %v4082
  %v4647 = vpack.c.b16 %v4085, %v4083
  %v4648 = vpack.c.b16 %v4088, %v4086
  %v4649 = vpack.c.b16 %v4089, %v4087
  %v4650 = vpack.c.b16 %v4092, %v4090
  %v4651 = vpack.c.b16 %v4093, %v4091
  %v4652 = vpack.c.b16 %v4096, %v4094
  %v4653 = vpack.c.b16 %v4097, %v4095
  %v4654 = vpack.c.b16 %v4100, %v4098
  %v4655 = vpack.c.b16 %v4101, %v4099
  %v4656 = vpack.c.b16 %v4104, %v4102
  %v4657 = vpack.c.b16 %v4105, %v4103
  %v4658 = vpack.c.b16 %v4108, %v4106
  %v4659 = vpack.c.b16 %v4109, %v4107
  %v4660 = vpack.c.b16 %v4112, %v4110
  %v4661 = vpack.c.b16 %v4113, %v4111
  %v4662 = vpack.c.b16 %v4116, %v4114
  %v4663 = vpack.c.b16 %v4117, %v4115
  %v4664 = vpack.c.b16 %v4120, %v4118
  %v4665 = vpack.c.b16 %v4121, %v4119
  %v4666 = vpack.c.b16 %v4124, %v4122
  %v4667 = vpack.c.b16 %v4125, %v4123
  %v4668 = vpack.c.b16 %v4128, %v4126
  %v4669 = vpack.c.b16 %v4129, %v4127
  %v4670 = vpack.c.b16 %v4132, %v4130
  %v4671 = vpack.c.b16 %v4133, %v4131
  %v4672 = vpack.c.b16 %v4136, %v4134
  %v4673 = vpack.c.b16 %v4137, %v4135
  %v4674 = vpack.c.b16 %v4140, %v4138
  %v4675 = vpack.c.b16 %v4141, %v4139
  %v4676 = vpack.c.b16 %v4144, %v4142
  %v4677 = vpack.c.b16 %v4145, %v4143
  %v4678 = vpack.c.b16 %v4148, %v4146
  %v4679 = vpack.c.b16 %v4149, %v4147
  %v4680 = vpack.c.b16 %v4152, %v4150
  %v4681 = vpack.c.b16 %v4153, %v4151
  %v4682 = vpack.c.b16 %v4156, %v4154
  %v4683 = vpack.c.b16 %v4157, %v4155
  %v4684 = vpack.c.b16 %v4160, %v4158
  %v4685 = vpack.c.b16 %v4161, %v4159
  %v4686 = vpack.c.b16 %v4164, %v4162
  %v4687 = vpack.c.b16 %v4165, %v4163
  %v4688 = vpack.c.b16 %v4168, %v4166
  %v4689 = vpack.c.b16 %v4169, %v4167
  %v4690 = vpack.c.b16 %v4172, %v4170
  %v4691 = vpack.c.b16 %v4173, %v4171
  %v4692 = vpack.c.b16 %v4176, %v4174
  %v4693 = vpack.c.b16 %v4177, %v4175
  %v4694 = vpack.c.b16 %v4180, %v4178
  %v4695 = vpack.c.b16 %v4181, %v4179
  %v4696 = vpack.c.b16 %v4184, %v4182
  %v4697 = vpack.c.b16 %v4185, %v4183
  %v4698 = vpack.c.b16 %v4188, %v4186
  %v4699 = vpack.c.b16 %v4189, %v4187
  %v4700 = vpack.c.b16 %v4192, %v4190
  %v4701 = vpack.c.b16 %v4193, %v4191
  %v4702 = vpack.c.b16 %v4196, %v4194
  %v4703 = vpack.c.b16 %v4197, %v4195
  %v4704 = vpack.c.b16 %v4200, %v4198
  %v4705 = vpack.c.b16 %v4201, %v4199
  %v4706 = vpack.c.b16 %v4204, %v4202
  %v4707 = vpack.c.b16 %v4205, %v4203
  %v4708 = vpack.c.b16 %v4208, %v4206
  %v4709 = vpack.c.b16 %v4209, %v4207
  %v4710 = vpack.c.b16 %v4212, %v4210
  %v4711 = vpack.c.b16 %v4213, %v4211
  %v4712 = vpack.c.b16 %v4216, %v4214
  %v4713 = vpack.c.b16 %v4217, %v4215
  %v4714 = vpack.c.b16 %v4220, %v4218
  %v4715 = vpack.c.b16 %v4221, %v4219
  %v4716 = vpack.c.b16 %v4224, %v4222
  %v4717 = vpack.c.b16 %v4225, %v4223
  %v4718 = vpack.c.b16 %v4228, %v4226
  %v4719 = vpack.c.b16 %v4229, %v4227
  %v4720 = vpack.c.b16 %v4232, %v4230
  %v4721 = vpack.c.b16 %v4233, %v4231
  %v4722 = vpack.c.b16 %v4236, %v4234
  %v4723 = vpack.c.b16 %v4237, %v4235
  %v4724 = vpack.c.b16 %v4240, %v4238
  %v4725 = vpack.c.b16 %v4241, %v4239
  %v4726 = vpack.c.b16 %v4244, %v4242
  %v4727 = vpack.c.b16 %v4245, %v4243
  %v4728 = vpack.c.b16 %v4248, %v4246
  %v4729 = vpack.c.b16 %v4249, %v4247
  %v4730 = vpack.c.b16 %v4252, %v4250
  %v4731 = vpack.c.b16 %v4253, %v4251
  %v4732 = vpack.c.b16 %v4256, %v4254
  %v4733 = vpack.c.b16 %v4257, %v4255
  %v4734 = vpack.c.b16 %v4260, %v4258
  %v4735 = vpack.c.b16 %v4261, %v4259
  %v4736 = vpack.c.b16 %v4264, %v4262
  %v4737 = vpack.c.b16 %v4265, %v4263
  %v4738 = vpack.c.b16 %v4268, %v4266
  %v4739 = vpack.c.b16 %v4269, %v4267
  %v4740 = vpack.c.b16 %v4272, %v4270
  %v4741 = vpack.c.b16 %v4273, %v4271
  %v4742 = vpack.c.b16 %v4276, %v4274
  %v4743 = vpack.c.b16 %v4277, %v4275
  %v4744 = vpack.c.b16 %v4280, %v4278
  %v4745 = vpack.c.b16 %v4281, %v4279
  %v4746 = vpack.c.b16 %v4284, %v4282
  %v4747 = vpack.c.b16 %v4285, %v4283
  %v4748 = vpack.c.b16 %v4288, %v4286
  %v4749 = vpack.c.b16 %v4289, %v4287
  %v4750 = vpack.c.b16 %v4292, %v4290
  %v4751 = vpack.c.b16 %v4293, %v4291
  %v4752 = vpack.c.b16 %v4296, %v4294
  %v4753 = vpack.c.b16 %v4297, %v4295
  %v4754 = vpack.c.b16 %v4300, %v4298
  %v4755 = vpack.c.b16 %v4301, %v4299
  %v4756 = vpack.c.b16 %v4304, %v4302
  %v4757 = vpack.c.b16 %v4305, %v4303
  %v4758 = vpack.c.b16 %v4308, %v4306
  %v4759 = vpack.c.b16 %v4309, %v4307
  %v4760 = vpack.c.b16 %v4312, %v4310
  %v4761 = vpack.c.b16 %v4313, %v4311
  %v4762 = vpack.c.b16 %v4316, %v4314
  %v4763 = vpack.c.b16 %v4317, %v4315
  %v4764 = vpack.c.b16 %v4320, %v4318
  %v4765 = vpack.c.b16 %v4321, %v4319
  %v4766 = vpack.c.b16 %v4324, %v4322
  %v4767 = vpack.c.b16 %v4325, %v4323
  %v4768 = vpack.c.b16 %v4328, %v4326
  %v4769 = vpack.c.b16 %v4329, %v4327
  %v4770 = vpack.c.b16 %v4332, %v4330
  %v4771 = vpack.c.b16 %v4333, %v4331
  %v4772 = vpack.c.b16 %v4336, %v4334
  %v4773 = vpack.c.b16 %v4337, %v4335
  %v4774 = vpack.c.b16 %v4340, %v4338
  %v4775 = vpack.c.b16 %v4341, %v4339
  %v4776 = vpack.c.b16 %v4344, %v4342
  %v4777 = vpack.c.b16 %v4345, %v4343
  %v4778 = vpack.c.b16 %v4348, %v4346
  %v4779 = vpack.c.b16 %v4349, %v4347
  %v4780 = vpack.c.b16 %v4352, %v4350
  %v4781 = vpack.c.b16 %v4353, %v4351
  %v4782 = vpack.c.b16 %v4356, %v4354
  %v4783 = vpack.c.b16 %v4357, %v4355
  %v4784 = vpack.c.b16 %v4360, %v4358
  %v4785 = vpack.c.b16 %v4361, %v4359
  %v4786 = vpack.c.b16 %v4364, %v4362
  %v4787 = vpack.c.b16 %v4365, %v4363
  %v4788 = vpack.c.b16 %v4368, %v4366
  %v4789 = vpack.c.b16 %v4369, %v4367
  %v4790 = vpack.c.b16 %v4372, %v4370
  %v4791 = vpack.c.b16 %v4373, %v4371
  %v4792 = vpack.c.b16 %v4376, %v4374
  %v4793 = vpack.c.b16 %v4377, %v4375
  %v4794 = vpack.c.b16 %v4380, %v4378
  %v4795 = vpack.c.b16 %v4381, %v4379
  %v4796 = vpack.c.b16 %v4384, %v4382
  %v4797 = vpack.c.b16 %v4385, %v4383
  %v4798 = vpack.c.b16 %v4388, %v4386
  %v4799 = vpack.c.b16 %v4389, %v4387
  %v4800 = vpack.c.b16 %v4392, %v4390
  %v4801 = vpack.c.b16 %v4393, %v4391
  %v4802 = vpack.c.b16 %v4396, %v4394
  %v4803 = vpack.c.b16 %v4397, %v4395
  %v4804 = vpack.c.b16 %v4400, %v4398
  %v4805 = vpack.c.b16 %v4401, %v4399
  %v4806 = vpack.c.b16 %v4404, %v4402
  %v4807 = vpack.c.b16 %v4405, %v4403
  %v4808 = vpack.c.b16 %v4408, %v4406
  %v4809 = vpack.c.b16 %v4409, %v4407
  %v4810 = vpack.c.b16 %v4412, %v4410
  %v4811 = vpack.c.b16 %v4413, %v4411
  %v4812 = vpack.c.b16 %v4416, %v4414
  %v4813 = vpack.c.b16 %v4417, %v4415
  %v4814 = vpack.c.b16 %v4420, %v4418
  %v4815 = vpack.c.b16 %v4421, %v4419
  %v4816 = vpack.c.b16 %v4424, %v4422
  %v4817 = vpack.c.b16 %v4425, %v4423
  %v4818 = vpack.c.b16 %v4428, %v4426
  %v4819 = vpack.c.b16 %v4429, %v4427
  %v4820 = vpack.c.b16 %v4432, %v4430
  %v4821 = vpack.c.b16 %v4433, %v4431
  %v4822 = vpack.c.b16 %v4436, %v4434
  %v4823 = vpack.c.b16 %v4437, %v4435
  %v4824 = vpack.c.b16 %v4440, %v4438
  %v4825 = vpack.c.b16 %v4441, %v4439
  %v4826 = vpack.c.b16 %v4444, %v4442
  %v4827 = vpack.c.b16 %v4445, %v4443
  %v4828 = vpack.c.b16 %v4448, %v4446
  %v4829 = vpack.c.b16 %v4449, %v4447
  %v4830 = vpack.c.b16 %v4452, %v4450
  %v4831 = vpack.c.b16 %v4453, %v4451
  %v4832 = vpack.c.b16 %v4456, %v4454
  %v4833 = vpack.c.b16 %v4457, %v4455
  %v4834 = vpack.c.b16 %v4460, %v4458
  %v4835 = vpack.c.b16 %v4461, %v4459
  %v4836 = vpack.c.b16 %v4464, %v4462
  %v4837 = vpack.c.b16 %v4465, %v4463
  %v4838 = vpack.c.b16 %v4468, %v4466
  %v4839 = vpack.c.b16 %v4469, %v4467
  %v4840 = vpack.c.b16 %v4472, %v4470
  %v4841 = vpack.c.b16 %v4473, %v4471
  %v4842 = vpack.c.b16 %v4476, %v4474
  %v4843 = vpack.c.b16 %v4477, %v4475
  %v4844 = vpack.c.b16 %v4480, %v4478
  %v4845 = vpack.c.b16 %v4481, %v4479
  %v4846 = vpack.c.b16 %v4484, %v4482
  %v4847 = vpack.c.b16 %v4485, %v4483
  %v4848 = vpack.c.b16 %v4488, %v4486
  %v4849 = vpack.c.b16 %v4489, %v4487
  %v4850 = vpack.c.b16 %v4492, %v4490
  %v4851 = vpack.c.b16 %v4493, %v4491
  %v4852 = vpack.c.b16 %v4496, %v4494
  %v4853 = vpack.c.b16 %v4497, %v4495
  %v4854 = vpack.c.b16 %v4500, %v4498
  %v4855 = vpack.c.b16 %v4501, %v4499
  %v4856 = vpack.c.b16 %v4504, %v4502
  %v4857 = vpack.c.b16 %v4505, %v4503
  %v4858 = vpack.c.b16 %v4508, %v4506
  %v4859 = vpack.c.b16 %v4509, %v4507
  %v4860 = vpack.c.b16 %v4512, %v4510
  %v4861 = vpack.c.b16 %v4513, %v4511
  %v4862 = vpack.c.b16 %v4516, %v4514
  %v4863 = vpack.c.b16 %v4517, %v4515
  %v4864 = vpack.c.b16 %v4520, %v4518
  %v4865 = vpack.c.b16 %v4521, %v4519
  %v4866 = vpack.c.b16 %v4524, %v4522
  %v4867 = vpack.c.b16 %v4525, %v4523
  %v4868 = vpack.c.b16 %v4528, %v4526
  %v4869 = vpack.c.b16 %v4529, %v4527
  %v4870 = vpack.c.b16 %v4532, %v4530
  %v4871 = vpack.c.b16 %v4533, %v4531
  %v4872 = vpack.c.b16 %v4536, %v4534
  %v4873 = vpack.c.b16 %v4537, %v4535
  %v4874 = vpack.c.b16 %v4540, %v4538
  %v4875 = vpack.c.b16 %v4541, %v4539
  %v4876 = vpack.c.b16 %v4544, %v4542
  %v4877 = vpack.c.b16 %v4545, %v4543
  %v4878 = vpack.c.b16 %v4548, %v4546
  %v4879 = vpack.c.b16 %v4549, %v4547
  %v4880 = vpack.c.b16 %v4552, %v4550
  %v4881 = vpack.c.b16 %v4553, %v4551
  %v4882 = vpack.c.b16 %v4556, %v4554
  %v4883 = vpack.c.b16 %v4557, %v4555
  %v4884 = vpack.c.b16 %v4560, %v4558
  %v4885 = vpack.c.b16 %v4561, %v4559
  %v4886 = vpack.c.b16 %v4564, %v4562
  %v4887 = vpack.c.b16 %v4565, %v4563
  %v4888 = vpack.c.b16 %v4568, %v4566
  %v4889 = vpack.c.b16 %v4569, %v4567
  %v4890 = vpack.c.b16 %v4572, %v4570
  %v4891 = vpack.c.b16 %v4573, %v4571
  %v4892 = vpack.c.b16 %v4576, %v4574
  %v4893 = vpack.c.b16 %v4577, %v4575
  %v4894 = vpack.c.b16 %v4580, %v4578
  %v4895 = vpack.c.b16 %v4581, %v4579
  %v4896 = vpack.c.b16 %v4584, %v4582
  %v4897 = vpack.c.b16 %v4585, %v4583
  %v4898 = vpack.c.b16 %v4588, %v4586
  %v4899 = vpack.c.b16 %v4589, %v4587
  %v4900 = vpack.c.b16 %v4592, %v4590
  %v4901 = vpack.c.b16 %v4593, %v4591
  %v4902 = vpack.c.b16 %v4596, %v4594
  %v4903 = vpack.c.b16 %v4597, %v4595
  %v4904 = vpack.c.b16 %v4600, %v4598
  %v4905 = vpack.c.b16 %v4601, %v4599
  %v4906 = vpack.c.b16 %v4604, %v4602
  %v4907 = vpack.c.b16 %v4605, %v4603
  %v4908 = vpack.c.b16 %v4608, %v4606
  %v4909 = vpack.c.b16 %v4609, %v4607
  %v4910 = vpack.c.b16 %v4612, %v4610
  %v4911 = vpack.c.b16 %v4613, %v4611
  %v4912 = vpack.c.b16 %v4616, %v4614
  %v4913 = vpack.c.b16 %v4617, %v4615
  %v4914 = vpack.c.b16 %v4620, %v4618
  %v4915 = vpack.c.b16 %v4621, %v4619
  %v4916 = vpack.c.b16 %v4624, %v4622
  %v4917 = vpack.c.b16 %v4625, %v4623
  %v4918 = vpack.c.b16 %v4628, %v4626
  %v4919 = vpack.c.b16 %v4629, %v4627
  %v4920 = vpack.c.b16 %v4632, %v4630
  %v4921 = vpack.c.b16 %v4633, %v4631
  %5210 = vmatprep.subr.bf16.mxu0 %v4635
  %5211 = vmatpush1.bf16.msra.mxu0 %v4634
  %5212 = vmatprep.subr.bf16.mxu0 %v4637
  %5213 = vmatpush1.bf16.msra.mxu0 %v4636
  %5214 = vmatprep.subr.bf16.mxu0 %v4639
  %5215 = vmatpush1.bf16.msra.mxu0 %v4638
  %5216 = vmatprep.subr.bf16.mxu0 %v4641
  %5217 = vmatpush1.bf16.msra.mxu0 %v4640
  %5218 = vmatprep.subr.bf16.mxu0 %v4643
  %5219 = vmatpush1.bf16.msra.mxu0 %v4642
  %5220 = vmatprep.subr.bf16.mxu0 %v4645
  %5221 = vmatpush1.bf16.msra.mxu0 %v4644
  %5222 = vmatprep.subr.bf16.mxu0 %v4647
  %5223 = vmatpush1.bf16.msra.mxu0 %v4646
  %5224 = vmatprep.subr.bf16.mxu0 %v4649
  %5225 = vmatpush1.bf16.msra.mxu0 %v4648
  %5226 = vmatprep.subr.bf16.mxu0 %v4651
  %5227 = vmatpush1.bf16.msra.mxu0 %v4650
  %5228 = vmatprep.subr.bf16.mxu0 %v4653
  %5229 = vmatpush1.bf16.msra.mxu0 %v4652
  %5230 = vmatprep.subr.bf16.mxu0 %v4655
  %5231 = vmatpush1.bf16.msra.mxu0 %v4654
  %5232 = vmatprep.subr.bf16.mxu0 %v4657
  %5233 = vmatpush1.bf16.msra.mxu0 %v4656
  %5234 = vmatprep.subr.bf16.mxu0 %v4659
  %5235 = vmatpush1.bf16.msra.mxu0 %v4658
  %5236 = vmatprep.subr.bf16.mxu0 %v4661
  %5237 = vmatpush1.bf16.msra.mxu0 %v4660
  %5238 = vmatprep.subr.bf16.mxu0 %v4663
  %5239 = vmatpush1.bf16.msra.mxu0 %v4662
  %5240 = vmatprep.subr.bf16.mxu0 %v4665
  %5241 = vmatpush1.bf16.msra.mxu0 %v4664
  %5242 = vmatprep.mubr.bf16.mxu0 %v2619
  %5243 = vmatmul.mubr.bf16.gmra.mrb[0].mxu0 %v2618
  %v5244 = vpop.f32.mrb[0].mxu0
  %v5245 = vadd.f32 %v883, %v5244
  %v5246 = vpop.f32.mrb[0].mxu0
  %v5247 = vadd.f32 %v887, %v5246
  %v5248 = vpop.f32.mrb[0].mxu0
  %v5249 = vadd.f32 %v883, %v5248
  %v5250 = vpop.f32.mrb[0].mxu0
  %v5251 = vadd.f32 %v887, %v5250
  %5252 = vmatprep.mubr.bf16.mxu0 %v2637
  %5253 = vmatmul.mubr.bf16.gmra.mrb[0].mxu0 %v2636
  %v5254 = vpop.f32.mrb[0].mxu0
  %v5255 = vadd.f32 %v883, %v5254
  %v5256 = vpop.f32.mrb[0].mxu0
  %v5257 = vadd.f32 %v887, %v5256
  %v5258 = vpop.f32.mrb[0].mxu0
  %v5259 = vadd.f32 %v883, %v5258
  %v5260 = vpop.f32.mrb[0].mxu0
  %v5261 = vadd.f32 %v887, %v5260
  %5262 = vmatprep.mubr.bf16.mxu0 %v2655
  %5263 = vmatmul.mubr.bf16.gmra.mrb[0].mxu0 %v2654
  %v5264 = vpop.f32.mrb[0].mxu0
  %v5265 = vadd.f32 %v883, %v5264
  %v5266 = vpop.f32.mrb[0].mxu0
  %v5267 = vadd.f32 %v887, %v5266
  %v5268 = vpop.f32.mrb[0].mxu0
  %v5269 = vadd.f32 %v883, %v5268
  %v5270 = vpop.f32.mrb[0].mxu0
  %v5271 = vadd.f32 %v887, %v5270
  %5272 = vmatprep.mubr.bf16.mxu0 %v2673
  %5273 = vmatmul.mubr.bf16.gmra.mrb[0].mxu0 %v2672
  %v5274 = vpop.f32.mrb[0].mxu0
  %v5275 = vadd.f32 %v883, %v5274
  %v5276 = vpop.f32.mrb[0].mxu0
  %v5277 = vadd.f32 %v887, %v5276
  %v5278 = vpop.f32.mrb[0].mxu0
  %v5279 = vadd.f32 %v883, %v5278
  %v5280 = vpop.f32.mrb[0].mxu0
  %v5281 = vadd.f32 %v887, %v5280
  %5282 = vmatprep.mubr.bf16.mxu0 %v2691
  %5283 = vmatmul.mubr.bf16.gmra.mrb[0].mxu0 %v2690
  %v5284 = vpop.f32.mrb[0].mxu0
  %v5285 = vadd.f32 %v883, %v5284
  %v5286 = vpop.f32.mrb[0].mxu0
  %v5287 = vadd.f32 %v887, %v5286
  %v5288 = vpop.f32.mrb[0].mxu0
  %v5289 = vadd.f32 %v883, %v5288
  %v5290 = vpop.f32.mrb[0].mxu0
  %v5291 = vadd.f32 %v887, %v5290
  %5292 = vmatprep.mubr.bf16.mxu0 %v2709
  %5293 = vmatmul.mubr.bf16.gmra.mrb[0].mxu0 %v2708
  %v5294 = vpop.f32.mrb[0].mxu0
  %v5295 = vadd.f32 %v883, %v5294
  %v5296 = vpop.f32.mrb[0].mxu0
  %v5297 = vadd.f32 %v887, %v5296
  %v5298 = vpop.f32.mrb[0].mxu0
  %v5299 = vadd.f32 %v883, %v5298
  %v5300 = vpop.f32.mrb[0].mxu0
  %v5301 = vadd.f32 %v887, %v5300
  %5302 = vmatprep.mubr.bf16.mxu0 %v2727
  %5303 = vmatmul.mubr.bf16.gmra.mrb[0].mxu0 %v2726
  %v5304 = vpop.f32.mrb[0].mxu0
  %v5305 = vadd.f32 %v883, %v5304
  %v5306 = vpop.f32.mrb[0].mxu0
  %v5307 = vadd.f32 %v887, %v5306
  %v5308 = vpop.f32.mrb[0].mxu0
  %v5309 = vadd.f32 %v883, %v5308
  %v5310 = vpop.f32.mrb[0].mxu0
  %v5311 = vadd.f32 %v887, %v5310
  %5312 = vmatprep.mubr.bf16.mxu0 %v2745
  %5313 = vmatmul.mubr.bf16.gmra.mrb[0].mxu0 %v2744
  %v5314 = vpop.f32.mrb[0].mxu0
  %v5315 = vadd.f32 %v883, %v5314
  %v5316 = vpop.f32.mrb[0].mxu0
  %v5317 = vadd.f32 %v887, %v5316
  %v5318 = vpop.f32.mrb[0].mxu0
  %v5319 = vadd.f32 %v883, %v5318
  %v5320 = vpop.f32.mrb[0].mxu0
  %v5321 = vadd.f32 %v887, %v5320
  %5322 = vmatprep.mubr.bf16.mxu0 %v2763
  %5323 = vmatmul.mubr.bf16.gmra.mrb[0].mxu0 %v2762
  %v5324 = vpop.f32.mrb[0].mxu0
  %v5325 = vadd.f32 %v883, %v5324
  %v5326 = vpop.f32.mrb[0].mxu0
  %v5327 = vadd.f32 %v887, %v5326
  %v5328 = vpop.f32.mrb[0].mxu0
  %v5329 = vadd.f32 %v883, %v5328
  %v5330 = vpop.f32.mrb[0].mxu0
  %v5331 = vadd.f32 %v887, %v5330
  %5332 = vmatprep.mubr.bf16.mxu0 %v2781
  %5333 = vmatmul.mubr.bf16.gmra.mrb[0].mxu0 %v2780
  %v5334 = vpop.f32.mrb[0].mxu0
  %v5335 = vadd.f32 %v883, %v5334
  %v5336 = vpop.f32.mrb[0].mxu0
  %v5337 = vadd.f32 %v887, %v5336
  %v5338 = vpop.f32.mrb[0].mxu0
  %v5339 = vadd.f32 %v883, %v5338
  %v5340 = vpop.f32.mrb[0].mxu0
  %v5341 = vadd.f32 %v887, %v5340
  %5342 = vmatprep.mubr.bf16.mxu0 %v2799
  %5343 = vmatmul.mubr.bf16.gmra.mrb[0].mxu0 %v2798
  %v5344 = vpop.f32.mrb[0].mxu0
  %v5345 = vadd.f32 %v883, %v5344
  %v5346 = vpop.f32.mrb[0].mxu0
  %v5347 = vadd.f32 %v887, %v5346
  %v5348 = vpop.f32.mrb[0].mxu0
  %v5349 = vadd.f32 %v883, %v5348
  %v5350 = vpop.f32.mrb[0].mxu0
  %v5351 = vadd.f32 %v887, %v5350
  %5352 = vmatprep.mubr.bf16.mxu0 %v2817
  %5353 = vmatmul.mubr.bf16.gmra.mrb[0].mxu0 %v2816
  %v5354 = vpop.f32.mrb[0].mxu0
  %v5355 = vadd.f32 %v883, %v5354
  %v5356 = vpop.f32.mrb[0].mxu0
  %v5357 = vadd.f32 %v887, %v5356
  %v5358 = vpop.f32.mrb[0].mxu0
  %v5359 = vadd.f32 %v883, %v5358
  %v5360 = vpop.f32.mrb[0].mxu0
  %v5361 = vadd.f32 %v887, %v5360
  %5362 = vmatprep.mubr.bf16.mxu0 %v2835
  %5363 = vmatmul.mubr.bf16.gmra.mrb[0].mxu0 %v2834
  %v5364 = vpop.f32.mrb[0].mxu0
  %v5365 = vadd.f32 %v883, %v5364
  %v5366 = vpop.f32.mrb[0].mxu0
  %v5367 = vadd.f32 %v887, %v5366
  %v5368 = vpop.f32.mrb[0].mxu0
  %v5369 = vadd.f32 %v883, %v5368
  %v5370 = vpop.f32.mrb[0].mxu0
  %v5371 = vadd.f32 %v887, %v5370
  %5372 = vmatprep.mubr.bf16.mxu0 %v2853
  %5373 = vmatmul.mubr.bf16.gmra.mrb[0].mxu0 %v2852
  %v5374 = vpop.f32.mrb[0].mxu0
  %v5375 = vadd.f32 %v883, %v5374
  %v5376 = vpop.f32.mrb[0].mxu0
  %v5377 = vadd.f32 %v887, %v5376
  %v5378 = vpop.f32.mrb[0].mxu0
  %v5379 = vadd.f32 %v883, %v5378
  %v5380 = vpop.f32.mrb[0].mxu0
  %v5381 = vadd.f32 %v887, %v5380
  %5382 = vmatprep.mubr.bf16.mxu0 %v2871
  %5383 = vmatmul.mubr.bf16.gmra.mrb[0].mxu0 %v2870
  %v5384 = vpop.f32.mrb[0].mxu0
  %v5385 = vadd.f32 %v883, %v5384
  %v5386 = vpop.f32.mrb[0].mxu0
  %v5387 = vadd.f32 %v887, %v5386
  %v5388 = vpop.f32.mrb[0].mxu0
  %v5389 = vadd.f32 %v883, %v5388
  %v5390 = vpop.f32.mrb[0].mxu0
  %v5391 = vadd.f32 %v887, %v5390
  %5392 = vmatprep.mubr.bf16.mxu0 %v2889
  %5393 = vmatmul.mubr.bf16.gmra.mrb[0].mxu0 %v2888
  %v5394 = vpop.f32.mrb[0].mxu0
  %v5395 = vadd.f32 %v883, %v5394
  %v5396 = vpop.f32.mrb[0].mxu0
  %v5397 = vadd.f32 %v887, %v5396
  %v5398 = vpop.f32.mrb[0].mxu0
  %v5399 = vadd.f32 %v883, %v5398
  %v5400 = vpop.f32.mrb[0].mxu0
  %v5401 = vadd.f32 %v887, %v5400
  %5402 = vmatprep.mubr.bf16.mxu0 %v2907
  %5403 = vmatmul.mubr.bf16.gmra.mrb[0].mxu0 %v2906
  %v5404 = vpop.f32.mrb[0].mxu0
  %v5405 = vadd.f32 %v883, %v5404
  %v5406 = vpop.f32.mrb[0].mxu0
  %v5407 = vadd.f32 %v887, %v5406
  %v5408 = vpop.f32.mrb[0].mxu0
  %v5409 = vadd.f32 %v883, %v5408
  %v5410 = vpop.f32.mrb[0].mxu0
  %v5411 = vadd.f32 %v887, %v5410
  %5412 = vmatprep.mubr.bf16.mxu0 %v2925
  %5413 = vmatmul.mubr.bf16.gmra.mrb[0].mxu0 %v2924
  %v5414 = vpop.f32.mrb[0].mxu0
  %v5415 = vadd.f32 %v883, %v5414
  %v5416 = vpop.f32.mrb[0].mxu0
  %v5417 = vadd.f32 %v887, %v5416
  %v5418 = vpop.f32.mrb[0].mxu0
  %v5419 = vadd.f32 %v883, %v5418
  %v5420 = vpop.f32.mrb[0].mxu0
  %v5421 = vadd.f32 %v887, %v5420
  %5422 = vmatprep.mubr.bf16.mxu0 %v2943
  %5423 = vmatmul.mubr.bf16.gmra.mrb[0].mxu0 %v2942
  %v5424 = vpop.f32.mrb[0].mxu0
  %v5425 = vadd.f32 %v883, %v5424
  %v5426 = vpop.f32.mrb[0].mxu0
  %v5427 = vadd.f32 %v887, %v5426
  %v5428 = vpop.f32.mrb[0].mxu0
  %v5429 = vadd.f32 %v883, %v5428
  %v5430 = vpop.f32.mrb[0].mxu0
  %v5431 = vadd.f32 %v887, %v5430
  %5432 = vmatprep.mubr.bf16.mxu0 %v2961
  %5433 = vmatmul.mubr.bf16.gmra.mrb[0].mxu0 %v2960
  %v5434 = vpop.f32.mrb[0].mxu0
  %v5435 = vadd.f32 %v883, %v5434
  %v5436 = vpop.f32.mrb[0].mxu0
  %v5437 = vadd.f32 %v887, %v5436
  %v5438 = vpop.f32.mrb[0].mxu0
  %v5439 = vadd.f32 %v883, %v5438
  %v5440 = vpop.f32.mrb[0].mxu0
  %v5441 = vadd.f32 %v887, %v5440
  %5442 = vmatprep.mubr.bf16.mxu0 %v2979
  %5443 = vmatmul.mubr.bf16.gmra.mrb[0].mxu0 %v2978
  %v5444 = vpop.f32.mrb[0].mxu0
  %v5445 = vadd.f32 %v883, %v5444
  %v5446 = vpop.f32.mrb[0].mxu0
  %v5447 = vadd.f32 %v887, %v5446
  %v5448 = vpop.f32.mrb[0].mxu0
  %v5449 = vadd.f32 %v883, %v5448
  %v5450 = vpop.f32.mrb[0].mxu0
  %v5451 = vadd.f32 %v887, %v5450
  %5452 = vmatprep.mubr.bf16.mxu0 %v2997
  %5453 = vmatmul.mubr.bf16.gmra.mrb[0].mxu0 %v2996
  %v5454 = vpop.f32.mrb[0].mxu0
  %v5455 = vadd.f32 %v883, %v5454
  %v5456 = vpop.f32.mrb[0].mxu0
  %v5457 = vadd.f32 %v887, %v5456
  %v5458 = vpop.f32.mrb[0].mxu0
  %v5459 = vadd.f32 %v883, %v5458
  %v5460 = vpop.f32.mrb[0].mxu0
  %v5461 = vadd.f32 %v887, %v5460
  %5462 = vmatprep.mubr.bf16.mxu0 %v3015
  %5463 = vmatmul.mubr.bf16.gmra.mrb[0].mxu0 %v3014
  %v5464 = vpop.f32.mrb[0].mxu0
  %v5465 = vadd.f32 %v883, %v5464
  %v5466 = vpop.f32.mrb[0].mxu0
  %v5467 = vadd.f32 %v887, %v5466
  %v5468 = vpop.f32.mrb[0].mxu0
  %v5469 = vadd.f32 %v883, %v5468
  %v5470 = vpop.f32.mrb[0].mxu0
  %v5471 = vadd.f32 %v887, %v5470
  %5472 = vmatprep.mubr.bf16.mxu0 %v3033
  %5473 = vmatmul.mubr.bf16.gmra.mrb[0].mxu0 %v3032
  %v5474 = vpop.f32.mrb[0].mxu0
  %v5475 = vadd.f32 %v883, %v5474
  %v5476 = vpop.f32.mrb[0].mxu0
  %v5477 = vadd.f32 %v887, %v5476
  %v5478 = vpop.f32.mrb[0].mxu0
  %v5479 = vadd.f32 %v883, %v5478
  %v5480 = vpop.f32.mrb[0].mxu0
  %v5481 = vadd.f32 %v887, %v5480
  %5482 = vmatprep.mubr.bf16.mxu0 %v3051
  %5483 = vmatmul.mubr.bf16.gmra.mrb[0].mxu0 %v3050
  %v5484 = vpop.f32.mrb[0].mxu0
  %v5485 = vadd.f32 %v883, %v5484
  %v5486 = vpop.f32.mrb[0].mxu0
  %v5487 = vadd.f32 %v887, %v5486
  %v5488 = vpop.f32.mrb[0].mxu0
  %v5489 = vadd.f32 %v883, %v5488
  %v5490 = vpop.f32.mrb[0].mxu0
  %v5491 = vadd.f32 %v887, %v5490
  %5492 = vmatprep.mubr.bf16.mxu0 %v3069
  %5493 = vmatmul.mubr.bf16.gmra.mrb[0].mxu0 %v3068
  %v5494 = vpop.f32.mrb[0].mxu0
  %v5495 = vadd.f32 %v883, %v5494
  %v5496 = vpop.f32.mrb[0].mxu0
  %v5497 = vadd.f32 %v887, %v5496
  %v5498 = vpop.f32.mrb[0].mxu0
  %v5499 = vadd.f32 %v883, %v5498
  %v5500 = vpop.f32.mrb[0].mxu0
  %v5501 = vadd.f32 %v887, %v5500
  %5502 = vmatprep.mubr.bf16.mxu0 %v3087
  %5503 = vmatmul.mubr.bf16.gmra.mrb[0].mxu0 %v3086
  %v5504 = vpop.f32.mrb[0].mxu0
  %v5505 = vadd.f32 %v883, %v5504
  %v5506 = vpop.f32.mrb[0].mxu0
  %v5507 = vadd.f32 %v887, %v5506
  %v5508 = vpop.f32.mrb[0].mxu0
  %v5509 = vadd.f32 %v883, %v5508
  %v5510 = vpop.f32.mrb[0].mxu0
  %v5511 = vadd.f32 %v887, %v5510
  %5512 = vmatprep.mubr.bf16.mxu0 %v3105
  %5513 = vmatmul.mubr.bf16.gmra.mrb[0].mxu0 %v3104
  %v5514 = vpop.f32.mrb[0].mxu0
  %v5515 = vadd.f32 %v883, %v5514
  %v5516 = vpop.f32.mrb[0].mxu0
  %v5517 = vadd.f32 %v887, %v5516
  %v5518 = vpop.f32.mrb[0].mxu0
  %v5519 = vadd.f32 %v883, %v5518
  %v5520 = vpop.f32.mrb[0].mxu0
  %v5521 = vadd.f32 %v887, %v5520
  %5522 = vmatprep.mubr.bf16.mxu0 %v3123
  %5523 = vmatmul.mubr.bf16.gmra.mrb[0].mxu0 %v3122
  %v5524 = vpop.f32.mrb[0].mxu0
  %v5525 = vadd.f32 %v883, %v5524
  %v5526 = vpop.f32.mrb[0].mxu0
  %v5527 = vadd.f32 %v887, %v5526
  %v5528 = vpop.f32.mrb[0].mxu0
  %v5529 = vadd.f32 %v883, %v5528
  %v5530 = vpop.f32.mrb[0].mxu0
  %v5531 = vadd.f32 %v887, %v5530
  %5532 = vmatprep.mubr.bf16.mxu0 %v3141
  %5533 = vmatmul.mubr.bf16.gmra.mrb[0].mxu0 %v3140
  %v5534 = vpop.f32.mrb[0].mxu0
  %v5535 = vadd.f32 %v883, %v5534
  %v5536 = vpop.f32.mrb[0].mxu0
  %v5537 = vadd.f32 %v887, %v5536
  %v5538 = vpop.f32.mrb[0].mxu0
  %v5539 = vadd.f32 %v883, %v5538
  %v5540 = vpop.f32.mrb[0].mxu0
  %v5541 = vadd.f32 %v887, %v5540
  %5542 = vmatprep.mubr.bf16.mxu0 %v3159
  %5543 = vmatmul.mubr.bf16.gmra.mrb[0].mxu0 %v3158
  %v5544 = vpop.f32.mrb[0].mxu0
  %v5545 = vadd.f32 %v883, %v5544
  %v5546 = vpop.f32.mrb[0].mxu0
  %v5547 = vadd.f32 %v887, %v5546
  %v5548 = vpop.f32.mrb[0].mxu0
  %v5549 = vadd.f32 %v883, %v5548
  %v5550 = vpop.f32.mrb[0].mxu0
  %v5551 = vadd.f32 %v887, %v5550
  %5552 = vmatprep.mubr.bf16.mxu0 %v3177
  %5553 = vmatmul.mubr.bf16.gmra.mrb[0].mxu0 %v3176
  %v5554 = vpop.f32.mrb[0].mxu0
  %v5555 = vadd.f32 %v883, %v5554
  %v5556 = vpop.f32.mrb[0].mxu0
  %v5557 = vadd.f32 %v887, %v5556
  %v5558 = vpop.f32.mrb[0].mxu0
  %v5559 = vadd.f32 %v883, %v5558
  %v5560 = vpop.f32.mrb[0].mxu0
  %v5561 = vadd.f32 %v887, %v5560
  %5562 = vdwg.mxu0
  %5563 = vmatprep.subr.bf16.mxu0 %v4667
  %5564 = vmatpush1.bf16.msra.mxu0 %v4666
  %5565 = vmatprep.subr.bf16.mxu0 %v4669
  %5566 = vmatpush1.bf16.msra.mxu0 %v4668
  %5567 = vmatprep.subr.bf16.mxu0 %v4671
  %5568 = vmatpush1.bf16.msra.mxu0 %v4670
  %5569 = vmatprep.subr.bf16.mxu0 %v4673
  %5570 = vmatpush1.bf16.msra.mxu0 %v4672
  %5571 = vmatprep.subr.bf16.mxu0 %v4675
  %5572 = vmatpush1.bf16.msra.mxu0 %v4674
  %5573 = vmatprep.subr.bf16.mxu0 %v4677
  %5574 = vmatpush1.bf16.msra.mxu0 %v4676
  %5575 = vmatprep.subr.bf16.mxu0 %v4679
  %5576 = vmatpush1.bf16.msra.mxu0 %v4678
  %5577 = vmatprep.subr.bf16.mxu0 %v4681
  %5578 = vmatpush1.bf16.msra.mxu0 %v4680
  %5579 = vmatprep.subr.bf16.mxu0 %v4683
  %5580 = vmatpush1.bf16.msra.mxu0 %v4682
  %5581 = vmatprep.subr.bf16.mxu0 %v4685
  %5582 = vmatpush1.bf16.msra.mxu0 %v4684
  %5583 = vmatprep.subr.bf16.mxu0 %v4687
  %5584 = vmatpush1.bf16.msra.mxu0 %v4686
  %5585 = vmatprep.subr.bf16.mxu0 %v4689
  %5586 = vmatpush1.bf16.msra.mxu0 %v4688
  %5587 = vmatprep.subr.bf16.mxu0 %v4691
  %5588 = vmatpush1.bf16.msra.mxu0 %v4690
  %5589 = vmatprep.subr.bf16.mxu0 %v4693
  %5590 = vmatpush1.bf16.msra.mxu0 %v4692
  %5591 = vmatprep.subr.bf16.mxu0 %v4695
  %5592 = vmatpush1.bf16.msra.mxu0 %v4694
  %5593 = vmatprep.subr.bf16.mxu0 %v4697
  %5594 = vmatpush1.bf16.msra.mxu0 %v4696
  %5595 = vmatprep.mubr.bf16.mxu0 %v2621
  %5596 = vmatmul.mubr.bf16.gmra.mrb[0].mxu0 %v2620
  %v5597 = vpop.f32.mrb[0].mxu0
  %v5598 = vadd.f32 %v5245, %v5597
  %v5599 = vpop.f32.mrb[0].mxu0
  %v5600 = vadd.f32 %v5247, %v5599
  %v5601 = vpop.f32.mrb[0].mxu0
  %v5602 = vadd.f32 %v5249, %v5601
  %v5603 = vpop.f32.mrb[0].mxu0
  %v5604 = vadd.f32 %v5251, %v5603
  %5605 = vmatprep.mubr.bf16.mxu0 %v2639
  %5606 = vmatmul.mubr.bf16.gmra.mrb[0].mxu0 %v2638
  %v5607 = vpop.f32.mrb[0].mxu0
  %v5608 = vadd.f32 %v5255, %v5607
  %v5609 = vpop.f32.mrb[0].mxu0
  %v5610 = vadd.f32 %v5257, %v5609
  %v5611 = vpop.f32.mrb[0].mxu0
  %v5612 = vadd.f32 %v5259, %v5611
  %v5613 = vpop.f32.mrb[0].mxu0
  %v5614 = vadd.f32 %v5261, %v5613
  %5615 = vmatprep.mubr.bf16.mxu0 %v2657
  %5616 = vmatmul.mubr.bf16.gmra.mrb[0].mxu0 %v2656
  %v5617 = vpop.f32.mrb[0].mxu0
  %v5618 = vadd.f32 %v5265, %v5617
  %v5619 = vpop.f32.mrb[0].mxu0
  %v5620 = vadd.f32 %v5267, %v5619
  %v5621 = vpop.f32.mrb[0].mxu0
  %v5622 = vadd.f32 %v5269, %v5621
  %v5623 = vpop.f32.mrb[0].mxu0
  %v5624 = vadd.f32 %v5271, %v5623
  %5625 = vmatprep.mubr.bf16.mxu0 %v2675
  %5626 = vmatmul.mubr.bf16.gmra.mrb[0].mxu0 %v2674
  %v5627 = vpop.f32.mrb[0].mxu0
  %v5628 = vadd.f32 %v5275, %v5627
  %v5629 = vpop.f32.mrb[0].mxu0
  %v5630 = vadd.f32 %v5277, %v5629
  %v5631 = vpop.f32.mrb[0].mxu0
  %v5632 = vadd.f32 %v5279, %v5631
  %v5633 = vpop.f32.mrb[0].mxu0
  %v5634 = vadd.f32 %v5281, %v5633
  %5635 = vmatprep.mubr.bf16.mxu0 %v2693
  %5636 = vmatmul.mubr.bf16.gmra.mrb[0].mxu0 %v2692
  %v5637 = vpop.f32.mrb[0].mxu0
  %v5638 = vadd.f32 %v5285, %v5637
  %v5639 = vpop.f32.mrb[0].mxu0
  %v5640 = vadd.f32 %v5287, %v5639
  %v5641 = vpop.f32.mrb[0].mxu0
  %v5642 = vadd.f32 %v5289, %v5641
  %v5643 = vpop.f32.mrb[0].mxu0
  %v5644 = vadd.f32 %v5291, %v5643
  %5645 = vmatprep.mubr.bf16.mxu0 %v2711
  %5646 = vmatmul.mubr.bf16.gmra.mrb[0].mxu0 %v2710
  %v5647 = vpop.f32.mrb[0].mxu0
  %v5648 = vadd.f32 %v5295, %v5647
  %v5649 = vpop.f32.mrb[0].mxu0
  %v5650 = vadd.f32 %v5297, %v5649
  %v5651 = vpop.f32.mrb[0].mxu0
  %v5652 = vadd.f32 %v5299, %v5651
  %v5653 = vpop.f32.mrb[0].mxu0
  %v5654 = vadd.f32 %v5301, %v5653
  %5655 = vmatprep.mubr.bf16.mxu0 %v2729
  %5656 = vmatmul.mubr.bf16.gmra.mrb[0].mxu0 %v2728
  %v5657 = vpop.f32.mrb[0].mxu0
  %v5658 = vadd.f32 %v5305, %v5657
  %v5659 = vpop.f32.mrb[0].mxu0
  %v5660 = vadd.f32 %v5307, %v5659
  %v5661 = vpop.f32.mrb[0].mxu0
  %v5662 = vadd.f32 %v5309, %v5661
  %v5663 = vpop.f32.mrb[0].mxu0
  %v5664 = vadd.f32 %v5311, %v5663
  %5665 = vmatprep.mubr.bf16.mxu0 %v2747
  %5666 = vmatmul.mubr.bf16.gmra.mrb[0].mxu0 %v2746
  %v5667 = vpop.f32.mrb[0].mxu0
  %v5668 = vadd.f32 %v5315, %v5667
  %v5669 = vpop.f32.mrb[0].mxu0
  %v5670 = vadd.f32 %v5317, %v5669
  %v5671 = vpop.f32.mrb[0].mxu0
  %v5672 = vadd.f32 %v5319, %v5671
  %v5673 = vpop.f32.mrb[0].mxu0
  %v5674 = vadd.f32 %v5321, %v5673
  %5675 = vmatprep.mubr.bf16.mxu0 %v2765
  %5676 = vmatmul.mubr.bf16.gmra.mrb[0].mxu0 %v2764
  %v5677 = vpop.f32.mrb[0].mxu0
  %v5678 = vadd.f32 %v5325, %v5677
  %v5679 = vpop.f32.mrb[0].mxu0
  %v5680 = vadd.f32 %v5327, %v5679
  %v5681 = vpop.f32.mrb[0].mxu0
  %v5682 = vadd.f32 %v5329, %v5681
  %v5683 = vpop.f32.mrb[0].mxu0
  %v5684 = vadd.f32 %v5331, %v5683
  %5685 = vmatprep.mubr.bf16.mxu0 %v2783
  %5686 = vmatmul.mubr.bf16.gmra.mrb[0].mxu0 %v2782
  %v5687 = vpop.f32.mrb[0].mxu0
  %v5688 = vadd.f32 %v5335, %v5687
  %v5689 = vpop.f32.mrb[0].mxu0
  %v5690 = vadd.f32 %v5337, %v5689
  %v5691 = vpop.f32.mrb[0].mxu0
  %v5692 = vadd.f32 %v5339, %v5691
  %v5693 = vpop.f32.mrb[0].mxu0
  %v5694 = vadd.f32 %v5341, %v5693
  %5695 = vmatprep.mubr.bf16.mxu0 %v2801
  %5696 = vmatmul.mubr.bf16.gmra.mrb[0].mxu0 %v2800
  %v5697 = vpop.f32.mrb[0].mxu0
  %v5698 = vadd.f32 %v5345, %v5697
  %v5699 = vpop.f32.mrb[0].mxu0
  %v5700 = vadd.f32 %v5347, %v5699
  %v5701 = vpop.f32.mrb[0].mxu0
  %v5702 = vadd.f32 %v5349, %v5701
  %v5703 = vpop.f32.mrb[0].mxu0
  %v5704 = vadd.f32 %v5351, %v5703
  %5705 = vmatprep.mubr.bf16.mxu0 %v2819
  %5706 = vmatmul.mubr.bf16.gmra.mrb[0].mxu0 %v2818
  %v5707 = vpop.f32.mrb[0].mxu0
  %v5708 = vadd.f32 %v5355, %v5707
  %v5709 = vpop.f32.mrb[0].mxu0
  %v5710 = vadd.f32 %v5357, %v5709
  %v5711 = vpop.f32.mrb[0].mxu0
  %v5712 = vadd.f32 %v5359, %v5711
  %v5713 = vpop.f32.mrb[0].mxu0
  %v5714 = vadd.f32 %v5361, %v5713
  %5715 = vmatprep.mubr.bf16.mxu0 %v2837
  %5716 = vmatmul.mubr.bf16.gmra.mrb[0].mxu0 %v2836
  %v5717 = vpop.f32.mrb[0].mxu0
  %v5718 = vadd.f32 %v5365, %v5717
  %v5719 = vpop.f32.mrb[0].mxu0
  %v5720 = vadd.f32 %v5367, %v5719
  %v5721 = vpop.f32.mrb[0].mxu0
  %v5722 = vadd.f32 %v5369, %v5721
  %v5723 = vpop.f32.mrb[0].mxu0
  %v5724 = vadd.f32 %v5371, %v5723
  %5725 = vmatprep.mubr.bf16.mxu0 %v2855
  %5726 = vmatmul.mubr.bf16.gmra.mrb[0].mxu0 %v2854
  %v5727 = vpop.f32.mrb[0].mxu0
  %v5728 = vadd.f32 %v5375, %v5727
  %v5729 = vpop.f32.mrb[0].mxu0
  %v5730 = vadd.f32 %v5377, %v5729
  %v5731 = vpop.f32.mrb[0].mxu0
  %v5732 = vadd.f32 %v5379, %v5731
  %v5733 = vpop.f32.mrb[0].mxu0
  %v5734 = vadd.f32 %v5381, %v5733
  %5735 = vmatprep.mubr.bf16.mxu0 %v2873
  %5736 = vmatmul.mubr.bf16.gmra.mrb[0].mxu0 %v2872
  %v5737 = vpop.f32.mrb[0].mxu0
  %v5738 = vadd.f32 %v5385, %v5737
  %v5739 = vpop.f32.mrb[0].mxu0
  %v5740 = vadd.f32 %v5387, %v5739
  %v5741 = vpop.f32.mrb[0].mxu0
  %v5742 = vadd.f32 %v5389, %v5741
  %v5743 = vpop.f32.mrb[0].mxu0
  %v5744 = vadd.f32 %v5391, %v5743
  %5745 = vmatprep.mubr.bf16.mxu0 %v2891
  %5746 = vmatmul.mubr.bf16.gmra.mrb[0].mxu0 %v2890
  %v5747 = vpop.f32.mrb[0].mxu0
  %v5748 = vadd.f32 %v5395, %v5747
  %v5749 = vpop.f32.mrb[0].mxu0
  %v5750 = vadd.f32 %v5397, %v5749
  %v5751 = vpop.f32.mrb[0].mxu0
  %v5752 = vadd.f32 %v5399, %v5751
  %v5753 = vpop.f32.mrb[0].mxu0
  %v5754 = vadd.f32 %v5401, %v5753
  %5755 = vmatprep.mubr.bf16.mxu0 %v2909
  %5756 = vmatmul.mubr.bf16.gmra.mrb[0].mxu0 %v2908
  %v5757 = vpop.f32.mrb[0].mxu0
  %v5758 = vadd.f32 %v5405, %v5757
  %v5759 = vpop.f32.mrb[0].mxu0
  %v5760 = vadd.f32 %v5407, %v5759
  %v5761 = vpop.f32.mrb[0].mxu0
  %v5762 = vadd.f32 %v5409, %v5761
  %v5763 = vpop.f32.mrb[0].mxu0
  %v5764 = vadd.f32 %v5411, %v5763
  %5765 = vmatprep.mubr.bf16.mxu0 %v2927
  %5766 = vmatmul.mubr.bf16.gmra.mrb[0].mxu0 %v2926
  %v5767 = vpop.f32.mrb[0].mxu0
  %v5768 = vadd.f32 %v5415, %v5767
  %v5769 = vpop.f32.mrb[0].mxu0
  %v5770 = vadd.f32 %v5417, %v5769
  %v5771 = vpop.f32.mrb[0].mxu0
  %v5772 = vadd.f32 %v5419, %v5771
  %v5773 = vpop.f32.mrb[0].mxu0
  %v5774 = vadd.f32 %v5421, %v5773
  %5775 = vmatprep.mubr.bf16.mxu0 %v2945
  %5776 = vmatmul.mubr.bf16.gmra.mrb[0].mxu0 %v2944
  %v5777 = vpop.f32.mrb[0].mxu0
  %v5778 = vadd.f32 %v5425, %v5777
  %v5779 = vpop.f32.mrb[0].mxu0
  %v5780 = vadd.f32 %v5427, %v5779
  %v5781 = vpop.f32.mrb[0].mxu0
  %v5782 = vadd.f32 %v5429, %v5781
  %v5783 = vpop.f32.mrb[0].mxu0
  %v5784 = vadd.f32 %v5431, %v5783
  %5785 = vmatprep.mubr.bf16.mxu0 %v2963
  %5786 = vmatmul.mubr.bf16.gmra.mrb[0].mxu0 %v2962
  %v5787 = vpop.f32.mrb[0].mxu0
  %v5788 = vadd.f32 %v5435, %v5787
  %v5789 = vpop.f32.mrb[0].mxu0
  %v5790 = vadd.f32 %v5437, %v5789
  %v5791 = vpop.f32.mrb[0].mxu0
  %v5792 = vadd.f32 %v5439, %v5791
  %v5793 = vpop.f32.mrb[0].mxu0
  %v5794 = vadd.f32 %v5441, %v5793
  %5795 = vmatprep.mubr.bf16.mxu0 %v2981
  %5796 = vmatmul.mubr.bf16.gmra.mrb[0].mxu0 %v2980
  %v5797 = vpop.f32.mrb[0].mxu0
  %v5798 = vadd.f32 %v5445, %v5797
  %v5799 = vpop.f32.mrb[0].mxu0
  %v5800 = vadd.f32 %v5447, %v5799
  %v5801 = vpop.f32.mrb[0].mxu0
  %v5802 = vadd.f32 %v5449, %v5801
  %v5803 = vpop.f32.mrb[0].mxu0
  %v5804 = vadd.f32 %v5451, %v5803
  %5805 = vmatprep.mubr.bf16.mxu0 %v2999
  %5806 = vmatmul.mubr.bf16.gmra.mrb[0].mxu0 %v2998
  %v5807 = vpop.f32.mrb[0].mxu0
  %v5808 = vadd.f32 %v5455, %v5807
  %v5809 = vpop.f32.mrb[0].mxu0
  %v5810 = vadd.f32 %v5457, %v5809
  %v5811 = vpop.f32.mrb[0].mxu0
  %v5812 = vadd.f32 %v5459, %v5811
  %v5813 = vpop.f32.mrb[0].mxu0
  %v5814 = vadd.f32 %v5461, %v5813
  %5815 = vmatprep.mubr.bf16.mxu0 %v3017
  %5816 = vmatmul.mubr.bf16.gmra.mrb[0].mxu0 %v3016
  %v5817 = vpop.f32.mrb[0].mxu0
  %v5818 = vadd.f32 %v5465, %v5817
  %v5819 = vpop.f32.mrb[0].mxu0
  %v5820 = vadd.f32 %v5467, %v5819
  %v5821 = vpop.f32.mrb[0].mxu0
  %v5822 = vadd.f32 %v5469, %v5821
  %v5823 = vpop.f32.mrb[0].mxu0
  %v5824 = vadd.f32 %v5471, %v5823
  %5825 = vmatprep.mubr.bf16.mxu0 %v3035
  %5826 = vmatmul.mubr.bf16.gmra.mrb[0].mxu0 %v3034
  %v5827 = vpop.f32.mrb[0].mxu0
  %v5828 = vadd.f32 %v5475, %v5827
  %v5829 = vpop.f32.mrb[0].mxu0
  %v5830 = vadd.f32 %v5477, %v5829
  %v5831 = vpop.f32.mrb[0].mxu0
  %v5832 = vadd.f32 %v5479, %v5831
  %v5833 = vpop.f32.mrb[0].mxu0
  %v5834 = vadd.f32 %v5481, %v5833
  %5835 = vmatprep.mubr.bf16.mxu0 %v3053
  %5836 = vmatmul.mubr.bf16.gmra.mrb[0].mxu0 %v3052
  %v5837 = vpop.f32.mrb[0].mxu0
  %v5838 = vadd.f32 %v5485, %v5837
  %v5839 = vpop.f32.mrb[0].mxu0
  %v5840 = vadd.f32 %v5487, %v5839
  %v5841 = vpop.f32.mrb[0].mxu0
  %v5842 = vadd.f32 %v5489, %v5841
  %v5843 = vpop.f32.mrb[0].mxu0
  %v5844 = vadd.f32 %v5491, %v5843
  %5845 = vmatprep.mubr.bf16.mxu0 %v3071
  %5846 = vmatmul.mubr.bf16.gmra.mrb[0].mxu0 %v3070
  %v5847 = vpop.f32.mrb[0].mxu0
  %v5848 = vadd.f32 %v5495, %v5847
  %v5849 = vpop.f32.mrb[0].mxu0
  %v5850 = vadd.f32 %v5497, %v5849
  %v5851 = vpop.f32.mrb[0].mxu0
  %v5852 = vadd.f32 %v5499, %v5851
  %v5853 = vpop.f32.mrb[0].mxu0
  %v5854 = vadd.f32 %v5501, %v5853
  %5855 = vmatprep.mubr.bf16.mxu0 %v3089
  %5856 = vmatmul.mubr.bf16.gmra.mrb[0].mxu0 %v3088
  %v5857 = vpop.f32.mrb[0].mxu0
  %v5858 = vadd.f32 %v5505, %v5857
  %v5859 = vpop.f32.mrb[0].mxu0
  %v5860 = vadd.f32 %v5507, %v5859
  %v5861 = vpop.f32.mrb[0].mxu0
  %v5862 = vadd.f32 %v5509, %v5861
  %v5863 = vpop.f32.mrb[0].mxu0
  %v5864 = vadd.f32 %v5511, %v5863
  %5865 = vmatprep.mubr.bf16.mxu0 %v3107
  %5866 = vmatmul.mubr.bf16.gmra.mrb[0].mxu0 %v3106
  %v5867 = vpop.f32.mrb[0].mxu0
  %v5868 = vadd.f32 %v5515, %v5867
  %v5869 = vpop.f32.mrb[0].mxu0
  %v5870 = vadd.f32 %v5517, %v5869
  %v5871 = vpop.f32.mrb[0].mxu0
  %v5872 = vadd.f32 %v5519, %v5871
  %v5873 = vpop.f32.mrb[0].mxu0
  %v5874 = vadd.f32 %v5521, %v5873
  %5875 = vmatprep.mubr.bf16.mxu0 %v3125
  %5876 = vmatmul.mubr.bf16.gmra.mrb[0].mxu0 %v3124
  %v5877 = vpop.f32.mrb[0].mxu0
  %v5878 = vadd.f32 %v5525, %v5877
  %v5879 = vpop.f32.mrb[0].mxu0
  %v5880 = vadd.f32 %v5527, %v5879
  %v5881 = vpop.f32.mrb[0].mxu0
  %v5882 = vadd.f32 %v5529, %v5881
  %v5883 = vpop.f32.mrb[0].mxu0
  %v5884 = vadd.f32 %v5531, %v5883
  %5885 = vmatprep.mubr.bf16.mxu0 %v3143
  %5886 = vmatmul.mubr.bf16.gmra.mrb[0].mxu0 %v3142
  %v5887 = vpop.f32.mrb[0].mxu0
  %v5888 = vadd.f32 %v5535, %v5887
  %v5889 = vpop.f32.mrb[0].mxu0
  %v5890 = vadd.f32 %v5537, %v5889
  %v5891 = vpop.f32.mrb[0].mxu0
  %v5892 = vadd.f32 %v5539, %v5891
  %v5893 = vpop.f32.mrb[0].mxu0
  %v5894 = vadd.f32 %v5541, %v5893
  %5895 = vmatprep.mubr.bf16.mxu0 %v3161
  %5896 = vmatmul.mubr.bf16.gmra.mrb[0].mxu0 %v3160
  %v5897 = vpop.f32.mrb[0].mxu0
  %v5898 = vadd.f32 %v5545, %v5897
  %v5899 = vpop.f32.mrb[0].mxu0
  %v5900 = vadd.f32 %v5547, %v5899
  %v5901 = vpop.f32.mrb[0].mxu0
  %v5902 = vadd.f32 %v5549, %v5901
  %v5903 = vpop.f32.mrb[0].mxu0
  %v5904 = vadd.f32 %v5551, %v5903
  %5905 = vmatprep.mubr.bf16.mxu0 %v3179
  %5906 = vmatmul.mubr.bf16.gmra.mrb[0].mxu0 %v3178
  %v5907 = vpop.f32.mrb[0].mxu0
  %v5908 = vadd.f32 %v5555, %v5907
  %v5909 = vpop.f32.mrb[0].mxu0
  %v5910 = vadd.f32 %v5557, %v5909
  %v5911 = vpop.f32.mrb[0].mxu0
  %v5912 = vadd.f32 %v5559, %v5911
  %v5913 = vpop.f32.mrb[0].mxu0
  %v5914 = vadd.f32 %v5561, %v5913
  %5915 = vdwg.mxu0
  %5916 = vmatprep.subr.bf16.mxu0 %v4699
  %5917 = vmatpush1.bf16.msra.mxu0 %v4698
  %5918 = vmatprep.subr.bf16.mxu0 %v4701
  %5919 = vmatpush1.bf16.msra.mxu0 %v4700
  %5920 = vmatprep.subr.bf16.mxu0 %v4703
  %5921 = vmatpush1.bf16.msra.mxu0 %v4702
  %5922 = vmatprep.subr.bf16.mxu0 %v4705
  %5923 = vmatpush1.bf16.msra.mxu0 %v4704
  %5924 = vmatprep.subr.bf16.mxu0 %v4707
  %5925 = vmatpush1.bf16.msra.mxu0 %v4706
  %5926 = vmatprep.subr.bf16.mxu0 %v4709
  %5927 = vmatpush1.bf16.msra.mxu0 %v4708
  %5928 = vmatprep.subr.bf16.mxu0 %v4711
  %5929 = vmatpush1.bf16.msra.mxu0 %v4710
  %5930 = vmatprep.subr.bf16.mxu0 %v4713
  %5931 = vmatpush1.bf16.msra.mxu0 %v4712
  %5932 = vmatprep.subr.bf16.mxu0 %v4715
  %5933 = vmatpush1.bf16.msra.mxu0 %v4714
  %5934 = vmatprep.subr.bf16.mxu0 %v4717
  %5935 = vmatpush1.bf16.msra.mxu0 %v4716
  %5936 = vmatprep.subr.bf16.mxu0 %v4719
  %5937 = vmatpush1.bf16.msra.mxu0 %v4718
  %5938 = vmatprep.subr.bf16.mxu0 %v4721
  %5939 = vmatpush1.bf16.msra.mxu0 %v4720
  %5940 = vmatprep.subr.bf16.mxu0 %v4723
  %5941 = vmatpush1.bf16.msra.mxu0 %v4722
  %5942 = vmatprep.subr.bf16.mxu0 %v4725
  %5943 = vmatpush1.bf16.msra.mxu0 %v4724
  %5944 = vmatprep.subr.bf16.mxu0 %v4727
  %5945 = vmatpush1.bf16.msra.mxu0 %v4726
  %5946 = vmatprep.subr.bf16.mxu0 %v4729
  %5947 = vmatpush1.bf16.msra.mxu0 %v4728
  %5948 = vmatprep.mubr.bf16.mxu0 %v2623
  %5949 = vmatmul.mubr.bf16.gmra.mrb[0].mxu0 %v2622
  %v5950 = vpop.f32.mrb[0].mxu0
  %v5951 = vadd.f32 %v5598, %v5950
  %v5952 = vpop.f32.mrb[0].mxu0
  %v5953 = vadd.f32 %v5600, %v5952
  %v5954 = vpop.f32.mrb[0].mxu0
  %v5955 = vadd.f32 %v5602, %v5954
  %v5956 = vpop.f32.mrb[0].mxu0
  %v5957 = vadd.f32 %v5604, %v5956
  %5958 = vmatprep.mubr.bf16.mxu0 %v2641
  %5959 = vmatmul.mubr.bf16.gmra.mrb[0].mxu0 %v2640
  %v5960 = vpop.f32.mrb[0].mxu0
  %v5961 = vadd.f32 %v5608, %v5960
  %v5962 = vpop.f32.mrb[0].mxu0
  %v5963 = vadd.f32 %v5610, %v5962
  %v5964 = vpop.f32.mrb[0].mxu0
  %v5965 = vadd.f32 %v5612, %v5964
  %v5966 = vpop.f32.mrb[0].mxu0
  %v5967 = vadd.f32 %v5614, %v5966
  %5968 = vmatprep.mubr.bf16.mxu0 %v2659
  %5969 = vmatmul.mubr.bf16.gmra.mrb[0].mxu0 %v2658
  %v5970 = vpop.f32.mrb[0].mxu0
  %v5971 = vadd.f32 %v5618, %v5970
  %v5972 = vpop.f32.mrb[0].mxu0
  %v5973 = vadd.f32 %v5620, %v5972
  %v5974 = vpop.f32.mrb[0].mxu0
  %v5975 = vadd.f32 %v5622, %v5974
  %v5976 = vpop.f32.mrb[0].mxu0
  %v5977 = vadd.f32 %v5624, %v5976
  %5978 = vmatprep.mubr.bf16.mxu0 %v2677
  %5979 = vmatmul.mubr.bf16.gmra.mrb[0].mxu0 %v2676
  %v5980 = vpop.f32.mrb[0].mxu0
  %v5981 = vadd.f32 %v5628, %v5980
  %v5982 = vpop.f32.mrb[0].mxu0
  %v5983 = vadd.f32 %v5630, %v5982
  %v5984 = vpop.f32.mrb[0].mxu0
  %v5985 = vadd.f32 %v5632, %v5984
  %v5986 = vpop.f32.mrb[0].mxu0
  %v5987 = vadd.f32 %v5634, %v5986
  %5988 = vmatprep.mubr.bf16.mxu0 %v2695
  %5989 = vmatmul.mubr.bf16.gmra.mrb[0].mxu0 %v2694
  %v5990 = vpop.f32.mrb[0].mxu0
  %v5991 = vadd.f32 %v5638, %v5990
  %v5992 = vpop.f32.mrb[0].mxu0
  %v5993 = vadd.f32 %v5640, %v5992
  %v5994 = vpop.f32.mrb[0].mxu0
  %v5995 = vadd.f32 %v5642, %v5994
  %v5996 = vpop.f32.mrb[0].mxu0
  %v5997 = vadd.f32 %v5644, %v5996
  %5998 = vmatprep.mubr.bf16.mxu0 %v2713
  %5999 = vmatmul.mubr.bf16.gmra.mrb[0].mxu0 %v2712
  %v6000 = vpop.f32.mrb[0].mxu0
  %v6001 = vadd.f32 %v5648, %v6000
  %v6002 = vpop.f32.mrb[0].mxu0
  %v6003 = vadd.f32 %v5650, %v6002
  %v6004 = vpop.f32.mrb[0].mxu0
  %v6005 = vadd.f32 %v5652, %v6004
  %v6006 = vpop.f32.mrb[0].mxu0
  %v6007 = vadd.f32 %v5654, %v6006
  %6008 = vmatprep.mubr.bf16.mxu0 %v2731
  %6009 = vmatmul.mubr.bf16.gmra.mrb[0].mxu0 %v2730
  %v6010 = vpop.f32.mrb[0].mxu0
  %v6011 = vadd.f32 %v5658, %v6010
  %v6012 = vpop.f32.mrb[0].mxu0
  %v6013 = vadd.f32 %v5660, %v6012
  %v6014 = vpop.f32.mrb[0].mxu0
  %v6015 = vadd.f32 %v5662, %v6014
  %v6016 = vpop.f32.mrb[0].mxu0
  %v6017 = vadd.f32 %v5664, %v6016
  %6018 = vmatprep.mubr.bf16.mxu0 %v2749
  %6019 = vmatmul.mubr.bf16.gmra.mrb[0].mxu0 %v2748
  %v6020 = vpop.f32.mrb[0].mxu0
  %v6021 = vadd.f32 %v5668, %v6020
  %v6022 = vpop.f32.mrb[0].mxu0
  %v6023 = vadd.f32 %v5670, %v6022
  %v6024 = vpop.f32.mrb[0].mxu0
  %v6025 = vadd.f32 %v5672, %v6024
  %v6026 = vpop.f32.mrb[0].mxu0
  %v6027 = vadd.f32 %v5674, %v6026
  %6028 = vmatprep.mubr.bf16.mxu0 %v2767
  %6029 = vmatmul.mubr.bf16.gmra.mrb[0].mxu0 %v2766
  %v6030 = vpop.f32.mrb[0].mxu0
  %v6031 = vadd.f32 %v5678, %v6030
  %v6032 = vpop.f32.mrb[0].mxu0
  %v6033 = vadd.f32 %v5680, %v6032
  %v6034 = vpop.f32.mrb[0].mxu0
  %v6035 = vadd.f32 %v5682, %v6034
  %v6036 = vpop.f32.mrb[0].mxu0
  %v6037 = vadd.f32 %v5684, %v6036
  %6038 = vmatprep.mubr.bf16.mxu0 %v2785
  %6039 = vmatmul.mubr.bf16.gmra.mrb[0].mxu0 %v2784
  %v6040 = vpop.f32.mrb[0].mxu0
  %v6041 = vadd.f32 %v5688, %v6040
  %v6042 = vpop.f32.mrb[0].mxu0
  %v6043 = vadd.f32 %v5690, %v6042
  %v6044 = vpop.f32.mrb[0].mxu0
  %v6045 = vadd.f32 %v5692, %v6044
  %v6046 = vpop.f32.mrb[0].mxu0
  %v6047 = vadd.f32 %v5694, %v6046
  %6048 = vmatprep.mubr.bf16.mxu0 %v2803
  %6049 = vmatmul.mubr.bf16.gmra.mrb[0].mxu0 %v2802
  %v6050 = vpop.f32.mrb[0].mxu0
  %v6051 = vadd.f32 %v5698, %v6050
  %v6052 = vpop.f32.mrb[0].mxu0
  %v6053 = vadd.f32 %v5700, %v6052
  %v6054 = vpop.f32.mrb[0].mxu0
  %v6055 = vadd.f32 %v5702, %v6054
  %v6056 = vpop.f32.mrb[0].mxu0
  %v6057 = vadd.f32 %v5704, %v6056
  %6058 = vmatprep.mubr.bf16.mxu0 %v2821
  %6059 = vmatmul.mubr.bf16.gmra.mrb[0].mxu0 %v2820
  %v6060 = vpop.f32.mrb[0].mxu0
  %v6061 = vadd.f32 %v5708, %v6060
  %v6062 = vpop.f32.mrb[0].mxu0
  %v6063 = vadd.f32 %v5710, %v6062
  %v6064 = vpop.f32.mrb[0].mxu0
  %v6065 = vadd.f32 %v5712, %v6064
  %v6066 = vpop.f32.mrb[0].mxu0
  %v6067 = vadd.f32 %v5714, %v6066
  %6068 = vmatprep.mubr.bf16.mxu0 %v2839
  %6069 = vmatmul.mubr.bf16.gmra.mrb[0].mxu0 %v2838
  %v6070 = vpop.f32.mrb[0].mxu0
  %v6071 = vadd.f32 %v5718, %v6070
  %v6072 = vpop.f32.mrb[0].mxu0
  %v6073 = vadd.f32 %v5720, %v6072
  %v6074 = vpop.f32.mrb[0].mxu0
  %v6075 = vadd.f32 %v5722, %v6074
  %v6076 = vpop.f32.mrb[0].mxu0
  %v6077 = vadd.f32 %v5724, %v6076
  %6078 = vmatprep.mubr.bf16.mxu0 %v2857
  %6079 = vmatmul.mubr.bf16.gmra.mrb[0].mxu0 %v2856
  %v6080 = vpop.f32.mrb[0].mxu0
  %v6081 = vadd.f32 %v5728, %v6080
  %v6082 = vpop.f32.mrb[0].mxu0
  %v6083 = vadd.f32 %v5730, %v6082
  %v6084 = vpop.f32.mrb[0].mxu0
  %v6085 = vadd.f32 %v5732, %v6084
  %v6086 = vpop.f32.mrb[0].mxu0
  %v6087 = vadd.f32 %v5734, %v6086
  %6088 = vmatprep.mubr.bf16.mxu0 %v2875
  %6089 = vmatmul.mubr.bf16.gmra.mrb[0].mxu0 %v2874
  %v6090 = vpop.f32.mrb[0].mxu0
  %v6091 = vadd.f32 %v5738, %v6090
  %v6092 = vpop.f32.mrb[0].mxu0
  %v6093 = vadd.f32 %v5740, %v6092
  %v6094 = vpop.f32.mrb[0].mxu0
  %v6095 = vadd.f32 %v5742, %v6094
  %v6096 = vpop.f32.mrb[0].mxu0
  %v6097 = vadd.f32 %v5744, %v6096
  %6098 = vmatprep.mubr.bf16.mxu0 %v2893
  %6099 = vmatmul.mubr.bf16.gmra.mrb[0].mxu0 %v2892
  %v6100 = vpop.f32.mrb[0].mxu0
  %v6101 = vadd.f32 %v5748, %v6100
  %v6102 = vpop.f32.mrb[0].mxu0
  %v6103 = vadd.f32 %v5750, %v6102
  %v6104 = vpop.f32.mrb[0].mxu0
  %v6105 = vadd.f32 %v5752, %v6104
  %v6106 = vpop.f32.mrb[0].mxu0
  %v6107 = vadd.f32 %v5754, %v6106
  %6108 = vmatprep.mubr.bf16.mxu0 %v2911
  %6109 = vmatmul.mubr.bf16.gmra.mrb[0].mxu0 %v2910
  %v6110 = vpop.f32.mrb[0].mxu0
  %v6111 = vadd.f32 %v5758, %v6110
  %v6112 = vpop.f32.mrb[0].mxu0
  %v6113 = vadd.f32 %v5760, %v6112
  %v6114 = vpop.f32.mrb[0].mxu0
  %v6115 = vadd.f32 %v5762, %v6114
  %v6116 = vpop.f32.mrb[0].mxu0
  %v6117 = vadd.f32 %v5764, %v6116
  %6118 = vmatprep.mubr.bf16.mxu0 %v2929
  %6119 = vmatmul.mubr.bf16.gmra.mrb[0].mxu0 %v2928
  %v6120 = vpop.f32.mrb[0].mxu0
  %v6121 = vadd.f32 %v5768, %v6120
  %v6122 = vpop.f32.mrb[0].mxu0
  %v6123 = vadd.f32 %v5770, %v6122
  %v6124 = vpop.f32.mrb[0].mxu0
  %v6125 = vadd.f32 %v5772, %v6124
  %v6126 = vpop.f32.mrb[0].mxu0
  %v6127 = vadd.f32 %v5774, %v6126
  %6128 = vmatprep.mubr.bf16.mxu0 %v2947
  %6129 = vmatmul.mubr.bf16.gmra.mrb[0].mxu0 %v2946
  %v6130 = vpop.f32.mrb[0].mxu0
  %v6131 = vadd.f32 %v5778, %v6130
  %v6132 = vpop.f32.mrb[0].mxu0
  %v6133 = vadd.f32 %v5780, %v6132
  %v6134 = vpop.f32.mrb[0].mxu0
  %v6135 = vadd.f32 %v5782, %v6134
  %v6136 = vpop.f32.mrb[0].mxu0
  %v6137 = vadd.f32 %v5784, %v6136
  %6138 = vmatprep.mubr.bf16.mxu0 %v2965
  %6139 = vmatmul.mubr.bf16.gmra.mrb[0].mxu0 %v2964
  %v6140 = vpop.f32.mrb[0].mxu0
  %v6141 = vadd.f32 %v5788, %v6140
  %v6142 = vpop.f32.mrb[0].mxu0
  %v6143 = vadd.f32 %v5790, %v6142
  %v6144 = vpop.f32.mrb[0].mxu0
  %v6145 = vadd.f32 %v5792, %v6144
  %v6146 = vpop.f32.mrb[0].mxu0
  %v6147 = vadd.f32 %v5794, %v6146
  %6148 = vmatprep.mubr.bf16.mxu0 %v2983
  %6149 = vmatmul.mubr.bf16.gmra.mrb[0].mxu0 %v2982
  %v6150 = vpop.f32.mrb[0].mxu0
  %v6151 = vadd.f32 %v5798, %v6150
  %v6152 = vpop.f32.mrb[0].mxu0
  %v6153 = vadd.f32 %v5800, %v6152
  %v6154 = vpop.f32.mrb[0].mxu0
  %v6155 = vadd.f32 %v5802, %v6154
  %v6156 = vpop.f32.mrb[0].mxu0
  %v6157 = vadd.f32 %v5804, %v6156
  %6158 = vmatprep.mubr.bf16.mxu0 %v3001
  %6159 = vmatmul.mubr.bf16.gmra.mrb[0].mxu0 %v3000
  %v6160 = vpop.f32.mrb[0].mxu0
  %v6161 = vadd.f32 %v5808, %v6160
  %v6162 = vpop.f32.mrb[0].mxu0
  %v6163 = vadd.f32 %v5810, %v6162
  %v6164 = vpop.f32.mrb[0].mxu0
  %v6165 = vadd.f32 %v5812, %v6164
  %v6166 = vpop.f32.mrb[0].mxu0
  %v6167 = vadd.f32 %v5814, %v6166
  %6168 = vmatprep.mubr.bf16.mxu0 %v3019
  %6169 = vmatmul.mubr.bf16.gmra.mrb[0].mxu0 %v3018
  %v6170 = vpop.f32.mrb[0].mxu0
  %v6171 = vadd.f32 %v5818, %v6170
  %v6172 = vpop.f32.mrb[0].mxu0
  %v6173 = vadd.f32 %v5820, %v6172
  %v6174 = vpop.f32.mrb[0].mxu0
  %v6175 = vadd.f32 %v5822, %v6174
  %v6176 = vpop.f32.mrb[0].mxu0
  %v6177 = vadd.f32 %v5824, %v6176
  %6178 = vmatprep.mubr.bf16.mxu0 %v3037
  %6179 = vmatmul.mubr.bf16.gmra.mrb[0].mxu0 %v3036
  %v6180 = vpop.f32.mrb[0].mxu0
  %v6181 = vadd.f32 %v5828, %v6180
  %v6182 = vpop.f32.mrb[0].mxu0
  %v6183 = vadd.f32 %v5830, %v6182
  %v6184 = vpop.f32.mrb[0].mxu0
  %v6185 = vadd.f32 %v5832, %v6184
  %v6186 = vpop.f32.mrb[0].mxu0
  %v6187 = vadd.f32 %v5834, %v6186
  %6188 = vmatprep.mubr.bf16.mxu0 %v3055
  %6189 = vmatmul.mubr.bf16.gmra.mrb[0].mxu0 %v3054
  %v6190 = vpop.f32.mrb[0].mxu0
  %v6191 = vadd.f32 %v5838, %v6190
  %v6192 = vpop.f32.mrb[0].mxu0
  %v6193 = vadd.f32 %v5840, %v6192
  %v6194 = vpop.f32.mrb[0].mxu0
  %v6195 = vadd.f32 %v5842, %v6194
  %v6196 = vpop.f32.mrb[0].mxu0
  %v6197 = vadd.f32 %v5844, %v6196
  %6198 = vmatprep.mubr.bf16.mxu0 %v3073
  %6199 = vmatmul.mubr.bf16.gmra.mrb[0].mxu0 %v3072
  %v6200 = vpop.f32.mrb[0].mxu0
  %v6201 = vadd.f32 %v5848, %v6200
  %v6202 = vpop.f32.mrb[0].mxu0
  %v6203 = vadd.f32 %v5850, %v6202
  %v6204 = vpop.f32.mrb[0].mxu0
  %v6205 = vadd.f32 %v5852, %v6204
  %v6206 = vpop.f32.mrb[0].mxu0
  %v6207 = vadd.f32 %v5854, %v6206
  %6208 = vmatprep.mubr.bf16.mxu0 %v3091
  %6209 = vmatmul.mubr.bf16.gmra.mrb[0].mxu0 %v3090
  %v6210 = vpop.f32.mrb[0].mxu0
  %v6211 = vadd.f32 %v5858, %v6210
  %v6212 = vpop.f32.mrb[0].mxu0
  %v6213 = vadd.f32 %v5860, %v6212
  %v6214 = vpop.f32.mrb[0].mxu0
  %v6215 = vadd.f32 %v5862, %v6214
  %v6216 = vpop.f32.mrb[0].mxu0
  %v6217 = vadd.f32 %v5864, %v6216
  %6218 = vmatprep.mubr.bf16.mxu0 %v3109
  %6219 = vmatmul.mubr.bf16.gmra.mrb[0].mxu0 %v3108
  %v6220 = vpop.f32.mrb[0].mxu0
  %v6221 = vadd.f32 %v5868, %v6220
  %v6222 = vpop.f32.mrb[0].mxu0
  %v6223 = vadd.f32 %v5870, %v6222
  %v6224 = vpop.f32.mrb[0].mxu0
  %v6225 = vadd.f32 %v5872, %v6224
  %v6226 = vpop.f32.mrb[0].mxu0
  %v6227 = vadd.f32 %v5874, %v6226
  %6228 = vmatprep.mubr.bf16.mxu0 %v3127
  %6229 = vmatmul.mubr.bf16.gmra.mrb[0].mxu0 %v3126
  %v6230 = vpop.f32.mrb[0].mxu0
  %v6231 = vadd.f32 %v5878, %v6230
  %v6232 = vpop.f32.mrb[0].mxu0
  %v6233 = vadd.f32 %v5880, %v6232
  %v6234 = vpop.f32.mrb[0].mxu0
  %v6235 = vadd.f32 %v5882, %v6234
  %v6236 = vpop.f32.mrb[0].mxu0
  %v6237 = vadd.f32 %v5884, %v6236
  %6238 = vmatprep.mubr.bf16.mxu0 %v3145
  %6239 = vmatmul.mubr.bf16.gmra.mrb[0].mxu0 %v3144
  %v6240 = vpop.f32.mrb[0].mxu0
  %v6241 = vadd.f32 %v5888, %v6240
  %v6242 = vpop.f32.mrb[0].mxu0
  %v6243 = vadd.f32 %v5890, %v6242
  %v6244 = vpop.f32.mrb[0].mxu0
  %v6245 = vadd.f32 %v5892, %v6244
  %v6246 = vpop.f32.mrb[0].mxu0
  %v6247 = vadd.f32 %v5894, %v6246
  %6248 = vmatprep.mubr.bf16.mxu0 %v3163
  %6249 = vmatmul.mubr.bf16.gmra.mrb[0].mxu0 %v3162
  %v6250 = vpop.f32.mrb[0].mxu0
  %v6251 = vadd.f32 %v5898, %v6250
  %v6252 = vpop.f32.mrb[0].mxu0
  %v6253 = vadd.f32 %v5900, %v6252
  %v6254 = vpop.f32.mrb[0].mxu0
  %v6255 = vadd.f32 %v5902, %v6254
  %v6256 = vpop.f32.mrb[0].mxu0
  %v6257 = vadd.f32 %v5904, %v6256
  %6258 = vmatprep.mubr.bf16.mxu0 %v3181
  %6259 = vmatmul.mubr.bf16.gmra.mrb[0].mxu0 %v3180
  %v6260 = vpop.f32.mrb[0].mxu0
  %v6261 = vadd.f32 %v5908, %v6260
  %v6262 = vpop.f32.mrb[0].mxu0
  %v6263 = vadd.f32 %v5910, %v6262
  %v6264 = vpop.f32.mrb[0].mxu0
  %v6265 = vadd.f32 %v5912, %v6264
  %v6266 = vpop.f32.mrb[0].mxu0
  %v6267 = vadd.f32 %v5914, %v6266
  %6268 = vdwg.mxu0
  %6269 = vmatprep.subr.bf16.mxu0 %v4731
  %6270 = vmatpush1.bf16.msra.mxu0 %v4730
  %6271 = vmatprep.subr.bf16.mxu0 %v4733
  %6272 = vmatpush1.bf16.msra.mxu0 %v4732
  %6273 = vmatprep.subr.bf16.mxu0 %v4735
  %6274 = vmatpush1.bf16.msra.mxu0 %v4734
  %6275 = vmatprep.subr.bf16.mxu0 %v4737
  %6276 = vmatpush1.bf16.msra.mxu0 %v4736
  %6277 = vmatprep.subr.bf16.mxu0 %v4739
  %6278 = vmatpush1.bf16.msra.mxu0 %v4738
  %6279 = vmatprep.subr.bf16.mxu0 %v4741
  %6280 = vmatpush1.bf16.msra.mxu0 %v4740
  %6281 = vmatprep.subr.bf16.mxu0 %v4743
  %6282 = vmatpush1.bf16.msra.mxu0 %v4742
  %6283 = vmatprep.subr.bf16.mxu0 %v4745
  %6284 = vmatpush1.bf16.msra.mxu0 %v4744
  %6285 = vmatprep.subr.bf16.mxu0 %v4747
  %6286 = vmatpush1.bf16.msra.mxu0 %v4746
  %6287 = vmatprep.subr.bf16.mxu0 %v4749
  %6288 = vmatpush1.bf16.msra.mxu0 %v4748
  %6289 = vmatprep.subr.bf16.mxu0 %v4751
  %6290 = vmatpush1.bf16.msra.mxu0 %v4750
  %6291 = vmatprep.subr.bf16.mxu0 %v4753
  %6292 = vmatpush1.bf16.msra.mxu0 %v4752
  %6293 = vmatprep.subr.bf16.mxu0 %v4755
  %6294 = vmatpush1.bf16.msra.mxu0 %v4754
  %6295 = vmatprep.subr.bf16.mxu0 %v4757
  %6296 = vmatpush1.bf16.msra.mxu0 %v4756
  %6297 = vmatprep.subr.bf16.mxu0 %v4759
  %6298 = vmatpush1.bf16.msra.mxu0 %v4758
  %6299 = vmatprep.subr.bf16.mxu0 %v4761
  %6300 = vmatpush1.bf16.msra.mxu0 %v4760
  %6301 = vmatprep.mubr.bf16.mxu0 %v2625
  %6302 = vmatmul.mubr.bf16.gmra.mrb[0].mxu0 %v2624
  %v6303 = vpop.f32.mrb[0].mxu0
  %v6304 = vadd.f32 %v5951, %v6303
  %v6305 = vpop.f32.mrb[0].mxu0
  %v6306 = vadd.f32 %v5953, %v6305
  %v6307 = vpop.f32.mrb[0].mxu0
  %v6308 = vadd.f32 %v5955, %v6307
  %v6309 = vpop.f32.mrb[0].mxu0
  %v6310 = vadd.f32 %v5957, %v6309
  %6311 = vmatprep.mubr.bf16.mxu0 %v2643
  %6312 = vmatmul.mubr.bf16.gmra.mrb[0].mxu0 %v2642
  %v6313 = vpop.f32.mrb[0].mxu0
  %v6314 = vadd.f32 %v5961, %v6313
  %v6315 = vpop.f32.mrb[0].mxu0
  %v6316 = vadd.f32 %v5963, %v6315
  %v6317 = vpop.f32.mrb[0].mxu0
  %v6318 = vadd.f32 %v5965, %v6317
  %v6319 = vpop.f32.mrb[0].mxu0
  %v6320 = vadd.f32 %v5967, %v6319
  %6321 = vmatprep.mubr.bf16.mxu0 %v2661
  %6322 = vmatmul.mubr.bf16.gmra.mrb[0].mxu0 %v2660
  %v6323 = vpop.f32.mrb[0].mxu0
  %v6324 = vadd.f32 %v5971, %v6323
  %v6325 = vpop.f32.mrb[0].mxu0
  %v6326 = vadd.f32 %v5973, %v6325
  %v6327 = vpop.f32.mrb[0].mxu0
  %v6328 = vadd.f32 %v5975, %v6327
  %v6329 = vpop.f32.mrb[0].mxu0
  %v6330 = vadd.f32 %v5977, %v6329
  %6331 = vmatprep.mubr.bf16.mxu0 %v2679
  %6332 = vmatmul.mubr.bf16.gmra.mrb[0].mxu0 %v2678
  %v6333 = vpop.f32.mrb[0].mxu0
  %v6334 = vadd.f32 %v5981, %v6333
  %v6335 = vpop.f32.mrb[0].mxu0
  %v6336 = vadd.f32 %v5983, %v6335
  %v6337 = vpop.f32.mrb[0].mxu0
  %v6338 = vadd.f32 %v5985, %v6337
  %v6339 = vpop.f32.mrb[0].mxu0
  %v6340 = vadd.f32 %v5987, %v6339
  %6341 = vmatprep.mubr.bf16.mxu0 %v2697
  %6342 = vmatmul.mubr.bf16.gmra.mrb[0].mxu0 %v2696
  %v6343 = vpop.f32.mrb[0].mxu0
  %v6344 = vadd.f32 %v5991, %v6343
  %v6345 = vpop.f32.mrb[0].mxu0
  %v6346 = vadd.f32 %v5993, %v6345
  %v6347 = vpop.f32.mrb[0].mxu0
  %v6348 = vadd.f32 %v5995, %v6347
  %v6349 = vpop.f32.mrb[0].mxu0
  %v6350 = vadd.f32 %v5997, %v6349
  %6351 = vmatprep.mubr.bf16.mxu0 %v2715
  %6352 = vmatmul.mubr.bf16.gmra.mrb[0].mxu0 %v2714
  %v6353 = vpop.f32.mrb[0].mxu0
  %v6354 = vadd.f32 %v6001, %v6353
  %v6355 = vpop.f32.mrb[0].mxu0
  %v6356 = vadd.f32 %v6003, %v6355
  %v6357 = vpop.f32.mrb[0].mxu0
  %v6358 = vadd.f32 %v6005, %v6357
  %v6359 = vpop.f32.mrb[0].mxu0
  %v6360 = vadd.f32 %v6007, %v6359
  %6361 = vmatprep.mubr.bf16.mxu0 %v2733
  %6362 = vmatmul.mubr.bf16.gmra.mrb[0].mxu0 %v2732
  %v6363 = vpop.f32.mrb[0].mxu0
  %v6364 = vadd.f32 %v6011, %v6363
  %v6365 = vpop.f32.mrb[0].mxu0
  %v6366 = vadd.f32 %v6013, %v6365
  %v6367 = vpop.f32.mrb[0].mxu0
  %v6368 = vadd.f32 %v6015, %v6367
  %v6369 = vpop.f32.mrb[0].mxu0
  %v6370 = vadd.f32 %v6017, %v6369
  %6371 = vmatprep.mubr.bf16.mxu0 %v2751
  %6372 = vmatmul.mubr.bf16.gmra.mrb[0].mxu0 %v2750
  %v6373 = vpop.f32.mrb[0].mxu0
  %v6374 = vadd.f32 %v6021, %v6373
  %v6375 = vpop.f32.mrb[0].mxu0
  %v6376 = vadd.f32 %v6023, %v6375
  %v6377 = vpop.f32.mrb[0].mxu0
  %v6378 = vadd.f32 %v6025, %v6377
  %v6379 = vpop.f32.mrb[0].mxu0
  %v6380 = vadd.f32 %v6027, %v6379
  %6381 = vmatprep.mubr.bf16.mxu0 %v2769
  %6382 = vmatmul.mubr.bf16.gmra.mrb[0].mxu0 %v2768
  %v6383 = vpop.f32.mrb[0].mxu0
  %v6384 = vadd.f32 %v6031, %v6383
  %v6385 = vpop.f32.mrb[0].mxu0
  %v6386 = vadd.f32 %v6033, %v6385
  %v6387 = vpop.f32.mrb[0].mxu0
  %v6388 = vadd.f32 %v6035, %v6387
  %v6389 = vpop.f32.mrb[0].mxu0
  %v6390 = vadd.f32 %v6037, %v6389
  %6391 = vmatprep.mubr.bf16.mxu0 %v2787
  %6392 = vmatmul.mubr.bf16.gmra.mrb[0].mxu0 %v2786
  %v6393 = vpop.f32.mrb[0].mxu0
  %v6394 = vadd.f32 %v6041, %v6393
  %v6395 = vpop.f32.mrb[0].mxu0
  %v6396 = vadd.f32 %v6043, %v6395
  %v6397 = vpop.f32.mrb[0].mxu0
  %v6398 = vadd.f32 %v6045, %v6397
  %v6399 = vpop.f32.mrb[0].mxu0
  %v6400 = vadd.f32 %v6047, %v6399
  %6401 = vmatprep.mubr.bf16.mxu0 %v2805
  %6402 = vmatmul.mubr.bf16.gmra.mrb[0].mxu0 %v2804
  %v6403 = vpop.f32.mrb[0].mxu0
  %v6404 = vadd.f32 %v6051, %v6403
  %v6405 = vpop.f32.mrb[0].mxu0
  %v6406 = vadd.f32 %v6053, %v6405
  %v6407 = vpop.f32.mrb[0].mxu0
  %v6408 = vadd.f32 %v6055, %v6407
  %v6409 = vpop.f32.mrb[0].mxu0
  %v6410 = vadd.f32 %v6057, %v6409
  %6411 = vmatprep.mubr.bf16.mxu0 %v2823
  %6412 = vmatmul.mubr.bf16.gmra.mrb[0].mxu0 %v2822
  %v6413 = vpop.f32.mrb[0].mxu0
  %v6414 = vadd.f32 %v6061, %v6413
  %v6415 = vpop.f32.mrb[0].mxu0
  %v6416 = vadd.f32 %v6063, %v6415
  %v6417 = vpop.f32.mrb[0].mxu0
  %v6418 = vadd.f32 %v6065, %v6417
  %v6419 = vpop.f32.mrb[0].mxu0
  %v6420 = vadd.f32 %v6067, %v6419
  %6421 = vmatprep.mubr.bf16.mxu0 %v2841
  %6422 = vmatmul.mubr.bf16.gmra.mrb[0].mxu0 %v2840
  %v6423 = vpop.f32.mrb[0].mxu0
  %v6424 = vadd.f32 %v6071, %v6423
  %v6425 = vpop.f32.mrb[0].mxu0
  %v6426 = vadd.f32 %v6073, %v6425
  %v6427 = vpop.f32.mrb[0].mxu0
  %v6428 = vadd.f32 %v6075, %v6427
  %v6429 = vpop.f32.mrb[0].mxu0
  %v6430 = vadd.f32 %v6077, %v6429
  %6431 = vmatprep.mubr.bf16.mxu0 %v2859
  %6432 = vmatmul.mubr.bf16.gmra.mrb[0].mxu0 %v2858
  %v6433 = vpop.f32.mrb[0].mxu0
  %v6434 = vadd.f32 %v6081, %v6433
  %v6435 = vpop.f32.mrb[0].mxu0
  %v6436 = vadd.f32 %v6083, %v6435
  %v6437 = vpop.f32.mrb[0].mxu0
  %v6438 = vadd.f32 %v6085, %v6437
  %v6439 = vpop.f32.mrb[0].mxu0
  %v6440 = vadd.f32 %v6087, %v6439
  %6441 = vmatprep.mubr.bf16.mxu0 %v2877
  %6442 = vmatmul.mubr.bf16.gmra.mrb[0].mxu0 %v2876
  %v6443 = vpop.f32.mrb[0].mxu0
  %v6444 = vadd.f32 %v6091, %v6443
  %v6445 = vpop.f32.mrb[0].mxu0
  %v6446 = vadd.f32 %v6093, %v6445
  %v6447 = vpop.f32.mrb[0].mxu0
  %v6448 = vadd.f32 %v6095, %v6447
  %v6449 = vpop.f32.mrb[0].mxu0
  %v6450 = vadd.f32 %v6097, %v6449
  %6451 = vmatprep.mubr.bf16.mxu0 %v2895
  %6452 = vmatmul.mubr.bf16.gmra.mrb[0].mxu0 %v2894
  %v6453 = vpop.f32.mrb[0].mxu0
  %v6454 = vadd.f32 %v6101, %v6453
  %v6455 = vpop.f32.mrb[0].mxu0
  %v6456 = vadd.f32 %v6103, %v6455
  %v6457 = vpop.f32.mrb[0].mxu0
  %v6458 = vadd.f32 %v6105, %v6457
  %v6459 = vpop.f32.mrb[0].mxu0
  %v6460 = vadd.f32 %v6107, %v6459
  %6461 = vmatprep.mubr.bf16.mxu0 %v2913
  %6462 = vmatmul.mubr.bf16.gmra.mrb[0].mxu0 %v2912
  %v6463 = vpop.f32.mrb[0].mxu0
  %v6464 = vadd.f32 %v6111, %v6463
  %v6465 = vpop.f32.mrb[0].mxu0
  %v6466 = vadd.f32 %v6113, %v6465
  %v6467 = vpop.f32.mrb[0].mxu0
  %v6468 = vadd.f32 %v6115, %v6467
  %v6469 = vpop.f32.mrb[0].mxu0
  %v6470 = vadd.f32 %v6117, %v6469
  %6471 = vmatprep.mubr.bf16.mxu0 %v2931
  %6472 = vmatmul.mubr.bf16.gmra.mrb[0].mxu0 %v2930
  %v6473 = vpop.f32.mrb[0].mxu0
  %v6474 = vadd.f32 %v6121, %v6473
  %v6475 = vpop.f32.mrb[0].mxu0
  %v6476 = vadd.f32 %v6123, %v6475
  %v6477 = vpop.f32.mrb[0].mxu0
  %v6478 = vadd.f32 %v6125, %v6477
  %v6479 = vpop.f32.mrb[0].mxu0
  %v6480 = vadd.f32 %v6127, %v6479
  %6481 = vmatprep.mubr.bf16.mxu0 %v2949
  %6482 = vmatmul.mubr.bf16.gmra.mrb[0].mxu0 %v2948
  %v6483 = vpop.f32.mrb[0].mxu0
  %v6484 = vadd.f32 %v6131, %v6483
  %v6485 = vpop.f32.mrb[0].mxu0
  %v6486 = vadd.f32 %v6133, %v6485
  %v6487 = vpop.f32.mrb[0].mxu0
  %v6488 = vadd.f32 %v6135, %v6487
  %v6489 = vpop.f32.mrb[0].mxu0
  %v6490 = vadd.f32 %v6137, %v6489
  %6491 = vmatprep.mubr.bf16.mxu0 %v2967
  %6492 = vmatmul.mubr.bf16.gmra.mrb[0].mxu0 %v2966
  %v6493 = vpop.f32.mrb[0].mxu0
  %v6494 = vadd.f32 %v6141, %v6493
  %v6495 = vpop.f32.mrb[0].mxu0
  %v6496 = vadd.f32 %v6143, %v6495
  %v6497 = vpop.f32.mrb[0].mxu0
  %v6498 = vadd.f32 %v6145, %v6497
  %v6499 = vpop.f32.mrb[0].mxu0
  %v6500 = vadd.f32 %v6147, %v6499
  %6501 = vmatprep.mubr.bf16.mxu0 %v2985
  %6502 = vmatmul.mubr.bf16.gmra.mrb[0].mxu0 %v2984
  %v6503 = vpop.f32.mrb[0].mxu0
  %v6504 = vadd.f32 %v6151, %v6503
  %v6505 = vpop.f32.mrb[0].mxu0
  %v6506 = vadd.f32 %v6153, %v6505
  %v6507 = vpop.f32.mrb[0].mxu0
  %v6508 = vadd.f32 %v6155, %v6507
  %v6509 = vpop.f32.mrb[0].mxu0
  %v6510 = vadd.f32 %v6157, %v6509
  %6511 = vmatprep.mubr.bf16.mxu0 %v3003
  %6512 = vmatmul.mubr.bf16.gmra.mrb[0].mxu0 %v3002
  %v6513 = vpop.f32.mrb[0].mxu0
  %v6514 = vadd.f32 %v6161, %v6513
  %v6515 = vpop.f32.mrb[0].mxu0
  %v6516 = vadd.f32 %v6163, %v6515
  %v6517 = vpop.f32.mrb[0].mxu0
  %v6518 = vadd.f32 %v6165, %v6517
  %v6519 = vpop.f32.mrb[0].mxu0
  %v6520 = vadd.f32 %v6167, %v6519
  %6521 = vmatprep.mubr.bf16.mxu0 %v3021
  %6522 = vmatmul.mubr.bf16.gmra.mrb[0].mxu0 %v3020
  %v6523 = vpop.f32.mrb[0].mxu0
  %v6524 = vadd.f32 %v6171, %v6523
  %v6525 = vpop.f32.mrb[0].mxu0
  %v6526 = vadd.f32 %v6173, %v6525
  %v6527 = vpop.f32.mrb[0].mxu0
  %v6528 = vadd.f32 %v6175, %v6527
  %v6529 = vpop.f32.mrb[0].mxu0
  %v6530 = vadd.f32 %v6177, %v6529
  %6531 = vmatprep.mubr.bf16.mxu0 %v3039
  %6532 = vmatmul.mubr.bf16.gmra.mrb[0].mxu0 %v3038
  %v6533 = vpop.f32.mrb[0].mxu0
  %v6534 = vadd.f32 %v6181, %v6533
  %v6535 = vpop.f32.mrb[0].mxu0
  %v6536 = vadd.f32 %v6183, %v6535
  %v6537 = vpop.f32.mrb[0].mxu0
  %v6538 = vadd.f32 %v6185, %v6537
  %v6539 = vpop.f32.mrb[0].mxu0
  %v6540 = vadd.f32 %v6187, %v6539
  %6541 = vmatprep.mubr.bf16.mxu0 %v3057
  %6542 = vmatmul.mubr.bf16.gmra.mrb[0].mxu0 %v3056
  %v6543 = vpop.f32.mrb[0].mxu0
  %v6544 = vadd.f32 %v6191, %v6543
  %v6545 = vpop.f32.mrb[0].mxu0
  %v6546 = vadd.f32 %v6193, %v6545
  %v6547 = vpop.f32.mrb[0].mxu0
  %v6548 = vadd.f32 %v6195, %v6547
  %v6549 = vpop.f32.mrb[0].mxu0
  %v6550 = vadd.f32 %v6197, %v6549
  %6551 = vmatprep.mubr.bf16.mxu0 %v3075
  %6552 = vmatmul.mubr.bf16.gmra.mrb[0].mxu0 %v3074
  %v6553 = vpop.f32.mrb[0].mxu0
  %v6554 = vadd.f32 %v6201, %v6553
  %v6555 = vpop.f32.mrb[0].mxu0
  %v6556 = vadd.f32 %v6203, %v6555
  %v6557 = vpop.f32.mrb[0].mxu0
  %v6558 = vadd.f32 %v6205, %v6557
  %v6559 = vpop.f32.mrb[0].mxu0
  %v6560 = vadd.f32 %v6207, %v6559
  %6561 = vmatprep.mubr.bf16.mxu0 %v3093
  %6562 = vmatmul.mubr.bf16.gmra.mrb[0].mxu0 %v3092
  %v6563 = vpop.f32.mrb[0].mxu0
  %v6564 = vadd.f32 %v6211, %v6563
  %v6565 = vpop.f32.mrb[0].mxu0
  %v6566 = vadd.f32 %v6213, %v6565
  %v6567 = vpop.f32.mrb[0].mxu0
  %v6568 = vadd.f32 %v6215, %v6567
  %v6569 = vpop.f32.mrb[0].mxu0
  %v6570 = vadd.f32 %v6217, %v6569
  %6571 = vmatprep.mubr.bf16.mxu0 %v3111
  %6572 = vmatmul.mubr.bf16.gmra.mrb[0].mxu0 %v3110
  %v6573 = vpop.f32.mrb[0].mxu0
  %v6574 = vadd.f32 %v6221, %v6573
  %v6575 = vpop.f32.mrb[0].mxu0
  %v6576 = vadd.f32 %v6223, %v6575
  %v6577 = vpop.f32.mrb[0].mxu0
  %v6578 = vadd.f32 %v6225, %v6577
  %v6579 = vpop.f32.mrb[0].mxu0
  %v6580 = vadd.f32 %v6227, %v6579
  %6581 = vmatprep.mubr.bf16.mxu0 %v3129
  %6582 = vmatmul.mubr.bf16.gmra.mrb[0].mxu0 %v3128
  %v6583 = vpop.f32.mrb[0].mxu0
  %v6584 = vadd.f32 %v6231, %v6583
  %v6585 = vpop.f32.mrb[0].mxu0
  %v6586 = vadd.f32 %v6233, %v6585
  %v6587 = vpop.f32.mrb[0].mxu0
  %v6588 = vadd.f32 %v6235, %v6587
  %v6589 = vpop.f32.mrb[0].mxu0
  %v6590 = vadd.f32 %v6237, %v6589
  %6591 = vmatprep.mubr.bf16.mxu0 %v3147
  %6592 = vmatmul.mubr.bf16.gmra.mrb[0].mxu0 %v3146
  %v6593 = vpop.f32.mrb[0].mxu0
  %v6594 = vadd.f32 %v6241, %v6593
  %v6595 = vpop.f32.mrb[0].mxu0
  %v6596 = vadd.f32 %v6243, %v6595
  %v6597 = vpop.f32.mrb[0].mxu0
  %v6598 = vadd.f32 %v6245, %v6597
  %v6599 = vpop.f32.mrb[0].mxu0
  %v6600 = vadd.f32 %v6247, %v6599
  %6601 = vmatprep.mubr.bf16.mxu0 %v3165
  %6602 = vmatmul.mubr.bf16.gmra.mrb[0].mxu0 %v3164
  %v6603 = vpop.f32.mrb[0].mxu0
  %v6604 = vadd.f32 %v6251, %v6603
  %v6605 = vpop.f32.mrb[0].mxu0
  %v6606 = vadd.f32 %v6253, %v6605
  %v6607 = vpop.f32.mrb[0].mxu0
  %v6608 = vadd.f32 %v6255, %v6607
  %v6609 = vpop.f32.mrb[0].mxu0
  %v6610 = vadd.f32 %v6257, %v6609
  %6611 = vmatprep.mubr.bf16.mxu0 %v3183
  %6612 = vmatmul.mubr.bf16.gmra.mrb[0].mxu0 %v3182
  %v6613 = vpop.f32.mrb[0].mxu0
  %v6614 = vadd.f32 %v6261, %v6613
  %v6615 = vpop.f32.mrb[0].mxu0
  %v6616 = vadd.f32 %v6263, %v6615
  %v6617 = vpop.f32.mrb[0].mxu0
  %v6618 = vadd.f32 %v6265, %v6617
  %v6619 = vpop.f32.mrb[0].mxu0
  %v6620 = vadd.f32 %v6267, %v6619
  %6621 = vdwg.mxu0
  %6622 = vmatprep.subr.bf16.mxu0 %v4763
  %6623 = vmatpush1.bf16.msra.mxu0 %v4762
  %6624 = vmatprep.subr.bf16.mxu0 %v4765
  %6625 = vmatpush1.bf16.msra.mxu0 %v4764
  %6626 = vmatprep.subr.bf16.mxu0 %v4767
  %6627 = vmatpush1.bf16.msra.mxu0 %v4766
  %6628 = vmatprep.subr.bf16.mxu0 %v4769
  %6629 = vmatpush1.bf16.msra.mxu0 %v4768
  %6630 = vmatprep.subr.bf16.mxu0 %v4771
  %6631 = vmatpush1.bf16.msra.mxu0 %v4770
  %6632 = vmatprep.subr.bf16.mxu0 %v4773
  %6633 = vmatpush1.bf16.msra.mxu0 %v4772
  %6634 = vmatprep.subr.bf16.mxu0 %v4775
  %6635 = vmatpush1.bf16.msra.mxu0 %v4774
  %6636 = vmatprep.subr.bf16.mxu0 %v4777
  %6637 = vmatpush1.bf16.msra.mxu0 %v4776
  %6638 = vmatprep.subr.bf16.mxu0 %v4779
  %6639 = vmatpush1.bf16.msra.mxu0 %v4778
  %6640 = vmatprep.subr.bf16.mxu0 %v4781
  %6641 = vmatpush1.bf16.msra.mxu0 %v4780
  %6642 = vmatprep.subr.bf16.mxu0 %v4783
  %6643 = vmatpush1.bf16.msra.mxu0 %v4782
  %6644 = vmatprep.subr.bf16.mxu0 %v4785
  %6645 = vmatpush1.bf16.msra.mxu0 %v4784
  %6646 = vmatprep.subr.bf16.mxu0 %v4787
  %6647 = vmatpush1.bf16.msra.mxu0 %v4786
  %6648 = vmatprep.subr.bf16.mxu0 %v4789
  %6649 = vmatpush1.bf16.msra.mxu0 %v4788
  %6650 = vmatprep.subr.bf16.mxu0 %v4791
  %6651 = vmatpush1.bf16.msra.mxu0 %v4790
  %6652 = vmatprep.subr.bf16.mxu0 %v4793
  %6653 = vmatpush1.bf16.msra.mxu0 %v4792
  %6654 = vmatprep.mubr.bf16.mxu0 %v2627
  %6655 = vmatmul.mubr.bf16.gmra.mrb[0].mxu0 %v2626
  %v6656 = vpop.f32.mrb[0].mxu0
  %v6657 = vadd.f32 %v6304, %v6656
  %v6658 = vpop.f32.mrb[0].mxu0
  %v6659 = vadd.f32 %v6306, %v6658
  %v6660 = vpop.f32.mrb[0].mxu0
  %v6661 = vadd.f32 %v6308, %v6660
  %v6662 = vpop.f32.mrb[0].mxu0
  %v6663 = vadd.f32 %v6310, %v6662
  %6664 = vmatprep.mubr.bf16.mxu0 %v2645
  %6665 = vmatmul.mubr.bf16.gmra.mrb[0].mxu0 %v2644
  %v6666 = vpop.f32.mrb[0].mxu0
  %v6667 = vadd.f32 %v6314, %v6666
  %v6668 = vpop.f32.mrb[0].mxu0
  %v6669 = vadd.f32 %v6316, %v6668
  %v6670 = vpop.f32.mrb[0].mxu0
  %v6671 = vadd.f32 %v6318, %v6670
  %v6672 = vpop.f32.mrb[0].mxu0
  %v6673 = vadd.f32 %v6320, %v6672
  %6674 = vmatprep.mubr.bf16.mxu0 %v2663
  %6675 = vmatmul.mubr.bf16.gmra.mrb[0].mxu0 %v2662
  %v6676 = vpop.f32.mrb[0].mxu0
  %v6677 = vadd.f32 %v6324, %v6676
  %v6678 = vpop.f32.mrb[0].mxu0
  %v6679 = vadd.f32 %v6326, %v6678
  %v6680 = vpop.f32.mrb[0].mxu0
  %v6681 = vadd.f32 %v6328, %v6680
  %v6682 = vpop.f32.mrb[0].mxu0
  %v6683 = vadd.f32 %v6330, %v6682
  %6684 = vmatprep.mubr.bf16.mxu0 %v2681
  %6685 = vmatmul.mubr.bf16.gmra.mrb[0].mxu0 %v2680
  %v6686 = vpop.f32.mrb[0].mxu0
  %v6687 = vadd.f32 %v6334, %v6686
  %v6688 = vpop.f32.mrb[0].mxu0
  %v6689 = vadd.f32 %v6336, %v6688
  %v6690 = vpop.f32.mrb[0].mxu0
  %v6691 = vadd.f32 %v6338, %v6690
  %v6692 = vpop.f32.mrb[0].mxu0
  %v6693 = vadd.f32 %v6340, %v6692
  %6694 = vmatprep.mubr.bf16.mxu0 %v2699
  %6695 = vmatmul.mubr.bf16.gmra.mrb[0].mxu0 %v2698
  %v6696 = vpop.f32.mrb[0].mxu0
  %v6697 = vadd.f32 %v6344, %v6696
  %v6698 = vpop.f32.mrb[0].mxu0
  %v6699 = vadd.f32 %v6346, %v6698
  %v6700 = vpop.f32.mrb[0].mxu0
  %v6701 = vadd.f32 %v6348, %v6700
  %v6702 = vpop.f32.mrb[0].mxu0
  %v6703 = vadd.f32 %v6350, %v6702
  %6704 = vmatprep.mubr.bf16.mxu0 %v2717
  %6705 = vmatmul.mubr.bf16.gmra.mrb[0].mxu0 %v2716
  %v6706 = vpop.f32.mrb[0].mxu0
  %v6707 = vadd.f32 %v6354, %v6706
  %v6708 = vpop.f32.mrb[0].mxu0
  %v6709 = vadd.f32 %v6356, %v6708
  %v6710 = vpop.f32.mrb[0].mxu0
  %v6711 = vadd.f32 %v6358, %v6710
  %v6712 = vpop.f32.mrb[0].mxu0
  %v6713 = vadd.f32 %v6360, %v6712
  %6714 = vmatprep.mubr.bf16.mxu0 %v2735
  %6715 = vmatmul.mubr.bf16.gmra.mrb[0].mxu0 %v2734
  %v6716 = vpop.f32.mrb[0].mxu0
  %v6717 = vadd.f32 %v6364, %v6716
  %v6718 = vpop.f32.mrb[0].mxu0
  %v6719 = vadd.f32 %v6366, %v6718
  %v6720 = vpop.f32.mrb[0].mxu0
  %v6721 = vadd.f32 %v6368, %v6720
  %v6722 = vpop.f32.mrb[0].mxu0
  %v6723 = vadd.f32 %v6370, %v6722
  %6724 = vmatprep.mubr.bf16.mxu0 %v2753
  %6725 = vmatmul.mubr.bf16.gmra.mrb[0].mxu0 %v2752
  %v6726 = vpop.f32.mrb[0].mxu0
  %v6727 = vadd.f32 %v6374, %v6726
  %v6728 = vpop.f32.mrb[0].mxu0
  %v6729 = vadd.f32 %v6376, %v6728
  %v6730 = vpop.f32.mrb[0].mxu0
  %v6731 = vadd.f32 %v6378, %v6730
  %v6732 = vpop.f32.mrb[0].mxu0
  %v6733 = vadd.f32 %v6380, %v6732
  %6734 = vmatprep.mubr.bf16.mxu0 %v2771
  %6735 = vmatmul.mubr.bf16.gmra.mrb[0].mxu0 %v2770
  %v6736 = vpop.f32.mrb[0].mxu0
  %v6737 = vadd.f32 %v6384, %v6736
  %v6738 = vpop.f32.mrb[0].mxu0
  %v6739 = vadd.f32 %v6386, %v6738
  %v6740 = vpop.f32.mrb[0].mxu0
  %v6741 = vadd.f32 %v6388, %v6740
  %v6742 = vpop.f32.mrb[0].mxu0
  %v6743 = vadd.f32 %v6390, %v6742
  %6744 = vmatprep.mubr.bf16.mxu0 %v2789
  %6745 = vmatmul.mubr.bf16.gmra.mrb[0].mxu0 %v2788
  %v6746 = vpop.f32.mrb[0].mxu0
  %v6747 = vadd.f32 %v6394, %v6746
  %v6748 = vpop.f32.mrb[0].mxu0
  %v6749 = vadd.f32 %v6396, %v6748
  %v6750 = vpop.f32.mrb[0].mxu0
  %v6751 = vadd.f32 %v6398, %v6750
  %v6752 = vpop.f32.mrb[0].mxu0
  %v6753 = vadd.f32 %v6400, %v6752
  %6754 = vmatprep.mubr.bf16.mxu0 %v2807
  %6755 = vmatmul.mubr.bf16.gmra.mrb[0].mxu0 %v2806
  %v6756 = vpop.f32.mrb[0].mxu0
  %v6757 = vadd.f32 %v6404, %v6756
  %v6758 = vpop.f32.mrb[0].mxu0
  %v6759 = vadd.f32 %v6406, %v6758
  %v6760 = vpop.f32.mrb[0].mxu0
  %v6761 = vadd.f32 %v6408, %v6760
  %v6762 = vpop.f32.mrb[0].mxu0
  %v6763 = vadd.f32 %v6410, %v6762
  %6764 = vmatprep.mubr.bf16.mxu0 %v2825
  %6765 = vmatmul.mubr.bf16.gmra.mrb[0].mxu0 %v2824
  %v6766 = vpop.f32.mrb[0].mxu0
  %v6767 = vadd.f32 %v6414, %v6766
  %v6768 = vpop.f32.mrb[0].mxu0
  %v6769 = vadd.f32 %v6416, %v6768
  %v6770 = vpop.f32.mrb[0].mxu0
  %v6771 = vadd.f32 %v6418, %v6770
  %v6772 = vpop.f32.mrb[0].mxu0
  %v6773 = vadd.f32 %v6420, %v6772
  %6774 = vmatprep.mubr.bf16.mxu0 %v2843
  %6775 = vmatmul.mubr.bf16.gmra.mrb[0].mxu0 %v2842
  %v6776 = vpop.f32.mrb[0].mxu0
  %v6777 = vadd.f32 %v6424, %v6776
  %v6778 = vpop.f32.mrb[0].mxu0
  %v6779 = vadd.f32 %v6426, %v6778
  %v6780 = vpop.f32.mrb[0].mxu0
  %v6781 = vadd.f32 %v6428, %v6780
  %v6782 = vpop.f32.mrb[0].mxu0
  %v6783 = vadd.f32 %v6430, %v6782
  %6784 = vmatprep.mubr.bf16.mxu0 %v2861
  %6785 = vmatmul.mubr.bf16.gmra.mrb[0].mxu0 %v2860
  %v6786 = vpop.f32.mrb[0].mxu0
  %v6787 = vadd.f32 %v6434, %v6786
  %v6788 = vpop.f32.mrb[0].mxu0
  %v6789 = vadd.f32 %v6436, %v6788
  %v6790 = vpop.f32.mrb[0].mxu0
  %v6791 = vadd.f32 %v6438, %v6790
  %v6792 = vpop.f32.mrb[0].mxu0
  %v6793 = vadd.f32 %v6440, %v6792
  %6794 = vmatprep.mubr.bf16.mxu0 %v2879
  %6795 = vmatmul.mubr.bf16.gmra.mrb[0].mxu0 %v2878
  %v6796 = vpop.f32.mrb[0].mxu0
  %v6797 = vadd.f32 %v6444, %v6796
  %v6798 = vpop.f32.mrb[0].mxu0
  %v6799 = vadd.f32 %v6446, %v6798
  %v6800 = vpop.f32.mrb[0].mxu0
  %v6801 = vadd.f32 %v6448, %v6800
  %v6802 = vpop.f32.mrb[0].mxu0
  %v6803 = vadd.f32 %v6450, %v6802
  %6804 = vmatprep.mubr.bf16.mxu0 %v2897
  %6805 = vmatmul.mubr.bf16.gmra.mrb[0].mxu0 %v2896
  %v6806 = vpop.f32.mrb[0].mxu0
  %v6807 = vadd.f32 %v6454, %v6806
  %v6808 = vpop.f32.mrb[0].mxu0
  %v6809 = vadd.f32 %v6456, %v6808
  %v6810 = vpop.f32.mrb[0].mxu0
  %v6811 = vadd.f32 %v6458, %v6810
  %v6812 = vpop.f32.mrb[0].mxu0
  %v6813 = vadd.f32 %v6460, %v6812
  %6814 = vmatprep.mubr.bf16.mxu0 %v2915
  %6815 = vmatmul.mubr.bf16.gmra.mrb[0].mxu0 %v2914
  %v6816 = vpop.f32.mrb[0].mxu0
  %v6817 = vadd.f32 %v6464, %v6816
  %v6818 = vpop.f32.mrb[0].mxu0
  %v6819 = vadd.f32 %v6466, %v6818
  %v6820 = vpop.f32.mrb[0].mxu0
  %v6821 = vadd.f32 %v6468, %v6820
  %v6822 = vpop.f32.mrb[0].mxu0
  %v6823 = vadd.f32 %v6470, %v6822
  %6824 = vmatprep.mubr.bf16.mxu0 %v2933
  %6825 = vmatmul.mubr.bf16.gmra.mrb[0].mxu0 %v2932
  %v6826 = vpop.f32.mrb[0].mxu0
  %v6827 = vadd.f32 %v6474, %v6826
  %v6828 = vpop.f32.mrb[0].mxu0
  %v6829 = vadd.f32 %v6476, %v6828
  %v6830 = vpop.f32.mrb[0].mxu0
  %v6831 = vadd.f32 %v6478, %v6830
  %v6832 = vpop.f32.mrb[0].mxu0
  %v6833 = vadd.f32 %v6480, %v6832
  %6834 = vmatprep.mubr.bf16.mxu0 %v2951
  %6835 = vmatmul.mubr.bf16.gmra.mrb[0].mxu0 %v2950
  %v6836 = vpop.f32.mrb[0].mxu0
  %v6837 = vadd.f32 %v6484, %v6836
  %v6838 = vpop.f32.mrb[0].mxu0
  %v6839 = vadd.f32 %v6486, %v6838
  %v6840 = vpop.f32.mrb[0].mxu0
  %v6841 = vadd.f32 %v6488, %v6840
  %v6842 = vpop.f32.mrb[0].mxu0
  %v6843 = vadd.f32 %v6490, %v6842
  %6844 = vmatprep.mubr.bf16.mxu0 %v2969
  %6845 = vmatmul.mubr.bf16.gmra.mrb[0].mxu0 %v2968
  %v6846 = vpop.f32.mrb[0].mxu0
  %v6847 = vadd.f32 %v6494, %v6846
  %v6848 = vpop.f32.mrb[0].mxu0
  %v6849 = vadd.f32 %v6496, %v6848
  %v6850 = vpop.f32.mrb[0].mxu0
  %v6851 = vadd.f32 %v6498, %v6850
  %v6852 = vpop.f32.mrb[0].mxu0
  %v6853 = vadd.f32 %v6500, %v6852
  %6854 = vmatprep.mubr.bf16.mxu0 %v2987
  %6855 = vmatmul.mubr.bf16.gmra.mrb[0].mxu0 %v2986
  %v6856 = vpop.f32.mrb[0].mxu0
  %v6857 = vadd.f32 %v6504, %v6856
  %v6858 = vpop.f32.mrb[0].mxu0
  %v6859 = vadd.f32 %v6506, %v6858
  %v6860 = vpop.f32.mrb[0].mxu0
  %v6861 = vadd.f32 %v6508, %v6860
  %v6862 = vpop.f32.mrb[0].mxu0
  %v6863 = vadd.f32 %v6510, %v6862
  %6864 = vmatprep.mubr.bf16.mxu0 %v3005
  %6865 = vmatmul.mubr.bf16.gmra.mrb[0].mxu0 %v3004
  %v6866 = vpop.f32.mrb[0].mxu0
  %v6867 = vadd.f32 %v6514, %v6866
  %v6868 = vpop.f32.mrb[0].mxu0
  %v6869 = vadd.f32 %v6516, %v6868
  %v6870 = vpop.f32.mrb[0].mxu0
  %v6871 = vadd.f32 %v6518, %v6870
  %v6872 = vpop.f32.mrb[0].mxu0
  %v6873 = vadd.f32 %v6520, %v6872
  %6874 = vmatprep.mubr.bf16.mxu0 %v3023
  %6875 = vmatmul.mubr.bf16.gmra.mrb[0].mxu0 %v3022
  %v6876 = vpop.f32.mrb[0].mxu0
  %v6877 = vadd.f32 %v6524, %v6876
  %v6878 = vpop.f32.mrb[0].mxu0
  %v6879 = vadd.f32 %v6526, %v6878
  %v6880 = vpop.f32.mrb[0].mxu0
  %v6881 = vadd.f32 %v6528, %v6880
  %v6882 = vpop.f32.mrb[0].mxu0
  %v6883 = vadd.f32 %v6530, %v6882
  %6884 = vmatprep.mubr.bf16.mxu0 %v3041
  %6885 = vmatmul.mubr.bf16.gmra.mrb[0].mxu0 %v3040
  %v6886 = vpop.f32.mrb[0].mxu0
  %v6887 = vadd.f32 %v6534, %v6886
  %v6888 = vpop.f32.mrb[0].mxu0
  %v6889 = vadd.f32 %v6536, %v6888
  %v6890 = vpop.f32.mrb[0].mxu0
  %v6891 = vadd.f32 %v6538, %v6890
  %v6892 = vpop.f32.mrb[0].mxu0
  %v6893 = vadd.f32 %v6540, %v6892
  %6894 = vmatprep.mubr.bf16.mxu0 %v3059
  %6895 = vmatmul.mubr.bf16.gmra.mrb[0].mxu0 %v3058
  %v6896 = vpop.f32.mrb[0].mxu0
  %v6897 = vadd.f32 %v6544, %v6896
  %v6898 = vpop.f32.mrb[0].mxu0
  %v6899 = vadd.f32 %v6546, %v6898
  %v6900 = vpop.f32.mrb[0].mxu0
  %v6901 = vadd.f32 %v6548, %v6900
  %v6902 = vpop.f32.mrb[0].mxu0
  %v6903 = vadd.f32 %v6550, %v6902
  %6904 = vmatprep.mubr.bf16.mxu0 %v3077
  %6905 = vmatmul.mubr.bf16.gmra.mrb[0].mxu0 %v3076
  %v6906 = vpop.f32.mrb[0].mxu0
  %v6907 = vadd.f32 %v6554, %v6906
  %v6908 = vpop.f32.mrb[0].mxu0
  %v6909 = vadd.f32 %v6556, %v6908
  %v6910 = vpop.f32.mrb[0].mxu0
  %v6911 = vadd.f32 %v6558, %v6910
  %v6912 = vpop.f32.mrb[0].mxu0
  %v6913 = vadd.f32 %v6560, %v6912
  %6914 = vmatprep.mubr.bf16.mxu0 %v3095
  %6915 = vmatmul.mubr.bf16.gmra.mrb[0].mxu0 %v3094
  %v6916 = vpop.f32.mrb[0].mxu0
  %v6917 = vadd.f32 %v6564, %v6916
  %v6918 = vpop.f32.mrb[0].mxu0
  %v6919 = vadd.f32 %v6566, %v6918
  %v6920 = vpop.f32.mrb[0].mxu0
  %v6921 = vadd.f32 %v6568, %v6920
  %v6922 = vpop.f32.mrb[0].mxu0
  %v6923 = vadd.f32 %v6570, %v6922
  %6924 = vmatprep.mubr.bf16.mxu0 %v3113
  %6925 = vmatmul.mubr.bf16.gmra.mrb[0].mxu0 %v3112
  %v6926 = vpop.f32.mrb[0].mxu0
  %v6927 = vadd.f32 %v6574, %v6926
  %v6928 = vpop.f32.mrb[0].mxu0
  %v6929 = vadd.f32 %v6576, %v6928
  %v6930 = vpop.f32.mrb[0].mxu0
  %v6931 = vadd.f32 %v6578, %v6930
  %v6932 = vpop.f32.mrb[0].mxu0
  %v6933 = vadd.f32 %v6580, %v6932
  %6934 = vmatprep.mubr.bf16.mxu0 %v3131
  %6935 = vmatmul.mubr.bf16.gmra.mrb[0].mxu0 %v3130
  %v6936 = vpop.f32.mrb[0].mxu0
  %v6937 = vadd.f32 %v6584, %v6936
  %v6938 = vpop.f32.mrb[0].mxu0
  %v6939 = vadd.f32 %v6586, %v6938
  %v6940 = vpop.f32.mrb[0].mxu0
  %v6941 = vadd.f32 %v6588, %v6940
  %v6942 = vpop.f32.mrb[0].mxu0
  %v6943 = vadd.f32 %v6590, %v6942
  %6944 = vmatprep.mubr.bf16.mxu0 %v3149
  %6945 = vmatmul.mubr.bf16.gmra.mrb[0].mxu0 %v3148
  %v6946 = vpop.f32.mrb[0].mxu0
  %v6947 = vadd.f32 %v6594, %v6946
  %v6948 = vpop.f32.mrb[0].mxu0
  %v6949 = vadd.f32 %v6596, %v6948
  %v6950 = vpop.f32.mrb[0].mxu0
  %v6951 = vadd.f32 %v6598, %v6950
  %v6952 = vpop.f32.mrb[0].mxu0
  %v6953 = vadd.f32 %v6600, %v6952
  %6954 = vmatprep.mubr.bf16.mxu0 %v3167
  %6955 = vmatmul.mubr.bf16.gmra.mrb[0].mxu0 %v3166
  %v6956 = vpop.f32.mrb[0].mxu0
  %v6957 = vadd.f32 %v6604, %v6956
  %v6958 = vpop.f32.mrb[0].mxu0
  %v6959 = vadd.f32 %v6606, %v6958
  %v6960 = vpop.f32.mrb[0].mxu0
  %v6961 = vadd.f32 %v6608, %v6960
  %v6962 = vpop.f32.mrb[0].mxu0
  %v6963 = vadd.f32 %v6610, %v6962
  %6964 = vmatprep.mubr.bf16.mxu0 %v3185
  %6965 = vmatmul.mubr.bf16.gmra.mrb[0].mxu0 %v3184
  %v6966 = vpop.f32.mrb[0].mxu0
  %v6967 = vadd.f32 %v6614, %v6966
  %v6968 = vpop.f32.mrb[0].mxu0
  %v6969 = vadd.f32 %v6616, %v6968
  %v6970 = vpop.f32.mrb[0].mxu0
  %v6971 = vadd.f32 %v6618, %v6970
  %v6972 = vpop.f32.mrb[0].mxu0
  %v6973 = vadd.f32 %v6620, %v6972
  %6974 = vdwg.mxu0
  %6975 = vmatprep.subr.bf16.mxu0 %v4795
  %6976 = vmatpush1.bf16.msra.mxu0 %v4794
  %6977 = vmatprep.subr.bf16.mxu0 %v4797
  %6978 = vmatpush1.bf16.msra.mxu0 %v4796
  %6979 = vmatprep.subr.bf16.mxu0 %v4799
  %6980 = vmatpush1.bf16.msra.mxu0 %v4798
  %6981 = vmatprep.subr.bf16.mxu0 %v4801
  %6982 = vmatpush1.bf16.msra.mxu0 %v4800
  %6983 = vmatprep.subr.bf16.mxu0 %v4803
  %6984 = vmatpush1.bf16.msra.mxu0 %v4802
  %6985 = vmatprep.subr.bf16.mxu0 %v4805
  %6986 = vmatpush1.bf16.msra.mxu0 %v4804
  %6987 = vmatprep.subr.bf16.mxu0 %v4807
  %6988 = vmatpush1.bf16.msra.mxu0 %v4806
  %6989 = vmatprep.subr.bf16.mxu0 %v4809
  %6990 = vmatpush1.bf16.msra.mxu0 %v4808
  %6991 = vmatprep.subr.bf16.mxu0 %v4811
  %6992 = vmatpush1.bf16.msra.mxu0 %v4810
  %6993 = vmatprep.subr.bf16.mxu0 %v4813
  %6994 = vmatpush1.bf16.msra.mxu0 %v4812
  %6995 = vmatprep.subr.bf16.mxu0 %v4815
  %6996 = vmatpush1.bf16.msra.mxu0 %v4814
  %6997 = vmatprep.subr.bf16.mxu0 %v4817
  %6998 = vmatpush1.bf16.msra.mxu0 %v4816
  %6999 = vmatprep.subr.bf16.mxu0 %v4819
  %7000 = vmatpush1.bf16.msra.mxu0 %v4818
  %7001 = vmatprep.subr.bf16.mxu0 %v4821
  %7002 = vmatpush1.bf16.msra.mxu0 %v4820
  %7003 = vmatprep.subr.bf16.mxu0 %v4823
  %7004 = vmatpush1.bf16.msra.mxu0 %v4822
  %7005 = vmatprep.subr.bf16.mxu0 %v4825
  %7006 = vmatpush1.bf16.msra.mxu0 %v4824
  %7007 = vmatprep.mubr.bf16.mxu0 %v2629
  %7008 = vmatmul.mubr.bf16.gmra.mrb[0].mxu0 %v2628
  %v7009 = vpop.f32.mrb[0].mxu0
  %v7010 = vadd.f32 %v6657, %v7009
  %v7011 = vpop.f32.mrb[0].mxu0
  %v7012 = vadd.f32 %v6659, %v7011
  %v7013 = vpop.f32.mrb[0].mxu0
  %v7014 = vadd.f32 %v6661, %v7013
  %v7015 = vpop.f32.mrb[0].mxu0
  %v7016 = vadd.f32 %v6663, %v7015
  %7017 = vmatprep.mubr.bf16.mxu0 %v2647
  %7018 = vmatmul.mubr.bf16.gmra.mrb[0].mxu0 %v2646
  %v7019 = vpop.f32.mrb[0].mxu0
  %v7020 = vadd.f32 %v6667, %v7019
  %v7021 = vpop.f32.mrb[0].mxu0
  %v7022 = vadd.f32 %v6669, %v7021
  %v7023 = vpop.f32.mrb[0].mxu0
  %v7024 = vadd.f32 %v6671, %v7023
  %v7025 = vpop.f32.mrb[0].mxu0
  %v7026 = vadd.f32 %v6673, %v7025
  %7027 = vmatprep.mubr.bf16.mxu0 %v2665
  %7028 = vmatmul.mubr.bf16.gmra.mrb[0].mxu0 %v2664
  %v7029 = vpop.f32.mrb[0].mxu0
  %v7030 = vadd.f32 %v6677, %v7029
  %v7031 = vpop.f32.mrb[0].mxu0
  %v7032 = vadd.f32 %v6679, %v7031
  %v7033 = vpop.f32.mrb[0].mxu0
  %v7034 = vadd.f32 %v6681, %v7033
  %v7035 = vpop.f32.mrb[0].mxu0
  %v7036 = vadd.f32 %v6683, %v7035
  %7037 = vmatprep.mubr.bf16.mxu0 %v2683
  %7038 = vmatmul.mubr.bf16.gmra.mrb[0].mxu0 %v2682
  %v7039 = vpop.f32.mrb[0].mxu0
  %v7040 = vadd.f32 %v6687, %v7039
  %v7041 = vpop.f32.mrb[0].mxu0
  %v7042 = vadd.f32 %v6689, %v7041
  %v7043 = vpop.f32.mrb[0].mxu0
  %v7044 = vadd.f32 %v6691, %v7043
  %v7045 = vpop.f32.mrb[0].mxu0
  %v7046 = vadd.f32 %v6693, %v7045
  %7047 = vmatprep.mubr.bf16.mxu0 %v2701
  %7048 = vmatmul.mubr.bf16.gmra.mrb[0].mxu0 %v2700
  %v7049 = vpop.f32.mrb[0].mxu0
  %v7050 = vadd.f32 %v6697, %v7049
  %v7051 = vpop.f32.mrb[0].mxu0
  %v7052 = vadd.f32 %v6699, %v7051
  %v7053 = vpop.f32.mrb[0].mxu0
  %v7054 = vadd.f32 %v6701, %v7053
  %v7055 = vpop.f32.mrb[0].mxu0
  %v7056 = vadd.f32 %v6703, %v7055
  %7057 = vmatprep.mubr.bf16.mxu0 %v2719
  %7058 = vmatmul.mubr.bf16.gmra.mrb[0].mxu0 %v2718
  %v7059 = vpop.f32.mrb[0].mxu0
  %v7060 = vadd.f32 %v6707, %v7059
  %v7061 = vpop.f32.mrb[0].mxu0
  %v7062 = vadd.f32 %v6709, %v7061
  %v7063 = vpop.f32.mrb[0].mxu0
  %v7064 = vadd.f32 %v6711, %v7063
  %v7065 = vpop.f32.mrb[0].mxu0
  %v7066 = vadd.f32 %v6713, %v7065
  %7067 = vmatprep.mubr.bf16.mxu0 %v2737
  %7068 = vmatmul.mubr.bf16.gmra.mrb[0].mxu0 %v2736
  %v7069 = vpop.f32.mrb[0].mxu0
  %v7070 = vadd.f32 %v6717, %v7069
  %v7071 = vpop.f32.mrb[0].mxu0
  %v7072 = vadd.f32 %v6719, %v7071
  %v7073 = vpop.f32.mrb[0].mxu0
  %v7074 = vadd.f32 %v6721, %v7073
  %v7075 = vpop.f32.mrb[0].mxu0
  %v7076 = vadd.f32 %v6723, %v7075
  %7077 = vmatprep.mubr.bf16.mxu0 %v2755
  %7078 = vmatmul.mubr.bf16.gmra.mrb[0].mxu0 %v2754
  %v7079 = vpop.f32.mrb[0].mxu0
  %v7080 = vadd.f32 %v6727, %v7079
  %v7081 = vpop.f32.mrb[0].mxu0
  %v7082 = vadd.f32 %v6729, %v7081
  %v7083 = vpop.f32.mrb[0].mxu0
  %v7084 = vadd.f32 %v6731, %v7083
  %v7085 = vpop.f32.mrb[0].mxu0
  %v7086 = vadd.f32 %v6733, %v7085
  %7087 = vmatprep.mubr.bf16.mxu0 %v2773
  %7088 = vmatmul.mubr.bf16.gmra.mrb[0].mxu0 %v2772
  %v7089 = vpop.f32.mrb[0].mxu0
  %v7090 = vadd.f32 %v6737, %v7089
  %v7091 = vpop.f32.mrb[0].mxu0
  %v7092 = vadd.f32 %v6739, %v7091
  %v7093 = vpop.f32.mrb[0].mxu0
  %v7094 = vadd.f32 %v6741, %v7093
  %v7095 = vpop.f32.mrb[0].mxu0
  %v7096 = vadd.f32 %v6743, %v7095
  %7097 = vmatprep.mubr.bf16.mxu0 %v2791
  %7098 = vmatmul.mubr.bf16.gmra.mrb[0].mxu0 %v2790
  %v7099 = vpop.f32.mrb[0].mxu0
  %v7100 = vadd.f32 %v6747, %v7099
  %v7101 = vpop.f32.mrb[0].mxu0
  %v7102 = vadd.f32 %v6749, %v7101
  %v7103 = vpop.f32.mrb[0].mxu0
  %v7104 = vadd.f32 %v6751, %v7103
  %v7105 = vpop.f32.mrb[0].mxu0
  %v7106 = vadd.f32 %v6753, %v7105
  %7107 = vmatprep.mubr.bf16.mxu0 %v2809
  %7108 = vmatmul.mubr.bf16.gmra.mrb[0].mxu0 %v2808
  %v7109 = vpop.f32.mrb[0].mxu0
  %v7110 = vadd.f32 %v6757, %v7109
  %v7111 = vpop.f32.mrb[0].mxu0
  %v7112 = vadd.f32 %v6759, %v7111
  %v7113 = vpop.f32.mrb[0].mxu0
  %v7114 = vadd.f32 %v6761, %v7113
  %v7115 = vpop.f32.mrb[0].mxu0
  %v7116 = vadd.f32 %v6763, %v7115
  %7117 = vmatprep.mubr.bf16.mxu0 %v2827
  %7118 = vmatmul.mubr.bf16.gmra.mrb[0].mxu0 %v2826
  %v7119 = vpop.f32.mrb[0].mxu0
  %v7120 = vadd.f32 %v6767, %v7119
  %v7121 = vpop.f32.mrb[0].mxu0
  %v7122 = vadd.f32 %v6769, %v7121
  %v7123 = vpop.f32.mrb[0].mxu0
  %v7124 = vadd.f32 %v6771, %v7123
  %v7125 = vpop.f32.mrb[0].mxu0
  %v7126 = vadd.f32 %v6773, %v7125
  %7127 = vmatprep.mubr.bf16.mxu0 %v2845
  %7128 = vmatmul.mubr.bf16.gmra.mrb[0].mxu0 %v2844
  %v7129 = vpop.f32.mrb[0].mxu0
  %v7130 = vadd.f32 %v6777, %v7129
  %v7131 = vpop.f32.mrb[0].mxu0
  %v7132 = vadd.f32 %v6779, %v7131
  %v7133 = vpop.f32.mrb[0].mxu0
  %v7134 = vadd.f32 %v6781, %v7133
  %v7135 = vpop.f32.mrb[0].mxu0
  %v7136 = vadd.f32 %v6783, %v7135
  %7137 = vmatprep.mubr.bf16.mxu0 %v2863
  %7138 = vmatmul.mubr.bf16.gmra.mrb[0].mxu0 %v2862
  %v7139 = vpop.f32.mrb[0].mxu0
  %v7140 = vadd.f32 %v6787, %v7139
  %v7141 = vpop.f32.mrb[0].mxu0
  %v7142 = vadd.f32 %v6789, %v7141
  %v7143 = vpop.f32.mrb[0].mxu0
  %v7144 = vadd.f32 %v6791, %v7143
  %v7145 = vpop.f32.mrb[0].mxu0
  %v7146 = vadd.f32 %v6793, %v7145
  %7147 = vmatprep.mubr.bf16.mxu0 %v2881
  %7148 = vmatmul.mubr.bf16.gmra.mrb[0].mxu0 %v2880
  %v7149 = vpop.f32.mrb[0].mxu0
  %v7150 = vadd.f32 %v6797, %v7149
  %v7151 = vpop.f32.mrb[0].mxu0
  %v7152 = vadd.f32 %v6799, %v7151
  %v7153 = vpop.f32.mrb[0].mxu0
  %v7154 = vadd.f32 %v6801, %v7153
  %v7155 = vpop.f32.mrb[0].mxu0
  %v7156 = vadd.f32 %v6803, %v7155
  %7157 = vmatprep.mubr.bf16.mxu0 %v2899
  %7158 = vmatmul.mubr.bf16.gmra.mrb[0].mxu0 %v2898
  %v7159 = vpop.f32.mrb[0].mxu0
  %v7160 = vadd.f32 %v6807, %v7159
  %v7161 = vpop.f32.mrb[0].mxu0
  %v7162 = vadd.f32 %v6809, %v7161
  %v7163 = vpop.f32.mrb[0].mxu0
  %v7164 = vadd.f32 %v6811, %v7163
  %v7165 = vpop.f32.mrb[0].mxu0
  %v7166 = vadd.f32 %v6813, %v7165
  %7167 = vmatprep.mubr.bf16.mxu0 %v2917
  %7168 = vmatmul.mubr.bf16.gmra.mrb[0].mxu0 %v2916
  %v7169 = vpop.f32.mrb[0].mxu0
  %v7170 = vadd.f32 %v6817, %v7169
  %v7171 = vpop.f32.mrb[0].mxu0
  %v7172 = vadd.f32 %v6819, %v7171
  %v7173 = vpop.f32.mrb[0].mxu0
  %v7174 = vadd.f32 %v6821, %v7173
  %v7175 = vpop.f32.mrb[0].mxu0
  %v7176 = vadd.f32 %v6823, %v7175
  %7177 = vmatprep.mubr.bf16.mxu0 %v2935
  %7178 = vmatmul.mubr.bf16.gmra.mrb[0].mxu0 %v2934
  %v7179 = vpop.f32.mrb[0].mxu0
  %v7180 = vadd.f32 %v6827, %v7179
  %v7181 = vpop.f32.mrb[0].mxu0
  %v7182 = vadd.f32 %v6829, %v7181
  %v7183 = vpop.f32.mrb[0].mxu0
  %v7184 = vadd.f32 %v6831, %v7183
  %v7185 = vpop.f32.mrb[0].mxu0
  %v7186 = vadd.f32 %v6833, %v7185
  %7187 = vmatprep.mubr.bf16.mxu0 %v2953
  %7188 = vmatmul.mubr.bf16.gmra.mrb[0].mxu0 %v2952
  %v7189 = vpop.f32.mrb[0].mxu0
  %v7190 = vadd.f32 %v6837, %v7189
  %v7191 = vpop.f32.mrb[0].mxu0
  %v7192 = vadd.f32 %v6839, %v7191
  %v7193 = vpop.f32.mrb[0].mxu0
  %v7194 = vadd.f32 %v6841, %v7193
  %v7195 = vpop.f32.mrb[0].mxu0
  %v7196 = vadd.f32 %v6843, %v7195
  %7197 = vmatprep.mubr.bf16.mxu0 %v2971
  %7198 = vmatmul.mubr.bf16.gmra.mrb[0].mxu0 %v2970
  %v7199 = vpop.f32.mrb[0].mxu0
  %v7200 = vadd.f32 %v6847, %v7199
  %v7201 = vpop.f32.mrb[0].mxu0
  %v7202 = vadd.f32 %v6849, %v7201
  %v7203 = vpop.f32.mrb[0].mxu0
  %v7204 = vadd.f32 %v6851, %v7203
  %v7205 = vpop.f32.mrb[0].mxu0
  %v7206 = vadd.f32 %v6853, %v7205
  %7207 = vmatprep.mubr.bf16.mxu0 %v2989
  %7208 = vmatmul.mubr.bf16.gmra.mrb[0].mxu0 %v2988
  %v7209 = vpop.f32.mrb[0].mxu0
  %v7210 = vadd.f32 %v6857, %v7209
  %v7211 = vpop.f32.mrb[0].mxu0
  %v7212 = vadd.f32 %v6859, %v7211
  %v7213 = vpop.f32.mrb[0].mxu0
  %v7214 = vadd.f32 %v6861, %v7213
  %v7215 = vpop.f32.mrb[0].mxu0
  %v7216 = vadd.f32 %v6863, %v7215
  %7217 = vmatprep.mubr.bf16.mxu0 %v3007
  %7218 = vmatmul.mubr.bf16.gmra.mrb[0].mxu0 %v3006
  %v7219 = vpop.f32.mrb[0].mxu0
  %v7220 = vadd.f32 %v6867, %v7219
  %v7221 = vpop.f32.mrb[0].mxu0
  %v7222 = vadd.f32 %v6869, %v7221
  %v7223 = vpop.f32.mrb[0].mxu0
  %v7224 = vadd.f32 %v6871, %v7223
  %v7225 = vpop.f32.mrb[0].mxu0
  %v7226 = vadd.f32 %v6873, %v7225
  %7227 = vmatprep.mubr.bf16.mxu0 %v3025
  %7228 = vmatmul.mubr.bf16.gmra.mrb[0].mxu0 %v3024
  %v7229 = vpop.f32.mrb[0].mxu0
  %v7230 = vadd.f32 %v6877, %v7229
  %v7231 = vpop.f32.mrb[0].mxu0
  %v7232 = vadd.f32 %v6879, %v7231
  %v7233 = vpop.f32.mrb[0].mxu0
  %v7234 = vadd.f32 %v6881, %v7233
  %v7235 = vpop.f32.mrb[0].mxu0
  %v7236 = vadd.f32 %v6883, %v7235
  %7237 = vmatprep.mubr.bf16.mxu0 %v3043
  %7238 = vmatmul.mubr.bf16.gmra.mrb[0].mxu0 %v3042
  %v7239 = vpop.f32.mrb[0].mxu0
  %v7240 = vadd.f32 %v6887, %v7239
  %v7241 = vpop.f32.mrb[0].mxu0
  %v7242 = vadd.f32 %v6889, %v7241
  %v7243 = vpop.f32.mrb[0].mxu0
  %v7244 = vadd.f32 %v6891, %v7243
  %v7245 = vpop.f32.mrb[0].mxu0
  %v7246 = vadd.f32 %v6893, %v7245
  %7247 = vmatprep.mubr.bf16.mxu0 %v3061
  %7248 = vmatmul.mubr.bf16.gmra.mrb[0].mxu0 %v3060
  %v7249 = vpop.f32.mrb[0].mxu0
  %v7250 = vadd.f32 %v6897, %v7249
  %v7251 = vpop.f32.mrb[0].mxu0
  %v7252 = vadd.f32 %v6899, %v7251
  %v7253 = vpop.f32.mrb[0].mxu0
  %v7254 = vadd.f32 %v6901, %v7253
  %v7255 = vpop.f32.mrb[0].mxu0
  %v7256 = vadd.f32 %v6903, %v7255
  %7257 = vmatprep.mubr.bf16.mxu0 %v3079
  %7258 = vmatmul.mubr.bf16.gmra.mrb[0].mxu0 %v3078
  %v7259 = vpop.f32.mrb[0].mxu0
  %v7260 = vadd.f32 %v6907, %v7259
  %v7261 = vpop.f32.mrb[0].mxu0
  %v7262 = vadd.f32 %v6909, %v7261
  %v7263 = vpop.f32.mrb[0].mxu0
  %v7264 = vadd.f32 %v6911, %v7263
  %v7265 = vpop.f32.mrb[0].mxu0
  %v7266 = vadd.f32 %v6913, %v7265
  %7267 = vmatprep.mubr.bf16.mxu0 %v3097
  %7268 = vmatmul.mubr.bf16.gmra.mrb[0].mxu0 %v3096
  %v7269 = vpop.f32.mrb[0].mxu0
  %v7270 = vadd.f32 %v6917, %v7269
  %v7271 = vpop.f32.mrb[0].mxu0
  %v7272 = vadd.f32 %v6919, %v7271
  %v7273 = vpop.f32.mrb[0].mxu0
  %v7274 = vadd.f32 %v6921, %v7273
  %v7275 = vpop.f32.mrb[0].mxu0
  %v7276 = vadd.f32 %v6923, %v7275
  %7277 = vmatprep.mubr.bf16.mxu0 %v3115
  %7278 = vmatmul.mubr.bf16.gmra.mrb[0].mxu0 %v3114
  %v7279 = vpop.f32.mrb[0].mxu0
  %v7280 = vadd.f32 %v6927, %v7279
  %v7281 = vpop.f32.mrb[0].mxu0
  %v7282 = vadd.f32 %v6929, %v7281
  %v7283 = vpop.f32.mrb[0].mxu0
  %v7284 = vadd.f32 %v6931, %v7283
  %v7285 = vpop.f32.mrb[0].mxu0
  %v7286 = vadd.f32 %v6933, %v7285
  %7287 = vmatprep.mubr.bf16.mxu0 %v3133
  %7288 = vmatmul.mubr.bf16.gmra.mrb[0].mxu0 %v3132
  %v7289 = vpop.f32.mrb[0].mxu0
  %v7290 = vadd.f32 %v6937, %v7289
  %v7291 = vpop.f32.mrb[0].mxu0
  %v7292 = vadd.f32 %v6939, %v7291
  %v7293 = vpop.f32.mrb[0].mxu0
  %v7294 = vadd.f32 %v6941, %v7293
  %v7295 = vpop.f32.mrb[0].mxu0
  %v7296 = vadd.f32 %v6943, %v7295
  %7297 = vmatprep.mubr.bf16.mxu0 %v3151
  %7298 = vmatmul.mubr.bf16.gmra.mrb[0].mxu0 %v3150
  %v7299 = vpop.f32.mrb[0].mxu0
  %v7300 = vadd.f32 %v6947, %v7299
  %v7301 = vpop.f32.mrb[0].mxu0
  %v7302 = vadd.f32 %v6949, %v7301
  %v7303 = vpop.f32.mrb[0].mxu0
  %v7304 = vadd.f32 %v6951, %v7303
  %v7305 = vpop.f32.mrb[0].mxu0
  %v7306 = vadd.f32 %v6953, %v7305
  %7307 = vmatprep.mubr.bf16.mxu0 %v3169
  %7308 = vmatmul.mubr.bf16.gmra.mrb[0].mxu0 %v3168
  %v7309 = vpop.f32.mrb[0].mxu0
  %v7310 = vadd.f32 %v6957, %v7309
  %v7311 = vpop.f32.mrb[0].mxu0
  %v7312 = vadd.f32 %v6959, %v7311
  %v7313 = vpop.f32.mrb[0].mxu0
  %v7314 = vadd.f32 %v6961, %v7313
  %v7315 = vpop.f32.mrb[0].mxu0
  %v7316 = vadd.f32 %v6963, %v7315
  %7317 = vmatprep.mubr.bf16.mxu0 %v3187
  %7318 = vmatmul.mubr.bf16.gmra.mrb[0].mxu0 %v3186
  %v7319 = vpop.f32.mrb[0].mxu0
  %v7320 = vadd.f32 %v6967, %v7319
  %v7321 = vpop.f32.mrb[0].mxu0
  %v7322 = vadd.f32 %v6969, %v7321
  %v7323 = vpop.f32.mrb[0].mxu0
  %v7324 = vadd.f32 %v6971, %v7323
  %v7325 = vpop.f32.mrb[0].mxu0
  %v7326 = vadd.f32 %v6973, %v7325
  %7327 = vdwg.mxu0
  %7328 = vmatprep.subr.bf16.mxu0 %v4827
  %7329 = vmatpush1.bf16.msra.mxu0 %v4826
  %7330 = vmatprep.subr.bf16.mxu0 %v4829
  %7331 = vmatpush1.bf16.msra.mxu0 %v4828
  %7332 = vmatprep.subr.bf16.mxu0 %v4831
  %7333 = vmatpush1.bf16.msra.mxu0 %v4830
  %7334 = vmatprep.subr.bf16.mxu0 %v4833
  %7335 = vmatpush1.bf16.msra.mxu0 %v4832
  %7336 = vmatprep.subr.bf16.mxu0 %v4835
  %7337 = vmatpush1.bf16.msra.mxu0 %v4834
  %7338 = vmatprep.subr.bf16.mxu0 %v4837
  %7339 = vmatpush1.bf16.msra.mxu0 %v4836
  %7340 = vmatprep.subr.bf16.mxu0 %v4839
  %7341 = vmatpush1.bf16.msra.mxu0 %v4838
  %7342 = vmatprep.subr.bf16.mxu0 %v4841
  %7343 = vmatpush1.bf16.msra.mxu0 %v4840
  %7344 = vmatprep.subr.bf16.mxu0 %v4843
  %7345 = vmatpush1.bf16.msra.mxu0 %v4842
  %7346 = vmatprep.subr.bf16.mxu0 %v4845
  %7347 = vmatpush1.bf16.msra.mxu0 %v4844
  %7348 = vmatprep.subr.bf16.mxu0 %v4847
  %7349 = vmatpush1.bf16.msra.mxu0 %v4846
  %7350 = vmatprep.subr.bf16.mxu0 %v4849
  %7351 = vmatpush1.bf16.msra.mxu0 %v4848
  %7352 = vmatprep.subr.bf16.mxu0 %v4851
  %7353 = vmatpush1.bf16.msra.mxu0 %v4850
  %7354 = vmatprep.subr.bf16.mxu0 %v4853
  %7355 = vmatpush1.bf16.msra.mxu0 %v4852
  %7356 = vmatprep.subr.bf16.mxu0 %v4855
  %7357 = vmatpush1.bf16.msra.mxu0 %v4854
  %7358 = vmatprep.subr.bf16.mxu0 %v4857
  %7359 = vmatpush1.bf16.msra.mxu0 %v4856
  %7360 = vmatprep.mubr.bf16.mxu0 %v2631
  %7361 = vmatmul.mubr.bf16.gmra.mrb[0].mxu0 %v2630
  %v7362 = vpop.f32.mrb[0].mxu0
  %v7363 = vadd.f32 %v7010, %v7362
  %v7364 = vpop.f32.mrb[0].mxu0
  %v7365 = vadd.f32 %v7012, %v7364
  %v7366 = vpop.f32.mrb[0].mxu0
  %v7367 = vadd.f32 %v7014, %v7366
  %v7368 = vpop.f32.mrb[0].mxu0
  %v7369 = vadd.f32 %v7016, %v7368
  %7370 = vmatprep.mubr.bf16.mxu0 %v2649
  %7371 = vmatmul.mubr.bf16.gmra.mrb[0].mxu0 %v2648
  %v7372 = vpop.f32.mrb[0].mxu0
  %v7373 = vadd.f32 %v7020, %v7372
  %v7374 = vpop.f32.mrb[0].mxu0
  %v7375 = vadd.f32 %v7022, %v7374
  %v7376 = vpop.f32.mrb[0].mxu0
  %v7377 = vadd.f32 %v7024, %v7376
  %v7378 = vpop.f32.mrb[0].mxu0
  %v7379 = vadd.f32 %v7026, %v7378
  %7380 = vmatprep.mubr.bf16.mxu0 %v2667
  %7381 = vmatmul.mubr.bf16.gmra.mrb[0].mxu0 %v2666
  %v7382 = vpop.f32.mrb[0].mxu0
  %v7383 = vadd.f32 %v7030, %v7382
  %v7384 = vpop.f32.mrb[0].mxu0
  %v7385 = vadd.f32 %v7032, %v7384
  %v7386 = vpop.f32.mrb[0].mxu0
  %v7387 = vadd.f32 %v7034, %v7386
  %v7388 = vpop.f32.mrb[0].mxu0
  %v7389 = vadd.f32 %v7036, %v7388
  %7390 = vmatprep.mubr.bf16.mxu0 %v2685
  %7391 = vmatmul.mubr.bf16.gmra.mrb[0].mxu0 %v2684
  %v7392 = vpop.f32.mrb[0].mxu0
  %v7393 = vadd.f32 %v7040, %v7392
  %v7394 = vpop.f32.mrb[0].mxu0
  %v7395 = vadd.f32 %v7042, %v7394
  %v7396 = vpop.f32.mrb[0].mxu0
  %v7397 = vadd.f32 %v7044, %v7396
  %v7398 = vpop.f32.mrb[0].mxu0
  %v7399 = vadd.f32 %v7046, %v7398
  %7400 = vmatprep.mubr.bf16.mxu0 %v2703
  %7401 = vmatmul.mubr.bf16.gmra.mrb[0].mxu0 %v2702
  %v7402 = vpop.f32.mrb[0].mxu0
  %v7403 = vadd.f32 %v7050, %v7402
  %v7404 = vpop.f32.mrb[0].mxu0
  %v7405 = vadd.f32 %v7052, %v7404
  %v7406 = vpop.f32.mrb[0].mxu0
  %v7407 = vadd.f32 %v7054, %v7406
  %v7408 = vpop.f32.mrb[0].mxu0
  %v7409 = vadd.f32 %v7056, %v7408
  %7410 = vmatprep.mubr.bf16.mxu0 %v2721
  %7411 = vmatmul.mubr.bf16.gmra.mrb[0].mxu0 %v2720
  %v7412 = vpop.f32.mrb[0].mxu0
  %v7413 = vadd.f32 %v7060, %v7412
  %v7414 = vpop.f32.mrb[0].mxu0
  %v7415 = vadd.f32 %v7062, %v7414
  %v7416 = vpop.f32.mrb[0].mxu0
  %v7417 = vadd.f32 %v7064, %v7416
  %v7418 = vpop.f32.mrb[0].mxu0
  %v7419 = vadd.f32 %v7066, %v7418
  %7420 = vmatprep.mubr.bf16.mxu0 %v2739
  %7421 = vmatmul.mubr.bf16.gmra.mrb[0].mxu0 %v2738
  %v7422 = vpop.f32.mrb[0].mxu0
  %v7423 = vadd.f32 %v7070, %v7422
  %v7424 = vpop.f32.mrb[0].mxu0
  %v7425 = vadd.f32 %v7072, %v7424
  %v7426 = vpop.f32.mrb[0].mxu0
  %v7427 = vadd.f32 %v7074, %v7426
  %v7428 = vpop.f32.mrb[0].mxu0
  %v7429 = vadd.f32 %v7076, %v7428
  %7430 = vmatprep.mubr.bf16.mxu0 %v2757
  %7431 = vmatmul.mubr.bf16.gmra.mrb[0].mxu0 %v2756
  %v7432 = vpop.f32.mrb[0].mxu0
  %v7433 = vadd.f32 %v7080, %v7432
  %v7434 = vpop.f32.mrb[0].mxu0
  %v7435 = vadd.f32 %v7082, %v7434
  %v7436 = vpop.f32.mrb[0].mxu0
  %v7437 = vadd.f32 %v7084, %v7436
  %v7438 = vpop.f32.mrb[0].mxu0
  %v7439 = vadd.f32 %v7086, %v7438
  %7440 = vmatprep.mubr.bf16.mxu0 %v2775
  %7441 = vmatmul.mubr.bf16.gmra.mrb[0].mxu0 %v2774
  %v7442 = vpop.f32.mrb[0].mxu0
  %v7443 = vadd.f32 %v7090, %v7442
  %v7444 = vpop.f32.mrb[0].mxu0
  %v7445 = vadd.f32 %v7092, %v7444
  %v7446 = vpop.f32.mrb[0].mxu0
  %v7447 = vadd.f32 %v7094, %v7446
  %v7448 = vpop.f32.mrb[0].mxu0
  %v7449 = vadd.f32 %v7096, %v7448
  %7450 = vmatprep.mubr.bf16.mxu0 %v2793
  %7451 = vmatmul.mubr.bf16.gmra.mrb[0].mxu0 %v2792
  %v7452 = vpop.f32.mrb[0].mxu0
  %v7453 = vadd.f32 %v7100, %v7452
  %v7454 = vpop.f32.mrb[0].mxu0
  %v7455 = vadd.f32 %v7102, %v7454
  %v7456 = vpop.f32.mrb[0].mxu0
  %v7457 = vadd.f32 %v7104, %v7456
  %v7458 = vpop.f32.mrb[0].mxu0
  %v7459 = vadd.f32 %v7106, %v7458
  %7460 = vmatprep.mubr.bf16.mxu0 %v2811
  %7461 = vmatmul.mubr.bf16.gmra.mrb[0].mxu0 %v2810
  %v7462 = vpop.f32.mrb[0].mxu0
  %v7463 = vadd.f32 %v7110, %v7462
  %v7464 = vpop.f32.mrb[0].mxu0
  %v7465 = vadd.f32 %v7112, %v7464
  %v7466 = vpop.f32.mrb[0].mxu0
  %v7467 = vadd.f32 %v7114, %v7466
  %v7468 = vpop.f32.mrb[0].mxu0
  %v7469 = vadd.f32 %v7116, %v7468
  %7470 = vmatprep.mubr.bf16.mxu0 %v2829
  %7471 = vmatmul.mubr.bf16.gmra.mrb[0].mxu0 %v2828
  %v7472 = vpop.f32.mrb[0].mxu0
  %v7473 = vadd.f32 %v7120, %v7472
  %v7474 = vpop.f32.mrb[0].mxu0
  %v7475 = vadd.f32 %v7122, %v7474
  %v7476 = vpop.f32.mrb[0].mxu0
  %v7477 = vadd.f32 %v7124, %v7476
  %v7478 = vpop.f32.mrb[0].mxu0
  %v7479 = vadd.f32 %v7126, %v7478
  %7480 = vmatprep.mubr.bf16.mxu0 %v2847
  %7481 = vmatmul.mubr.bf16.gmra.mrb[0].mxu0 %v2846
  %v7482 = vpop.f32.mrb[0].mxu0
  %v7483 = vadd.f32 %v7130, %v7482
  %v7484 = vpop.f32.mrb[0].mxu0
  %v7485 = vadd.f32 %v7132, %v7484
  %v7486 = vpop.f32.mrb[0].mxu0
  %v7487 = vadd.f32 %v7134, %v7486
  %v7488 = vpop.f32.mrb[0].mxu0
  %v7489 = vadd.f32 %v7136, %v7488
  %7490 = vmatprep.mubr.bf16.mxu0 %v2865
  %7491 = vmatmul.mubr.bf16.gmra.mrb[0].mxu0 %v2864
  %v7492 = vpop.f32.mrb[0].mxu0
  %v7493 = vadd.f32 %v7140, %v7492
  %v7494 = vpop.f32.mrb[0].mxu0
  %v7495 = vadd.f32 %v7142, %v7494
  %v7496 = vpop.f32.mrb[0].mxu0
  %v7497 = vadd.f32 %v7144, %v7496
  %v7498 = vpop.f32.mrb[0].mxu0
  %v7499 = vadd.f32 %v7146, %v7498
  %7500 = vmatprep.mubr.bf16.mxu0 %v2883
  %7501 = vmatmul.mubr.bf16.gmra.mrb[0].mxu0 %v2882
  %v7502 = vpop.f32.mrb[0].mxu0
  %v7503 = vadd.f32 %v7150, %v7502
  %v7504 = vpop.f32.mrb[0].mxu0
  %v7505 = vadd.f32 %v7152, %v7504
  %v7506 = vpop.f32.mrb[0].mxu0
  %v7507 = vadd.f32 %v7154, %v7506
  %v7508 = vpop.f32.mrb[0].mxu0
  %v7509 = vadd.f32 %v7156, %v7508
  %7510 = vmatprep.mubr.bf16.mxu0 %v2901
  %7511 = vmatmul.mubr.bf16.gmra.mrb[0].mxu0 %v2900
  %v7512 = vpop.f32.mrb[0].mxu0
  %v7513 = vadd.f32 %v7160, %v7512
  %v7514 = vpop.f32.mrb[0].mxu0
  %v7515 = vadd.f32 %v7162, %v7514
  %v7516 = vpop.f32.mrb[0].mxu0
  %v7517 = vadd.f32 %v7164, %v7516
  %v7518 = vpop.f32.mrb[0].mxu0
  %v7519 = vadd.f32 %v7166, %v7518
  %7520 = vmatprep.mubr.bf16.mxu0 %v2919
  %7521 = vmatmul.mubr.bf16.gmra.mrb[0].mxu0 %v2918
  %v7522 = vpop.f32.mrb[0].mxu0
  %v7523 = vadd.f32 %v7170, %v7522
  %v7524 = vpop.f32.mrb[0].mxu0
  %v7525 = vadd.f32 %v7172, %v7524
  %v7526 = vpop.f32.mrb[0].mxu0
  %v7527 = vadd.f32 %v7174, %v7526
  %v7528 = vpop.f32.mrb[0].mxu0
  %v7529 = vadd.f32 %v7176, %v7528
  %7530 = vmatprep.mubr.bf16.mxu0 %v2937
  %7531 = vmatmul.mubr.bf16.gmra.mrb[0].mxu0 %v2936
  %v7532 = vpop.f32.mrb[0].mxu0
  %v7533 = vadd.f32 %v7180, %v7532
  %v7534 = vpop.f32.mrb[0].mxu0
  %v7535 = vadd.f32 %v7182, %v7534
  %v7536 = vpop.f32.mrb[0].mxu0
  %v7537 = vadd.f32 %v7184, %v7536
  %v7538 = vpop.f32.mrb[0].mxu0
  %v7539 = vadd.f32 %v7186, %v7538
  %7540 = vmatprep.mubr.bf16.mxu0 %v2955
  %7541 = vmatmul.mubr.bf16.gmra.mrb[0].mxu0 %v2954
  %v7542 = vpop.f32.mrb[0].mxu0
  %v7543 = vadd.f32 %v7190, %v7542
  %v7544 = vpop.f32.mrb[0].mxu0
  %v7545 = vadd.f32 %v7192, %v7544
  %v7546 = vpop.f32.mrb[0].mxu0
  %v7547 = vadd.f32 %v7194, %v7546
  %v7548 = vpop.f32.mrb[0].mxu0
  %v7549 = vadd.f32 %v7196, %v7548
  %7550 = vmatprep.mubr.bf16.mxu0 %v2973
  %7551 = vmatmul.mubr.bf16.gmra.mrb[0].mxu0 %v2972
  %v7552 = vpop.f32.mrb[0].mxu0
  %v7553 = vadd.f32 %v7200, %v7552
  %v7554 = vpop.f32.mrb[0].mxu0
  %v7555 = vadd.f32 %v7202, %v7554
  %v7556 = vpop.f32.mrb[0].mxu0
  %v7557 = vadd.f32 %v7204, %v7556
  %v7558 = vpop.f32.mrb[0].mxu0
  %v7559 = vadd.f32 %v7206, %v7558
  %7560 = vmatprep.mubr.bf16.mxu0 %v2991
  %7561 = vmatmul.mubr.bf16.gmra.mrb[0].mxu0 %v2990
  %v7562 = vpop.f32.mrb[0].mxu0
  %v7563 = vadd.f32 %v7210, %v7562
  %v7564 = vpop.f32.mrb[0].mxu0
  %v7565 = vadd.f32 %v7212, %v7564
  %v7566 = vpop.f32.mrb[0].mxu0
  %v7567 = vadd.f32 %v7214, %v7566
  %v7568 = vpop.f32.mrb[0].mxu0
  %v7569 = vadd.f32 %v7216, %v7568
  %7570 = vmatprep.mubr.bf16.mxu0 %v3009
  %7571 = vmatmul.mubr.bf16.gmra.mrb[0].mxu0 %v3008
  %v7572 = vpop.f32.mrb[0].mxu0
  %v7573 = vadd.f32 %v7220, %v7572
  %v7574 = vpop.f32.mrb[0].mxu0
  %v7575 = vadd.f32 %v7222, %v7574
  %v7576 = vpop.f32.mrb[0].mxu0
  %v7577 = vadd.f32 %v7224, %v7576
  %v7578 = vpop.f32.mrb[0].mxu0
  %v7579 = vadd.f32 %v7226, %v7578
  %7580 = vmatprep.mubr.bf16.mxu0 %v3027
  %7581 = vmatmul.mubr.bf16.gmra.mrb[0].mxu0 %v3026
  %v7582 = vpop.f32.mrb[0].mxu0
  %v7583 = vadd.f32 %v7230, %v7582
  %v7584 = vpop.f32.mrb[0].mxu0
  %v7585 = vadd.f32 %v7232, %v7584
  %v7586 = vpop.f32.mrb[0].mxu0
  %v7587 = vadd.f32 %v7234, %v7586
  %v7588 = vpop.f32.mrb[0].mxu0
  %v7589 = vadd.f32 %v7236, %v7588
  %7590 = vmatprep.mubr.bf16.mxu0 %v3045
  %7591 = vmatmul.mubr.bf16.gmra.mrb[0].mxu0 %v3044
  %v7592 = vpop.f32.mrb[0].mxu0
  %v7593 = vadd.f32 %v7240, %v7592
  %v7594 = vpop.f32.mrb[0].mxu0
  %v7595 = vadd.f32 %v7242, %v7594
  %v7596 = vpop.f32.mrb[0].mxu0
  %v7597 = vadd.f32 %v7244, %v7596
  %v7598 = vpop.f32.mrb[0].mxu0
  %v7599 = vadd.f32 %v7246, %v7598
  %7600 = vmatprep.mubr.bf16.mxu0 %v3063
  %7601 = vmatmul.mubr.bf16.gmra.mrb[0].mxu0 %v3062
  %v7602 = vpop.f32.mrb[0].mxu0
  %v7603 = vadd.f32 %v7250, %v7602
  %v7604 = vpop.f32.mrb[0].mxu0
  %v7605 = vadd.f32 %v7252, %v7604
  %v7606 = vpop.f32.mrb[0].mxu0
  %v7607 = vadd.f32 %v7254, %v7606
  %v7608 = vpop.f32.mrb[0].mxu0
  %v7609 = vadd.f32 %v7256, %v7608
  %7610 = vmatprep.mubr.bf16.mxu0 %v3081
  %7611 = vmatmul.mubr.bf16.gmra.mrb[0].mxu0 %v3080
  %v7612 = vpop.f32.mrb[0].mxu0
  %v7613 = vadd.f32 %v7260, %v7612
  %v7614 = vpop.f32.mrb[0].mxu0
  %v7615 = vadd.f32 %v7262, %v7614
  %v7616 = vpop.f32.mrb[0].mxu0
  %v7617 = vadd.f32 %v7264, %v7616
  %v7618 = vpop.f32.mrb[0].mxu0
  %v7619 = vadd.f32 %v7266, %v7618
  %7620 = vmatprep.mubr.bf16.mxu0 %v3099
  %7621 = vmatmul.mubr.bf16.gmra.mrb[0].mxu0 %v3098
  %v7622 = vpop.f32.mrb[0].mxu0
  %v7623 = vadd.f32 %v7270, %v7622
  %v7624 = vpop.f32.mrb[0].mxu0
  %v7625 = vadd.f32 %v7272, %v7624
  %v7626 = vpop.f32.mrb[0].mxu0
  %v7627 = vadd.f32 %v7274, %v7626
  %v7628 = vpop.f32.mrb[0].mxu0
  %v7629 = vadd.f32 %v7276, %v7628
  %7630 = vmatprep.mubr.bf16.mxu0 %v3117
  %7631 = vmatmul.mubr.bf16.gmra.mrb[0].mxu0 %v3116
  %v7632 = vpop.f32.mrb[0].mxu0
  %v7633 = vadd.f32 %v7280, %v7632
  %v7634 = vpop.f32.mrb[0].mxu0
  %v7635 = vadd.f32 %v7282, %v7634
  %v7636 = vpop.f32.mrb[0].mxu0
  %v7637 = vadd.f32 %v7284, %v7636
  %v7638 = vpop.f32.mrb[0].mxu0
  %v7639 = vadd.f32 %v7286, %v7638
  %7640 = vmatprep.mubr.bf16.mxu0 %v3135
  %7641 = vmatmul.mubr.bf16.gmra.mrb[0].mxu0 %v3134
  %v7642 = vpop.f32.mrb[0].mxu0
  %v7643 = vadd.f32 %v7290, %v7642
  %v7644 = vpop.f32.mrb[0].mxu0
  %v7645 = vadd.f32 %v7292, %v7644
  %v7646 = vpop.f32.mrb[0].mxu0
  %v7647 = vadd.f32 %v7294, %v7646
  %v7648 = vpop.f32.mrb[0].mxu0
  %v7649 = vadd.f32 %v7296, %v7648
  %7650 = vmatprep.mubr.bf16.mxu0 %v3153
  %7651 = vmatmul.mubr.bf16.gmra.mrb[0].mxu0 %v3152
  %v7652 = vpop.f32.mrb[0].mxu0
  %v7653 = vadd.f32 %v7300, %v7652
  %v7654 = vpop.f32.mrb[0].mxu0
  %v7655 = vadd.f32 %v7302, %v7654
  %v7656 = vpop.f32.mrb[0].mxu0
  %v7657 = vadd.f32 %v7304, %v7656
  %v7658 = vpop.f32.mrb[0].mxu0
  %v7659 = vadd.f32 %v7306, %v7658
  %7660 = vmatprep.mubr.bf16.mxu0 %v3171
  %7661 = vmatmul.mubr.bf16.gmra.mrb[0].mxu0 %v3170
  %v7662 = vpop.f32.mrb[0].mxu0
  %v7663 = vadd.f32 %v7310, %v7662
  %v7664 = vpop.f32.mrb[0].mxu0
  %v7665 = vadd.f32 %v7312, %v7664
  %v7666 = vpop.f32.mrb[0].mxu0
  %v7667 = vadd.f32 %v7314, %v7666
  %v7668 = vpop.f32.mrb[0].mxu0
  %v7669 = vadd.f32 %v7316, %v7668
  %7670 = vmatprep.mubr.bf16.mxu0 %v3189
  %7671 = vmatmul.mubr.bf16.gmra.mrb[0].mxu0 %v3188
  %v7672 = vpop.f32.mrb[0].mxu0
  %v7673 = vadd.f32 %v7320, %v7672
  %v7674 = vpop.f32.mrb[0].mxu0
  %v7675 = vadd.f32 %v7322, %v7674
  %v7676 = vpop.f32.mrb[0].mxu0
  %v7677 = vadd.f32 %v7324, %v7676
  %v7678 = vpop.f32.mrb[0].mxu0
  %v7679 = vadd.f32 %v7326, %v7678
  %7680 = vdwg.mxu0
  %7681 = vmatprep.subr.bf16.mxu0 %v4859
  %7682 = vmatpush1.bf16.msra.mxu0 %v4858
  %7683 = vmatprep.subr.bf16.mxu0 %v4861
  %7684 = vmatpush1.bf16.msra.mxu0 %v4860
  %7685 = vmatprep.subr.bf16.mxu0 %v4863
  %7686 = vmatpush1.bf16.msra.mxu0 %v4862
  %7687 = vmatprep.subr.bf16.mxu0 %v4865
  %7688 = vmatpush1.bf16.msra.mxu0 %v4864
  %7689 = vmatprep.subr.bf16.mxu0 %v4867
  %7690 = vmatpush1.bf16.msra.mxu0 %v4866
  %7691 = vmatprep.subr.bf16.mxu0 %v4869
  %7692 = vmatpush1.bf16.msra.mxu0 %v4868
  %7693 = vmatprep.subr.bf16.mxu0 %v4871
  %7694 = vmatpush1.bf16.msra.mxu0 %v4870
  %7695 = vmatprep.subr.bf16.mxu0 %v4873
  %7696 = vmatpush1.bf16.msra.mxu0 %v4872
  %7697 = vmatprep.subr.bf16.mxu0 %v4875
  %7698 = vmatpush1.bf16.msra.mxu0 %v4874
  %7699 = vmatprep.subr.bf16.mxu0 %v4877
  %7700 = vmatpush1.bf16.msra.mxu0 %v4876
  %7701 = vmatprep.subr.bf16.mxu0 %v4879
  %7702 = vmatpush1.bf16.msra.mxu0 %v4878
  %7703 = vmatprep.subr.bf16.mxu0 %v4881
  %7704 = vmatpush1.bf16.msra.mxu0 %v4880
  %7705 = vmatprep.subr.bf16.mxu0 %v4883
  %7706 = vmatpush1.bf16.msra.mxu0 %v4882
  %7707 = vmatprep.subr.bf16.mxu0 %v4885
  %7708 = vmatpush1.bf16.msra.mxu0 %v4884
  %7709 = vmatprep.subr.bf16.mxu0 %v4887
  %7710 = vmatpush1.bf16.msra.mxu0 %v4886
  %7711 = vmatprep.subr.bf16.mxu0 %v4889
  %7712 = vmatpush1.bf16.msra.mxu0 %v4888
  %7713 = vmatprep.mubr.bf16.mxu0 %v2633
  %7714 = vmatmul.mubr.bf16.gmra.mrb[0].mxu0 %v2632
  %v7715 = vpop.f32.mrb[0].mxu0
  %v7716 = vadd.f32 %v7363, %v7715
  %v7717 = vpop.f32.mrb[0].mxu0
  %v7718 = vadd.f32 %v7365, %v7717
  %v7719 = vpop.f32.mrb[0].mxu0
  %v7720 = vadd.f32 %v7367, %v7719
  %v7721 = vpop.f32.mrb[0].mxu0
  %v7722 = vadd.f32 %v7369, %v7721
  %7723 = vmatprep.mubr.bf16.mxu0 %v2651
  %7724 = vmatmul.mubr.bf16.gmra.mrb[0].mxu0 %v2650
  %v7725 = vpop.f32.mrb[0].mxu0
  %v7726 = vadd.f32 %v7373, %v7725
  %v7727 = vpop.f32.mrb[0].mxu0
  %v7728 = vadd.f32 %v7375, %v7727
  %v7729 = vpop.f32.mrb[0].mxu0
  %v7730 = vadd.f32 %v7377, %v7729
  %v7731 = vpop.f32.mrb[0].mxu0
  %v7732 = vadd.f32 %v7379, %v7731
  %7733 = vmatprep.mubr.bf16.mxu0 %v2669
  %7734 = vmatmul.mubr.bf16.gmra.mrb[0].mxu0 %v2668
  %v7735 = vpop.f32.mrb[0].mxu0
  %v7736 = vadd.f32 %v7383, %v7735
  %v7737 = vpop.f32.mrb[0].mxu0
  %v7738 = vadd.f32 %v7385, %v7737
  %v7739 = vpop.f32.mrb[0].mxu0
  %v7740 = vadd.f32 %v7387, %v7739
  %v7741 = vpop.f32.mrb[0].mxu0
  %v7742 = vadd.f32 %v7389, %v7741
  %7743 = vmatprep.mubr.bf16.mxu0 %v2687
  %7744 = vmatmul.mubr.bf16.gmra.mrb[0].mxu0 %v2686
  %v7745 = vpop.f32.mrb[0].mxu0
  %v7746 = vadd.f32 %v7393, %v7745
  %v7747 = vpop.f32.mrb[0].mxu0
  %v7748 = vadd.f32 %v7395, %v7747
  %v7749 = vpop.f32.mrb[0].mxu0
  %v7750 = vadd.f32 %v7397, %v7749
  %v7751 = vpop.f32.mrb[0].mxu0
  %v7752 = vadd.f32 %v7399, %v7751
  %7753 = vmatprep.mubr.bf16.mxu0 %v2705
  %7754 = vmatmul.mubr.bf16.gmra.mrb[0].mxu0 %v2704
  %v7755 = vpop.f32.mrb[0].mxu0
  %v7756 = vadd.f32 %v7403, %v7755
  %v7757 = vpop.f32.mrb[0].mxu0
  %v7758 = vadd.f32 %v7405, %v7757
  %v7759 = vpop.f32.mrb[0].mxu0
  %v7760 = vadd.f32 %v7407, %v7759
  %v7761 = vpop.f32.mrb[0].mxu0
  %v7762 = vadd.f32 %v7409, %v7761
  %7763 = vmatprep.mubr.bf16.mxu0 %v2723
  %7764 = vmatmul.mubr.bf16.gmra.mrb[0].mxu0 %v2722
  %v7765 = vpop.f32.mrb[0].mxu0
  %v7766 = vadd.f32 %v7413, %v7765
  %v7767 = vpop.f32.mrb[0].mxu0
  %v7768 = vadd.f32 %v7415, %v7767
  %v7769 = vpop.f32.mrb[0].mxu0
  %v7770 = vadd.f32 %v7417, %v7769
  %v7771 = vpop.f32.mrb[0].mxu0
  %v7772 = vadd.f32 %v7419, %v7771
  %7773 = vmatprep.mubr.bf16.mxu0 %v2741
  %7774 = vmatmul.mubr.bf16.gmra.mrb[0].mxu0 %v2740
  %v7775 = vpop.f32.mrb[0].mxu0
  %v7776 = vadd.f32 %v7423, %v7775
  %v7777 = vpop.f32.mrb[0].mxu0
  %v7778 = vadd.f32 %v7425, %v7777
  %v7779 = vpop.f32.mrb[0].mxu0
  %v7780 = vadd.f32 %v7427, %v7779
  %v7781 = vpop.f32.mrb[0].mxu0
  %v7782 = vadd.f32 %v7429, %v7781
  %7783 = vmatprep.mubr.bf16.mxu0 %v2759
  %7784 = vmatmul.mubr.bf16.gmra.mrb[0].mxu0 %v2758
  %v7785 = vpop.f32.mrb[0].mxu0
  %v7786 = vadd.f32 %v7433, %v7785
  %v7787 = vpop.f32.mrb[0].mxu0
  %v7788 = vadd.f32 %v7435, %v7787
  %v7789 = vpop.f32.mrb[0].mxu0
  %v7790 = vadd.f32 %v7437, %v7789
  %v7791 = vpop.f32.mrb[0].mxu0
  %v7792 = vadd.f32 %v7439, %v7791
  %7793 = vmatprep.mubr.bf16.mxu0 %v2777
  %7794 = vmatmul.mubr.bf16.gmra.mrb[0].mxu0 %v2776
  %v7795 = vpop.f32.mrb[0].mxu0
  %v7796 = vadd.f32 %v7443, %v7795
  %v7797 = vpop.f32.mrb[0].mxu0
  %v7798 = vadd.f32 %v7445, %v7797
  %v7799 = vpop.f32.mrb[0].mxu0
  %v7800 = vadd.f32 %v7447, %v7799
  %v7801 = vpop.f32.mrb[0].mxu0
  %v7802 = vadd.f32 %v7449, %v7801
  %7803 = vmatprep.mubr.bf16.mxu0 %v2795
  %7804 = vmatmul.mubr.bf16.gmra.mrb[0].mxu0 %v2794
  %v7805 = vpop.f32.mrb[0].mxu0
  %v7806 = vadd.f32 %v7453, %v7805
  %v7807 = vpop.f32.mrb[0].mxu0
  %v7808 = vadd.f32 %v7455, %v7807
  %v7809 = vpop.f32.mrb[0].mxu0
  %v7810 = vadd.f32 %v7457, %v7809
  %v7811 = vpop.f32.mrb[0].mxu0
  %v7812 = vadd.f32 %v7459, %v7811
  %7813 = vmatprep.mubr.bf16.mxu0 %v2813
  %7814 = vmatmul.mubr.bf16.gmra.mrb[0].mxu0 %v2812
  %v7815 = vpop.f32.mrb[0].mxu0
  %v7816 = vadd.f32 %v7463, %v7815
  %v7817 = vpop.f32.mrb[0].mxu0
  %v7818 = vadd.f32 %v7465, %v7817
  %v7819 = vpop.f32.mrb[0].mxu0
  %v7820 = vadd.f32 %v7467, %v7819
  %v7821 = vpop.f32.mrb[0].mxu0
  %v7822 = vadd.f32 %v7469, %v7821
  %7823 = vmatprep.mubr.bf16.mxu0 %v2831
  %7824 = vmatmul.mubr.bf16.gmra.mrb[0].mxu0 %v2830
  %v7825 = vpop.f32.mrb[0].mxu0
  %v7826 = vadd.f32 %v7473, %v7825
  %v7827 = vpop.f32.mrb[0].mxu0
  %v7828 = vadd.f32 %v7475, %v7827
  %v7829 = vpop.f32.mrb[0].mxu0
  %v7830 = vadd.f32 %v7477, %v7829
  %v7831 = vpop.f32.mrb[0].mxu0
  %v7832 = vadd.f32 %v7479, %v7831
  %7833 = vmatprep.mubr.bf16.mxu0 %v2849
  %7834 = vmatmul.mubr.bf16.gmra.mrb[0].mxu0 %v2848
  %v7835 = vpop.f32.mrb[0].mxu0
  %v7836 = vadd.f32 %v7483, %v7835
  %v7837 = vpop.f32.mrb[0].mxu0
  %v7838 = vadd.f32 %v7485, %v7837
  %v7839 = vpop.f32.mrb[0].mxu0
  %v7840 = vadd.f32 %v7487, %v7839
  %v7841 = vpop.f32.mrb[0].mxu0
  %v7842 = vadd.f32 %v7489, %v7841
  %7843 = vmatprep.mubr.bf16.mxu0 %v2867
  %7844 = vmatmul.mubr.bf16.gmra.mrb[0].mxu0 %v2866
  %v7845 = vpop.f32.mrb[0].mxu0
  %v7846 = vadd.f32 %v7493, %v7845
  %v7847 = vpop.f32.mrb[0].mxu0
  %v7848 = vadd.f32 %v7495, %v7847
  %v7849 = vpop.f32.mrb[0].mxu0
  %v7850 = vadd.f32 %v7497, %v7849
  %v7851 = vpop.f32.mrb[0].mxu0
  %v7852 = vadd.f32 %v7499, %v7851
  %7853 = vmatprep.mubr.bf16.mxu0 %v2885
  %7854 = vmatmul.mubr.bf16.gmra.mrb[0].mxu0 %v2884
  %v7855 = vpop.f32.mrb[0].mxu0
  %v7856 = vadd.f32 %v7503, %v7855
  %v7857 = vpop.f32.mrb[0].mxu0
  %v7858 = vadd.f32 %v7505, %v7857
  %v7859 = vpop.f32.mrb[0].mxu0
  %v7860 = vadd.f32 %v7507, %v7859
  %v7861 = vpop.f32.mrb[0].mxu0
  %v7862 = vadd.f32 %v7509, %v7861
  %7863 = vmatprep.mubr.bf16.mxu0 %v2903
  %7864 = vmatmul.mubr.bf16.gmra.mrb[0].mxu0 %v2902
  %v7865 = vpop.f32.mrb[0].mxu0
  %v7866 = vadd.f32 %v7513, %v7865
  %v7867 = vpop.f32.mrb[0].mxu0
  %v7868 = vadd.f32 %v7515, %v7867
  %v7869 = vpop.f32.mrb[0].mxu0
  %v7870 = vadd.f32 %v7517, %v7869
  %v7871 = vpop.f32.mrb[0].mxu0
  %v7872 = vadd.f32 %v7519, %v7871
  %7873 = vmatprep.mubr.bf16.mxu0 %v2921
  %7874 = vmatmul.mubr.bf16.gmra.mrb[0].mxu0 %v2920
  %v7875 = vpop.f32.mrb[0].mxu0
  %v7876 = vadd.f32 %v7523, %v7875
  %v7877 = vpop.f32.mrb[0].mxu0
  %v7878 = vadd.f32 %v7525, %v7877
  %v7879 = vpop.f32.mrb[0].mxu0
  %v7880 = vadd.f32 %v7527, %v7879
  %v7881 = vpop.f32.mrb[0].mxu0
  %v7882 = vadd.f32 %v7529, %v7881
  %7883 = vmatprep.mubr.bf16.mxu0 %v2939
  %7884 = vmatmul.mubr.bf16.gmra.mrb[0].mxu0 %v2938
  %v7885 = vpop.f32.mrb[0].mxu0
  %v7886 = vadd.f32 %v7533, %v7885
  %v7887 = vpop.f32.mrb[0].mxu0
  %v7888 = vadd.f32 %v7535, %v7887
  %v7889 = vpop.f32.mrb[0].mxu0
  %v7890 = vadd.f32 %v7537, %v7889
  %v7891 = vpop.f32.mrb[0].mxu0
  %v7892 = vadd.f32 %v7539, %v7891
  %7893 = vmatprep.mubr.bf16.mxu0 %v2957
  %7894 = vmatmul.mubr.bf16.gmra.mrb[0].mxu0 %v2956
  %v7895 = vpop.f32.mrb[0].mxu0
  %v7896 = vadd.f32 %v7543, %v7895
  %v7897 = vpop.f32.mrb[0].mxu0
  %v7898 = vadd.f32 %v7545, %v7897
  %v7899 = vpop.f32.mrb[0].mxu0
  %v7900 = vadd.f32 %v7547, %v7899
  %v7901 = vpop.f32.mrb[0].mxu0
  %v7902 = vadd.f32 %v7549, %v7901
  %7903 = vmatprep.mubr.bf16.mxu0 %v2975
  %7904 = vmatmul.mubr.bf16.gmra.mrb[0].mxu0 %v2974
  %v7905 = vpop.f32.mrb[0].mxu0
  %v7906 = vadd.f32 %v7553, %v7905
  %v7907 = vpop.f32.mrb[0].mxu0
  %v7908 = vadd.f32 %v7555, %v7907
  %v7909 = vpop.f32.mrb[0].mxu0
  %v7910 = vadd.f32 %v7557, %v7909
  %v7911 = vpop.f32.mrb[0].mxu0
  %v7912 = vadd.f32 %v7559, %v7911
  %7913 = vmatprep.mubr.bf16.mxu0 %v2993
  %7914 = vmatmul.mubr.bf16.gmra.mrb[0].mxu0 %v2992
  %v7915 = vpop.f32.mrb[0].mxu0
  %v7916 = vadd.f32 %v7563, %v7915
  %v7917 = vpop.f32.mrb[0].mxu0
  %v7918 = vadd.f32 %v7565, %v7917
  %v7919 = vpop.f32.mrb[0].mxu0
  %v7920 = vadd.f32 %v7567, %v7919
  %v7921 = vpop.f32.mrb[0].mxu0
  %v7922 = vadd.f32 %v7569, %v7921
  %7923 = vmatprep.mubr.bf16.mxu0 %v3011
  %7924 = vmatmul.mubr.bf16.gmra.mrb[0].mxu0 %v3010
  %v7925 = vpop.f32.mrb[0].mxu0
  %v7926 = vadd.f32 %v7573, %v7925
  %v7927 = vpop.f32.mrb[0].mxu0
  %v7928 = vadd.f32 %v7575, %v7927
  %v7929 = vpop.f32.mrb[0].mxu0
  %v7930 = vadd.f32 %v7577, %v7929
  %v7931 = vpop.f32.mrb[0].mxu0
  %v7932 = vadd.f32 %v7579, %v7931
  %7933 = vmatprep.mubr.bf16.mxu0 %v3029
  %7934 = vmatmul.mubr.bf16.gmra.mrb[0].mxu0 %v3028
  %v7935 = vpop.f32.mrb[0].mxu0
  %v7936 = vadd.f32 %v7583, %v7935
  %v7937 = vpop.f32.mrb[0].mxu0
  %v7938 = vadd.f32 %v7585, %v7937
  %v7939 = vpop.f32.mrb[0].mxu0
  %v7940 = vadd.f32 %v7587, %v7939
  %v7941 = vpop.f32.mrb[0].mxu0
  %v7942 = vadd.f32 %v7589, %v7941
  %7943 = vmatprep.mubr.bf16.mxu0 %v3047
  %7944 = vmatmul.mubr.bf16.gmra.mrb[0].mxu0 %v3046
  %v7945 = vpop.f32.mrb[0].mxu0
  %v7946 = vadd.f32 %v7593, %v7945
  %v7947 = vpop.f32.mrb[0].mxu0
  %v7948 = vadd.f32 %v7595, %v7947
  %v7949 = vpop.f32.mrb[0].mxu0
  %v7950 = vadd.f32 %v7597, %v7949
  %v7951 = vpop.f32.mrb[0].mxu0
  %v7952 = vadd.f32 %v7599, %v7951
  %7953 = vmatprep.mubr.bf16.mxu0 %v3065
  %7954 = vmatmul.mubr.bf16.gmra.mrb[0].mxu0 %v3064
  %v7955 = vpop.f32.mrb[0].mxu0
  %v7956 = vadd.f32 %v7603, %v7955
  %v7957 = vpop.f32.mrb[0].mxu0
  %v7958 = vadd.f32 %v7605, %v7957
  %v7959 = vpop.f32.mrb[0].mxu0
  %v7960 = vadd.f32 %v7607, %v7959
  %v7961 = vpop.f32.mrb[0].mxu0
  %v7962 = vadd.f32 %v7609, %v7961
  %7963 = vmatprep.mubr.bf16.mxu0 %v3083
  %7964 = vmatmul.mubr.bf16.gmra.mrb[0].mxu0 %v3082
  %v7965 = vpop.f32.mrb[0].mxu0
  %v7966 = vadd.f32 %v7613, %v7965
  %v7967 = vpop.f32.mrb[0].mxu0
  %v7968 = vadd.f32 %v7615, %v7967
  %v7969 = vpop.f32.mrb[0].mxu0
  %v7970 = vadd.f32 %v7617, %v7969
  %v7971 = vpop.f32.mrb[0].mxu0
  %v7972 = vadd.f32 %v7619, %v7971
  %7973 = vmatprep.mubr.bf16.mxu0 %v3101
  %7974 = vmatmul.mubr.bf16.gmra.mrb[0].mxu0 %v3100
  %v7975 = vpop.f32.mrb[0].mxu0
  %v7976 = vadd.f32 %v7623, %v7975
  %v7977 = vpop.f32.mrb[0].mxu0
  %v7978 = vadd.f32 %v7625, %v7977
  %v7979 = vpop.f32.mrb[0].mxu0
  %v7980 = vadd.f32 %v7627, %v7979
  %v7981 = vpop.f32.mrb[0].mxu0
  %v7982 = vadd.f32 %v7629, %v7981
  %7983 = vmatprep.mubr.bf16.mxu0 %v3119
  %7984 = vmatmul.mubr.bf16.gmra.mrb[0].mxu0 %v3118
  %v7985 = vpop.f32.mrb[0].mxu0
  %v7986 = vadd.f32 %v7633, %v7985
  %v7987 = vpop.f32.mrb[0].mxu0
  %v7988 = vadd.f32 %v7635, %v7987
  %v7989 = vpop.f32.mrb[0].mxu0
  %v7990 = vadd.f32 %v7637, %v7989
  %v7991 = vpop.f32.mrb[0].mxu0
  %v7992 = vadd.f32 %v7639, %v7991
  %7993 = vmatprep.mubr.bf16.mxu0 %v3137
  %7994 = vmatmul.mubr.bf16.gmra.mrb[0].mxu0 %v3136
  %v7995 = vpop.f32.mrb[0].mxu0
  %v7996 = vadd.f32 %v7643, %v7995
  %v7997 = vpop.f32.mrb[0].mxu0
  %v7998 = vadd.f32 %v7645, %v7997
  %v7999 = vpop.f32.mrb[0].mxu0
  %v8000 = vadd.f32 %v7647, %v7999
  %v8001 = vpop.f32.mrb[0].mxu0
  %v8002 = vadd.f32 %v7649, %v8001
  %8003 = vmatprep.mubr.bf16.mxu0 %v3155
  %8004 = vmatmul.mubr.bf16.gmra.mrb[0].mxu0 %v3154
  %v8005 = vpop.f32.mrb[0].mxu0
  %v8006 = vadd.f32 %v7653, %v8005
  %v8007 = vpop.f32.mrb[0].mxu0
  %v8008 = vadd.f32 %v7655, %v8007
  %v8009 = vpop.f32.mrb[0].mxu0
  %v8010 = vadd.f32 %v7657, %v8009
  %v8011 = vpop.f32.mrb[0].mxu0
  %v8012 = vadd.f32 %v7659, %v8011
  %8013 = vmatprep.mubr.bf16.mxu0 %v3173
  %8014 = vmatmul.mubr.bf16.gmra.mrb[0].mxu0 %v3172
  %v8015 = vpop.f32.mrb[0].mxu0
  %v8016 = vadd.f32 %v7663, %v8015
  %v8017 = vpop.f32.mrb[0].mxu0
  %v8018 = vadd.f32 %v7665, %v8017
  %v8019 = vpop.f32.mrb[0].mxu0
  %v8020 = vadd.f32 %v7667, %v8019
  %v8021 = vpop.f32.mrb[0].mxu0
  %v8022 = vadd.f32 %v7669, %v8021
  %8023 = vmatprep.mubr.bf16.mxu0 %v3191
  %8024 = vmatmul.mubr.bf16.gmra.mrb[0].mxu0 %v3190
  %v8025 = vpop.f32.mrb[0].mxu0
  %v8026 = vadd.f32 %v7673, %v8025
  %v8027 = vpop.f32.mrb[0].mxu0
  %v8028 = vadd.f32 %v7675, %v8027
  %v8029 = vpop.f32.mrb[0].mxu0
  %v8030 = vadd.f32 %v7677, %v8029
  %v8031 = vpop.f32.mrb[0].mxu0
  %v8032 = vadd.f32 %v7679, %v8031
  %8033 = vdwg.mxu0
  %8034 = vmatprep.subr.bf16.mxu0 %v4891
  %8035 = vmatpush1.bf16.msra.mxu0 %v4890
  %8036 = vmatprep.subr.bf16.mxu0 %v4893
  %8037 = vmatpush1.bf16.msra.mxu0 %v4892
  %8038 = vmatprep.subr.bf16.mxu0 %v4895
  %8039 = vmatpush1.bf16.msra.mxu0 %v4894
  %8040 = vmatprep.subr.bf16.mxu0 %v4897
  %8041 = vmatpush1.bf16.msra.mxu0 %v4896
  %8042 = vmatprep.subr.bf16.mxu0 %v4899
  %8043 = vmatpush1.bf16.msra.mxu0 %v4898
  %8044 = vmatprep.subr.bf16.mxu0 %v4901
  %8045 = vmatpush1.bf16.msra.mxu0 %v4900
  %8046 = vmatprep.subr.bf16.mxu0 %v4903
  %8047 = vmatpush1.bf16.msra.mxu0 %v4902
  %8048 = vmatprep.subr.bf16.mxu0 %v4905
  %8049 = vmatpush1.bf16.msra.mxu0 %v4904
  %8050 = vmatprep.subr.bf16.mxu0 %v4907
  %8051 = vmatpush1.bf16.msra.mxu0 %v4906
  %8052 = vmatprep.subr.bf16.mxu0 %v4909
  %8053 = vmatpush1.bf16.msra.mxu0 %v4908
  %8054 = vmatprep.subr.bf16.mxu0 %v4911
  %8055 = vmatpush1.bf16.msra.mxu0 %v4910
  %8056 = vmatprep.subr.bf16.mxu0 %v4913
  %8057 = vmatpush1.bf16.msra.mxu0 %v4912
  %8058 = vmatprep.subr.bf16.mxu0 %v4915
  %8059 = vmatpush1.bf16.msra.mxu0 %v4914
  %8060 = vmatprep.subr.bf16.mxu0 %v4917
  %8061 = vmatpush1.bf16.msra.mxu0 %v4916
  %8062 = vmatprep.subr.bf16.mxu0 %v4919
  %8063 = vmatpush1.bf16.msra.mxu0 %v4918
  %8064 = vmatprep.subr.bf16.mxu0 %v4921
  %8065 = vmatpush1.bf16.msra.mxu0 %v4920
  %8066 = vmatprep.mubr.bf16.mxu0 %v2635
  %8067 = vmatmul.mubr.bf16.gmra.mrb[0].mxu0 %v2634
  %v8068 = vpop.f32.mrb[0].mxu0
  %v8069 = vadd.f32 %v7716, %v8068
  %v8070 = vpop.f32.mrb[0].mxu0
  %v8071 = vadd.f32 %v7718, %v8070
  %v8072 = vpop.f32.mrb[0].mxu0
  %v8073 = vadd.f32 %v7720, %v8072
  %v8074 = vpop.f32.mrb[0].mxu0
  %v8075 = vadd.f32 %v7722, %v8074
  %8076 = vmatprep.mubr.bf16.mxu0 %v2653
  %8077 = vmatmul.mubr.bf16.gmra.mrb[0].mxu0 %v2652
  %v8078 = vpop.f32.mrb[0].mxu0
  %v8079 = vadd.f32 %v7726, %v8078
  %v8080 = vpop.f32.mrb[0].mxu0
  %v8081 = vadd.f32 %v7728, %v8080
  %v8082 = vpop.f32.mrb[0].mxu0
  %v8083 = vadd.f32 %v7730, %v8082
  %v8084 = vpop.f32.mrb[0].mxu0
  %v8085 = vadd.f32 %v7732, %v8084
  %8086 = vmatprep.mubr.bf16.mxu0 %v2671
  %8087 = vmatmul.mubr.bf16.gmra.mrb[0].mxu0 %v2670
  %v8088 = vpop.f32.mrb[0].mxu0
  %v8089 = vadd.f32 %v7736, %v8088
  %v8090 = vpop.f32.mrb[0].mxu0
  %v8091 = vadd.f32 %v7738, %v8090
  %v8092 = vpop.f32.mrb[0].mxu0
  %v8093 = vadd.f32 %v7740, %v8092
  %v8094 = vpop.f32.mrb[0].mxu0
  %v8095 = vadd.f32 %v7742, %v8094
  %8096 = vmatprep.mubr.bf16.mxu0 %v2689
  %8097 = vmatmul.mubr.bf16.gmra.mrb[0].mxu0 %v2688
  %v8098 = vpop.f32.mrb[0].mxu0
  %v8099 = vadd.f32 %v7746, %v8098
  %v8100 = vpop.f32.mrb[0].mxu0
  %v8101 = vadd.f32 %v7748, %v8100
  %v8102 = vpop.f32.mrb[0].mxu0
  %v8103 = vadd.f32 %v7750, %v8102
  %v8104 = vpop.f32.mrb[0].mxu0
  %v8105 = vadd.f32 %v7752, %v8104
  %8106 = vmatprep.mubr.bf16.mxu0 %v2707
  %8107 = vmatmul.mubr.bf16.gmra.mrb[0].mxu0 %v2706
  %v8108 = vpop.f32.mrb[0].mxu0
  %v8109 = vadd.f32 %v7756, %v8108
  %v8110 = vpop.f32.mrb[0].mxu0
  %v8111 = vadd.f32 %v7758, %v8110
  %v8112 = vpop.f32.mrb[0].mxu0
  %v8113 = vadd.f32 %v7760, %v8112
  %v8114 = vpop.f32.mrb[0].mxu0
  %v8115 = vadd.f32 %v7762, %v8114
  %8116 = vmatprep.mubr.bf16.mxu0 %v2725
  %8117 = vmatmul.mubr.bf16.gmra.mrb[0].mxu0 %v2724
  %v8118 = vpop.f32.mrb[0].mxu0
  %v8119 = vadd.f32 %v7766, %v8118
  %v8120 = vpop.f32.mrb[0].mxu0
  %v8121 = vadd.f32 %v7768, %v8120
  %v8122 = vpop.f32.mrb[0].mxu0
  %v8123 = vadd.f32 %v7770, %v8122
  %v8124 = vpop.f32.mrb[0].mxu0
  %v8125 = vadd.f32 %v7772, %v8124
  %8126 = vmatprep.mubr.bf16.mxu0 %v2743
  %8127 = vmatmul.mubr.bf16.gmra.mrb[0].mxu0 %v2742
  %v8128 = vpop.f32.mrb[0].mxu0
  %v8129 = vadd.f32 %v7776, %v8128
  %v8130 = vpop.f32.mrb[0].mxu0
  %v8131 = vadd.f32 %v7778, %v8130
  %v8132 = vpop.f32.mrb[0].mxu0
  %v8133 = vadd.f32 %v7780, %v8132
  %v8134 = vpop.f32.mrb[0].mxu0
  %v8135 = vadd.f32 %v7782, %v8134
  %8136 = vmatprep.mubr.bf16.mxu0 %v2761
  %8137 = vmatmul.mubr.bf16.gmra.mrb[0].mxu0 %v2760
  %v8138 = vpop.f32.mrb[0].mxu0
  %v8139 = vadd.f32 %v7786, %v8138
  %v8140 = vpop.f32.mrb[0].mxu0
  %v8141 = vadd.f32 %v7788, %v8140
  %v8142 = vpop.f32.mrb[0].mxu0
  %v8143 = vadd.f32 %v7790, %v8142
  %v8144 = vpop.f32.mrb[0].mxu0
  %v8145 = vadd.f32 %v7792, %v8144
  %8146 = vmatprep.mubr.bf16.mxu0 %v2779
  %8147 = vmatmul.mubr.bf16.gmra.mrb[0].mxu0 %v2778
  %v8148 = vpop.f32.mrb[0].mxu0
  %v8149 = vadd.f32 %v7796, %v8148
  %v8150 = vpop.f32.mrb[0].mxu0
  %v8151 = vadd.f32 %v7798, %v8150
  %v8152 = vpop.f32.mrb[0].mxu0
  %v8153 = vadd.f32 %v7800, %v8152
  %v8154 = vpop.f32.mrb[0].mxu0
  %v8155 = vadd.f32 %v7802, %v8154
  %8156 = vmatprep.mubr.bf16.mxu0 %v2797
  %8157 = vmatmul.mubr.bf16.gmra.mrb[0].mxu0 %v2796
  %v8158 = vpop.f32.mrb[0].mxu0
  %v8159 = vadd.f32 %v7806, %v8158
  %v8160 = vpop.f32.mrb[0].mxu0
  %v8161 = vadd.f32 %v7808, %v8160
  %v8162 = vpop.f32.mrb[0].mxu0
  %v8163 = vadd.f32 %v7810, %v8162
  %v8164 = vpop.f32.mrb[0].mxu0
  %v8165 = vadd.f32 %v7812, %v8164
  %8166 = vmatprep.mubr.bf16.mxu0 %v2815
  %8167 = vmatmul.mubr.bf16.gmra.mrb[0].mxu0 %v2814
  %v8168 = vpop.f32.mrb[0].mxu0
  %v8169 = vadd.f32 %v7816, %v8168
  %v8170 = vpop.f32.mrb[0].mxu0
  %v8171 = vadd.f32 %v7818, %v8170
  %v8172 = vpop.f32.mrb[0].mxu0
  %v8173 = vadd.f32 %v7820, %v8172
  %v8174 = vpop.f32.mrb[0].mxu0
  %v8175 = vadd.f32 %v7822, %v8174
  %8176 = vmatprep.mubr.bf16.mxu0 %v2833
  %8177 = vmatmul.mubr.bf16.gmra.mrb[0].mxu0 %v2832
  %v8178 = vpop.f32.mrb[0].mxu0
  %v8179 = vadd.f32 %v7826, %v8178
  %v8180 = vpop.f32.mrb[0].mxu0
  %v8181 = vadd.f32 %v7828, %v8180
  %v8182 = vpop.f32.mrb[0].mxu0
  %v8183 = vadd.f32 %v7830, %v8182
  %v8184 = vpop.f32.mrb[0].mxu0
  %v8185 = vadd.f32 %v7832, %v8184
  %8186 = vmatprep.mubr.bf16.mxu0 %v2851
  %8187 = vmatmul.mubr.bf16.gmra.mrb[0].mxu0 %v2850
  %v8188 = vpop.f32.mrb[0].mxu0
  %v8189 = vadd.f32 %v7836, %v8188
  %v8190 = vpop.f32.mrb[0].mxu0
  %v8191 = vadd.f32 %v7838, %v8190
  %v8192 = vpop.f32.mrb[0].mxu0
  %v8193 = vadd.f32 %v7840, %v8192
  %v8194 = vpop.f32.mrb[0].mxu0
  %v8195 = vadd.f32 %v7842, %v8194
  %8196 = vmatprep.mubr.bf16.mxu0 %v2869
  %8197 = vmatmul.mubr.bf16.gmra.mrb[0].mxu0 %v2868
  %v8198 = vpop.f32.mrb[0].mxu0
  %v8199 = vadd.f32 %v7846, %v8198
  %v8200 = vpop.f32.mrb[0].mxu0
  %v8201 = vadd.f32 %v7848, %v8200
  %v8202 = vpop.f32.mrb[0].mxu0
  %v8203 = vadd.f32 %v7850, %v8202
  %v8204 = vpop.f32.mrb[0].mxu0
  %v8205 = vadd.f32 %v7852, %v8204
  %8206 = vmatprep.mubr.bf16.mxu0 %v2887
  %8207 = vmatmul.mubr.bf16.gmra.mrb[0].mxu0 %v2886
  %v8208 = vpop.f32.mrb[0].mxu0
  %v8209 = vadd.f32 %v7856, %v8208
  %v8210 = vpop.f32.mrb[0].mxu0
  %v8211 = vadd.f32 %v7858, %v8210
  %v8212 = vpop.f32.mrb[0].mxu0
  %v8213 = vadd.f32 %v7860, %v8212
  %v8214 = vpop.f32.mrb[0].mxu0
  %v8215 = vadd.f32 %v7862, %v8214
  %8216 = vmatprep.mubr.bf16.mxu0 %v2905
  %8217 = vmatmul.mubr.bf16.gmra.mrb[0].mxu0 %v2904
  %v8218 = vpop.f32.mrb[0].mxu0
  %v8219 = vadd.f32 %v7866, %v8218
  %v8220 = vpop.f32.mrb[0].mxu0
  %v8221 = vadd.f32 %v7868, %v8220
  %v8222 = vpop.f32.mrb[0].mxu0
  %v8223 = vadd.f32 %v7870, %v8222
  %v8224 = vpop.f32.mrb[0].mxu0
  %v8225 = vadd.f32 %v7872, %v8224
  %8226 = vmatprep.mubr.bf16.mxu0 %v2923
  %8227 = vmatmul.mubr.bf16.gmra.mrb[0].mxu0 %v2922
  %v8228 = vpop.f32.mrb[0].mxu0
  %v8229 = vadd.f32 %v7876, %v8228
  %v8230 = vpop.f32.mrb[0].mxu0
  %v8231 = vadd.f32 %v7878, %v8230
  %v8232 = vpop.f32.mrb[0].mxu0
  %v8233 = vadd.f32 %v7880, %v8232
  %v8234 = vpop.f32.mrb[0].mxu0
  %v8235 = vadd.f32 %v7882, %v8234
  %8236 = vmatprep.mubr.bf16.mxu0 %v2941
  %8237 = vmatmul.mubr.bf16.gmra.mrb[0].mxu0 %v2940
  %v8238 = vpop.f32.mrb[0].mxu0
  %v8239 = vadd.f32 %v7886, %v8238
  %v8240 = vpop.f32.mrb[0].mxu0
  %v8241 = vadd.f32 %v7888, %v8240
  %v8242 = vpop.f32.mrb[0].mxu0
  %v8243 = vadd.f32 %v7890, %v8242
  %v8244 = vpop.f32.mrb[0].mxu0
  %v8245 = vadd.f32 %v7892, %v8244
  %8246 = vmatprep.mubr.bf16.mxu0 %v2959
  %8247 = vmatmul.mubr.bf16.gmra.mrb[0].mxu0 %v2958
  %v8248 = vpop.f32.mrb[0].mxu0
  %v8249 = vadd.f32 %v7896, %v8248
  %v8250 = vpop.f32.mrb[0].mxu0
  %v8251 = vadd.f32 %v7898, %v8250
  %v8252 = vpop.f32.mrb[0].mxu0
  %v8253 = vadd.f32 %v7900, %v8252
  %v8254 = vpop.f32.mrb[0].mxu0
  %v8255 = vadd.f32 %v7902, %v8254
  %8256 = vmatprep.mubr.bf16.mxu0 %v2977
  %8257 = vmatmul.mubr.bf16.gmra.mrb[0].mxu0 %v2976
  %v8258 = vpop.f32.mrb[0].mxu0
  %v8259 = vadd.f32 %v7906, %v8258
  %v8260 = vpop.f32.mrb[0].mxu0
  %v8261 = vadd.f32 %v7908, %v8260
  %v8262 = vpop.f32.mrb[0].mxu0
  %v8263 = vadd.f32 %v7910, %v8262
  %v8264 = vpop.f32.mrb[0].mxu0
  %v8265 = vadd.f32 %v7912, %v8264
  %8266 = vmatprep.mubr.bf16.mxu0 %v2995
  %8267 = vmatmul.mubr.bf16.gmra.mrb[0].mxu0 %v2994
  %v8268 = vpop.f32.mrb[0].mxu0
  %v8269 = vadd.f32 %v7916, %v8268
  %v8270 = vpop.f32.mrb[0].mxu0
  %v8271 = vadd.f32 %v7918, %v8270
  %v8272 = vpop.f32.mrb[0].mxu0
  %v8273 = vadd.f32 %v7920, %v8272
  %v8274 = vpop.f32.mrb[0].mxu0
  %v8275 = vadd.f32 %v7922, %v8274
  %8276 = vmatprep.mubr.bf16.mxu0 %v3013
  %8277 = vmatmul.mubr.bf16.gmra.mrb[0].mxu0 %v3012
  %v8278 = vpop.f32.mrb[0].mxu0
  %v8279 = vadd.f32 %v7926, %v8278
  %v8280 = vpop.f32.mrb[0].mxu0
  %v8281 = vadd.f32 %v7928, %v8280
  %v8282 = vpop.f32.mrb[0].mxu0
  %v8283 = vadd.f32 %v7930, %v8282
  %v8284 = vpop.f32.mrb[0].mxu0
  %v8285 = vadd.f32 %v7932, %v8284
  %8286 = vmatprep.mubr.bf16.mxu0 %v3031
  %8287 = vmatmul.mubr.bf16.gmra.mrb[0].mxu0 %v3030
  %v8288 = vpop.f32.mrb[0].mxu0
  %v8289 = vadd.f32 %v7936, %v8288
  %v8290 = vpop.f32.mrb[0].mxu0
  %v8291 = vadd.f32 %v7938, %v8290
  %v8292 = vpop.f32.mrb[0].mxu0
  %v8293 = vadd.f32 %v7940, %v8292
  %v8294 = vpop.f32.mrb[0].mxu0
  %v8295 = vadd.f32 %v7942, %v8294
  %8296 = vmatprep.mubr.bf16.mxu0 %v3049
  %8297 = vmatmul.mubr.bf16.gmra.mrb[0].mxu0 %v3048
  %v8298 = vpop.f32.mrb[0].mxu0
  %v8299 = vadd.f32 %v7946, %v8298
  %v8300 = vpop.f32.mrb[0].mxu0
  %v8301 = vadd.f32 %v7948, %v8300
  %v8302 = vpop.f32.mrb[0].mxu0
  %v8303 = vadd.f32 %v7950, %v8302
  %v8304 = vpop.f32.mrb[0].mxu0
  %v8305 = vadd.f32 %v7952, %v8304
  %8306 = vmatprep.mubr.bf16.mxu0 %v3067
  %8307 = vmatmul.mubr.bf16.gmra.mrb[0].mxu0 %v3066
  %v8308 = vpop.f32.mrb[0].mxu0
  %v8309 = vadd.f32 %v7956, %v8308
  %v8310 = vpop.f32.mrb[0].mxu0
  %v8311 = vadd.f32 %v7958, %v8310
  %v8312 = vpop.f32.mrb[0].mxu0
  %v8313 = vadd.f32 %v7960, %v8312
  %v8314 = vpop.f32.mrb[0].mxu0
  %v8315 = vadd.f32 %v7962, %v8314
  %8316 = vmatprep.mubr.bf16.mxu0 %v3085
  %8317 = vmatmul.mubr.bf16.gmra.mrb[0].mxu0 %v3084
  %v8318 = vpop.f32.mrb[0].mxu0
  %v8319 = vadd.f32 %v7966, %v8318
  %v8320 = vpop.f32.mrb[0].mxu0
  %v8321 = vadd.f32 %v7968, %v8320
  %v8322 = vpop.f32.mrb[0].mxu0
  %v8323 = vadd.f32 %v7970, %v8322
  %v8324 = vpop.f32.mrb[0].mxu0
  %v8325 = vadd.f32 %v7972, %v8324
  %8326 = vmatprep.mubr.bf16.mxu0 %v3103
  %8327 = vmatmul.mubr.bf16.gmra.mrb[0].mxu0 %v3102
  %v8328 = vpop.f32.mrb[0].mxu0
  %v8329 = vadd.f32 %v7976, %v8328
  %v8330 = vpop.f32.mrb[0].mxu0
  %v8331 = vadd.f32 %v7978, %v8330
  %v8332 = vpop.f32.mrb[0].mxu0
  %v8333 = vadd.f32 %v7980, %v8332
  %v8334 = vpop.f32.mrb[0].mxu0
  %v8335 = vadd.f32 %v7982, %v8334
  %8336 = vmatprep.mubr.bf16.mxu0 %v3121
  %8337 = vmatmul.mubr.bf16.gmra.mrb[0].mxu0 %v3120
  %v8338 = vpop.f32.mrb[0].mxu0
  %v8339 = vadd.f32 %v7986, %v8338
  %v8340 = vpop.f32.mrb[0].mxu0
  %v8341 = vadd.f32 %v7988, %v8340
  %v8342 = vpop.f32.mrb[0].mxu0
  %v8343 = vadd.f32 %v7990, %v8342
  %v8344 = vpop.f32.mrb[0].mxu0
  %v8345 = vadd.f32 %v7992, %v8344
  %8346 = vmatprep.mubr.bf16.mxu0 %v3139
  %8347 = vmatmul.mubr.bf16.gmra.mrb[0].mxu0 %v3138
  %v8348 = vpop.f32.mrb[0].mxu0
  %v8349 = vadd.f32 %v7996, %v8348
  %v8350 = vpop.f32.mrb[0].mxu0
  %v8351 = vadd.f32 %v7998, %v8350
  %v8352 = vpop.f32.mrb[0].mxu0
  %v8353 = vadd.f32 %v8000, %v8352
  %v8354 = vpop.f32.mrb[0].mxu0
  %v8355 = vadd.f32 %v8002, %v8354
  %8356 = vmatprep.mubr.bf16.mxu0 %v3157
  %8357 = vmatmul.mubr.bf16.gmra.mrb[0].mxu0 %v3156
  %v8358 = vpop.f32.mrb[0].mxu0
  %v8359 = vadd.f32 %v8006, %v8358
  %v8360 = vpop.f32.mrb[0].mxu0
  %v8361 = vadd.f32 %v8008, %v8360
  %v8362 = vpop.f32.mrb[0].mxu0
  %v8363 = vadd.f32 %v8010, %v8362
  %v8364 = vpop.f32.mrb[0].mxu0
  %v8365 = vadd.f32 %v8012, %v8364
  %8366 = vmatprep.mubr.bf16.mxu0 %v3175
  %8367 = vmatmul.mubr.bf16.gmra.mrb[0].mxu0 %v3174
  %v8368 = vpop.f32.mrb[0].mxu0
  %v8369 = vadd.f32 %v8016, %v8368
  %v8370 = vpop.f32.mrb[0].mxu0
  %v8371 = vadd.f32 %v8018, %v8370
  %v8372 = vpop.f32.mrb[0].mxu0
  %v8373 = vadd.f32 %v8020, %v8372
  %v8374 = vpop.f32.mrb[0].mxu0
  %v8375 = vadd.f32 %v8022, %v8374
  %8376 = vmatprep.mubr.bf16.mxu0 %v3193
  %8377 = vmatmul.mubr.bf16.gmra.mrb[0].mxu0 %v3192
  %v8378 = vpop.f32.mrb[0].mxu0
  %v8379 = vadd.f32 %v8026, %v8378
  %v8380 = vpop.f32.mrb[0].mxu0
  %v8381 = vadd.f32 %v8028, %v8380
  %v8382 = vpop.f32.mrb[0].mxu0
  %v8383 = vadd.f32 %v8030, %v8382
  %v8384 = vpop.f32.mrb[0].mxu0
  %v8385 = vadd.f32 %v8032, %v8384
  %8386 = vdwg.mxu0
  %v8387 = vmax.f32 %v8069, 0.0
  %v8388 = vmax.f32 %v8071, 0.0
  %v8389 = vmax.f32 %v8073, 0.0
  %v8390 = vmax.f32 %v8075, 0.0
  %v8391 = vmax.f32 %v8079, 0.0
  %v8392 = vmax.f32 %v8081, 0.0
  %v8393 = vmax.f32 %v8083, 0.0
  %v8394 = vmax.f32 %v8085, 0.0
  %v8395 = vmax.f32 %v8089, 0.0
  %v8396 = vmax.f32 %v8091, 0.0
  %v8397 = vmax.f32 %v8093, 0.0
  %v8398 = vmax.f32 %v8095, 0.0
  %v8399 = vmax.f32 %v8099, 0.0
  %v8400 = vmax.f32 %v8101, 0.0
  %v8401 = vmax.f32 %v8103, 0.0
  %v8402 = vmax.f32 %v8105, 0.0
  %v8403 = vmax.f32 %v8109, 0.0
  %v8404 = vmax.f32 %v8111, 0.0
  %v8405 = vmax.f32 %v8113, 0.0
  %v8406 = vmax.f32 %v8115, 0.0
  %v8407 = vmax.f32 %v8119, 0.0
  %v8408 = vmax.f32 %v8121, 0.0
  %v8409 = vmax.f32 %v8123, 0.0
  %v8410 = vmax.f32 %v8125, 0.0
  %v8411 = vmax.f32 %v8129, 0.0
  %v8412 = vmax.f32 %v8131, 0.0
  %v8413 = vmax.f32 %v8133, 0.0
  %v8414 = vmax.f32 %v8135, 0.0
  %v8415 = vmax.f32 %v8139, 0.0
  %v8416 = vmax.f32 %v8141, 0.0
  %v8417 = vmax.f32 %v8143, 0.0
  %v8418 = vmax.f32 %v8145, 0.0
  %v8419 = vmax.f32 %v8149, 0.0
  %v8420 = vmax.f32 %v8151, 0.0
  %v8421 = vmax.f32 %v8153, 0.0
  %v8422 = vmax.f32 %v8155, 0.0
  %v8423 = vmax.f32 %v8159, 0.0
  %v8424 = vmax.f32 %v8161, 0.0
  %v8425 = vmax.f32 %v8163, 0.0
  %v8426 = vmax.f32 %v8165, 0.0
  %v8427 = vmax.f32 %v8169, 0.0
  %v8428 = vmax.f32 %v8171, 0.0
  %v8429 = vmax.f32 %v8173, 0.0
  %v8430 = vmax.f32 %v8175, 0.0
  %v8431 = vmax.f32 %v8179, 0.0
  %v8432 = vmax.f32 %v8181, 0.0
  %v8433 = vmax.f32 %v8183, 0.0
  %v8434 = vmax.f32 %v8185, 0.0
  %v8435 = vmax.f32 %v8189, 0.0
  %v8436 = vmax.f32 %v8191, 0.0
  %v8437 = vmax.f32 %v8193, 0.0
  %v8438 = vmax.f32 %v8195, 0.0
  %v8439 = vmax.f32 %v8199, 0.0
  %v8440 = vmax.f32 %v8201, 0.0
  %v8441 = vmax.f32 %v8203, 0.0
  %v8442 = vmax.f32 %v8205, 0.0
  %v8443 = vmax.f32 %v8209, 0.0
  %v8444 = vmax.f32 %v8211, 0.0
  %v8445 = vmax.f32 %v8213, 0.0
  %v8446 = vmax.f32 %v8215, 0.0
  %v8447 = vmax.f32 %v8219, 0.0
  %v8448 = vmax.f32 %v8221, 0.0
  %v8449 = vmax.f32 %v8223, 0.0
  %v8450 = vmax.f32 %v8225, 0.0
  %v8451 = vmax.f32 %v8229, 0.0
  %v8452 = vmax.f32 %v8231, 0.0
  %v8453 = vmax.f32 %v8233, 0.0
  %v8454 = vmax.f32 %v8235, 0.0
  %v8455 = vmax.f32 %v8239, 0.0
  %v8456 = vmax.f32 %v8241, 0.0
  %v8457 = vmax.f32 %v8243, 0.0
  %v8458 = vmax.f32 %v8245, 0.0
  %v8459 = vmax.f32 %v8249, 0.0
  %v8460 = vmax.f32 %v8251, 0.0
  %v8461 = vmax.f32 %v8253, 0.0
  %v8462 = vmax.f32 %v8255, 0.0
  %v8463 = vmax.f32 %v8259, 0.0
  %v8464 = vmax.f32 %v8261, 0.0
  %v8465 = vmax.f32 %v8263, 0.0
  %v8466 = vmax.f32 %v8265, 0.0
  %v8467 = vmax.f32 %v8269, 0.0
  %v8468 = vmax.f32 %v8271, 0.0
  %v8469 = vmax.f32 %v8273, 0.0
  %v8470 = vmax.f32 %v8275, 0.0
  %v8471 = vmax.f32 %v8279, 0.0
  %v8472 = vmax.f32 %v8281, 0.0
  %v8473 = vmax.f32 %v8283, 0.0
  %v8474 = vmax.f32 %v8285, 0.0
  %v8475 = vmax.f32 %v8289, 0.0
  %v8476 = vmax.f32 %v8291, 0.0
  %v8477 = vmax.f32 %v8293, 0.0
  %v8478 = vmax.f32 %v8295, 0.0
  %v8479 = vmax.f32 %v8299, 0.0
  %v8480 = vmax.f32 %v8301, 0.0
  %v8481 = vmax.f32 %v8303, 0.0
  %v8482 = vmax.f32 %v8305, 0.0
  %v8483 = vmax.f32 %v8309, 0.0
  %v8484 = vmax.f32 %v8311, 0.0
  %v8485 = vmax.f32 %v8313, 0.0
  %v8486 = vmax.f32 %v8315, 0.0
  %v8487 = vmax.f32 %v8319, 0.0
  %v8488 = vmax.f32 %v8321, 0.0
  %v8489 = vmax.f32 %v8323, 0.0
  %v8490 = vmax.f32 %v8325, 0.0
  %v8491 = vmax.f32 %v8329, 0.0
  %v8492 = vmax.f32 %v8331, 0.0
  %v8493 = vmax.f32 %v8333, 0.0
  %v8494 = vmax.f32 %v8335, 0.0
  %v8495 = vmax.f32 %v8339, 0.0
  %v8496 = vmax.f32 %v8341, 0.0
  %v8497 = vmax.f32 %v8343, 0.0
  %v8498 = vmax.f32 %v8345, 0.0
  %v8499 = vmax.f32 %v8349, 0.0
  %v8500 = vmax.f32 %v8351, 0.0
  %v8501 = vmax.f32 %v8353, 0.0
  %v8502 = vmax.f32 %v8355, 0.0
  %v8503 = vmax.f32 %v8359, 0.0
  %v8504 = vmax.f32 %v8361, 0.0
  %v8505 = vmax.f32 %v8363, 0.0
  %v8506 = vmax.f32 %v8365, 0.0
  %v8507 = vmax.f32 %v8369, 0.0
  %v8508 = vmax.f32 %v8371, 0.0
  %v8509 = vmax.f32 %v8373, 0.0
  %v8510 = vmax.f32 %v8375, 0.0
  %v8511 = vmax.f32 %v8379, 0.0
  %v8512 = vmax.f32 %v8381, 0.0
  %v8513 = vmax.f32 %v8383, 0.0
  %v8514 = vmax.f32 %v8385, 0.0
  %v8515 = vpack.c.bf16 %v8389, %v8387
  %v8516 = vpack.c.bf16 %v8390, %v8388
  %v8517 = vpack.c.bf16 %v8393, %v8391
  %v8518 = vpack.c.bf16 %v8394, %v8392
  %v8519 = vpack.c.bf16 %v8397, %v8395
  %v8520 = vpack.c.bf16 %v8398, %v8396
  %v8521 = vpack.c.bf16 %v8401, %v8399
  %v8522 = vpack.c.bf16 %v8402, %v8400
  %v8523 = vpack.c.bf16 %v8405, %v8403
  %v8524 = vpack.c.bf16 %v8406, %v8404
  %v8525 = vpack.c.bf16 %v8409, %v8407
  %v8526 = vpack.c.bf16 %v8410, %v8408
  %v8527 = vpack.c.bf16 %v8413, %v8411
  %v8528 = vpack.c.bf16 %v8414, %v8412
  %v8529 = vpack.c.bf16 %v8417, %v8415
  %v8530 = vpack.c.bf16 %v8418, %v8416
  %v8531 = vpack.c.bf16 %v8421, %v8419
  %v8532 = vpack.c.bf16 %v8422, %v8420
  %v8533 = vpack.c.bf16 %v8425, %v8423
  %v8534 = vpack.c.bf16 %v8426, %v8424
  %v8535 = vpack.c.bf16 %v8429, %v8427
  %v8536 = vpack.c.bf16 %v8430, %v8428
  %v8537 = vpack.c.bf16 %v8433, %v8431
  %v8538 = vpack.c.bf16 %v8434, %v8432
  %v8539 = vpack.c.bf16 %v8437, %v8435
  %v8540 = vpack.c.bf16 %v8438, %v8436
  %v8541 = vpack.c.bf16 %v8441, %v8439
  %v8542 = vpack.c.bf16 %v8442, %v8440
  %v8543 = vpack.c.bf16 %v8445, %v8443
  %v8544 = vpack.c.bf16 %v8446, %v8444
  %v8545 = vpack.c.bf16 %v8449, %v8447
  %v8546 = vpack.c.bf16 %v8450, %v8448
  %v8547 = vpack.c.bf16 %v8453, %v8451
  %v8548 = vpack.c.bf16 %v8454, %v8452
  %v8549 = vpack.c.bf16 %v8457, %v8455
  %v8550 = vpack.c.bf16 %v8458, %v8456
  %v8551 = vpack.c.bf16 %v8461, %v8459
  %v8552 = vpack.c.bf16 %v8462, %v8460
  %v8553 = vpack.c.bf16 %v8465, %v8463
  %v8554 = vpack.c.bf16 %v8466, %v8464
  %v8555 = vpack.c.bf16 %v8469, %v8467
  %v8556 = vpack.c.bf16 %v8470, %v8468
  %v8557 = vpack.c.bf16 %v8473, %v8471
  %v8558 = vpack.c.bf16 %v8474, %v8472
  %v8559 = vpack.c.bf16 %v8477, %v8475
  %v8560 = vpack.c.bf16 %v8478, %v8476
  %v8561 = vpack.c.bf16 %v8481, %v8479
  %v8562 = vpack.c.bf16 %v8482, %v8480
  %v8563 = vpack.c.bf16 %v8485, %v8483
  %v8564 = vpack.c.bf16 %v8486, %v8484
  %v8565 = vpack.c.bf16 %v8489, %v8487
  %v8566 = vpack.c.bf16 %v8490, %v8488
  %v8567 = vpack.c.bf16 %v8493, %v8491
  %v8568 = vpack.c.bf16 %v8494, %v8492
  %v8569 = vpack.c.bf16 %v8497, %v8495
  %v8570 = vpack.c.bf16 %v8498, %v8496
  %v8571 = vpack.c.bf16 %v8501, %v8499
  %v8572 = vpack.c.bf16 %v8502, %v8500
  %v8573 = vpack.c.bf16 %v8505, %v8503
  %v8574 = vpack.c.bf16 %v8506, %v8504
  %v8575 = vpack.c.bf16 %v8509, %v8507
  %v8576 = vpack.c.bf16 %v8510, %v8508
  %v8577 = vpack.c.bf16 %v8513, %v8511
  %v8578 = vpack.c.bf16 %v8514, %v8512
  %v8643 = vunpack.c.l.b16 %v8515
  %v8644 = vunpack.c.l.b16 %v8516
  %v8645 = vunpack.c.h.b16 %v8515
  %v8646 = vunpack.c.h.b16 %v8516
  %v8647 = vunpack.c.l.b16 %v8517
  %v8648 = vunpack.c.l.b16 %v8518
  %v8649 = vunpack.c.h.b16 %v8517
  %v8650 = vunpack.c.h.b16 %v8518
  %v8651 = vunpack.c.l.b16 %v8519
  %v8652 = vunpack.c.l.b16 %v8520
  %v8653 = vunpack.c.h.b16 %v8519
  %v8654 = vunpack.c.h.b16 %v8520
  %v8655 = vunpack.c.l.b16 %v8521
  %v8656 = vunpack.c.l.b16 %v8522
  %v8657 = vunpack.c.h.b16 %v8521
  %v8658 = vunpack.c.h.b16 %v8522
  %v8659 = vunpack.c.l.b16 %v8523
  %v8660 = vunpack.c.l.b16 %v8524
  %v8661 = vunpack.c.h.b16 %v8523
  %v8662 = vunpack.c.h.b16 %v8524
  %v8663 = vunpack.c.l.b16 %v8525
  %v8664 = vunpack.c.l.b16 %v8526
  %v8665 = vunpack.c.h.b16 %v8525
  %v8666 = vunpack.c.h.b16 %v8526
  %v8667 = vunpack.c.l.b16 %v8527
  %v8668 = vunpack.c.l.b16 %v8528
  %v8669 = vunpack.c.h.b16 %v8527
  %v8670 = vunpack.c.h.b16 %v8528
  %v8671 = vunpack.c.l.b16 %v8529
  %v8672 = vunpack.c.l.b16 %v8530
  %v8673 = vunpack.c.h.b16 %v8529
  %v8674 = vunpack.c.h.b16 %v8530
  %v8675 = vunpack.c.l.b16 %v8531
  %v8676 = vunpack.c.l.b16 %v8532
  %v8677 = vunpack.c.h.b16 %v8531
  %v8678 = vunpack.c.h.b16 %v8532
  %v8679 = vunpack.c.l.b16 %v8533
  %v8680 = vunpack.c.l.b16 %v8534
  %v8681 = vunpack.c.h.b16 %v8533
  %v8682 = vunpack.c.h.b16 %v8534
  %v8683 = vunpack.c.l.b16 %v8535
  %v8684 = vunpack.c.l.b16 %v8536
  %v8685 = vunpack.c.h.b16 %v8535
  %v8686 = vunpack.c.h.b16 %v8536
  %v8687 = vunpack.c.l.b16 %v8537
  %v8688 = vunpack.c.l.b16 %v8538
  %v8689 = vunpack.c.h.b16 %v8537
  %v8690 = vunpack.c.h.b16 %v8538
  %v8691 = vunpack.c.l.b16 %v8539
  %v8692 = vunpack.c.l.b16 %v8540
  %v8693 = vunpack.c.h.b16 %v8539
  %v8694 = vunpack.c.h.b16 %v8540
  %v8695 = vunpack.c.l.b16 %v8541
  %v8696 = vunpack.c.l.b16 %v8542
  %v8697 = vunpack.c.h.b16 %v8541
  %v8698 = vunpack.c.h.b16 %v8542
  %v8699 = vunpack.c.l.b16 %v8543
  %v8700 = vunpack.c.l.b16 %v8544
  %v8701 = vunpack.c.h.b16 %v8543
  %v8702 = vunpack.c.h.b16 %v8544
  %v8703 = vunpack.c.l.b16 %v8545
  %v8704 = vunpack.c.l.b16 %v8546
  %v8705 = vunpack.c.h.b16 %v8545
  %v8706 = vunpack.c.h.b16 %v8546
  %v8707 = vunpack.c.l.b16 %v8547
  %v8708 = vunpack.c.l.b16 %v8548
  %v8709 = vunpack.c.h.b16 %v8547
  %v8710 = vunpack.c.h.b16 %v8548
  %v8711 = vunpack.c.l.b16 %v8549
  %v8712 = vunpack.c.l.b16 %v8550
  %v8713 = vunpack.c.h.b16 %v8549
  %v8714 = vunpack.c.h.b16 %v8550
  %v8715 = vunpack.c.l.b16 %v8551
  %v8716 = vunpack.c.l.b16 %v8552
  %v8717 = vunpack.c.h.b16 %v8551
  %v8718 = vunpack.c.h.b16 %v8552
  %v8719 = vunpack.c.l.b16 %v8553
  %v8720 = vunpack.c.l.b16 %v8554
  %v8721 = vunpack.c.h.b16 %v8553
  %v8722 = vunpack.c.h.b16 %v8554
  %v8723 = vunpack.c.l.b16 %v8555
  %v8724 = vunpack.c.l.b16 %v8556
  %v8725 = vunpack.c.h.b16 %v8555
  %v8726 = vunpack.c.h.b16 %v8556
  %v8727 = vunpack.c.l.b16 %v8557
  %v8728 = vunpack.c.l.b16 %v8558
  %v8729 = vunpack.c.h.b16 %v8557
  %v8730 = vunpack.c.h.b16 %v8558
  %v8731 = vunpack.c.l.b16 %v8559
  %v8732 = vunpack.c.l.b16 %v8560
  %v8733 = vunpack.c.h.b16 %v8559
  %v8734 = vunpack.c.h.b16 %v8560
  %v8735 = vunpack.c.l.b16 %v8561
  %v8736 = vunpack.c.l.b16 %v8562
  %v8737 = vunpack.c.h.b16 %v8561
  %v8738 = vunpack.c.h.b16 %v8562
  %v8739 = vunpack.c.l.b16 %v8563
  %v8740 = vunpack.c.l.b16 %v8564
  %v8741 = vunpack.c.h.b16 %v8563
  %v8742 = vunpack.c.h.b16 %v8564
  %v8743 = vunpack.c.l.b16 %v8565
  %v8744 = vunpack.c.l.b16 %v8566
  %v8745 = vunpack.c.h.b16 %v8565
  %v8746 = vunpack.c.h.b16 %v8566
  %v8747 = vunpack.c.l.b16 %v8567
  %v8748 = vunpack.c.l.b16 %v8568
  %v8749 = vunpack.c.h.b16 %v8567
  %v8750 = vunpack.c.h.b16 %v8568
  %v8751 = vunpack.c.l.b16 %v8569
  %v8752 = vunpack.c.l.b16 %v8570
  %v8753 = vunpack.c.h.b16 %v8569
  %v8754 = vunpack.c.h.b16 %v8570
  %v8755 = vunpack.c.l.b16 %v8571
  %v8756 = vunpack.c.l.b16 %v8572
  %v8757 = vunpack.c.h.b16 %v8571
  %v8758 = vunpack.c.h.b16 %v8572
  %v8759 = vunpack.c.l.b16 %v8573
  %v8760 = vunpack.c.l.b16 %v8574
  %v8761 = vunpack.c.h.b16 %v8573
  %v8762 = vunpack.c.h.b16 %v8574
  %v8763 = vunpack.c.l.b16 %v8575
  %v8764 = vunpack.c.l.b16 %v8576
  %v8765 = vunpack.c.h.b16 %v8575
  %v8766 = vunpack.c.h.b16 %v8576
  %v8767 = vunpack.c.l.b16 %v8577
  %v8768 = vunpack.c.l.b16 %v8578
  %v8769 = vunpack.c.h.b16 %v8577
  %v8770 = vunpack.c.h.b16 %v8578
  %v8771 = vpack.c.b16 %v8644, %v8643
  %v8772 = vpack.c.b16 %v8646, %v8645
  %v8773 = vpack.c.b16 %v8648, %v8647
  %v8774 = vpack.c.b16 %v8650, %v8649
  %v8775 = vpack.c.b16 %v8652, %v8651
  %v8776 = vpack.c.b16 %v8654, %v8653
  %v8777 = vpack.c.b16 %v8656, %v8655
  %v8778 = vpack.c.b16 %v8658, %v8657
  %v8779 = vpack.c.b16 %v8660, %v8659
  %v8780 = vpack.c.b16 %v8662, %v8661
  %v8781 = vpack.c.b16 %v8664, %v8663
  %v8782 = vpack.c.b16 %v8666, %v8665
  %v8783 = vpack.c.b16 %v8668, %v8667
  %v8784 = vpack.c.b16 %v8670, %v8669
  %v8785 = vpack.c.b16 %v8672, %v8671
  %v8786 = vpack.c.b16 %v8674, %v8673
  %v8787 = vpack.c.b16 %v8676, %v8675
  %v8788 = vpack.c.b16 %v8678, %v8677
  %v8789 = vpack.c.b16 %v8680, %v8679
  %v8790 = vpack.c.b16 %v8682, %v8681
  %v8791 = vpack.c.b16 %v8684, %v8683
  %v8792 = vpack.c.b16 %v8686, %v8685
  %v8793 = vpack.c.b16 %v8688, %v8687
  %v8794 = vpack.c.b16 %v8690, %v8689
  %v8795 = vpack.c.b16 %v8692, %v8691
  %v8796 = vpack.c.b16 %v8694, %v8693
  %v8797 = vpack.c.b16 %v8696, %v8695
  %v8798 = vpack.c.b16 %v8698, %v8697
  %v8799 = vpack.c.b16 %v8700, %v8699
  %v8800 = vpack.c.b16 %v8702, %v8701
  %v8801 = vpack.c.b16 %v8704, %v8703
  %v8802 = vpack.c.b16 %v8706, %v8705
  %v8803 = vpack.c.b16 %v8708, %v8707
  %v8804 = vpack.c.b16 %v8710, %v8709
  %v8805 = vpack.c.b16 %v8712, %v8711
  %v8806 = vpack.c.b16 %v8714, %v8713
  %v8807 = vpack.c.b16 %v8716, %v8715
  %v8808 = vpack.c.b16 %v8718, %v8717
  %v8809 = vpack.c.b16 %v8720, %v8719
  %v8810 = vpack.c.b16 %v8722, %v8721
  %v8811 = vpack.c.b16 %v8724, %v8723
  %v8812 = vpack.c.b16 %v8726, %v8725
  %v8813 = vpack.c.b16 %v8728, %v8727
  %v8814 = vpack.c.b16 %v8730, %v8729
  %v8815 = vpack.c.b16 %v8732, %v8731
  %v8816 = vpack.c.b16 %v8734, %v8733
  %v8817 = vpack.c.b16 %v8736, %v8735
  %v8818 = vpack.c.b16 %v8738, %v8737
  %v8819 = vpack.c.b16 %v8740, %v8739
  %v8820 = vpack.c.b16 %v8742, %v8741
  %v8821 = vpack.c.b16 %v8744, %v8743
  %v8822 = vpack.c.b16 %v8746, %v8745
  %v8823 = vpack.c.b16 %v8748, %v8747
  %v8824 = vpack.c.b16 %v8750, %v8749
  %v8825 = vpack.c.b16 %v8752, %v8751
  %v8826 = vpack.c.b16 %v8754, %v8753
  %v8827 = vpack.c.b16 %v8756, %v8755
  %v8828 = vpack.c.b16 %v8758, %v8757
  %v8829 = vpack.c.b16 %v8760, %v8759
  %v8830 = vpack.c.b16 %v8762, %v8761
  %v8831 = vpack.c.b16 %v8764, %v8763
  %v8832 = vpack.c.b16 %v8766, %v8765
  %v8833 = vpack.c.b16 %v8768, %v8767
  %v8834 = vpack.c.b16 %v8770, %v8769
  %8899 = vst [vmem:[%s3] sm:$0xff] %v8771
  %8900 = vst [vmem:[%s3 + $0x8] sm:$0xff] %v8772
  %8901 = vst [vmem:[%s3 + $0x10] sm:$0xff] %v8773
  %8902 = vst [vmem:[%s3 + $0x18] sm:$0xff] %v8774
  %8903 = vst [vmem:[%s3 + $0x20] sm:$0xff] %v8775
  %8904 = vst [vmem:[%s3 + $0x28] sm:$0xff] %v8776
  %8905 = vst [vmem:[%s3 + $0x30] sm:$0xff] %v8777
  %8906 = vst [vmem:[%s3 + $0x38] sm:$0xff] %v8778
  %8907 = vst [vmem:[%s3 + $0x40] sm:$0xff] %v8779
  %8908 = vst [vmem:[%s3 + $0x48] sm:$0xff] %v8780
  %8909 = vst [vmem:[%s3 + $0x50] sm:$0xff] %v8781
  %8910 = vst [vmem:[%s3 + $0x58] sm:$0xff] %v8782
  %8911 = vst [vmem:[%s3 + $0x60] sm:$0xff] %v8783
  %8912 = vst [vmem:[%s3 + $0x68] sm:$0xff] %v8784
  %8913 = vst [vmem:[%s3 + $0x70] sm:$0xff] %v8785
  %8914 = vst [vmem:[%s3 + $0x78] sm:$0xff] %v8786
  %8915 = vst [vmem:[%s3 + $0x80] sm:$0xff] %v8787
  %8916 = vst [vmem:[%s3 + $0x88] sm:$0xff] %v8788
  %8917 = vst [vmem:[%s3 + $0x90] sm:$0xff] %v8789
  %8918 = vst [vmem:[%s3 + $0x98] sm:$0xff] %v8790
  %8919 = vst [vmem:[%s3 + $0xa0] sm:$0xff] %v8791
  %8920 = vst [vmem:[%s3 + $0xa8] sm:$0xff] %v8792
  %8921 = vst [vmem:[%s3 + $0xb0] sm:$0xff] %v8793
  %8922 = vst [vmem:[%s3 + $0xb8] sm:$0xff] %v8794
  %8923 = vst [vmem:[%s3 + $0xc0] sm:$0xff] %v8795
  %8924 = vst [vmem:[%s3 + $0xc8] sm:$0xff] %v8796
  %8925 = vst [vmem:[%s3 + $0xd0] sm:$0xff] %v8797
  %8926 = vst [vmem:[%s3 + $0xd8] sm:$0xff] %v8798
  %8927 = vst [vmem:[%s3 + $0xe0] sm:$0xff] %v8799
  %8928 = vst [vmem:[%s3 + $0xe8] sm:$0xff] %v8800
  %8929 = vst [vmem:[%s3 + $0xf0] sm:$0xff] %v8801
  %8930 = vst [vmem:[%s3 + $0xf8] sm:$0xff] %v8802
  %8931 = vst [vmem:[%s3 + $0x100] sm:$0xff] %v8803
  %8932 = vst [vmem:[%s3 + $0x108] sm:$0xff] %v8804
  %8933 = vst [vmem:[%s3 + $0x110] sm:$0xff] %v8805
  %8934 = vst [vmem:[%s3 + $0x118] sm:$0xff] %v8806
  %8935 = vst [vmem:[%s3 + $0x120] sm:$0xff] %v8807
  %8936 = vst [vmem:[%s3 + $0x128] sm:$0xff] %v8808
  %8937 = vst [vmem:[%s3 + $0x130] sm:$0xff] %v8809
  %8938 = vst [vmem:[%s3 + $0x138] sm:$0xff] %v8810
  %8939 = vst [vmem:[%s3 + $0x140] sm:$0xff] %v8811
  %8940 = vst [vmem:[%s3 + $0x148] sm:$0xff] %v8812
  %8941 = vst [vmem:[%s3 + $0x150] sm:$0xff] %v8813
  %8942 = vst [vmem:[%s3 + $0x158] sm:$0xff] %v8814
  %8943 = vst [vmem:[%s3 + $0x160] sm:$0xff] %v8815
  %8944 = vst [vmem:[%s3 + $0x168] sm:$0xff] %v8816
  %8945 = vst [vmem:[%s3 + $0x170] sm:$0xff] %v8817
  %8946 = vst [vmem:[%s3 + $0x178] sm:$0xff] %v8818
  %8947 = vst [vmem:[%s3 + $0x180] sm:$0xff] %v8819
  %8948 = vst [vmem:[%s3 + $0x188] sm:$0xff] %v8820
  %8949 = vst [vmem:[%s3 + $0x190] sm:$0xff] %v8821
  %8950 = vst [vmem:[%s3 + $0x198] sm:$0xff] %v8822
  %8951 = vst [vmem:[%s3 + $0x1a0] sm:$0xff] %v8823
  %8952 = vst [vmem:[%s3 + $0x1a8] sm:$0xff] %v8824
  %8953 = vst [vmem:[%s3 + $0x1b0] sm:$0xff] %v8825
  %8954 = vst [vmem:[%s3 + $0x1b8] sm:$0xff] %v8826
  %8955 = vst [vmem:[%s3 + $0x1c0] sm:$0xff] %v8827
  %8956 = vst [vmem:[%s3 + $0x1c8] sm:$0xff] %v8828
  %8957 = vst [vmem:[%s3 + $0x1d0] sm:$0xff] %v8829
  %8958 = vst [vmem:[%s3 + $0x1d8] sm:$0xff] %v8830
  %8959 = vst [vmem:[%s3 + $0x1e0] sm:$0xff] %v8831
  %8960 = vst [vmem:[%s3 + $0x1e8] sm:$0xff] %v8832
  %8961 = vst [vmem:[%s3 + $0x1f0] sm:$0xff] %v8833
  %8962 = vst [vmem:[%s3 + $0x1f8] sm:$0xff] %v8834
  // Predicated region
  $region14: #{dpc_forward.8} parent=0 // pred_check
    _
  $region15: #{dpc_forward.8} parent=0 // pred_check_branch
    %8964 = sbr.rel (0) target = $region17
  $region16: #{dpc_forward.8} parent=0 // pred_region
    _
  $region17: #{dpc_forward.8} parent=0 // pred_fallthru
    _
  // Predicated region
  $region18: #{dpc_forward.8} parent=0 // pred_check
    _
  $region19: #{dpc_forward.8} parent=0 // pred_check_branch
    %8966 = sbr.rel (0) target = $region21
  $region20: #{dpc_forward.8} parent=0 // pred_region
    _
  $region21: #{dpc_forward.8} parent=0 // pred_fallthru
    _

</llo_original>
